<compile_context>
chip_gen: v6e
topology: v6e:2x2x1
jax: 0.10.0
libtpu: 0.0.40
codegen_flags: <defaults>
</compile_context>

<pallas_src>
import functools

import jax
import jax.numpy as jnp
from jax.experimental import pallas as pl
from jax.experimental.pallas import tpu as pltpu

EPS = 1e-5
# activation slopes per layer: conv0 = ReLU, conv1..4 = LeakyReLU(0.01)
SLOPES = (0.0, 0.01, 0.01, 0.01, 0.01)


def _round_up(x, m):
    return ((x + m - 1) // m) * m


# ---------------------------------------------------------------------------
# Fused kernel: tiled matmul (bf16 in, f32 acc) + bias + (Leaky)ReLU
#               + per-row-tile BatchNorm partial statistics.
# ---------------------------------------------------------------------------
def _conv_fused_kernel(x_ref, w_ref, b_ref, o_ref, stats_ref, acc_ref, *,
                       slope, m_actual, tm):
    k = pl.program_id(2)

    @pl.when(k == 0)
    def _():
        acc_ref[...] = jnp.zeros_like(acc_ref)

    acc_ref[...] += jnp.dot(x_ref[...], w_ref[...],
                            preferred_element_type=jnp.float32)

    @pl.when(k == pl.num_programs(2) - 1)
    def _():
        y = acc_ref[...] + b_ref[...]                 # bias broadcast (1,tn)
        if slope == 0.0:
            y = jnp.maximum(y, 0.0)                   # ReLU
        else:
            y = jnp.where(y > 0, y, slope * y)        # LeakyReLU(slope)
        o_ref[...] = y.astype(o_ref.dtype)

        # BatchNorm partial stats for this (i, j) tile (mask padded rows).
        if m_actual % tm != 0:
            rows = (jax.lax.broadcasted_iota(jnp.int32, y.shape, 0)
                    + pl.program_id(0) * tm)
            y = jnp.where(rows < m_actual, y, 0.0)
        s = jnp.sum(y, axis=0, keepdims=True)         # (1, tn)
        sq = jnp.sum(y * y, axis=0, keepdims=True)    # (1, tn)
        zeros6 = jnp.zeros((6, s.shape[1]), jnp.float32)
        # full-block (8, tn) store: row 0 = sum, row 1 = sum of squares.
        stats_ref[...] = jnp.concatenate([s, sq, zeros6], axis=0)


def _pick_tiles(M, K, N):
    """Right-size (tm, tk, tn) per layer; avoid padding where shapes allow."""
    if M <= 256:
        tm = _round_up(M, 8)
    elif M % 256 == 0:
        tm = 256
    else:
        tm = 128
    if K <= 512:
        tk = _round_up(K, 128)
    else:
        tk = next((t for t in (512, 256, 128) if K % t == 0), 128)
    if N <= 256:
        tn = _round_up(N, 8)
    elif N % 256 == 0:
        tn = 256
    else:
        tn = 128
    # Multi-core chips: if only one M tile, split N so >=2 parallel tiles.
    if (M + tm - 1) // tm == 1 and tn > 128 and N % 128 == 0:
        tn = 128
    return tm, tk, tn


def matmul_bias_act_bnstats(x_bf16, w_bf16, b_f32, slope):
    """act(x @ w + b) plus per-channel batch mean / biased variance.

    x:(M,K) bf16, w:(K,N) bf16, b:(N,) f32 -> (y (M,N) f32, mean (N,), var (N,)).
    """
    M, K = x_bf16.shape
    _, N = w_bf16.shape
    tm, tk, tn = _pick_tiles(M, K, N)
    Mp, Kp, Np = _round_up(M, tm), _round_up(K, tk), _round_up(N, tn)
    if (Mp, Kp) != (M, K):
        x_bf16 = jnp.pad(x_bf16, ((0, Mp - M), (0, Kp - K)))
    if (Kp, Np) != (K, N):
        w_bf16 = jnp.pad(w_bf16, ((0, Kp - K), (0, Np - N)))
    b2 = (jnp.pad(b_f32, (0, Np - N)) if Np != N else b_f32).reshape(1, Np)

    gi, gj, gk = Mp // tm, Np // tn, Kp // tk
    kernel = functools.partial(_conv_fused_kernel,
                               slope=slope, m_actual=M, tm=tm)
    y, stats = pl.pallas_call(
        kernel,
        out_shape=(jax.ShapeDtypeStruct((Mp, Np), jnp.float32),
                   jax.ShapeDtypeStruct((gi * 8, Np), jnp.float32)),
        grid_spec=pltpu.PrefetchScalarGridSpec(
            num_scalar_prefetch=0,
            grid=(gi, gj, gk),
            in_specs=[
                pl.BlockSpec((tm, tk), lambda i, j, k: (i, k)),
                pl.BlockSpec((tk, tn), lambda i, j, k: (k, j)),
                pl.BlockSpec((1, tn), lambda i, j, k: (0, j)),
            ],
            out_specs=(
                pl.BlockSpec((tm, tn), lambda i, j, k: (i, j)),
                pl.BlockSpec((8, tn), lambda i, j, k: (i, j)),
            ),
            scratch_shapes=[pltpu.VMEM((tm, tn), jnp.float32)],
        ),
        compiler_params=pltpu.CompilerParams(
            dimension_semantics=("parallel", "parallel", "arbitrary")),
    )(x_bf16, w_bf16, b2)

    # Finish the tiny BN reduction in JAX (per M-tile rows: 0 = sum, 1 = sumsq).
    stats = stats.reshape(gi, 8, Np)
    sums = jnp.sum(stats[:, 0, :N], axis=0)
    sqs = jnp.sum(stats[:, 1, :N], axis=0)
    mean = sums / M
    # TODO(synk): E[x^2]-E[x]^2 in f32 can cancel for large means; a shifted /
    # Welford accumulation would be more robust.  Clamp to >= 0 as a safeguard.
    var = jnp.maximum(sqs / M - mean * mean, 0.0)   # biased var (training BN)
    if (Mp, Np) != (M, N):
        y = y[:M, :N]
    return y, mean, var


# ---------------------------------------------------------------------------
# Glue: im2col for Conv2d(kernel=(4,4), stride=(2,2), padding=(1,1))
# ---------------------------------------------------------------------------
def im2col(x, kh=4, kw=4, sh=2, sw=2, ph=1, pw=1):
    """x: NHWC -> (N*Ho*Wo, kh*kw*C), flattened as (i*kw + j)*C + c."""
    # TODO(synk): at production batch sizes, avoid materializing this 16x
    # blow-up in HBM (DMA shifted row-strips inside the matmul via pl.ANY).
    N, H, W, C = x.shape
    xp = jnp.pad(x, ((0, 0), (ph, ph), (pw, pw), (0, 0)))
    Ho = (H + 2 * ph - kh) // sh + 1
    Wo = (W + 2 * pw - kw) // sw + 1
    patches = []
    for i in range(kh):
        for j in range(kw):
            patches.append(xp[:, i:i + sh * Ho:sh, j:j + sw * Wo:sw, :])
    p = jnp.stack(patches, axis=3)                 # (N, Ho, Wo, kh*kw, C)
    return p.reshape(N * Ho * Wo, kh * kw * C), Ho, Wo


def conv_bn_pallas(x_nhwc, p, slope):
    """One `conv_with_bn` block (before=False): BN(act(conv(x))).

    Returns (activated y (M, C_out) f32, bn_scale, bn_shift, out geometry).
    The BN affine is applied lazily by the caller (fused by XLA into the next
    layer's cast/pad/im2col) instead of a dedicated scale-shift pass.
    """
    w, b = p["w"], p["b"]
    gamma, beta = p["gamma"], p["beta"]
    cout, cin, kh, kw = w.shape
    n = x_nhwc.shape[0]
    # Pad channels so K = kh*kw*C_in is a multiple of 128; done on the small
    # pre-im2col tensor (layer 0: C_in 3 -> 8), not on the patch matrix.
    cin_p = _round_up(cin, 8)
    if cin_p != cin:
        x_nhwc = jnp.pad(x_nhwc, ((0, 0), (0, 0), (0, 0), (0, cin_p - cin)))
        w = jnp.pad(w, ((0, 0), (0, cin_p - cin), (0, 0), (0, 0)))
    patches, Ho, Wo = im2col(x_nhwc.astype(jnp.bfloat16), kh, kw)
    wm = jnp.transpose(w, (2, 3, 1, 0)).reshape(kh * kw * cin_p, cout)
    y, mean, var = matmul_bias_act_bnstats(patches, wm.astype(jnp.bfloat16),
                                           b, slope)
    scale = gamma * jax.lax.rsqrt(var + EPS)
    shift = beta - mean * scale
    return y, scale, shift, (n, Ho, Wo, cout)


def final_conv_bn_pool(x_nhwc, p, slope):
    """conv4 (C_out=1) + LeakyReLU + BatchNorm + full-spatial avg-pool.

    C_out == 1 makes the MXU path 127/128 padding waste, so this last tiny
    layer is a fused plain-JAX matvec.
    """
    w, b = p["w"], p["b"]
    gamma, beta = p["gamma"], p["beta"]
    cout, cin, kh, kw = w.shape
    n = x_nhwc.shape[0]
    patches, Ho, Wo = im2col(x_nhwc, kh, kw)                 # (M, K) f32
    wv = jnp.transpose(w, (2, 3, 1, 0)).reshape(kh * kw * cin, cout)
    y = patches @ wv + b                                     # (M, 1)
    y = jnp.where(y > 0, y, slope * y)                       # LeakyReLU
    mean = jnp.mean(y)
    var = jnp.maximum(jnp.mean(y * y) - mean * mean, 0.0)    # biased (training)
    scale = gamma[0] * jax.lax.rsqrt(var + EPS)
    shift = beta[0] - mean * scale
    # full-spatial avg-pool commutes with the BN affine: pool, then scale/shift
    pooled = jnp.mean(y.reshape(n, Ho * Wo), axis=1, keepdims=True)
    return scale * pooled + shift                            # (N, 1) == view(N,-1)


def init_params(key, input_channels=3):
    cfgs = [(input_channels, 64), (64, 128), (128, 256), (256, 512), (512, 1)]
    params = []
    for cin, cout in cfgs:
        key, kw_, kb_ = jax.random.split(key, 3)
        fan_in = cin * 16
        w = jax.random.normal(kw_, (cout, cin, 4, 4), jnp.float32) / jnp.sqrt(fan_in)
        b = jax.random.normal(kb_, (cout,), jnp.float32) * 0.01
        gamma = jnp.ones((cout,), jnp.float32)     # BatchNorm2d default init
        beta = jnp.zeros((cout,), jnp.float32)
        params.append({"w": w, "b": b, "gamma": gamma, "beta": beta})
    return params


@jax.jit
def discriminator_forward(params, x_nchw):
    x = jnp.transpose(x_nchw, (0, 2, 3, 1)).astype(jnp.float32)  # NCHW -> NHWC
    for p, slope in zip(params[:4], SLOPES[:4]):
        y, scale, shift, (n, ho, wo, c) = conv_bn_pallas(x, p, slope)
        # BN affine applied here; XLA fuses it with the next layer's im2col.
        x = (y * scale + shift).reshape(n, ho, wo, c)
    return final_conv_bn_pool(x, params[4], SLOPES[4])           # (N, 1)


if __name__ == "__main__":
    key = jax.random.PRNGKey(0)
    kp, kx = jax.random.split(key)
    params = init_params(kp, input_channels=3)
    # spatial 64 so that five stride-2 convs leave a 2x2 map to average-pool
    x = jax.random.normal(kx, (2, 3, 64, 64), jnp.float32)
    out = discriminator_forward(params, x)
    out = jax.block_until_ready(out)
    assert out.shape == (2, 1) and out.dtype == jnp.float32
    print("KERNEL_OK")
</pallas_src>

<mosaic_0001>
module attributes {stable_mosaic.version = 11 : i64} {
  func.func @_conv_fused_kernel(%arg0: i32, %arg1: i32, %arg2: i32, %arg3: memref<256x128xbf16, #tpu.memory_space<vmem>>, %arg4: memref<128x64xbf16, #tpu.memory_space<vmem>>, %arg5: memref<1x64xf32, #tpu.memory_space<vmem>>, %arg6: memref<256x64xf32, #tpu.memory_space<vmem>>, %arg7: memref<8x64xf32, #tpu.memory_space<vmem>>, %arg8: memref<256x64xf32, #tpu.memory_space<vmem>>) attributes {dimension_semantics = [#tpu.dimension_semantics<parallel>, #tpu.dimension_semantics<parallel>, #tpu.dimension_semantics<arbitrary>], iteration_bounds = array<i64: 8, 1, 1>, scalar_prefetch = 0 : i64, scratch_operands = 1 : i64, tpu.core_type = #tpu.core_type<tc>, window_params = [{transform_indices = @transform_0, window_bounds = array<i64: 256, 128>}, {transform_indices = @transform_1, window_bounds = array<i64: 128, 64>}, {transform_indices = @transform_2, window_bounds = array<i64: 1, 64>}, {transform_indices = @transform_3, window_bounds = array<i64: 256, 64>}, {transform_indices = @transform_4, window_bounds = array<i64: 8, 64>}]} {
    %c0_i32 = arith.constant 0 : i32
    %0 = arith.cmpi eq, %arg2, %c0_i32 : i32
    %1 = arith.extui %0 : i1 to i32
    %c0_i32_0 = arith.constant 0 : i32
    %2 = arith.cmpi ne, %1, %c0_i32_0 : i32
    scf.if %2 {
      %cst_10 = arith.constant 0.000000e+00 : f32
      %12 = vector.broadcast %cst_10 : f32 to vector<256x64xf32>
      %c0_11 = arith.constant 0 : index
      %c0_12 = arith.constant 0 : index
      %13 = vector.load %arg8[%c0_11, %c0_12] : memref<256x64xf32, #tpu.memory_space<vmem>>, vector<256x64xf32>
      tpu.vector_store %arg8[%c0_11, %c0_12], %12 {strides = array<i32>} : memref<256x64xf32, #tpu.memory_space<vmem>>, vector<256x64xf32>,
    } else {
    }
    %c0 = arith.constant 0 : index
    %c0_1 = arith.constant 0 : index
    %3 = vector.load %arg8[%c0, %c0_1] : memref<256x64xf32, #tpu.memory_space<vmem>>, vector<256x64xf32>
    %c0_2 = arith.constant 0 : index
    %c0_3 = arith.constant 0 : index
    %4 = vector.load %arg3[%c0_2, %c0_3] : memref<256x128xbf16, #tpu.memory_space<vmem>>, vector<256x128xbf16>
    %c0_4 = arith.constant 0 : index
    %c0_5 = arith.constant 0 : index
    %5 = vector.load %arg4[%c0_4, %c0_5] : memref<128x64xbf16, #tpu.memory_space<vmem>>, vector<128x64xbf16>
    %cst = arith.constant dense<0.000000e+00> : vector<256x64xf32>
    %6 = tpu.matmul %4, %5, %cst {dimension_numbers = #tpu.dot_dimension_numbers<[1], [0], [0], [1], [0, 0, 1, 1], [], []>} : vector<256x128xbf16>, vector<128x64xbf16>, vector<256x64xf32> -> vector<256x64xf32>
    %7 = arith.addf %3, %6 : vector<256x64xf32>
    %c0_6 = arith.constant 0 : index
    %c0_7 = arith.constant 0 : index
    %8 = vector.load %arg8[%c0_6, %c0_7] : memref<256x64xf32, #tpu.memory_space<vmem>>, vector<256x64xf32>
    tpu.vector_store %arg8[%c0_6, %c0_7], %7 {strides = array<i32>} : memref<256x64xf32, #tpu.memory_space<vmem>>, vector<256x64xf32>,
    %c0_i32_8 = arith.constant 0 : i32
    %9 = arith.cmpi eq, %arg2, %c0_i32_8 : i32
    %10 = arith.extui %9 : i1 to i32
    %c0_i32_9 = arith.constant 0 : i32
    %11 = arith.cmpi ne, %10, %c0_i32_9 : i32
    scf.if %11 {
      %c0_10 = arith.constant 0 : index
      %c0_11 = arith.constant 0 : index
      %12 = vector.load %arg8[%c0_10, %c0_11] : memref<256x64xf32, #tpu.memory_space<vmem>>, vector<256x64xf32>
      %c0_12 = arith.constant 0 : index
      %c0_13 = arith.constant 0 : index
      %13 = vector.load %arg5[%c0_12, %c0_13] : memref<1x64xf32, #tpu.memory_space<vmem>>, vector<1x64xf32>
      %14 = vector.broadcast %13 : vector<1x64xf32> to vector<256x64xf32>
      %15 = arith.addf %12, %14 : vector<256x64xf32>
      %cst_14 = arith.constant 0.000000e+00 : f32
      %16 = vector.broadcast %cst_14 : f32 to vector<256x64xf32>
      %17 = arith.maximumf %15, %16 : vector<256x64xf32>
      %c0_15 = arith.constant 0 : index
      %c0_16 = arith.constant 0 : index
      %18 = vector.load %arg6[%c0_15, %c0_16] : memref<256x64xf32, #tpu.memory_space<vmem>>, vector<256x64xf32>
      tpu.vector_store %arg6[%c0_15, %c0_16], %17 {strides = array<i32>} : memref<256x64xf32, #tpu.memory_space<vmem>>, vector<256x64xf32>,
      %cst_17 = arith.constant dense<0.000000e+00> : vector<64xf32>
      %19 = vector.multi_reduction <add>, %17, %cst_17 [0] : vector<256x64xf32> to vector<64xf32>
      %20 = vector.shape_cast %19 : vector<64xf32> to vector<1x64xf32>
      %21 = arith.mulf %17, %17 : vector<256x64xf32>
      %cst_18 = arith.constant dense<0.000000e+00> : vector<64xf32>
      %22 = vector.multi_reduction <add>, %21, %cst_18 [0] : vector<256x64xf32> to vector<64xf32>
      %23 = vector.shape_cast %22 : vector<64xf32> to vector<1x64xf32>
      %cst_19 = arith.constant 0.000000e+00 : f32
      %24 = vector.broadcast %cst_19 : f32 to vector<6x64xf32>
      %25 = tpu.concatenate %20, %23, %24 in 0 : vector<1x64xf32>, vector<1x64xf32>, vector<6x64xf32> -> vector<8x64xf32>
      %c0_20 = arith.constant 0 : index
      %c0_21 = arith.constant 0 : index
      %26 = vector.load %arg7[%c0_20, %c0_21] : memref<8x64xf32, #tpu.memory_space<vmem>>, vector<8x64xf32>
      tpu.vector_store %arg7[%c0_20, %c0_21], %25 {strides = array<i32>} : memref<8x64xf32, #tpu.memory_space<vmem>>, vector<8x64xf32>,
    } else {
    }
    return
  }
  func.func @transform_0(%arg0: i32, %arg1: i32, %arg2: i32) -> (i32, i32) {
    %c0_i32 = arith.constant 0 : i32
    return %arg0, %arg2 : i32, i32
  }
  func.func @transform_1(%arg0: i32, %arg1: i32, %arg2: i32) -> (i32, i32) {
    %c0_i32 = arith.constant 0 : i32
    return %arg2, %arg1 : i32, i32
  }
  func.func @transform_2(%arg0: i32, %arg1: i32, %arg2: i32) -> (i32, i32) {
    %c0_i32 = arith.constant 0 : i32
    %c0_i32_0 = arith.constant 0 : i32
    return %c0_i32, %arg1 : i32, i32
  }
  func.func @transform_3(%arg0: i32, %arg1: i32, %arg2: i32) -> (i32, i32) {
    %c0_i32 = arith.constant 0 : i32
    return %arg0, %arg1 : i32, i32
  }
  func.func @transform_4(%arg0: i32, %arg1: i32, %arg2: i32) -> (i32, i32) {
    %c0_i32 = arith.constant 0 : i32
    return %arg0, %arg1 : i32, i32
  }
}

module attributes {stable_mosaic.version = 11 : i64} {
  func.func @_conv_fused_kernel(%arg0: i32, %arg1: i32, %arg2: i32, %arg3: memref<256x512xbf16, #tpu.memory_space<vmem>>, %arg4: memref<512x128xbf16, #tpu.memory_space<vmem>>, %arg5: memref<1x128xf32, #tpu.memory_space<vmem>>, %arg6: memref<256x128xf32, #tpu.memory_space<vmem>>, %arg7: memref<8x128xf32, #tpu.memory_space<vmem>>, %arg8: memref<256x128xf32, #tpu.memory_space<vmem>>) attributes {dimension_semantics = [#tpu.dimension_semantics<parallel>, #tpu.dimension_semantics<parallel>, #tpu.dimension_semantics<arbitrary>], iteration_bounds = array<i64: 2, 1, 2>, scalar_prefetch = 0 : i64, scratch_operands = 1 : i64, tpu.core_type = #tpu.core_type<tc>, window_params = [{transform_indices = @transform_0, window_bounds = array<i64: 256, 512>}, {transform_indices = @transform_1, window_bounds = array<i64: 512, 128>}, {transform_indices = @transform_2, window_bounds = array<i64: 1, 128>}, {transform_indices = @transform_3, window_bounds = array<i64: 256, 128>}, {transform_indices = @transform_4, window_bounds = array<i64: 8, 128>}]} {
    %c0_i32 = arith.constant 0 : i32
    %0 = arith.cmpi eq, %arg2, %c0_i32 : i32
    %1 = arith.extui %0 : i1 to i32
    %c0_i32_0 = arith.constant 0 : i32
    %2 = arith.cmpi ne, %1, %c0_i32_0 : i32
    scf.if %2 {
      %cst_9 = arith.constant 0.000000e+00 : f32
      %12 = vector.broadcast %cst_9 : f32 to vector<256x128xf32>
      %c0_10 = arith.constant 0 : index
      %c0_11 = arith.constant 0 : index
      %13 = vector.load %arg8[%c0_10, %c0_11] : memref<256x128xf32, #tpu.memory_space<vmem>>, vector<256x128xf32>
      tpu.vector_store %arg8[%c0_10, %c0_11], %12 {strides = array<i32>} : memref<256x128xf32, #tpu.memory_space<vmem>>, vector<256x128xf32>,
    } else {
    }
    %c0 = arith.constant 0 : index
    %c0_1 = arith.constant 0 : index
    %3 = vector.load %arg8[%c0, %c0_1] : memref<256x128xf32, #tpu.memory_space<vmem>>, vector<256x128xf32>
    %c0_2 = arith.constant 0 : index
    %c0_3 = arith.constant 0 : index
    %4 = vector.load %arg3[%c0_2, %c0_3] : memref<256x512xbf16, #tpu.memory_space<vmem>>, vector<256x512xbf16>
    %c0_4 = arith.constant 0 : index
    %c0_5 = arith.constant 0 : index
    %5 = vector.load %arg4[%c0_4, %c0_5] : memref<512x128xbf16, #tpu.memory_space<vmem>>, vector<512x128xbf16>
    %cst = arith.constant dense<0.000000e+00> : vector<256x128xf32>
    %6 = tpu.matmul %4, %5, %cst {dimension_numbers = #tpu.dot_dimension_numbers<[1], [0], [0], [1], [0, 0, 1, 1], [], []>} : vector<256x512xbf16>, vector<512x128xbf16>, vector<256x128xf32> -> vector<256x128xf32>
    %7 = arith.addf %3, %6 : vector<256x128xf32>
    %c0_6 = arith.constant 0 : index
    %c0_7 = arith.constant 0 : index
    %8 = vector.load %arg8[%c0_6, %c0_7] : memref<256x128xf32, #tpu.memory_space<vmem>>, vector<256x128xf32>
    tpu.vector_store %arg8[%c0_6, %c0_7], %7 {strides = array<i32>} : memref<256x128xf32, #tpu.memory_space<vmem>>, vector<256x128xf32>,
    %c1_i32 = arith.constant 1 : i32
    %9 = arith.cmpi eq, %arg2, %c1_i32 : i32
    %10 = arith.extui %9 : i1 to i32
    %c0_i32_8 = arith.constant 0 : i32
    %11 = arith.cmpi ne, %10, %c0_i32_8 : i32
    scf.if %11 {
      %c0_9 = arith.constant 0 : index
      %c0_10 = arith.constant 0 : index
      %12 = vector.load %arg8[%c0_9, %c0_10] : memref<256x128xf32, #tpu.memory_space<vmem>>, vector<256x128xf32>
      %c0_11 = arith.constant 0 : index
      %c0_12 = arith.constant 0 : index
      %13 = vector.load %arg5[%c0_11, %c0_12] : memref<1x128xf32, #tpu.memory_space<vmem>>, vector<1x128xf32>
      %14 = vector.broadcast %13 : vector<1x128xf32> to vector<256x128xf32>
      %15 = arith.addf %12, %14 : vector<256x128xf32>
      %cst_13 = arith.constant 0.000000e+00 : f32
      %16 = vector.broadcast %cst_13 : f32 to vector<256x128xf32>
      %17 = arith.cmpf ogt, %15, %16 : vector<256x128xf32>
      %cst_14 = arith.constant 0.00999999977 : f32
      %18 = vector.broadcast %cst_14 : f32 to vector<256x128xf32>
      %19 = arith.mulf %18, %15 : vector<256x128xf32>
      %20 = arith.select %17, %15, %19 : vector<256x128xi1>, vector<256x128xf32>
      %c0_15 = arith.constant 0 : index
      %c0_16 = arith.constant 0 : index
      %21 = vector.load %arg6[%c0_15, %c0_16] : memref<256x128xf32, #tpu.memory_space<vmem>>, vector<256x128xf32>
      tpu.vector_store %arg6[%c0_15, %c0_16], %20 {strides = array<i32>} : memref<256x128xf32, #tpu.memory_space<vmem>>, vector<256x128xf32>,
      %cst_17 = arith.constant dense<0.000000e+00> : vector<128xf32>
      %22 = vector.multi_reduction <add>, %20, %cst_17 [0] : vector<256x128xf32> to vector<128xf32>
      %23 = vector.shape_cast %22 : vector<128xf32> to vector<1x128xf32>
      %24 = arith.mulf %20, %20 : vector<256x128xf32>
      %cst_18 = arith.constant dense<0.000000e+00> : vector<128xf32>
      %25 = vector.multi_reduction <add>, %24, %cst_18 [0] : vector<256x128xf32> to vector<128xf32>
      %26 = vector.shape_cast %25 : vector<128xf32> to vector<1x128xf32>
      %cst_19 = arith.constant 0.000000e+00 : f32
      %27 = vector.broadcast %cst_19 : f32 to vector<6x128xf32>
      %28 = tpu.concatenate %23, %26, %27 in 0 : vector<1x128xf32>, vector<1x128xf32>, vector<6x128xf32> -> vector<8x128xf32>
      %c0_20 = arith.constant 0 : index
      %c0_21 = arith.constant 0 : index
      %29 = vector.load %arg7[%c0_20, %c0_21] : memref<8x128xf32, #tpu.memory_space<vmem>>, vector<8x128xf32>
      tpu.vector_store %arg7[%c0_20, %c0_21], %28 {strides = array<i32>} : memref<8x128xf32, #tpu.memory_space<vmem>>, vector<8x128xf32>,
    } else {
    }
    return
  }
  func.func @transform_0(%arg0: i32, %arg1: i32, %arg2: i32) -> (i32, i32) {
    %c0_i32 = arith.constant 0 : i32
    return %arg0, %arg2 : i32, i32
  }
  func.func @transform_1(%arg0: i32, %arg1: i32, %arg2: i32) -> (i32, i32) {
    %c0_i32 = arith.constant 0 : i32
    return %arg2, %arg1 : i32, i32
  }
  func.func @transform_2(%arg0: i32, %arg1: i32, %arg2: i32) -> (i32, i32) {
    %c0_i32 = arith.constant 0 : i32
    %c0_i32_0 = arith.constant 0 : i32
    return %c0_i32, %arg1 : i32, i32
  }
  func.func @transform_3(%arg0: i32, %arg1: i32, %arg2: i32) -> (i32, i32) {
    %c0_i32 = arith.constant 0 : i32
    return %arg0, %arg1 : i32, i32
  }
  func.func @transform_4(%arg0: i32, %arg1: i32, %arg2: i32) -> (i32, i32) {
    %c0_i32 = arith.constant 0 : i32
    return %arg0, %arg1 : i32, i32
  }
}

module attributes {stable_mosaic.version = 11 : i64} {
  func.func @_conv_fused_kernel(%arg0: i32, %arg1: i32, %arg2: i32, %arg3: memref<128x512xbf16, #tpu.memory_space<vmem>>, %arg4: memref<512x128xbf16, #tpu.memory_space<vmem>>, %arg5: memref<1x128xf32, #tpu.memory_space<vmem>>, %arg6: memref<128x128xf32, #tpu.memory_space<vmem>>, %arg7: memref<8x128xf32, #tpu.memory_space<vmem>>, %arg8: memref<128x128xf32, #tpu.memory_space<vmem>>) attributes {dimension_semantics = [#tpu.dimension_semantics<parallel>, #tpu.dimension_semantics<parallel>, #tpu.dimension_semantics<arbitrary>], iteration_bounds = array<i64: 1, 2, 4>, scalar_prefetch = 0 : i64, scratch_operands = 1 : i64, tpu.core_type = #tpu.core_type<tc>, window_params = [{transform_indices = @transform_0, window_bounds = array<i64: 128, 512>}, {transform_indices = @transform_1, window_bounds = array<i64: 512, 128>}, {transform_indices = @transform_2, window_bounds = array<i64: 1, 128>}, {transform_indices = @transform_3, window_bounds = array<i64: 128, 128>}, {transform_indices = @transform_4, window_bounds = array<i64: 8, 128>}]} {
    %c0_i32 = arith.constant 0 : i32
    %0 = arith.cmpi eq, %arg2, %c0_i32 : i32
    %1 = arith.extui %0 : i1 to i32
    %c0_i32_0 = arith.constant 0 : i32
    %2 = arith.cmpi ne, %1, %c0_i32_0 : i32
    scf.if %2 {
      %cst_9 = arith.constant 0.000000e+00 : f32
      %12 = vector.broadcast %cst_9 : f32 to vector<128x128xf32>
      %c0_10 = arith.constant 0 : index
      %c0_11 = arith.constant 0 : index
      %13 = vector.load %arg8[%c0_10, %c0_11] : memref<128x128xf32, #tpu.memory_space<vmem>>, vector<128x128xf32>
      tpu.vector_store %arg8[%c0_10, %c0_11], %12 {strides = array<i32>} : memref<128x128xf32, #tpu.memory_space<vmem>>, vector<128x128xf32>,
    } else {
    }
    %c0 = arith.constant 0 : index
    %c0_1 = arith.constant 0 : index
    %3 = vector.load %arg8[%c0, %c0_1] : memref<128x128xf32, #tpu.memory_space<vmem>>, vector<128x128xf32>
    %c0_2 = arith.constant 0 : index
    %c0_3 = arith.constant 0 : index
    %4 = vector.load %arg3[%c0_2, %c0_3] : memref<128x512xbf16, #tpu.memory_space<vmem>>, vector<128x512xbf16>
    %c0_4 = arith.constant 0 : index
    %c0_5 = arith.constant 0 : index
    %5 = vector.load %arg4[%c0_4, %c0_5] : memref<512x128xbf16, #tpu.memory_space<vmem>>, vector<512x128xbf16>
    %cst = arith.constant dense<0.000000e+00> : vector<128x128xf32>
    %6 = tpu.matmul %4, %5, %cst {dimension_numbers = #tpu.dot_dimension_numbers<[1], [0], [0], [1], [0, 0, 1, 1], [], []>} : vector<128x512xbf16>, vector<512x128xbf16>, vector<128x128xf32> -> vector<128x128xf32>
    %7 = arith.addf %3, %6 : vector<128x128xf32>
    %c0_6 = arith.constant 0 : index
    %c0_7 = arith.constant 0 : index
    %8 = vector.load %arg8[%c0_6, %c0_7] : memref<128x128xf32, #tpu.memory_space<vmem>>, vector<128x128xf32>
    tpu.vector_store %arg8[%c0_6, %c0_7], %7 {strides = array<i32>} : memref<128x128xf32, #tpu.memory_space<vmem>>, vector<128x128xf32>,
    %c3_i32 = arith.constant 3 : i32
    %9 = arith.cmpi eq, %arg2, %c3_i32 : i32
    %10 = arith.extui %9 : i1 to i32
    %c0_i32_8 = arith.constant 0 : i32
    %11 = arith.cmpi ne, %10, %c0_i32_8 : i32
    scf.if %11 {
      %c0_9 = arith.constant 0 : index
      %c0_10 = arith.constant 0 : index
      %12 = vector.load %arg8[%c0_9, %c0_10] : memref<128x128xf32, #tpu.memory_space<vmem>>, vector<128x128xf32>
      %c0_11 = arith.constant 0 : index
      %c0_12 = arith.constant 0 : index
      %13 = vector.load %arg5[%c0_11, %c0_12] : memref<1x128xf32, #tpu.memory_space<vmem>>, vector<1x128xf32>
      %14 = vector.broadcast %13 : vector<1x128xf32> to vector<128x128xf32>
      %15 = arith.addf %12, %14 : vector<128x128xf32>
      %cst_13 = arith.constant 0.000000e+00 : f32
      %16 = vector.broadcast %cst_13 : f32 to vector<128x128xf32>
      %17 = arith.cmpf ogt, %15, %16 : vector<128x128xf32>
      %cst_14 = arith.constant 0.00999999977 : f32
      %18 = vector.broadcast %cst_14 : f32 to vector<128x128xf32>
      %19 = arith.mulf %18, %15 : vector<128x128xf32>
      %20 = arith.select %17, %15, %19 : vector<128x128xi1>, vector<128x128xf32>
      %c0_15 = arith.constant 0 : index
      %c0_16 = arith.constant 0 : index
      %21 = vector.load %arg6[%c0_15, %c0_16] : memref<128x128xf32, #tpu.memory_space<vmem>>, vector<128x128xf32>
      tpu.vector_store %arg6[%c0_15, %c0_16], %20 {strides = array<i32>} : memref<128x128xf32, #tpu.memory_space<vmem>>, vector<128x128xf32>,
      %cst_17 = arith.constant dense<0.000000e+00> : vector<128xf32>
      %22 = vector.multi_reduction <add>, %20, %cst_17 [0] : vector<128x128xf32> to vector<128xf32>
      %23 = vector.shape_cast %22 : vector<128xf32> to vector<1x128xf32>
      %24 = arith.mulf %20, %20 : vector<128x128xf32>
      %cst_18 = arith.constant dense<0.000000e+00> : vector<128xf32>
      %25 = vector.multi_reduction <add>, %24, %cst_18 [0] : vector<128x128xf32> to vector<128xf32>
      %26 = vector.shape_cast %25 : vector<128xf32> to vector<1x128xf32>
      %cst_19 = arith.constant 0.000000e+00 : f32
      %27 = vector.broadcast %cst_19 : f32 to vector<6x128xf32>
      %28 = tpu.concatenate %23, %26, %27 in 0 : vector<1x128xf32>, vector<1x128xf32>, vector<6x128xf32> -> vector<8x128xf32>
      %c0_20 = arith.constant 0 : index
      %c0_21 = arith.constant 0 : index
      %29 = vector.load %arg7[%c0_20, %c0_21] : memref<8x128xf32, #tpu.memory_space<vmem>>, vector<8x128xf32>
      tpu.vector_store %arg7[%c0_20, %c0_21], %28 {strides = array<i32>} : memref<8x128xf32, #tpu.memory_space<vmem>>, vector<8x128xf32>,
    } else {
    }
    return
  }
  func.func @transform_0(%arg0: i32, %arg1: i32, %arg2: i32) -> (i32, i32) {
    %c0_i32 = arith.constant 0 : i32
    return %arg0, %arg2 : i32, i32
  }
  func.func @transform_1(%arg0: i32, %arg1: i32, %arg2: i32) -> (i32, i32) {
    %c0_i32 = arith.constant 0 : i32
    return %arg2, %arg1 : i32, i32
  }
  func.func @transform_2(%arg0: i32, %arg1: i32, %arg2: i32) -> (i32, i32) {
    %c0_i32 = arith.constant 0 : i32
    %c0_i32_0 = arith.constant 0 : i32
    return %c0_i32, %arg1 : i32, i32
  }
  func.func @transform_3(%arg0: i32, %arg1: i32, %arg2: i32) -> (i32, i32) {
    %c0_i32 = arith.constant 0 : i32
    return %arg0, %arg1 : i32, i32
  }
  func.func @transform_4(%arg0: i32, %arg1: i32, %arg2: i32) -> (i32, i32) {
    %c0_i32 = arith.constant 0 : i32
    return %arg0, %arg1 : i32, i32
  }
}

module attributes {stable_mosaic.version = 11 : i64} {
  func.func @_conv_fused_kernel(%arg0: i32, %arg1: i32, %arg2: i32, %arg3: memref<32x512xbf16, #tpu.memory_space<vmem>>, %arg4: memref<512x128xbf16, #tpu.memory_space<vmem>>, %arg5: memref<1x128xf32, #tpu.memory_space<vmem>>, %arg6: memref<32x128xf32, #tpu.memory_space<vmem>>, %arg7: memref<8x128xf32, #tpu.memory_space<vmem>>, %arg8: memref<32x128xf32, #tpu.memory_space<vmem>>) attributes {dimension_semantics = [#tpu.dimension_semantics<parallel>, #tpu.dimension_semantics<parallel>, #tpu.dimension_semantics<arbitrary>], iteration_bounds = array<i64: 1, 4, 8>, scalar_prefetch = 0 : i64, scratch_operands = 1 : i64, tpu.core_type = #tpu.core_type<tc>, window_params = [{transform_indices = @transform_0, window_bounds = array<i64: 32, 512>}, {transform_indices = @transform_1, window_bounds = array<i64: 512, 128>}, {transform_indices = @transform_2, window_bounds = array<i64: 1, 128>}, {transform_indices = @transform_3, window_bounds = array<i64: 32, 128>}, {transform_indices = @transform_4, window_bounds = array<i64: 8, 128>}]} {
    %c0_i32 = arith.constant 0 : i32
    %0 = arith.cmpi eq, %arg2, %c0_i32 : i32
    %1 = arith.extui %0 : i1 to i32
    %c0_i32_0 = arith.constant 0 : i32
    %2 = arith.cmpi ne, %1, %c0_i32_0 : i32
    scf.if %2 {
      %cst_9 = arith.constant 0.000000e+00 : f32
      %12 = vector.broadcast %cst_9 : f32 to vector<32x128xf32>
      %c0_10 = arith.constant 0 : index
      %c0_11 = arith.constant 0 : index
      %13 = vector.load %arg8[%c0_10, %c0_11] : memref<32x128xf32, #tpu.memory_space<vmem>>, vector<32x128xf32>
      tpu.vector_store %arg8[%c0_10, %c0_11], %12 {strides = array<i32>} : memref<32x128xf32, #tpu.memory_space<vmem>>, vector<32x128xf32>,
    } else {
    }
    %c0 = arith.constant 0 : index
    %c0_1 = arith.constant 0 : index
    %3 = vector.load %arg8[%c0, %c0_1] : memref<32x128xf32, #tpu.memory_space<vmem>>, vector<32x128xf32>
    %c0_2 = arith.constant 0 : index
    %c0_3 = arith.constant 0 : index
    %4 = vector.load %arg3[%c0_2, %c0_3] : memref<32x512xbf16, #tpu.memory_space<vmem>>, vector<32x512xbf16>
    %c0_4 = arith.constant 0 : index
    %c0_5 = arith.constant 0 : index
    %5 = vector.load %arg4[%c0_4, %c0_5] : memref<512x128xbf16, #tpu.memory_space<vmem>>, vector<512x128xbf16>
    %cst = arith.constant dense<0.000000e+00> : vector<32x128xf32>
    %6 = tpu.matmul %4, %5, %cst {dimension_numbers = #tpu.dot_dimension_numbers<[1], [0], [0], [1], [0, 0, 1, 1], [], []>} : vector<32x512xbf16>, vector<512x128xbf16>, vector<32x128xf32> -> vector<32x128xf32>
    %7 = arith.addf %3, %6 : vector<32x128xf32>
    %c0_6 = arith.constant 0 : index
    %c0_7 = arith.constant 0 : index
    %8 = vector.load %arg8[%c0_6, %c0_7] : memref<32x128xf32, #tpu.memory_space<vmem>>, vector<32x128xf32>
    tpu.vector_store %arg8[%c0_6, %c0_7], %7 {strides = array<i32>} : memref<32x128xf32, #tpu.memory_space<vmem>>, vector<32x128xf32>,
    %c7_i32 = arith.constant 7 : i32
    %9 = arith.cmpi eq, %arg2, %c7_i32 : i32
    %10 = arith.extui %9 : i1 to i32
    %c0_i32_8 = arith.constant 0 : i32
    %11 = arith.cmpi ne, %10, %c0_i32_8 : i32
    scf.if %11 {
      %c0_9 = arith.constant 0 : index
      %c0_10 = arith.constant 0 : index
      %12 = vector.load %arg8[%c0_9, %c0_10] : memref<32x128xf32, #tpu.memory_space<vmem>>, vector<32x128xf32>
      %c0_11 = arith.constant 0 : index
      %c0_12 = arith.constant 0 : index
      %13 = vector.load %arg5[%c0_11, %c0_12] : memref<1x128xf32, #tpu.memory_space<vmem>>, vector<1x128xf32>
      %14 = vector.broadcast %13 : vector<1x128xf32> to vector<32x128xf32>
      %15 = arith.addf %12, %14 : vector<32x128xf32>
      %cst_13 = arith.constant 0.000000e+00 : f32
      %16 = vector.broadcast %cst_13 : f32 to vector<32x128xf32>
      %17 = arith.cmpf ogt, %15, %16 : vector<32x128xf32>
      %cst_14 = arith.constant 0.00999999977 : f32
      %18 = vector.broadcast %cst_14 : f32 to vector<32x128xf32>
      %19 = arith.mulf %18, %15 : vector<32x128xf32>
      %20 = arith.select %17, %15, %19 : vector<32x128xi1>, vector<32x128xf32>
      %c0_15 = arith.constant 0 : index
      %c0_16 = arith.constant 0 : index
      %21 = vector.load %arg6[%c0_15, %c0_16] : memref<32x128xf32, #tpu.memory_space<vmem>>, vector<32x128xf32>
      tpu.vector_store %arg6[%c0_15, %c0_16], %20 {strides = array<i32>} : memref<32x128xf32, #tpu.memory_space<vmem>>, vector<32x128xf32>,
      %cst_17 = arith.constant dense<0.000000e+00> : vector<128xf32>
      %22 = vector.multi_reduction <add>, %20, %cst_17 [0] : vector<32x128xf32> to vector<128xf32>
      %23 = vector.shape_cast %22 : vector<128xf32> to vector<1x128xf32>
      %24 = arith.mulf %20, %20 : vector<32x128xf32>
      %cst_18 = arith.constant dense<0.000000e+00> : vector<128xf32>
      %25 = vector.multi_reduction <add>, %24, %cst_18 [0] : vector<32x128xf32> to vector<128xf32>
      %26 = vector.shape_cast %25 : vector<128xf32> to vector<1x128xf32>
      %cst_19 = arith.constant 0.000000e+00 : f32
      %27 = vector.broadcast %cst_19 : f32 to vector<6x128xf32>
      %28 = tpu.concatenate %23, %26, %27 in 0 : vector<1x128xf32>, vector<1x128xf32>, vector<6x128xf32> -> vector<8x128xf32>
      %c0_20 = arith.constant 0 : index
      %c0_21 = arith.constant 0 : index
      %29 = vector.load %arg7[%c0_20, %c0_21] : memref<8x128xf32, #tpu.memory_space<vmem>>, vector<8x128xf32>
      tpu.vector_store %arg7[%c0_20, %c0_21], %28 {strides = array<i32>} : memref<8x128xf32, #tpu.memory_space<vmem>>, vector<8x128xf32>,
    } else {
    }
    return
  }
  func.func @transform_0(%arg0: i32, %arg1: i32, %arg2: i32) -> (i32, i32) {
    %c0_i32 = arith.constant 0 : i32
    return %arg0, %arg2 : i32, i32
  }
  func.func @transform_1(%arg0: i32, %arg1: i32, %arg2: i32) -> (i32, i32) {
    %c0_i32 = arith.constant 0 : i32
    return %arg2, %arg1 : i32, i32
  }
  func.func @transform_2(%arg0: i32, %arg1: i32, %arg2: i32) -> (i32, i32) {
    %c0_i32 = arith.constant 0 : i32
    %c0_i32_0 = arith.constant 0 : i32
    return %c0_i32, %arg1 : i32, i32
  }
  func.func @transform_3(%arg0: i32, %arg1: i32, %arg2: i32) -> (i32, i32) {
    %c0_i32 = arith.constant 0 : i32
    return %arg0, %arg1 : i32, i32
  }
  func.func @transform_4(%arg0: i32, %arg1: i32, %arg2: i32) -> (i32, i32) {
    %c0_i32 = arith.constant 0 : i32
    return %arg0, %arg1 : i32, i32
  }
}

</mosaic_0001>

<llo_original>
// kernel: discriminator_forward.4
$region0: #{discriminator_forward.4}
  #allocation0 [shape = 'u32[]', space=smem, size = 0x4, offset = 0x4, fixed_abs, tag = 'smem constant byte address 0x4 - core index']
  #allocation1 [shape = 'u32[144,128]{1,0:T(1,128)}', space=vmem, size = 0x12000, scoped, tag = 'internal scratch']
  #allocation2 [shape = 'f32[256,64]{1,0:T(8,128)}', space=vmem, size = 0x20000, scoped, tag = 'scratch operand']
  %s0 = inlined_call_operand.vmem [shape: bf16[2048,128], index: 0, kind: input, shape index: {}]
  %s1 = inlined_call_operand.vmem [shape: bf16[128,64], index: 1, kind: input, shape index: {}]
  %s2 = inlined_call_operand.vmem [shape: f32[1,64], index: 2, kind: input, shape index: {}]
  %s3 = inlined_call_operand.vmem [shape: f32[2048,64], index: 3, kind: output, shape index: {0}]
  %s4 = inlined_call_operand.vmem [shape: f32[64,64], index: 4, kind: output, shape index: {1}]
  %5 = xla_tuple %s3, %s4
  %s6 = sld [smem:[#allocation0]]
  $region61: #{discriminator_forward.4} parent=0
    _
  %s8 = ssub.s32 1, %s6
  %s9 = scalar_select 0, %s8, %s6
  loop: start=0, step=1, limit=10
  $region2: #{discriminator_forward.4} parent=0 // loop_pre_header
    _
  $region3: #{discriminator_forward.4} parent=0 // loop_header
    %s11 = sphi 0, %s15
    %p12 = scmp.ge.s32.totalorder %s11, 10
    %s18 = sphi 0, %s37
    %s19 = sphi 0, %s33
    %s20 = sphi 0, %s29
    %s21 = sphi 0, %s18
    %s22 = sphi 0, %s19
    %s23 = sphi 0, %s20
    %s24 = sphi 0, %s21
    %s25 = sphi 0, %s22
    %s26 = sphi 0, %s23
    %s42 = sphi 0, %s44
    %s45 = sphi 0, %s42
    %s46 = sphi 0, %s45
    %s62 = sphi 0, %s46
    %s70 = sphi 0, %s72
    %s73 = sphi 0, %s70
    %s74 = sphi 0, %s73
    %s90 = sphi 0, %s74
    %s96 = sphi 0, %s98
    %s99 = sphi 0, %s96
    %s100 = sphi 0, %s99
    %s116 = sphi 0, %s100
    %s124 = sphi 0, %s126
    %s127 = sphi 0, %s124
    %s128 = sphi 0, %s127
    %s144 = sphi 0, %s128
    %s152 = sphi 0, %s154
    %s155 = sphi 0, %s152
    %s156 = sphi 0, %s155
    %s172 = sphi 0, %s156
  $region4: #{discriminator_forward.4} parent=0 // loop_header_branch
    %14 = sbr.rel (%p12) target = $region8
  $region5: #{discriminator_forward.4} parent=0 // loop_body
    %s16 = ssub.s32 %s11, 1
    %s17 = ssub.s32 %s11, 2
    %s27 = sadd.s32 1, %s20
    %p28 = scmp.ge.s32.totalorder %s27, 1
    %s29 = scalar_select %p28, 0, %s27
    %s30 = sadd.s32 1, %s19
    %s31 = scalar_select %p28, %s30, %s19
    %p32 = scmp.ge.s32.totalorder %s31, 1
    %s33 = scalar_select %p32, 0, %s31
    %s34 = sadd.s32 1, %s18
    %s35 = scalar_select %p32, %s34, %s18
    %p36 = scmp.ge.s32.totalorder %s35, 8
    %s37 = scalar_select %p36, 0, %s35
    %s38 = ssub.s32 %s18, %s37
    %s39 = ssub.s32 %s20, %s29
    %s40 = sor.u32 %s38, %s39
    %p41 = scmp.eq.s32.totalorder %s40, 0
    %s43 = sadd.s32 %s42, 1
    %s44 = scalar_select %p41, %s42, %s43
    %p47 = pneg %p41
    %p48 = scmp.eq.s32.totalorder %s11, 7
    %p49 = por %p47, %p48
    %p50 = scmp.ne.s32.totalorder %s42, %s45
    %p51 = scmp.eq.s32.totalorder %s11, 0
    %p52 = por %p50, %p51
    %p53 = scmp.ne.s32.totalorder %s42, %s45
    %p54 = scmp.eq.s32.totalorder %s16, 7
    %p55 = por %p53, %p54
    %p56 = scmp.ne.s32.totalorder %s45, %s46
    %p57 = scmp.eq.s32.totalorder %s16, 0
    %p58 = por %p56, %p57
    %p59 = scmp.ne.s32.totalorder %s45, %s46
    %p60 = scmp.eq.s32.totalorder %s17, 7
    %p61 = por %p59, %p60
    %p63 = scmp.ne.s32.totalorder %s46, %s62
    %p64 = scmp.eq.s32.totalorder %s17, 0
    %p65 = por %p63, %p64
    %s66 = ssub.s32 %s20, %s29
    %s67 = ssub.s32 %s19, %s33
    %s68 = sor.u32 %s66, %s67
    %p69 = scmp.eq.s32.totalorder %s68, 0
    %s71 = sadd.s32 %s70, 1
    %s72 = scalar_select %p69, %s70, %s71
    %p75 = pneg %p69
    %p76 = scmp.eq.s32.totalorder %s11, 7
    %p77 = por %p75, %p76
    %p78 = scmp.ne.s32.totalorder %s70, %s73
    %p79 = scmp.eq.s32.totalorder %s11, 0
    %p80 = por %p78, %p79
    %p81 = scmp.ne.s32.totalorder %s70, %s73
    %p82 = scmp.eq.s32.totalorder %s16, 7
    %p83 = por %p81, %p82
    %p84 = scmp.ne.s32.totalorder %s73, %s74
    %p85 = scmp.eq.s32.totalorder %s16, 0
    %p86 = por %p84, %p85
    %p87 = scmp.ne.s32.totalorder %s73, %s74
    %p88 = scmp.eq.s32.totalorder %s17, 7
    %p89 = por %p87, %p88
    %p91 = scmp.ne.s32.totalorder %s74, %s90
    %p92 = scmp.eq.s32.totalorder %s17, 0
    %p93 = por %p91, %p92
    %s94 = ssub.s32 %s19, %s33
    %p95 = scmp.eq.s32.totalorder %s94, 0
    %s97 = sadd.s32 %s96, 1
    %s98 = scalar_select %p95, %s96, %s97
    %p101 = pneg %p95
    %p102 = scmp.eq.s32.totalorder %s11, 7
    %p103 = por %p101, %p102
    %p104 = scmp.ne.s32.totalorder %s96, %s99
    %p105 = scmp.eq.s32.totalorder %s11, 0
    %p106 = por %p104, %p105
    %p107 = scmp.ne.s32.totalorder %s96, %s99
    %p108 = scmp.eq.s32.totalorder %s16, 7
    %p109 = por %p107, %p108
    %p110 = scmp.ne.s32.totalorder %s99, %s100
    %p111 = scmp.eq.s32.totalorder %s16, 0
    %p112 = por %p110, %p111
    %p113 = scmp.ne.s32.totalorder %s99, %s100
    %p114 = scmp.eq.s32.totalorder %s17, 7
    %p115 = por %p113, %p114
    %p117 = scmp.ne.s32.totalorder %s100, %s116
    %p118 = scmp.eq.s32.totalorder %s17, 0
    %p119 = por %p117, %p118
    %s120 = ssub.s32 %s18, %s37
    %s121 = ssub.s32 %s19, %s33
    %s122 = sor.u32 %s120, %s121
    %p123 = scmp.eq.s32.totalorder %s122, 0
    %s125 = sadd.s32 %s124, 1
    %s126 = scalar_select %p123, %s124, %s125
    %p129 = pneg %p123
    %p130 = scmp.eq.s32.totalorder %s11, 7
    %p131 = por %p129, %p130
    %p132 = scmp.ne.s32.totalorder %s124, %s127
    %p133 = scmp.eq.s32.totalorder %s11, 0
    %p134 = por %p132, %p133
    %p135 = scmp.ne.s32.totalorder %s124, %s127
    %p136 = scmp.eq.s32.totalorder %s16, 7
    %p137 = por %p135, %p136
    %p138 = scmp.ne.s32.totalorder %s127, %s128
    %p139 = scmp.eq.s32.totalorder %s16, 0
    %p140 = por %p138, %p139
    %p141 = scmp.ne.s32.totalorder %s127, %s128
    %p142 = scmp.eq.s32.totalorder %s17, 7
    %p143 = por %p141, %p142
    %p145 = scmp.ne.s32.totalorder %s128, %s144
    %p146 = scmp.eq.s32.totalorder %s17, 0
    %p147 = por %p145, %p146
    %s148 = ssub.s32 %s18, %s37
    %s149 = ssub.s32 %s19, %s33
    %s150 = sor.u32 %s148, %s149
    %p151 = scmp.eq.s32.totalorder %s150, 0
    %s153 = sadd.s32 %s152, 1
    %s154 = scalar_select %p151, %s152, %s153
    %p157 = pneg %p151
    %p158 = scmp.eq.s32.totalorder %s11, 7
    %p159 = por %p157, %p158
    %p160 = scmp.ne.s32.totalorder %s152, %s155
    %p161 = scmp.eq.s32.totalorder %s11, 0
    %p162 = por %p160, %p161
    %p163 = scmp.ne.s32.totalorder %s152, %s155
    %p164 = scmp.eq.s32.totalorder %s16, 7
    %p165 = por %p163, %p164
    %p166 = scmp.ne.s32.totalorder %s155, %s156
    %p167 = scmp.eq.s32.totalorder %s16, 0
    %p168 = por %p166, %p167
    %p169 = scmp.ne.s32.totalorder %s155, %s156
    %p170 = scmp.eq.s32.totalorder %s17, 7
    %p171 = por %p169, %p170
    %p173 = scmp.ne.s32.totalorder %s156, %s172
    %p174 = scmp.eq.s32.totalorder %s17, 0
    %p175 = por %p173, %p174
    %p176 = scmp.le.s32.totalorder 1, %s11
    %p177 = scmp.lt.s32.totalorder %s11, 9
    %p178 = pnand %p176, %p177
    %p179 = pneg %p178
    // Predicated region
    $region9: #{discriminator_forward.4} parent=5 // pred_check
      _
    $region10: #{discriminator_forward.4} parent=5 // pred_check_branch
      %181 = sbr.rel (%p178) target = $region12
    $region11: #{discriminator_forward.4} parent=5 // pred_region
      %s182 = ssub.s32 %s11, 1
      // Predicated region
      $region13: #{discriminator_forward.4} parent=11 // pred_check
        %p183 = pneg %p86
      $region14: #{discriminator_forward.4} parent=11 // pred_check_branch
        %185 = sbr.rel (%p183) target = $region16
      $region15: #{discriminator_forward.4} parent=11 // pred_region
        %s186 = smul.u32 16, %s23
        %p187 = scmp.lt.s32.totalorder %s186, 15
        %s188 = scalar_select %p187, %s186, 15
        %p189 = scmp.lt.s32.totalorder %s22, 0
        %s190 = scalar_select %p189, %s22, 0
        %s191 = sadd.s32 %s190, %s188
        %s192 = smul.addr %s191, 4
        %s193 = scalar_lea.vmem %s1, %s192
        %s194 = smul.u32 16, %s23
      $region16: #{discriminator_forward.4} parent=11 // pred_fallthru
        _
      // Predicated region
      $region17: #{discriminator_forward.4} parent=11 // pred_check
        %p195 = pneg %p112
      $region18: #{discriminator_forward.4} parent=11 // pred_check_branch
        %197 = sbr.rel (%p195) target = $region20
      $region19: #{discriminator_forward.4} parent=11 // pred_region
        %p198 = scmp.lt.s32.totalorder %s22, 0
        %s199 = scalar_select %p198, %s22, 0
        %s200 = scalar_lea.vmem %s2, %s199
      $region20: #{discriminator_forward.4} parent=11 // pred_fallthru
        _
    $region12: #{discriminator_forward.4} parent=5 // pred_fallthru
      _
    %p201 = scmp.lt.s32.totalorder %s11, 8
    // Predicated region
    $region21: #{discriminator_forward.4} parent=5 // pred_check
      %p202 = pneg %p201
    $region22: #{discriminator_forward.4} parent=5 // pred_check_branch
      %204 = sbr.rel (%p202) target = $region24
    $region23: #{discriminator_forward.4} parent=5 // pred_region
      // Predicated region
      $region25: #{discriminator_forward.4} parent=23 // pred_check
        %p205 = pneg %p52
      $region26: #{discriminator_forward.4} parent=23 // pred_check_branch
        %207 = sbr.rel (%p205) target = $region28
      $region27: #{discriminator_forward.4} parent=23 // pred_region
        %s208 = smul.u32 32, %s18
        %p209 = scmp.lt.s32.totalorder %s208, 255
        %s210 = scalar_select %p209, %s208, 255
        %p211 = scmp.lt.s32.totalorder %s20, 0
        %s212 = scalar_select %p211, %s20, 0
        %s213 = sadd.s32 %s212, %s210
        %s214 = smul.addr %s213, 4
        %s215 = scalar_lea.vmem %s0, %s214
        %s216 = smul.u32 32, %s18
      $region28: #{discriminator_forward.4} parent=23 // pred_fallthru
        _
    $region24: #{discriminator_forward.4} parent=5 // pred_fallthru
      _
    %p217 = scmp.le.s32.totalorder 1, %s11
    %p218 = scmp.lt.s32.totalorder %s11, 9
    %p219 = pnand %p217, %p218
    %p220 = pneg %p219
    // Predicated region
    $region29: #{discriminator_forward.4} parent=5 // pred_check
      _
    $region30: #{discriminator_forward.4} parent=5 // pred_check_branch
      %222 = sbr.rel (%p219) target = $region32
    $region31: #{discriminator_forward.4} parent=5 // pred_region
      %s223 = ssub.s32 %s11, 1
      %s224 = smul.u32 32, %s21
      %p225 = scmp.lt.s32.totalorder %s224, 255
      %s226 = scalar_select %p225, %s224, 255
      %p227 = scmp.lt.s32.totalorder %s23, 0
      %s228 = scalar_select %p227, %s23, 0
      %s229 = sadd.s32 %s228, %s226
      %s230 = smul.addr %s229, 4
      %s231 = scalar_lea.vmem %s0, %s230
      %p232 = pneg %p58
      %p233 = pneg %p55
      %s234 = smul.u32 16, %s23
      %p235 = scmp.lt.s32.totalorder %s234, 15
      %s236 = scalar_select %p235, %s234, 15
      %p237 = scmp.lt.s32.totalorder %s22, 0
      %s238 = scalar_select %p237, %s22, 0
      %s239 = sadd.s32 %s238, %s236
      %s240 = smul.addr %s239, 4
      %s241 = scalar_lea.vmem %s1, %s240
      %p242 = pneg %p86
      %p243 = pneg %p83
      %p244 = scmp.lt.s32.totalorder %s22, 0
      %s245 = scalar_select %p244, %s22, 0
      %s246 = scalar_lea.vmem %s2, %s245
      %p247 = pneg %p112
      %p248 = pneg %p109
      %p249 = pneg %p140
      %p250 = pneg %p137
      %s251 = smul.u32 32, %s21
      %p252 = scmp.lt.s32.totalorder %s251, 255
      %s253 = scalar_select %p252, %s251, 255
      %p254 = scmp.lt.s32.totalorder %s22, 0
      %s255 = scalar_select %p254, %s22, 0
      %s256 = sadd.s32 %s255, %s253
      %s257 = smul.addr %s256, 8
      %s258 = scalar_lea.vmem %s3, %s257
      %p259 = pneg %p168
      %p260 = pneg %p165
      %p261 = scmp.lt.s32.totalorder %s21, 7
      %s262 = scalar_select %p261, %s21, 7
      %p263 = scmp.lt.s32.totalorder %s22, 0
      %s264 = scalar_select %p263, %s22, 0
      %s265 = sadd.s32 %s264, %s262
      %s266 = smul.addr %s265, 8
      %s267 = scalar_lea.vmem %s4, %s266
      %s268 = smul.u32 32, %s21
      %p269 = scmp.lt.s32.totalorder %s268, 255
      %s270 = scalar_select %p269, %s268, 255
      %p271 = scmp.lt.s32.totalorder %s23, 0
      %s272 = scalar_select %p271, %s23, 0
      %s273 = sadd.s32 %s272, %s270
      %s274 = smul.addr %s273, 4
      %s275 = scalar_lea.vmem %s0, %s274
      %s276 = smul.u32 32, %s21
      %s277 = smul.u32 16, %s23
      %p278 = scmp.lt.s32.totalorder %s277, 15
      %s279 = scalar_select %p278, %s277, 15
      %p280 = scmp.lt.s32.totalorder %s22, 0
      %s281 = scalar_select %p280, %s22, 0
      %s282 = sadd.s32 %s281, %s279
      %s283 = smul.addr %s282, 4
      %s284 = scalar_lea.vmem %s1, %s283
      %s285 = smul.u32 16, %s23
      %p286 = scmp.lt.s32.totalorder %s22, 0
      %s287 = scalar_select %p286, %s22, 0
      %s288 = scalar_lea.vmem %s2, %s287
      %s289 = smul.u32 32, %s21
      %p290 = scmp.lt.s32.totalorder %s289, 255
      %s291 = scalar_select %p290, %s289, 255
      %p292 = scmp.lt.s32.totalorder %s22, 0
      %s293 = scalar_select %p292, %s22, 0
      %s294 = sadd.s32 %s293, %s291
      %s295 = smul.addr %s294, 8
      %s296 = scalar_lea.vmem %s3, %s295
      %s297 = smul.u32 32, %s21
      %p298 = scmp.lt.s32.totalorder %s21, 7
      %s299 = scalar_select %p298, %s21, 7
      %p300 = scmp.lt.s32.totalorder %s22, 0
      %s301 = scalar_select %p300, %s22, 0
      %s302 = sadd.s32 %s301, %s299
      %s303 = smul.addr %s302, 8
      %s304 = scalar_lea.vmem %s4, %s303
      %p306 = scmp.eq.s32.totalorder %s23, 0
      // Predicated region
      $region33: #{discriminator_forward.4} parent=31 // pred_check
        %p307 = pneg %p306
      $region34: #{discriminator_forward.4} parent=31 // pred_check_branch
        %309 = sbr.rel (%p307) target = $region36
      $region35: #{discriminator_forward.4} parent=31 // pred_region
        %vm310 = vcmask 523264
        %311 = vst.msk [vmem:[#allocation2] sm:$0xff] %vm310, 0.0
        %312 = vst.msk [vmem:[#allocation2 + $0x8] sm:$0xff] %vm310, 0.0
        %313 = vst.msk [vmem:[#allocation2 + $0x10] sm:$0xff] %vm310, 0.0
        %314 = vst.msk [vmem:[#allocation2 + $0x18] sm:$0xff] %vm310, 0.0
        %315 = vst.msk [vmem:[#allocation2 + $0x20] sm:$0xff] %vm310, 0.0
        %316 = vst.msk [vmem:[#allocation2 + $0x28] sm:$0xff] %vm310, 0.0
        %317 = vst.msk [vmem:[#allocation2 + $0x30] sm:$0xff] %vm310, 0.0
        %318 = vst.msk [vmem:[#allocation2 + $0x38] sm:$0xff] %vm310, 0.0
        %319 = vst.msk [vmem:[#allocation2 + $0x40] sm:$0xff] %vm310, 0.0
        %320 = vst.msk [vmem:[#allocation2 + $0x48] sm:$0xff] %vm310, 0.0
        %321 = vst.msk [vmem:[#allocation2 + $0x50] sm:$0xff] %vm310, 0.0
        %322 = vst.msk [vmem:[#allocation2 + $0x58] sm:$0xff] %vm310, 0.0
        %323 = vst.msk [vmem:[#allocation2 + $0x60] sm:$0xff] %vm310, 0.0
        %324 = vst.msk [vmem:[#allocation2 + $0x68] sm:$0xff] %vm310, 0.0
        %325 = vst.msk [vmem:[#allocation2 + $0x70] sm:$0xff] %vm310, 0.0
        %326 = vst.msk [vmem:[#allocation2 + $0x78] sm:$0xff] %vm310, 0.0
        %327 = vst.msk [vmem:[#allocation2 + $0x80] sm:$0xff] %vm310, 0.0
        %328 = vst.msk [vmem:[#allocation2 + $0x88] sm:$0xff] %vm310, 0.0
        %329 = vst.msk [vmem:[#allocation2 + $0x90] sm:$0xff] %vm310, 0.0
        %330 = vst.msk [vmem:[#allocation2 + $0x98] sm:$0xff] %vm310, 0.0
        %331 = vst.msk [vmem:[#allocation2 + $0xa0] sm:$0xff] %vm310, 0.0
        %332 = vst.msk [vmem:[#allocation2 + $0xa8] sm:$0xff] %vm310, 0.0
        %333 = vst.msk [vmem:[#allocation2 + $0xb0] sm:$0xff] %vm310, 0.0
        %334 = vst.msk [vmem:[#allocation2 + $0xb8] sm:$0xff] %vm310, 0.0
        %335 = vst.msk [vmem:[#allocation2 + $0xc0] sm:$0xff] %vm310, 0.0
        %336 = vst.msk [vmem:[#allocation2 + $0xc8] sm:$0xff] %vm310, 0.0
        %337 = vst.msk [vmem:[#allocation2 + $0xd0] sm:$0xff] %vm310, 0.0
        %338 = vst.msk [vmem:[#allocation2 + $0xd8] sm:$0xff] %vm310, 0.0
        %339 = vst.msk [vmem:[#allocation2 + $0xe0] sm:$0xff] %vm310, 0.0
        %340 = vst.msk [vmem:[#allocation2 + $0xe8] sm:$0xff] %vm310, 0.0
        %341 = vst.msk [vmem:[#allocation2 + $0xf0] sm:$0xff] %vm310, 0.0
        %342 = vst.msk [vmem:[#allocation2 + $0xf8] sm:$0xff] %vm310, 0.0
      $region36: #{discriminator_forward.4} parent=31 // pred_fallthru
        _
      %v343 = vld [vmem:[#allocation2] sm:$0xff]
      %v344 = vld [vmem:[#allocation2 + $0x8] sm:$0xff]
      %v345 = vld [vmem:[#allocation2 + $0x10] sm:$0xff]
      %v346 = vld [vmem:[#allocation2 + $0x18] sm:$0xff]
      %v347 = vld [vmem:[#allocation2 + $0x20] sm:$0xff]
      %v348 = vld [vmem:[#allocation2 + $0x28] sm:$0xff]
      %v349 = vld [vmem:[#allocation2 + $0x30] sm:$0xff]
      %v350 = vld [vmem:[#allocation2 + $0x38] sm:$0xff]
      %v351 = vld [vmem:[#allocation2 + $0x40] sm:$0xff]
      %v352 = vld [vmem:[#allocation2 + $0x48] sm:$0xff]
      %v353 = vld [vmem:[#allocation2 + $0x50] sm:$0xff]
      %v354 = vld [vmem:[#allocation2 + $0x58] sm:$0xff]
      %v355 = vld [vmem:[#allocation2 + $0x60] sm:$0xff]
      %v356 = vld [vmem:[#allocation2 + $0x68] sm:$0xff]
      %v357 = vld [vmem:[#allocation2 + $0x70] sm:$0xff]
      %v358 = vld [vmem:[#allocation2 + $0x78] sm:$0xff]
      %v359 = vld [vmem:[#allocation2 + $0x80] sm:$0xff]
      %v360 = vld [vmem:[#allocation2 + $0x88] sm:$0xff]
      %v361 = vld [vmem:[#allocation2 + $0x90] sm:$0xff]
      %v362 = vld [vmem:[#allocation2 + $0x98] sm:$0xff]
      %v363 = vld [vmem:[#allocation2 + $0xa0] sm:$0xff]
      %v364 = vld [vmem:[#allocation2 + $0xa8] sm:$0xff]
      %v365 = vld [vmem:[#allocation2 + $0xb0] sm:$0xff]
      %v366 = vld [vmem:[#allocation2 + $0xb8] sm:$0xff]
      %v367 = vld [vmem:[#allocation2 + $0xc0] sm:$0xff]
      %v368 = vld [vmem:[#allocation2 + $0xc8] sm:$0xff]
      %v369 = vld [vmem:[#allocation2 + $0xd0] sm:$0xff]
      %v370 = vld [vmem:[#allocation2 + $0xd8] sm:$0xff]
      %v371 = vld [vmem:[#allocation2 + $0xe0] sm:$0xff]
      %v372 = vld [vmem:[#allocation2 + $0xe8] sm:$0xff]
      %v373 = vld [vmem:[#allocation2 + $0xf0] sm:$0xff]
      %v374 = vld [vmem:[#allocation2 + $0xf8] sm:$0xff]
      %v375 = vld [vmem:[%s275] sm:$0xf]
      %v376 = vld [vmem:[%s275 + $0x4] sm:$0xf]
      %v377 = vld [vmem:[%s275 + $0x8] sm:$0xf]
      %v378 = vld [vmem:[%s275 + $0xc] sm:$0xf]
      %v379 = vld [vmem:[%s275 + $0x10] sm:$0xf]
      %v380 = vld [vmem:[%s275 + $0x14] sm:$0xf]
      %v381 = vld [vmem:[%s275 + $0x18] sm:$0xf]
      %v382 = vld [vmem:[%s275 + $0x1c] sm:$0xf]
      %v383 = vld [vmem:[%s275 + $0x20] sm:$0xf]
      %v384 = vld [vmem:[%s275 + $0x24] sm:$0xf]
      %v385 = vld [vmem:[%s275 + $0x28] sm:$0xf]
      %v386 = vld [vmem:[%s275 + $0x2c] sm:$0xf]
      %v387 = vld [vmem:[%s275 + $0x30] sm:$0xf]
      %v388 = vld [vmem:[%s275 + $0x34] sm:$0xf]
      %v389 = vld [vmem:[%s275 + $0x38] sm:$0xf]
      %v390 = vld [vmem:[%s275 + $0x3c] sm:$0xf]
      %v391 = vld [vmem:[%s275 + $0x40] sm:$0xf]
      %v392 = vld [vmem:[%s275 + $0x44] sm:$0xf]
      %v393 = vld [vmem:[%s275 + $0x48] sm:$0xf]
      %v394 = vld [vmem:[%s275 + $0x4c] sm:$0xf]
      %v395 = vld [vmem:[%s275 + $0x50] sm:$0xf]
      %v396 = vld [vmem:[%s275 + $0x54] sm:$0xf]
      %v397 = vld [vmem:[%s275 + $0x58] sm:$0xf]
      %v398 = vld [vmem:[%s275 + $0x5c] sm:$0xf]
      %v399 = vld [vmem:[%s275 + $0x60] sm:$0xf]
      %v400 = vld [vmem:[%s275 + $0x64] sm:$0xf]
      %v401 = vld [vmem:[%s275 + $0x68] sm:$0xf]
      %v402 = vld [vmem:[%s275 + $0x6c] sm:$0xf]
      %v403 = vld [vmem:[%s275 + $0x70] sm:$0xf]
      %v404 = vld [vmem:[%s275 + $0x74] sm:$0xf]
      %v405 = vld [vmem:[%s275 + $0x78] sm:$0xf]
      %v406 = vld [vmem:[%s275 + $0x7c] sm:$0xf]
      %v407 = vld [vmem:[%s284] sm:$0xf]
      %v408 = vld [vmem:[%s284 + $0x4] sm:$0xf]
      %v409 = vld [vmem:[%s284 + $0x8] sm:$0xf]
      %v410 = vld [vmem:[%s284 + $0xc] sm:$0xf]
      %v411 = vld [vmem:[%s284 + $0x10] sm:$0xf]
      %v412 = vld [vmem:[%s284 + $0x14] sm:$0xf]
      %v413 = vld [vmem:[%s284 + $0x18] sm:$0xf]
      %v414 = vld [vmem:[%s284 + $0x1c] sm:$0xf]
      %v415 = vld [vmem:[%s284 + $0x20] sm:$0xf]
      %v416 = vld [vmem:[%s284 + $0x24] sm:$0xf]
      %v417 = vld [vmem:[%s284 + $0x28] sm:$0xf]
      %v418 = vld [vmem:[%s284 + $0x2c] sm:$0xf]
      %v419 = vld [vmem:[%s284 + $0x30] sm:$0xf]
      %v420 = vld [vmem:[%s284 + $0x34] sm:$0xf]
      %v421 = vld [vmem:[%s284 + $0x38] sm:$0xf]
      %v422 = vld [vmem:[%s284 + $0x3c] sm:$0xf]
      %v455 = vunpack.c.l.b16 %v375
      %v456 = vunpack.c.l.b16 %v376
      %v457 = vunpack.c.l.b16 %v377
      %v458 = vunpack.c.l.b16 %v378
      %v459 = vunpack.c.l.b16 %v379
      %v460 = vunpack.c.l.b16 %v380
      %v461 = vunpack.c.l.b16 %v381
      %v462 = vunpack.c.l.b16 %v382
      %v463 = vunpack.c.l.b16 %v383
      %v464 = vunpack.c.l.b16 %v384
      %v465 = vunpack.c.l.b16 %v385
      %v466 = vunpack.c.l.b16 %v386
      %v467 = vunpack.c.l.b16 %v387
      %v468 = vunpack.c.l.b16 %v388
      %v469 = vunpack.c.l.b16 %v389
      %v470 = vunpack.c.l.b16 %v390
      %v471 = vunpack.c.l.b16 %v391
      %v472 = vunpack.c.l.b16 %v392
      %v473 = vunpack.c.l.b16 %v393
      %v474 = vunpack.c.l.b16 %v394
      %v475 = vunpack.c.l.b16 %v395
      %v476 = vunpack.c.l.b16 %v396
      %v477 = vunpack.c.l.b16 %v397
      %v478 = vunpack.c.l.b16 %v398
      %v479 = vunpack.c.l.b16 %v399
      %v480 = vunpack.c.l.b16 %v400
      %v481 = vunpack.c.l.b16 %v401
      %v482 = vunpack.c.l.b16 %v402
      %v483 = vunpack.c.l.b16 %v403
      %v484 = vunpack.c.l.b16 %v404
      %v485 = vunpack.c.l.b16 %v405
      %v486 = vunpack.c.l.b16 %v406
      %v487 = vpack.c.b16 %v456, %v455
      %v488 = vpack.c.b16 %v458, %v457
      %v489 = vpack.c.b16 %v460, %v459
      %v490 = vpack.c.b16 %v462, %v461
      %v491 = vpack.c.b16 %v464, %v463
      %v492 = vpack.c.b16 %v466, %v465
      %v493 = vpack.c.b16 %v468, %v467
      %v494 = vpack.c.b16 %v470, %v469
      %v495 = vpack.c.b16 %v472, %v471
      %v496 = vpack.c.b16 %v474, %v473
      %v497 = vpack.c.b16 %v476, %v475
      %v498 = vpack.c.b16 %v478, %v477
      %v499 = vpack.c.b16 %v480, %v479
      %v500 = vpack.c.b16 %v482, %v481
      %v501 = vpack.c.b16 %v484, %v483
      %v502 = vpack.c.b16 %v486, %v485
      %v535 = vunpack.c.l.b16 %v407
      %v536 = vunpack.c.l.b16 %v408
      %v537 = vunpack.c.l.b16 %v409
      %v538 = vunpack.c.l.b16 %v410
      %v539 = vunpack.c.l.b16 %v411
      %v540 = vunpack.c.l.b16 %v412
      %v541 = vunpack.c.l.b16 %v413
      %v542 = vunpack.c.l.b16 %v414
      %v543 = vunpack.c.l.b16 %v415
      %v544 = vunpack.c.l.b16 %v416
      %v545 = vunpack.c.l.b16 %v417
      %v546 = vunpack.c.l.b16 %v418
      %v547 = vunpack.c.l.b16 %v419
      %v548 = vunpack.c.l.b16 %v420
      %v549 = vunpack.c.l.b16 %v421
      %v550 = vunpack.c.l.b16 %v422
      %v551 = vpack.c.b16 %v536, %v535
      %v552 = vpack.c.b16 %v538, %v537
      %v553 = vpack.c.b16 %v540, %v539
      %v554 = vpack.c.b16 %v542, %v541
      %v555 = vpack.c.b16 %v544, %v543
      %v556 = vpack.c.b16 %v546, %v545
      %v557 = vpack.c.b16 %v548, %v547
      %v558 = vpack.c.b16 %v550, %v549
      %567 = vmatprep.subr.bf16.mxu0 0
      %568 = vmatpush1.bf16.msra.mxu0 %v558
      %569 = vmatprep.subr.bf16.mxu0 0
      %570 = vmatpush1.bf16.msra.mxu0 %v557
      %571 = vmatprep.subr.bf16.mxu0 0
      %572 = vmatpush1.bf16.msra.mxu0 %v556
      %573 = vmatprep.subr.bf16.mxu0 0
      %574 = vmatpush1.bf16.msra.mxu0 %v555
      %575 = vmatprep.subr.bf16.mxu0 0
      %576 = vmatpush1.bf16.msra.mxu0 %v554
      %577 = vmatprep.subr.bf16.mxu0 0
      %578 = vmatpush1.bf16.msra.mxu0 %v553
      %579 = vmatprep.subr.bf16.mxu0 0
      %580 = vmatpush1.bf16.msra.mxu0 %v552
      %581 = vmatprep.subr.bf16.mxu0 0
      %582 = vmatpush1.bf16.msra.mxu0 %v551
      %583 = vmatprep.subr.bf16.mxu0 0
      %584 = vmatpush2.bf16.msra.mxu0 0
      %585 = vmatprep.subr.bf16.mxu0 0
      %586 = vmatpush2.bf16.msra.mxu0 0
      %587 = vmatprep.subr.bf16.mxu0 0
      %588 = vmatpush2.bf16.msra.mxu0 0
      %589 = vmatprep.subr.bf16.mxu0 0
      %590 = vmatpush2.bf16.msra.mxu0 0
      %591 = vmatprep.subr.bf16.mxu0 0
      %592 = vmatpush2.bf16.msra.mxu0 0
      %593 = vmatprep.subr.bf16.mxu0 0
      %594 = vmatpush2.bf16.msra.mxu0 0
      %595 = vmatprep.subr.bf16.mxu0 0
      %596 = vmatpush2.bf16.msra.mxu0 0
      %597 = vmatprep.subr.bf16.mxu0 0
      %598 = vmatpush2.bf16.msra.mxu0 0
      %599 = vmatprep.mubr.bf16.mxu0 0
      %600 = vmatmul.mubr.bf16.gmra.mxu0 %v487
      %v601 = vpop.f32.mrf.mxu0
      %v602 = vadd.f32 0.0, %v601
      %v603 = vpop.f32.mrf.mxu0
      %v604 = vpop.f32.mrf.mxu0
      %v605 = vadd.f32 0.0, %v604
      %v606 = vpop.f32.mrf.mxu0
      %607 = vmatprep.mubr.bf16.mxu0 0
      %608 = vmatmul.mubr.bf16.gmra.mxu0 %v488
      %v609 = vpop.f32.mrf.mxu0
      %v610 = vadd.f32 0.0, %v609
      %v611 = vpop.f32.mrf.mxu0
      %v612 = vpop.f32.mrf.mxu0
      %v613 = vadd.f32 0.0, %v612
      %v614 = vpop.f32.mrf.mxu0
      %615 = vmatprep.mubr.bf16.mxu0 0
      %616 = vmatmul.mubr.bf16.gmra.mxu0 %v489
      %v617 = vpop.f32.mrf.mxu0
      %v618 = vadd.f32 0.0, %v617
      %v619 = vpop.f32.mrf.mxu0
      %v620 = vpop.f32.mrf.mxu0
      %v621 = vadd.f32 0.0, %v620
      %v622 = vpop.f32.mrf.mxu0
      %623 = vmatprep.mubr.bf16.mxu0 0
      %624 = vmatmul.mubr.bf16.gmra.mxu0 %v490
      %v625 = vpop.f32.mrf.mxu0
      %v626 = vadd.f32 0.0, %v625
      %v627 = vpop.f32.mrf.mxu0
      %v628 = vpop.f32.mrf.mxu0
      %v629 = vadd.f32 0.0, %v628
      %v630 = vpop.f32.mrf.mxu0
      %631 = vmatprep.mubr.bf16.mxu0 0
      %632 = vmatmul.mubr.bf16.gmra.mxu0 %v491
      %v633 = vpop.f32.mrf.mxu0
      %v634 = vadd.f32 0.0, %v633
      %v635 = vpop.f32.mrf.mxu0
      %v636 = vpop.f32.mrf.mxu0
      %v637 = vadd.f32 0.0, %v636
      %v638 = vpop.f32.mrf.mxu0
      %639 = vmatprep.mubr.bf16.mxu0 0
      %640 = vmatmul.mubr.bf16.gmra.mxu0 %v492
      %v641 = vpop.f32.mrf.mxu0
      %v642 = vadd.f32 0.0, %v641
      %v643 = vpop.f32.mrf.mxu0
      %v644 = vpop.f32.mrf.mxu0
      %v645 = vadd.f32 0.0, %v644
      %v646 = vpop.f32.mrf.mxu0
      %647 = vmatprep.mubr.bf16.mxu0 0
      %648 = vmatmul.mubr.bf16.gmra.mxu0 %v493
      %v649 = vpop.f32.mrf.mxu0
      %v650 = vadd.f32 0.0, %v649
      %v651 = vpop.f32.mrf.mxu0
      %v652 = vpop.f32.mrf.mxu0
      %v653 = vadd.f32 0.0, %v652
      %v654 = vpop.f32.mrf.mxu0
      %655 = vmatprep.mubr.bf16.mxu0 0
      %656 = vmatmul.mubr.bf16.gmra.mxu0 %v494
      %v657 = vpop.f32.mrf.mxu0
      %v658 = vadd.f32 0.0, %v657
      %v659 = vpop.f32.mrf.mxu0
      %v660 = vpop.f32.mrf.mxu0
      %v661 = vadd.f32 0.0, %v660
      %v662 = vpop.f32.mrf.mxu0
      %663 = vmatprep.mubr.bf16.mxu0 0
      %664 = vmatmul.mubr.bf16.gmra.mxu0 %v495
      %v665 = vpop.f32.mrf.mxu0
      %v666 = vadd.f32 0.0, %v665
      %v667 = vpop.f32.mrf.mxu0
      %v668 = vpop.f32.mrf.mxu0
      %v669 = vadd.f32 0.0, %v668
      %v670 = vpop.f32.mrf.mxu0
      %671 = vmatprep.mubr.bf16.mxu0 0
      %672 = vmatmul.mubr.bf16.gmra.mxu0 %v496
      %v673 = vpop.f32.mrf.mxu0
      %v674 = vadd.f32 0.0, %v673
      %v675 = vpop.f32.mrf.mxu0
      %v676 = vpop.f32.mrf.mxu0
      %v677 = vadd.f32 0.0, %v676
      %v678 = vpop.f32.mrf.mxu0
      %679 = vmatprep.mubr.bf16.mxu0 0
      %680 = vmatmul.mubr.bf16.gmra.mxu0 %v497
      %v681 = vpop.f32.mrf.mxu0
      %v682 = vadd.f32 0.0, %v681
      %v683 = vpop.f32.mrf.mxu0
      %v684 = vpop.f32.mrf.mxu0
      %v685 = vadd.f32 0.0, %v684
      %v686 = vpop.f32.mrf.mxu0
      %687 = vmatprep.mubr.bf16.mxu0 0
      %688 = vmatmul.mubr.bf16.gmra.mxu0 %v498
      %v689 = vpop.f32.mrf.mxu0
      %v690 = vadd.f32 0.0, %v689
      %v691 = vpop.f32.mrf.mxu0
      %v692 = vpop.f32.mrf.mxu0
      %v693 = vadd.f32 0.0, %v692
      %v694 = vpop.f32.mrf.mxu0
      %695 = vmatprep.mubr.bf16.mxu0 0
      %696 = vmatmul.mubr.bf16.gmra.mxu0 %v499
      %v697 = vpop.f32.mrf.mxu0
      %v698 = vadd.f32 0.0, %v697
      %v699 = vpop.f32.mrf.mxu0
      %v700 = vpop.f32.mrf.mxu0
      %v701 = vadd.f32 0.0, %v700
      %v702 = vpop.f32.mrf.mxu0
      %703 = vmatprep.mubr.bf16.mxu0 0
      %704 = vmatmul.mubr.bf16.gmra.mxu0 %v500
      %v705 = vpop.f32.mrf.mxu0
      %v706 = vadd.f32 0.0, %v705
      %v707 = vpop.f32.mrf.mxu0
      %v708 = vpop.f32.mrf.mxu0
      %v709 = vadd.f32 0.0, %v708
      %v710 = vpop.f32.mrf.mxu0
      %711 = vmatprep.mubr.bf16.mxu0 0
      %712 = vmatmul.mubr.bf16.gmra.mxu0 %v501
      %v713 = vpop.f32.mrf.mxu0
      %v714 = vadd.f32 0.0, %v713
      %v715 = vpop.f32.mrf.mxu0
      %v716 = vpop.f32.mrf.mxu0
      %v717 = vadd.f32 0.0, %v716
      %v718 = vpop.f32.mrf.mxu0
      %719 = vmatprep.mubr.bf16.mxu0 0
      %720 = vmatmul.mubr.bf16.gmra.mxu0 %v502
      %v721 = vpop.f32.mrf.mxu0
      %v722 = vadd.f32 0.0, %v721
      %v723 = vpop.f32.mrf.mxu0
      %v724 = vpop.f32.mrf.mxu0
      %v725 = vadd.f32 0.0, %v724
      %v726 = vpop.f32.mrf.mxu0
      %727 = vdwg.mxu0
      %v728 = vadd.f32 %v343, %v602
      %v729 = vadd.f32 %v344, %v605
      %v730 = vadd.f32 %v345, %v610
      %v731 = vadd.f32 %v346, %v613
      %v732 = vadd.f32 %v347, %v618
      %v733 = vadd.f32 %v348, %v621
      %v734 = vadd.f32 %v349, %v626
      %v735 = vadd.f32 %v350, %v629
      %v736 = vadd.f32 %v351, %v634
      %v737 = vadd.f32 %v352, %v637
      %v738 = vadd.f32 %v353, %v642
      %v739 = vadd.f32 %v354, %v645
      %v740 = vadd.f32 %v355, %v650
      %v741 = vadd.f32 %v356, %v653
      %v742 = vadd.f32 %v357, %v658
      %v743 = vadd.f32 %v358, %v661
      %v744 = vadd.f32 %v359, %v666
      %v745 = vadd.f32 %v360, %v669
      %v746 = vadd.f32 %v361, %v674
      %v747 = vadd.f32 %v362, %v677
      %v748 = vadd.f32 %v363, %v682
      %v749 = vadd.f32 %v364, %v685
      %v750 = vadd.f32 %v365, %v690
      %v751 = vadd.f32 %v366, %v693
      %v752 = vadd.f32 %v367, %v698
      %v753 = vadd.f32 %v368, %v701
      %v754 = vadd.f32 %v369, %v706
      %v755 = vadd.f32 %v370, %v709
      %v756 = vadd.f32 %v371, %v714
      %v757 = vadd.f32 %v372, %v717
      %v758 = vadd.f32 %v373, %v722
      %v759 = vadd.f32 %v374, %v725
      %vm760 = vcmask 523264
      %761 = vst.msk [vmem:[#allocation2] sm:$0xff] %vm760, %v728
      %762 = vst.msk [vmem:[#allocation2 + $0x8] sm:$0xff] %vm760, %v729
      %763 = vst.msk [vmem:[#allocation2 + $0x10] sm:$0xff] %vm760, %v730
      %764 = vst.msk [vmem:[#allocation2 + $0x18] sm:$0xff] %vm760, %v731
      %765 = vst.msk [vmem:[#allocation2 + $0x20] sm:$0xff] %vm760, %v732
      %766 = vst.msk [vmem:[#allocation2 + $0x28] sm:$0xff] %vm760, %v733
      %767 = vst.msk [vmem:[#allocation2 + $0x30] sm:$0xff] %vm760, %v734
      %768 = vst.msk [vmem:[#allocation2 + $0x38] sm:$0xff] %vm760, %v735
      %769 = vst.msk [vmem:[#allocation2 + $0x40] sm:$0xff] %vm760, %v736
      %770 = vst.msk [vmem:[#allocation2 + $0x48] sm:$0xff] %vm760, %v737
      %771 = vst.msk [vmem:[#allocation2 + $0x50] sm:$0xff] %vm760, %v738
      %772 = vst.msk [vmem:[#allocation2 + $0x58] sm:$0xff] %vm760, %v739
      %773 = vst.msk [vmem:[#allocation2 + $0x60] sm:$0xff] %vm760, %v740
      %774 = vst.msk [vmem:[#allocation2 + $0x68] sm:$0xff] %vm760, %v741
      %775 = vst.msk [vmem:[#allocation2 + $0x70] sm:$0xff] %vm760, %v742
      %776 = vst.msk [vmem:[#allocation2 + $0x78] sm:$0xff] %vm760, %v743
      %777 = vst.msk [vmem:[#allocation2 + $0x80] sm:$0xff] %vm760, %v744
      %778 = vst.msk [vmem:[#allocation2 + $0x88] sm:$0xff] %vm760, %v745
      %779 = vst.msk [vmem:[#allocation2 + $0x90] sm:$0xff] %vm760, %v746
      %780 = vst.msk [vmem:[#allocation2 + $0x98] sm:$0xff] %vm760, %v747
      %781 = vst.msk [vmem:[#allocation2 + $0xa0] sm:$0xff] %vm760, %v748
      %782 = vst.msk [vmem:[#allocation2 + $0xa8] sm:$0xff] %vm760, %v749
      %783 = vst.msk [vmem:[#allocation2 + $0xb0] sm:$0xff] %vm760, %v750
      %784 = vst.msk [vmem:[#allocation2 + $0xb8] sm:$0xff] %vm760, %v751
      %785 = vst.msk [vmem:[#allocation2 + $0xc0] sm:$0xff] %vm760, %v752
      %786 = vst.msk [vmem:[#allocation2 + $0xc8] sm:$0xff] %vm760, %v753
      %787 = vst.msk [vmem:[#allocation2 + $0xd0] sm:$0xff] %vm760, %v754
      %788 = vst.msk [vmem:[#allocation2 + $0xd8] sm:$0xff] %vm760, %v755
      %789 = vst.msk [vmem:[#allocation2 + $0xe0] sm:$0xff] %vm760, %v756
      %790 = vst.msk [vmem:[#allocation2 + $0xe8] sm:$0xff] %vm760, %v757
      %791 = vst.msk [vmem:[#allocation2 + $0xf0] sm:$0xff] %vm760, %v758
      %792 = vst.msk [vmem:[#allocation2 + $0xf8] sm:$0xff] %vm760, %v759
      // Predicated region
      $region37: #{discriminator_forward.4} parent=31 // pred_check
        %p793 = pneg %p306
      $region38: #{discriminator_forward.4} parent=31 // pred_check_branch
        %795 = sbr.rel (%p793) target = $region40
      $region39: #{discriminator_forward.4} parent=31 // pred_region
        %v796 = vld [vmem:[#allocation2] sm:$0xff]
        %v797 = vld [vmem:[#allocation2 + $0x8] sm:$0xff]
        %v798 = vld [vmem:[#allocation2 + $0x10] sm:$0xff]
        %v799 = vld [vmem:[#allocation2 + $0x18] sm:$0xff]
        %v800 = vld [vmem:[#allocation2 + $0x20] sm:$0xff]
        %v801 = vld [vmem:[#allocation2 + $0x28] sm:$0xff]
        %v802 = vld [vmem:[#allocation2 + $0x30] sm:$0xff]
        %v803 = vld [vmem:[#allocation2 + $0x38] sm:$0xff]
        %v804 = vld [vmem:[#allocation2 + $0x40] sm:$0xff]
        %v805 = vld [vmem:[#allocation2 + $0x48] sm:$0xff]
        %v806 = vld [vmem:[#allocation2 + $0x50] sm:$0xff]
        %v807 = vld [vmem:[#allocation2 + $0x58] sm:$0xff]
        %v808 = vld [vmem:[#allocation2 + $0x60] sm:$0xff]
        %v809 = vld [vmem:[#allocation2 + $0x68] sm:$0xff]
        %v810 = vld [vmem:[#allocation2 + $0x70] sm:$0xff]
        %v811 = vld [vmem:[#allocation2 + $0x78] sm:$0xff]
        %v812 = vld [vmem:[#allocation2 + $0x80] sm:$0xff]
        %v813 = vld [vmem:[#allocation2 + $0x88] sm:$0xff]
        %v814 = vld [vmem:[#allocation2 + $0x90] sm:$0xff]
        %v815 = vld [vmem:[#allocation2 + $0x98] sm:$0xff]
        %v816 = vld [vmem:[#allocation2 + $0xa0] sm:$0xff]
        %v817 = vld [vmem:[#allocation2 + $0xa8] sm:$0xff]
        %v818 = vld [vmem:[#allocation2 + $0xb0] sm:$0xff]
        %v819 = vld [vmem:[#allocation2 + $0xb8] sm:$0xff]
        %v820 = vld [vmem:[#allocation2 + $0xc0] sm:$0xff]
        %v821 = vld [vmem:[#allocation2 + $0xc8] sm:$0xff]
        %v822 = vld [vmem:[#allocation2 + $0xd0] sm:$0xff]
        %v823 = vld [vmem:[#allocation2 + $0xd8] sm:$0xff]
        %v824 = vld [vmem:[#allocation2 + $0xe0] sm:$0xff]
        %v825 = vld [vmem:[#allocation2 + $0xe8] sm:$0xff]
        %v826 = vld [vmem:[#allocation2 + $0xf0] sm:$0xff]
        %v827 = vld [vmem:[#allocation2 + $0xf8] sm:$0xff]
        %v828 = vld [vmem:[%s288] sm:$0x1]
        %v830 = vlaneseq
        %v831 = vshrl.u32 %v830, 7
        %v832 = vsub.s32 0, %v831
        %v833 = vrot.slane %v828, %v832
        %v835 = vadd.f32 %v796, %v833
        %v836 = vadd.f32 %v797, %v833
        %v837 = vadd.f32 %v798, %v833
        %v838 = vadd.f32 %v799, %v833
        %v839 = vadd.f32 %v800, %v833
        %v840 = vadd.f32 %v801, %v833
        %v841 = vadd.f32 %v802, %v833
        %v842 = vadd.f32 %v803, %v833
        %v843 = vadd.f32 %v804, %v833
        %v844 = vadd.f32 %v805, %v833
        %v845 = vadd.f32 %v806, %v833
        %v846 = vadd.f32 %v807, %v833
        %v847 = vadd.f32 %v808, %v833
        %v848 = vadd.f32 %v809, %v833
        %v849 = vadd.f32 %v810, %v833
        %v850 = vadd.f32 %v811, %v833
        %v851 = vadd.f32 %v812, %v833
        %v852 = vadd.f32 %v813, %v833
        %v853 = vadd.f32 %v814, %v833
        %v854 = vadd.f32 %v815, %v833
        %v855 = vadd.f32 %v816, %v833
        %v856 = vadd.f32 %v817, %v833
        %v857 = vadd.f32 %v818, %v833
        %v858 = vadd.f32 %v819, %v833
        %v859 = vadd.f32 %v820, %v833
        %v860 = vadd.f32 %v821, %v833
        %v861 = vadd.f32 %v822, %v833
        %v862 = vadd.f32 %v823, %v833
        %v863 = vadd.f32 %v824, %v833
        %v864 = vadd.f32 %v825, %v833
        %v865 = vadd.f32 %v826, %v833
        %v866 = vadd.f32 %v827, %v833
        %v867 = vmax.f32 %v835, 0.0
        %v868 = vmax.f32 %v836, 0.0
        %v869 = vmax.f32 %v837, 0.0
        %v870 = vmax.f32 %v838, 0.0
        %v871 = vmax.f32 %v839, 0.0
        %v872 = vmax.f32 %v840, 0.0
        %v873 = vmax.f32 %v841, 0.0
        %v874 = vmax.f32 %v842, 0.0
        %v875 = vmax.f32 %v843, 0.0
        %v876 = vmax.f32 %v844, 0.0
        %v877 = vmax.f32 %v845, 0.0
        %v878 = vmax.f32 %v846, 0.0
        %v879 = vmax.f32 %v847, 0.0
        %v880 = vmax.f32 %v848, 0.0
        %v881 = vmax.f32 %v849, 0.0
        %v882 = vmax.f32 %v850, 0.0
        %v883 = vmax.f32 %v851, 0.0
        %v884 = vmax.f32 %v852, 0.0
        %v885 = vmax.f32 %v853, 0.0
        %v886 = vmax.f32 %v854, 0.0
        %v887 = vmax.f32 %v855, 0.0
        %v888 = vmax.f32 %v856, 0.0
        %v889 = vmax.f32 %v857, 0.0
        %v890 = vmax.f32 %v858, 0.0
        %v891 = vmax.f32 %v859, 0.0
        %v892 = vmax.f32 %v860, 0.0
        %v893 = vmax.f32 %v861, 0.0
        %v894 = vmax.f32 %v862, 0.0
        %v895 = vmax.f32 %v863, 0.0
        %v896 = vmax.f32 %v864, 0.0
        %v897 = vmax.f32 %v865, 0.0
        %v898 = vmax.f32 %v866, 0.0
        %899 = vst.msk [vmem:[%s296] sm:$0xff] %vm760, %v867
        %900 = vst.msk [vmem:[%s296 + $0x8] sm:$0xff] %vm760, %v868
        %901 = vst.msk [vmem:[%s296 + $0x10] sm:$0xff] %vm760, %v869
        %902 = vst.msk [vmem:[%s296 + $0x18] sm:$0xff] %vm760, %v870
        %903 = vst.msk [vmem:[%s296 + $0x20] sm:$0xff] %vm760, %v871
        %904 = vst.msk [vmem:[%s296 + $0x28] sm:$0xff] %vm760, %v872
        %905 = vst.msk [vmem:[%s296 + $0x30] sm:$0xff] %vm760, %v873
        %906 = vst.msk [vmem:[%s296 + $0x38] sm:$0xff] %vm760, %v874
        %907 = vst.msk [vmem:[%s296 + $0x40] sm:$0xff] %vm760, %v875
        %908 = vst.msk [vmem:[%s296 + $0x48] sm:$0xff] %vm760, %v876
        %909 = vst.msk [vmem:[%s296 + $0x50] sm:$0xff] %vm760, %v877
        %910 = vst.msk [vmem:[%s296 + $0x58] sm:$0xff] %vm760, %v878
        %911 = vst.msk [vmem:[%s296 + $0x60] sm:$0xff] %vm760, %v879
        %912 = vst.msk [vmem:[%s296 + $0x68] sm:$0xff] %vm760, %v880
        %913 = vst.msk [vmem:[%s296 + $0x70] sm:$0xff] %vm760, %v881
        %914 = vst.msk [vmem:[%s296 + $0x78] sm:$0xff] %vm760, %v882
        %915 = vst.msk [vmem:[%s296 + $0x80] sm:$0xff] %vm760, %v883
        %916 = vst.msk [vmem:[%s296 + $0x88] sm:$0xff] %vm760, %v884
        %917 = vst.msk [vmem:[%s296 + $0x90] sm:$0xff] %vm760, %v885
        %918 = vst.msk [vmem:[%s296 + $0x98] sm:$0xff] %vm760, %v886
        %919 = vst.msk [vmem:[%s296 + $0xa0] sm:$0xff] %vm760, %v887
        %920 = vst.msk [vmem:[%s296 + $0xa8] sm:$0xff] %vm760, %v888
        %921 = vst.msk [vmem:[%s296 + $0xb0] sm:$0xff] %vm760, %v889
        %922 = vst.msk [vmem:[%s296 + $0xb8] sm:$0xff] %vm760, %v890
        %923 = vst.msk [vmem:[%s296 + $0xc0] sm:$0xff] %vm760, %v891
        %924 = vst.msk [vmem:[%s296 + $0xc8] sm:$0xff] %vm760, %v892
        %925 = vst.msk [vmem:[%s296 + $0xd0] sm:$0xff] %vm760, %v893
        %926 = vst.msk [vmem:[%s296 + $0xd8] sm:$0xff] %vm760, %v894
        %927 = vst.msk [vmem:[%s296 + $0xe0] sm:$0xff] %vm760, %v895
        %928 = vst.msk [vmem:[%s296 + $0xe8] sm:$0xff] %vm760, %v896
        %929 = vst.msk [vmem:[%s296 + $0xf0] sm:$0xff] %vm760, %v897
        %930 = vst.msk [vmem:[%s296 + $0xf8] sm:$0xff] %vm760, %v898
        %v931 = vsel %vm760, %v867, 0.0
        %v932 = vsel %vm760, %v868, 0.0
        %v933 = vadd.f32 %v931, %v932
        %v934 = vsel %vm760, %v869, 0.0
        %v935 = vadd.f32 %v933, %v934
        %v936 = vsel %vm760, %v870, 0.0
        %v937 = vadd.f32 %v935, %v936
        %v938 = vsel %vm760, %v871, 0.0
        %v939 = vadd.f32 %v937, %v938
        %v940 = vsel %vm760, %v872, 0.0
        %v941 = vadd.f32 %v939, %v940
        %v942 = vsel %vm760, %v873, 0.0
        %v943 = vadd.f32 %v941, %v942
        %v944 = vsel %vm760, %v874, 0.0
        %v945 = vadd.f32 %v943, %v944
        %v946 = vsel %vm760, %v875, 0.0
        %v947 = vadd.f32 %v945, %v946
        %v948 = vsel %vm760, %v876, 0.0
        %v949 = vadd.f32 %v947, %v948
        %v950 = vsel %vm760, %v877, 0.0
        %v951 = vadd.f32 %v949, %v950
        %v952 = vsel %vm760, %v878, 0.0
        %v953 = vadd.f32 %v951, %v952
        %v954 = vsel %vm760, %v879, 0.0
        %v955 = vadd.f32 %v953, %v954
        %v956 = vsel %vm760, %v880, 0.0
        %v957 = vadd.f32 %v955, %v956
        %v958 = vsel %vm760, %v881, 0.0
        %v959 = vadd.f32 %v957, %v958
        %v960 = vsel %vm760, %v882, 0.0
        %v961 = vadd.f32 %v959, %v960
        %v962 = vsel %vm760, %v883, 0.0
        %v963 = vadd.f32 %v961, %v962
        %v964 = vsel %vm760, %v884, 0.0
        %v965 = vadd.f32 %v963, %v964
        %v966 = vsel %vm760, %v885, 0.0
        %v967 = vadd.f32 %v965, %v966
        %v968 = vsel %vm760, %v886, 0.0
        %v969 = vadd.f32 %v967, %v968
        %v970 = vsel %vm760, %v887, 0.0
        %v971 = vadd.f32 %v969, %v970
        %v972 = vsel %vm760, %v888, 0.0
        %v973 = vadd.f32 %v971, %v972
        %v974 = vsel %vm760, %v889, 0.0
        %v975 = vadd.f32 %v973, %v974
        %v976 = vsel %vm760, %v890, 0.0
        %v977 = vadd.f32 %v975, %v976
        %v978 = vsel %vm760, %v891, 0.0
        %v979 = vadd.f32 %v977, %v978
        %v980 = vsel %vm760, %v892, 0.0
        %v981 = vadd.f32 %v979, %v980
        %v982 = vsel %vm760, %v893, 0.0
        %v983 = vadd.f32 %v981, %v982
        %v984 = vsel %vm760, %v894, 0.0
        %v985 = vadd.f32 %v983, %v984
        %v986 = vsel %vm760, %v895, 0.0
        %v987 = vadd.f32 %v985, %v986
        %v988 = vsel %vm760, %v896, 0.0
        %v989 = vadd.f32 %v987, %v988
        %v990 = vsel %vm760, %v897, 0.0
        %v991 = vadd.f32 %v989, %v990
        %v992 = vsel %vm760, %v898, 0.0
        %v993 = vadd.f32 %v991, %v992
        %v994 = vrot.slane %v993, 4
        %v995 = vadd.f32 %v993, %v994
        %v996 = vrot.slane %v995, 2
        %v997 = vadd.f32 %v995, %v996
        %v998 = vrot.slane %v997, 1
        %v999 = vadd.f32 %v997, %v998
        %v1000 = vmul.f32 %v867, %v867
        %v1001 = vmul.f32 %v868, %v868
        %v1002 = vmul.f32 %v869, %v869
        %v1003 = vmul.f32 %v870, %v870
        %v1004 = vmul.f32 %v871, %v871
        %v1005 = vmul.f32 %v872, %v872
        %v1006 = vmul.f32 %v873, %v873
        %v1007 = vmul.f32 %v874, %v874
        %v1008 = vmul.f32 %v875, %v875
        %v1009 = vmul.f32 %v876, %v876
        %v1010 = vmul.f32 %v877, %v877
        %v1011 = vmul.f32 %v878, %v878
        %v1012 = vmul.f32 %v879, %v879
        %v1013 = vmul.f32 %v880, %v880
        %v1014 = vmul.f32 %v881, %v881
        %v1015 = vmul.f32 %v882, %v882
        %v1016 = vmul.f32 %v883, %v883
        %v1017 = vmul.f32 %v884, %v884
        %v1018 = vmul.f32 %v885, %v885
        %v1019 = vmul.f32 %v886, %v886
        %v1020 = vmul.f32 %v887, %v887
        %v1021 = vmul.f32 %v888, %v888
        %v1022 = vmul.f32 %v889, %v889
        %v1023 = vmul.f32 %v890, %v890
        %v1024 = vmul.f32 %v891, %v891
        %v1025 = vmul.f32 %v892, %v892
        %v1026 = vmul.f32 %v893, %v893
        %v1027 = vmul.f32 %v894, %v894
        %v1028 = vmul.f32 %v895, %v895
        %v1029 = vmul.f32 %v896, %v896
        %v1030 = vmul.f32 %v897, %v897
        %v1031 = vmul.f32 %v898, %v898
        %v1032 = vsel %vm760, %v1000, 0.0
        %v1033 = vsel %vm760, %v1001, 0.0
        %v1034 = vadd.f32 %v1032, %v1033
        %v1035 = vsel %vm760, %v1002, 0.0
        %v1036 = vadd.f32 %v1034, %v1035
        %v1037 = vsel %vm760, %v1003, 0.0
        %v1038 = vadd.f32 %v1036, %v1037
        %v1039 = vsel %vm760, %v1004, 0.0
        %v1040 = vadd.f32 %v1038, %v1039
        %v1041 = vsel %vm760, %v1005, 0.0
        %v1042 = vadd.f32 %v1040, %v1041
        %v1043 = vsel %vm760, %v1006, 0.0
        %v1044 = vadd.f32 %v1042, %v1043
        %v1045 = vsel %vm760, %v1007, 0.0
        %v1046 = vadd.f32 %v1044, %v1045
        %v1047 = vsel %vm760, %v1008, 0.0
        %v1048 = vadd.f32 %v1046, %v1047
        %v1049 = vsel %vm760, %v1009, 0.0
        %v1050 = vadd.f32 %v1048, %v1049
        %v1051 = vsel %vm760, %v1010, 0.0
        %v1052 = vadd.f32 %v1050, %v1051
        %v1053 = vsel %vm760, %v1011, 0.0
        %v1054 = vadd.f32 %v1052, %v1053
        %v1055 = vsel %vm760, %v1012, 0.0
        %v1056 = vadd.f32 %v1054, %v1055
        %v1057 = vsel %vm760, %v1013, 0.0
        %v1058 = vadd.f32 %v1056, %v1057
        %v1059 = vsel %vm760, %v1014, 0.0
        %v1060 = vadd.f32 %v1058, %v1059
        %v1061 = vsel %vm760, %v1015, 0.0
        %v1062 = vadd.f32 %v1060, %v1061
        %v1063 = vsel %vm760, %v1016, 0.0
        %v1064 = vadd.f32 %v1062, %v1063
        %v1065 = vsel %vm760, %v1017, 0.0
        %v1066 = vadd.f32 %v1064, %v1065
        %v1067 = vsel %vm760, %v1018, 0.0
        %v1068 = vadd.f32 %v1066, %v1067
        %v1069 = vsel %vm760, %v1019, 0.0
        %v1070 = vadd.f32 %v1068, %v1069
        %v1071 = vsel %vm760, %v1020, 0.0
        %v1072 = vadd.f32 %v1070, %v1071
        %v1073 = vsel %vm760, %v1021, 0.0
        %v1074 = vadd.f32 %v1072, %v1073
        %v1075 = vsel %vm760, %v1022, 0.0
        %v1076 = vadd.f32 %v1074, %v1075
        %v1077 = vsel %vm760, %v1023, 0.0
        %v1078 = vadd.f32 %v1076, %v1077
        %v1079 = vsel %vm760, %v1024, 0.0
        %v1080 = vadd.f32 %v1078, %v1079
        %v1081 = vsel %vm760, %v1025, 0.0
        %v1082 = vadd.f32 %v1080, %v1081
        %v1083 = vsel %vm760, %v1026, 0.0
        %v1084 = vadd.f32 %v1082, %v1083
        %v1085 = vsel %vm760, %v1027, 0.0
        %v1086 = vadd.f32 %v1084, %v1085
        %v1087 = vsel %vm760, %v1028, 0.0
        %v1088 = vadd.f32 %v1086, %v1087
        %v1089 = vsel %vm760, %v1029, 0.0
        %v1090 = vadd.f32 %v1088, %v1089
        %v1091 = vsel %vm760, %v1030, 0.0
        %v1092 = vadd.f32 %v1090, %v1091
        %v1093 = vsel %vm760, %v1031, 0.0
        %v1094 = vadd.f32 %v1092, %v1093
        %v1095 = vrot.slane %v1094, 4
        %v1096 = vadd.f32 %v1094, %v1095
        %v1097 = vrot.slane %v1096, 2
        %v1098 = vadd.f32 %v1096, %v1097
        %v1099 = vrot.slane %v1098, 1
        %v1100 = vadd.f32 %v1098, %v1099
        %vm1101 = vcmask 1040384
        %v1102 = vsel %vm1101, %v999, %v1100
        %vm1103 = vcmask 1041408
        %v1104 = vsel %vm1103, %v1102, 0.0
        %1105 = vst.msk [vmem:[%s304] sm:$0xff] %vm760, %v1104
      $region40: #{discriminator_forward.4} parent=31 // pred_fallthru
        _
      %s1106 = smul.u32 32, %s21
      %p1107 = scmp.lt.s32.totalorder %s1106, 255
      %s1108 = scalar_select %p1107, %s1106, 255
      %p1109 = scmp.lt.s32.totalorder %s22, 0
      %s1110 = scalar_select %p1109, %s22, 0
      %s1111 = sadd.s32 %s1110, %s1108
      %s1112 = smul.addr %s1111, 8
      %s1113 = scalar_lea.vmem %s3, %s1112
      %p1114 = scmp.lt.s32.totalorder %s21, 7
      %s1115 = scalar_select %p1114, %s21, 7
      %p1116 = scmp.lt.s32.totalorder %s22, 0
      %s1117 = scalar_select %p1116, %s22, 0
      %s1118 = sadd.s32 %s1117, %s1115
      %s1119 = smul.addr %s1118, 8
      %s1120 = scalar_lea.vmem %s4, %s1119
      // Predicated region
      $region41: #{discriminator_forward.4} parent=31 // pred_check
        %p1121 = pneg %p137
      $region42: #{discriminator_forward.4} parent=31 // pred_check_branch
        %1123 = sbr.rel (%p1121) target = $region44
      $region43: #{discriminator_forward.4} parent=31 // pred_region
        %s1124 = smul.u32 32, %s21
      $region44: #{discriminator_forward.4} parent=31 // pred_fallthru
        _
      // Predicated region
      $region45: #{discriminator_forward.4} parent=31 // pred_check
        %p1125 = pneg %p165
      $region46: #{discriminator_forward.4} parent=31 // pred_check_branch
        %1127 = sbr.rel (%p1125) target = $region48
      $region47: #{discriminator_forward.4} parent=31 // pred_region
        _
      $region48: #{discriminator_forward.4} parent=31 // pred_fallthru
        _
    $region32: #{discriminator_forward.4} parent=5 // pred_fallthru
      _
    %p1128 = scmp.le.s32.totalorder 2, %s11
    // Predicated region
    $region49: #{discriminator_forward.4} parent=5 // pred_check
      %p1129 = pneg %p1128
    $region50: #{discriminator_forward.4} parent=5 // pred_check_branch
      %1131 = sbr.rel (%p1129) target = $region52
    $region51: #{discriminator_forward.4} parent=5 // pred_region
      %s1132 = ssub.s32 %s11, 2
      // Predicated region
      $region53: #{discriminator_forward.4} parent=51 // pred_check
        %p1133 = pneg %p143
      $region54: #{discriminator_forward.4} parent=51 // pred_check_branch
        %1135 = sbr.rel (%p1133) target = $region56
      $region55: #{discriminator_forward.4} parent=51 // pred_region
        %s1136 = smul.u32 32, %s24
        %p1137 = scmp.lt.s32.totalorder %s1136, 255
        %s1138 = scalar_select %p1137, %s1136, 255
        %p1139 = scmp.lt.s32.totalorder %s25, 0
        %s1140 = scalar_select %p1139, %s25, 0
        %s1141 = sadd.s32 %s1140, %s1138
        %s1142 = smul.addr %s1141, 8
        %s1143 = scalar_lea.vmem %s3, %s1142
      $region56: #{discriminator_forward.4} parent=51 // pred_fallthru
        _
      // Predicated region
      $region57: #{discriminator_forward.4} parent=51 // pred_check
        %p1144 = pneg %p171
      $region58: #{discriminator_forward.4} parent=51 // pred_check_branch
        %1146 = sbr.rel (%p1144) target = $region60
      $region59: #{discriminator_forward.4} parent=51 // pred_region
        %p1147 = scmp.lt.s32.totalorder %s24, 7
        %s1148 = scalar_select %p1147, %s24, 7
        %p1149 = scmp.lt.s32.totalorder %s25, 0
        %s1150 = scalar_select %p1149, %s25, 0
        %s1151 = sadd.s32 %s1150, %s1148
        %s1152 = smul.addr %s1151, 8
        %s1153 = scalar_lea.vmem %s4, %s1152
      $region60: #{discriminator_forward.4} parent=51 // pred_fallthru
        _
    $region52: #{discriminator_forward.4} parent=5 // pred_fallthru
      _
  $region6: #{discriminator_forward.4} parent=0 // loop_footer
    %s15 = sadd.s32 1, %s11
  $region7: #{discriminator_forward.4} parent=0 // loop_footer_branch
    %10 = sbr.rel target = $region3
  $region8: #{discriminator_forward.4} parent=0 // loop_exit
    _

// kernel: discriminator_forward.5
$region0: #{discriminator_forward.5}
  #allocation0 [shape = 'u32[]', space=smem, size = 0x4, offset = 0x4, fixed_abs, tag = 'smem constant byte address 0x4 - core index']
  #allocation1 [shape = 'u32[144,128]{1,0:T(1,128)}', space=vmem, size = 0x12000, scoped, tag = 'internal scratch']
  #allocation2 [shape = 'f32[256,128]{1,0:T(8,128)}', space=vmem, size = 0x20000, scoped, tag = 'scratch operand']
  %s0 = inlined_call_operand.vmem [shape: bf16[512,1024], index: 0, kind: input, shape index: {}]
  %s1 = inlined_call_operand.vmem [shape: bf16[1024,128], index: 1, kind: input, shape index: {}]
  %s2 = inlined_call_operand.vmem [shape: f32[1,128], index: 2, kind: input, shape index: {}]
  %s3 = inlined_call_operand.vmem [shape: f32[512,128], index: 3, kind: output, shape index: {0}]
  %s4 = inlined_call_operand.vmem [shape: f32[16,128], index: 4, kind: output, shape index: {1}]
  %5 = xla_tuple %s3, %s4
  %s6 = sld [smem:[#allocation0]]
  $region84: #{discriminator_forward.5} parent=0
    _
  %s8 = ssub.s32 1, %s6
  %s9 = scalar_select 0, %s8, %s6
  $region1: #{discriminator_forward.5} parent=0
    #allocation3 [shape = 'u8[524288]{0}', space=vmem, size = 0x80000, scoped, tag = 'input window, operand 0']
    loop: start=0, step=1, limit=6
    $region2: #{discriminator_forward.5} parent=1 // loop_pre_header
      _
    $region3: #{discriminator_forward.5} parent=1 // loop_header
      %s11 = sphi 0, %s15
      %p12 = scmp.ge.s32.totalorder %s11, 6
      %s18 = sphi 0, %s37
      %s19 = sphi 0, %s33
      %s20 = sphi 0, %s29
      %s21 = sphi 0, %s18
      %s22 = sphi 0, %s19
      %s23 = sphi 0, %s20
      %s24 = sphi 0, %s21
      %s25 = sphi 0, %s22
      %s26 = sphi 0, %s23
      %s42 = sphi 0, %s44
      %s45 = sphi 0, %s42
      %s46 = sphi 0, %s45
      %s62 = sphi 0, %s46
      %s70 = sphi 0, %s72
      %s73 = sphi 0, %s70
      %s74 = sphi 0, %s73
      %s90 = sphi 0, %s74
      %s96 = sphi 0, %s98
      %s99 = sphi 0, %s96
      %s100 = sphi 0, %s99
      %s116 = sphi 0, %s100
      %s124 = sphi 0, %s126
      %s127 = sphi 0, %s124
      %s128 = sphi 0, %s127
      %s144 = sphi 0, %s128
      %s152 = sphi 0, %s154
      %s155 = sphi 0, %s152
      %s156 = sphi 0, %s155
      %s172 = sphi 0, %s156
    $region4: #{discriminator_forward.5} parent=1 // loop_header_branch
      %14 = sbr.rel (%p12) target = $region8
    $region5: #{discriminator_forward.5} parent=1 // loop_body
      %s16 = ssub.s32 %s11, 1
      %s17 = ssub.s32 %s11, 2
      %s27 = sadd.s32 1, %s20
      %p28 = scmp.ge.s32.totalorder %s27, 2
      %s29 = scalar_select %p28, 0, %s27
      %s30 = sadd.s32 1, %s19
      %s31 = scalar_select %p28, %s30, %s19
      %p32 = scmp.ge.s32.totalorder %s31, 1
      %s33 = scalar_select %p32, 0, %s31
      %s34 = sadd.s32 1, %s18
      %s35 = scalar_select %p32, %s34, %s18
      %p36 = scmp.ge.s32.totalorder %s35, 2
      %s37 = scalar_select %p36, 0, %s35
      %s38 = ssub.s32 %s18, %s37
      %s39 = ssub.s32 %s20, %s29
      %s40 = sor.u32 %s38, %s39
      %p41 = scmp.eq.s32.totalorder %s40, 0
      %s43 = sadd.s32 %s42, 1
      %s44 = scalar_select %p41, %s42, %s43
      %p47 = pneg %p41
      %p48 = scmp.eq.s32.totalorder %s11, 3
      %p49 = por %p47, %p48
      %p50 = scmp.ne.s32.totalorder %s42, %s45
      %p51 = scmp.eq.s32.totalorder %s11, 0
      %p52 = por %p50, %p51
      %p53 = scmp.ne.s32.totalorder %s42, %s45
      %p54 = scmp.eq.s32.totalorder %s16, 3
      %p55 = por %p53, %p54
      %p56 = scmp.ne.s32.totalorder %s45, %s46
      %p57 = scmp.eq.s32.totalorder %s16, 0
      %p58 = por %p56, %p57
      %p59 = scmp.ne.s32.totalorder %s45, %s46
      %p60 = scmp.eq.s32.totalorder %s17, 3
      %p61 = por %p59, %p60
      %p63 = scmp.ne.s32.totalorder %s46, %s62
      %p64 = scmp.eq.s32.totalorder %s17, 0
      %p65 = por %p63, %p64
      %s66 = ssub.s32 %s20, %s29
      %s67 = ssub.s32 %s19, %s33
      %s68 = sor.u32 %s66, %s67
      %p69 = scmp.eq.s32.totalorder %s68, 0
      %s71 = sadd.s32 %s70, 1
      %s72 = scalar_select %p69, %s70, %s71
      %p75 = pneg %p69
      %p76 = scmp.eq.s32.totalorder %s11, 3
      %p77 = por %p75, %p76
      %p78 = scmp.ne.s32.totalorder %s70, %s73
      %p79 = scmp.eq.s32.totalorder %s11, 0
      %p80 = por %p78, %p79
      %p81 = scmp.ne.s32.totalorder %s70, %s73
      %p82 = scmp.eq.s32.totalorder %s16, 3
      %p83 = por %p81, %p82
      %p84 = scmp.ne.s32.totalorder %s73, %s74
      %p85 = scmp.eq.s32.totalorder %s16, 0
      %p86 = por %p84, %p85
      %p87 = scmp.ne.s32.totalorder %s73, %s74
      %p88 = scmp.eq.s32.totalorder %s17, 3
      %p89 = por %p87, %p88
      %p91 = scmp.ne.s32.totalorder %s74, %s90
      %p92 = scmp.eq.s32.totalorder %s17, 0
      %p93 = por %p91, %p92
      %s94 = ssub.s32 %s19, %s33
      %p95 = scmp.eq.s32.totalorder %s94, 0
      %s97 = sadd.s32 %s96, 1
      %s98 = scalar_select %p95, %s96, %s97
      %p101 = pneg %p95
      %p102 = scmp.eq.s32.totalorder %s11, 3
      %p103 = por %p101, %p102
      %p104 = scmp.ne.s32.totalorder %s96, %s99
      %p105 = scmp.eq.s32.totalorder %s11, 0
      %p106 = por %p104, %p105
      %p107 = scmp.ne.s32.totalorder %s96, %s99
      %p108 = scmp.eq.s32.totalorder %s16, 3
      %p109 = por %p107, %p108
      %p110 = scmp.ne.s32.totalorder %s99, %s100
      %p111 = scmp.eq.s32.totalorder %s16, 0
      %p112 = por %p110, %p111
      %p113 = scmp.ne.s32.totalorder %s99, %s100
      %p114 = scmp.eq.s32.totalorder %s17, 3
      %p115 = por %p113, %p114
      %p117 = scmp.ne.s32.totalorder %s100, %s116
      %p118 = scmp.eq.s32.totalorder %s17, 0
      %p119 = por %p117, %p118
      %s120 = ssub.s32 %s18, %s37
      %s121 = ssub.s32 %s19, %s33
      %s122 = sor.u32 %s120, %s121
      %p123 = scmp.eq.s32.totalorder %s122, 0
      %s125 = sadd.s32 %s124, 1
      %s126 = scalar_select %p123, %s124, %s125
      %p129 = pneg %p123
      %p130 = scmp.eq.s32.totalorder %s11, 3
      %p131 = por %p129, %p130
      %p132 = scmp.ne.s32.totalorder %s124, %s127
      %p133 = scmp.eq.s32.totalorder %s11, 0
      %p134 = por %p132, %p133
      %p135 = scmp.ne.s32.totalorder %s124, %s127
      %p136 = scmp.eq.s32.totalorder %s16, 3
      %p137 = por %p135, %p136
      %p138 = scmp.ne.s32.totalorder %s127, %s128
      %p139 = scmp.eq.s32.totalorder %s16, 0
      %p140 = por %p138, %p139
      %p141 = scmp.ne.s32.totalorder %s127, %s128
      %p142 = scmp.eq.s32.totalorder %s17, 3
      %p143 = por %p141, %p142
      %p145 = scmp.ne.s32.totalorder %s128, %s144
      %p146 = scmp.eq.s32.totalorder %s17, 0
      %p147 = por %p145, %p146
      %s148 = ssub.s32 %s18, %s37
      %s149 = ssub.s32 %s19, %s33
      %s150 = sor.u32 %s148, %s149
      %p151 = scmp.eq.s32.totalorder %s150, 0
      %s153 = sadd.s32 %s152, 1
      %s154 = scalar_select %p151, %s152, %s153
      %p157 = pneg %p151
      %p158 = scmp.eq.s32.totalorder %s11, 3
      %p159 = por %p157, %p158
      %p160 = scmp.ne.s32.totalorder %s152, %s155
      %p161 = scmp.eq.s32.totalorder %s11, 0
      %p162 = por %p160, %p161
      %p163 = scmp.ne.s32.totalorder %s152, %s155
      %p164 = scmp.eq.s32.totalorder %s16, 3
      %p165 = por %p163, %p164
      %p166 = scmp.ne.s32.totalorder %s155, %s156
      %p167 = scmp.eq.s32.totalorder %s16, 0
      %p168 = por %p166, %p167
      %p169 = scmp.ne.s32.totalorder %s155, %s156
      %p170 = scmp.eq.s32.totalorder %s17, 3
      %p171 = por %p169, %p170
      %p173 = scmp.ne.s32.totalorder %s156, %s172
      %p174 = scmp.eq.s32.totalorder %s17, 0
      %p175 = por %p173, %p174
      %p176 = scmp.le.s32.totalorder 1, %s11
      %p177 = scmp.lt.s32.totalorder %s11, 5
      %p178 = pnand %p176, %p177
      %p179 = pneg %p178
      // Predicated region
      $region9: #{discriminator_forward.5} parent=5 // pred_check
        _
      $region10: #{discriminator_forward.5} parent=5 // pred_check_branch
        %181 = sbr.rel (%p178) target = $region12
      $region11: #{discriminator_forward.5} parent=5 // pred_region
        %s182 = ssub.s32 %s11, 1
        // Predicated region
        $region13: #{discriminator_forward.5} parent=11 // pred_check
          %p183 = pneg %p112
        $region14: #{discriminator_forward.5} parent=11 // pred_check_branch
          %185 = sbr.rel (%p183) target = $region16
        $region15: #{discriminator_forward.5} parent=11 // pred_region
          %p186 = scmp.lt.s32.totalorder %s22, 0
          %s187 = scalar_select %p186, %s22, 0
          %s188 = scalar_lea.vmem %s2, %s187
        $region16: #{discriminator_forward.5} parent=11 // pred_fallthru
          _
      $region12: #{discriminator_forward.5} parent=5 // pred_fallthru
        _
      %p189 = scmp.lt.s32.totalorder %s11, 4
      // Predicated region
      $region17: #{discriminator_forward.5} parent=5 // pred_check
        %p190 = pneg %p189
      $region18: #{discriminator_forward.5} parent=5 // pred_check_branch
        %192 = sbr.rel (%p190) target = $region20
      $region19: #{discriminator_forward.5} parent=5 // pred_region
        // Predicated region
        $region21: #{discriminator_forward.5} parent=19 // pred_check
          %p193 = pneg %p52
        $region22: #{discriminator_forward.5} parent=19 // pred_check_branch
          %195 = sbr.rel (%p193) target = $region24
        $region23: #{discriminator_forward.5} parent=19 // pred_region
          %s196 = sand.u32 %s42, 1
          %s197 = sand.u32 %s42, 1
          %s198 = smul.addr %s197, 512
          %s199 = scalar_lea.vmem [#allocation3], %s198
          %s200 = smul.u32 32, %s18
          %s201 = smul.u32 4, %s20
          %s202 = smul.addr %s200, 8
          %s203 = sadd.s32 %s201, %s202
          %s204 = smul.addr %s203, 4
          %s205 = scalar_lea.vmem %s0, %s204
          // Predicated region
          $region25: #{discriminator_forward.5} parent=23 // pred_check
            _
          $region26: #{discriminator_forward.5} parent=23 // pred_check_branch
            %207 = sbr.rel (0) target = $region28
          $region27: #{discriminator_forward.5} parent=23 // pred_region
            // Predicated region
            $region29: #{discriminator_forward.5} parent=27 // pred_check
              _
            $region30: #{discriminator_forward.5} parent=27 // pred_check_branch
              %209 = sbr.rel (0) target = $region32
            $region31: #{discriminator_forward.5} parent=27 // pred_region
              loop: start=0, step=1, limit=1
              $region33: #{discriminator_forward.5} parent=31 // loop_pre_header
                _
              $region34: #{discriminator_forward.5} parent=31 // loop_header
                %s211 = sphi 0, %s215
                %p212 = scmp.ge.s32.totalorder %s211, 1
                %s216 = sphi %s205, %s205
                %s217 = sphi %s199, %s199
              $region35: #{discriminator_forward.5} parent=31 // loop_header_branch
                %214 = sbr.rel (%p212) target = $region39
              $region36: #{discriminator_forward.5} parent=31 // loop_body
                %v218 = vld [vmem:[%s216] sm:$0xff]
                %219 = vst [vmem:[%s217] sm:$0xff] %v218
                %v220 = vld [vmem:[%s216 + $0x8] sm:$0xff]
                %221 = vst [vmem:[%s217 + $0x8] sm:$0xff] %v220
                %v222 = vld [vmem:[%s216 + $0x20] sm:$0xff]
                %223 = vst [vmem:[%s217 + $0x10] sm:$0xff] %v222
                %v224 = vld [vmem:[%s216 + $0x28] sm:$0xff]
                %225 = vst [vmem:[%s217 + $0x18] sm:$0xff] %v224
                %v226 = vld [vmem:[%s216 + $0x40] sm:$0xff]
                %227 = vst [vmem:[%s217 + $0x20] sm:$0xff] %v226
                %v228 = vld [vmem:[%s216 + $0x48] sm:$0xff]
                %229 = vst [vmem:[%s217 + $0x28] sm:$0xff] %v228
                %v230 = vld [vmem:[%s216 + $0x60] sm:$0xff]
                %231 = vst [vmem:[%s217 + $0x30] sm:$0xff] %v230
                %v232 = vld [vmem:[%s216 + $0x68] sm:$0xff]
                %233 = vst [vmem:[%s217 + $0x38] sm:$0xff] %v232
                %v234 = vld [vmem:[%s216 + $0x80] sm:$0xff]
                %235 = vst [vmem:[%s217 + $0x40] sm:$0xff] %v234
                %v236 = vld [vmem:[%s216 + $0x88] sm:$0xff]
                %237 = vst [vmem:[%s217 + $0x48] sm:$0xff] %v236
                %v238 = vld [vmem:[%s216 + $0xa0] sm:$0xff]
                %239 = vst [vmem:[%s217 + $0x50] sm:$0xff] %v238
                %v240 = vld [vmem:[%s216 + $0xa8] sm:$0xff]
                %241 = vst [vmem:[%s217 + $0x58] sm:$0xff] %v240
                %v242 = vld [vmem:[%s216 + $0xc0] sm:$0xff]
                %243 = vst [vmem:[%s217 + $0x60] sm:$0xff] %v242
                %v244 = vld [vmem:[%s216 + $0xc8] sm:$0xff]
                %245 = vst [vmem:[%s217 + $0x68] sm:$0xff] %v244
                %v246 = vld [vmem:[%s216 + $0xe0] sm:$0xff]
                %247 = vst [vmem:[%s217 + $0x70] sm:$0xff] %v246
                %v248 = vld [vmem:[%s216 + $0xe8] sm:$0xff]
                %249 = vst [vmem:[%s217 + $0x78] sm:$0xff] %v248
                %v250 = vld [vmem:[%s216 + $0x100] sm:$0xff]
                %251 = vst [vmem:[%s217 + $0x80] sm:$0xff] %v250
                %v252 = vld [vmem:[%s216 + $0x108] sm:$0xff]
                %253 = vst [vmem:[%s217 + $0x88] sm:$0xff] %v252
                %v254 = vld [vmem:[%s216 + $0x120] sm:$0xff]
                %255 = vst [vmem:[%s217 + $0x90] sm:$0xff] %v254
                %v256 = vld [vmem:[%s216 + $0x128] sm:$0xff]
                %257 = vst [vmem:[%s217 + $0x98] sm:$0xff] %v256
                %v258 = vld [vmem:[%s216 + $0x140] sm:$0xff]
                %259 = vst [vmem:[%s217 + $0xa0] sm:$0xff] %v258
                %v260 = vld [vmem:[%s216 + $0x148] sm:$0xff]
                %261 = vst [vmem:[%s217 + $0xa8] sm:$0xff] %v260
                %v262 = vld [vmem:[%s216 + $0x160] sm:$0xff]
                %263 = vst [vmem:[%s217 + $0xb0] sm:$0xff] %v262
                %v264 = vld [vmem:[%s216 + $0x168] sm:$0xff]
                %265 = vst [vmem:[%s217 + $0xb8] sm:$0xff] %v264
                %v266 = vld [vmem:[%s216 + $0x180] sm:$0xff]
                %267 = vst [vmem:[%s217 + $0xc0] sm:$0xff] %v266
                %v268 = vld [vmem:[%s216 + $0x188] sm:$0xff]
                %269 = vst [vmem:[%s217 + $0xc8] sm:$0xff] %v268
                %v270 = vld [vmem:[%s216 + $0x1a0] sm:$0xff]
                %271 = vst [vmem:[%s217 + $0xd0] sm:$0xff] %v270
                %v272 = vld [vmem:[%s216 + $0x1a8] sm:$0xff]
                %273 = vst [vmem:[%s217 + $0xd8] sm:$0xff] %v272
                %v274 = vld [vmem:[%s216 + $0x1c0] sm:$0xff]
                %275 = vst [vmem:[%s217 + $0xe0] sm:$0xff] %v274
                %v276 = vld [vmem:[%s216 + $0x1c8] sm:$0xff]
                %277 = vst [vmem:[%s217 + $0xe8] sm:$0xff] %v276
                %v278 = vld [vmem:[%s216 + $0x1e0] sm:$0xff]
                %279 = vst [vmem:[%s217 + $0xf0] sm:$0xff] %v278
                %v280 = vld [vmem:[%s216 + $0x1e8] sm:$0xff]
                %281 = vst [vmem:[%s217 + $0xf8] sm:$0xff] %v280
                %v282 = vld [vmem:[%s216 + $0x200] sm:$0xff]
                %283 = vst [vmem:[%s217 + $0x100] sm:$0xff] %v282
                %v284 = vld [vmem:[%s216 + $0x208] sm:$0xff]
                %285 = vst [vmem:[%s217 + $0x108] sm:$0xff] %v284
                %v286 = vld [vmem:[%s216 + $0x220] sm:$0xff]
                %287 = vst [vmem:[%s217 + $0x110] sm:$0xff] %v286
                %v288 = vld [vmem:[%s216 + $0x228] sm:$0xff]
                %289 = vst [vmem:[%s217 + $0x118] sm:$0xff] %v288
                %v290 = vld [vmem:[%s216 + $0x240] sm:$0xff]
                %291 = vst [vmem:[%s217 + $0x120] sm:$0xff] %v290
                %v292 = vld [vmem:[%s216 + $0x248] sm:$0xff]
                %293 = vst [vmem:[%s217 + $0x128] sm:$0xff] %v292
                %v294 = vld [vmem:[%s216 + $0x260] sm:$0xff]
                %295 = vst [vmem:[%s217 + $0x130] sm:$0xff] %v294
                %v296 = vld [vmem:[%s216 + $0x268] sm:$0xff]
                %297 = vst [vmem:[%s217 + $0x138] sm:$0xff] %v296
                %v298 = vld [vmem:[%s216 + $0x280] sm:$0xff]
                %299 = vst [vmem:[%s217 + $0x140] sm:$0xff] %v298
                %v300 = vld [vmem:[%s216 + $0x288] sm:$0xff]
                %301 = vst [vmem:[%s217 + $0x148] sm:$0xff] %v300
                %v302 = vld [vmem:[%s216 + $0x2a0] sm:$0xff]
                %303 = vst [vmem:[%s217 + $0x150] sm:$0xff] %v302
                %v304 = vld [vmem:[%s216 + $0x2a8] sm:$0xff]
                %305 = vst [vmem:[%s217 + $0x158] sm:$0xff] %v304
                %v306 = vld [vmem:[%s216 + $0x2c0] sm:$0xff]
                %307 = vst [vmem:[%s217 + $0x160] sm:$0xff] %v306
                %v308 = vld [vmem:[%s216 + $0x2c8] sm:$0xff]
                %309 = vst [vmem:[%s217 + $0x168] sm:$0xff] %v308
                %v310 = vld [vmem:[%s216 + $0x2e0] sm:$0xff]
                %311 = vst [vmem:[%s217 + $0x170] sm:$0xff] %v310
                %v312 = vld [vmem:[%s216 + $0x2e8] sm:$0xff]
                %313 = vst [vmem:[%s217 + $0x178] sm:$0xff] %v312
                %v314 = vld [vmem:[%s216 + $0x300] sm:$0xff]
                %315 = vst [vmem:[%s217 + $0x180] sm:$0xff] %v314
                %v316 = vld [vmem:[%s216 + $0x308] sm:$0xff]
                %317 = vst [vmem:[%s217 + $0x188] sm:$0xff] %v316
                %v318 = vld [vmem:[%s216 + $0x320] sm:$0xff]
                %319 = vst [vmem:[%s217 + $0x190] sm:$0xff] %v318
                %v320 = vld [vmem:[%s216 + $0x328] sm:$0xff]
                %321 = vst [vmem:[%s217 + $0x198] sm:$0xff] %v320
                %v322 = vld [vmem:[%s216 + $0x340] sm:$0xff]
                %323 = vst [vmem:[%s217 + $0x1a0] sm:$0xff] %v322
                %v324 = vld [vmem:[%s216 + $0x348] sm:$0xff]
                %325 = vst [vmem:[%s217 + $0x1a8] sm:$0xff] %v324
                %v326 = vld [vmem:[%s216 + $0x360] sm:$0xff]
                %327 = vst [vmem:[%s217 + $0x1b0] sm:$0xff] %v326
                %v328 = vld [vmem:[%s216 + $0x368] sm:$0xff]
                %329 = vst [vmem:[%s217 + $0x1b8] sm:$0xff] %v328
                %v330 = vld [vmem:[%s216 + $0x380] sm:$0xff]
                %331 = vst [vmem:[%s217 + $0x1c0] sm:$0xff] %v330
                %v332 = vld [vmem:[%s216 + $0x388] sm:$0xff]
                %333 = vst [vmem:[%s217 + $0x1c8] sm:$0xff] %v332
                %v334 = vld [vmem:[%s216 + $0x3a0] sm:$0xff]
                %335 = vst [vmem:[%s217 + $0x1d0] sm:$0xff] %v334
                %v336 = vld [vmem:[%s216 + $0x3a8] sm:$0xff]
                %337 = vst [vmem:[%s217 + $0x1d8] sm:$0xff] %v336
                %v338 = vld [vmem:[%s216 + $0x3c0] sm:$0xff]
                %339 = vst [vmem:[%s217 + $0x1e0] sm:$0xff] %v338
                %v340 = vld [vmem:[%s216 + $0x3c8] sm:$0xff]
                %341 = vst [vmem:[%s217 + $0x1e8] sm:$0xff] %v340
                %v342 = vld [vmem:[%s216 + $0x3e0] sm:$0xff]
                %343 = vst [vmem:[%s217 + $0x1f0] sm:$0xff] %v342
                %v344 = vld [vmem:[%s216 + $0x3e8] sm:$0xff]
                %345 = vst [vmem:[%s217 + $0x1f8] sm:$0xff] %v344
              $region37: #{discriminator_forward.5} parent=31 // loop_footer
                %s215 = sadd.s32 1, %s211
              $region38: #{discriminator_forward.5} parent=31 // loop_footer_branch
                %210 = sbr.rel target = $region34
              $region39: #{discriminator_forward.5} parent=31 // loop_exit
                _
            $region32: #{discriminator_forward.5} parent=27 // pred_fallthru
              _
            // Predicated region
            $region40: #{discriminator_forward.5} parent=27 // pred_check
              _
            $region41: #{discriminator_forward.5} parent=27 // pred_check_branch
              %347 = sbr.rel target = $region43
            $region42: #{discriminator_forward.5} parent=27 // pred_region
              _
            $region43: #{discriminator_forward.5} parent=27 // pred_fallthru
              _
          $region28: #{discriminator_forward.5} parent=23 // pred_fallthru
            _
          %348 = vnop
        $region24: #{discriminator_forward.5} parent=19 // pred_fallthru
          _
        // Predicated region
        $region44: #{discriminator_forward.5} parent=19 // pred_check
          %p349 = pneg %p80
        $region45: #{discriminator_forward.5} parent=19 // pred_check_branch
          %351 = sbr.rel (%p349) target = $region47
        $region46: #{discriminator_forward.5} parent=19 // pred_region
          %s352 = smul.u32 64, %s20
          %p353 = scmp.lt.s32.totalorder %s352, 127
          %s354 = scalar_select %p353, %s352, 127
          %p355 = scmp.lt.s32.totalorder %s19, 0
          %s356 = scalar_select %p355, %s19, 0
          %s357 = sadd.s32 %s356, %s354
          %s358 = smul.addr %s357, 4
          %s359 = scalar_lea.vmem %s1, %s358
          %s360 = smul.u32 64, %s20
        $region47: #{discriminator_forward.5} parent=19 // pred_fallthru
          _
      $region20: #{discriminator_forward.5} parent=5 // pred_fallthru
        _
      %p361 = scmp.le.s32.totalorder 1, %s11
      %p362 = scmp.lt.s32.totalorder %s11, 5
      %p363 = pnand %p361, %p362
      %p364 = pneg %p363
      // Predicated region
      $region48: #{discriminator_forward.5} parent=5 // pred_check
        _
      $region49: #{discriminator_forward.5} parent=5 // pred_check_branch
        %366 = sbr.rel (%p363) target = $region51
      $region50: #{discriminator_forward.5} parent=5 // pred_region
        %s367 = ssub.s32 %s11, 1
        %s368 = sand.u32 %s45, 1
        %s369 = sand.u32 %s45, 1
        %s370 = smul.addr %s369, 512
        %s371 = scalar_lea.vmem [#allocation3], %s370
        // Predicated region
        $region52: #{discriminator_forward.5} parent=50 // pred_check
          %p372 = pneg %p58
        $region53: #{discriminator_forward.5} parent=50 // pred_check_branch
          %374 = sbr.rel (%p372) target = $region55
        $region54: #{discriminator_forward.5} parent=50 // pred_region
          _
        $region55: #{discriminator_forward.5} parent=50 // pred_fallthru
          _
        %s375 = sand.u32 %s45, 1
        %s376 = sand.u32 %s45, 1
        %s377 = smul.addr %s376, 512
        %s378 = scalar_lea.vmem [#allocation3], %s377
        %p379 = pneg %p58
        %p380 = pneg %p55
        %s381 = smul.u32 64, %s23
        %p382 = scmp.lt.s32.totalorder %s381, 127
        %s383 = scalar_select %p382, %s381, 127
        %p384 = scmp.lt.s32.totalorder %s22, 0
        %s385 = scalar_select %p384, %s22, 0
        %s386 = sadd.s32 %s385, %s383
        %s387 = smul.addr %s386, 4
        %s388 = scalar_lea.vmem %s1, %s387
        %p389 = pneg %p86
        %p390 = pneg %p83
        %p391 = scmp.lt.s32.totalorder %s22, 0
        %s392 = scalar_select %p391, %s22, 0
        %s393 = scalar_lea.vmem %s2, %s392
        %p394 = pneg %p112
        %p395 = pneg %p109
        %p396 = pneg %p140
        %p397 = pneg %p137
        %s398 = smul.u32 32, %s21
        %p399 = scmp.lt.s32.totalorder %s398, 63
        %s400 = scalar_select %p399, %s398, 63
        %p401 = scmp.lt.s32.totalorder %s22, 0
        %s402 = scalar_select %p401, %s22, 0
        %s403 = sadd.s32 %s402, %s400
        %s404 = smul.addr %s403, 8
        %s405 = scalar_lea.vmem %s3, %s404
        %p406 = pneg %p168
        %p407 = pneg %p165
        %p408 = scmp.lt.s32.totalorder %s21, 1
        %s409 = scalar_select %p408, %s21, 1
        %p410 = scmp.lt.s32.totalorder %s22, 0
        %s411 = scalar_select %p410, %s22, 0
        %s412 = sadd.s32 %s411, %s409
        %s413 = smul.addr %s412, 8
        %s414 = scalar_lea.vmem %s4, %s413
        %s415 = smul.u32 32, %s21
        %s416 = smul.u32 4, %s23
        %s417 = smul.u32 64, %s23
        %p418 = scmp.lt.s32.totalorder %s417, 127
        %s419 = scalar_select %p418, %s417, 127
        %p420 = scmp.lt.s32.totalorder %s22, 0
        %s421 = scalar_select %p420, %s22, 0
        %s422 = sadd.s32 %s421, %s419
        %s423 = smul.addr %s422, 4
        %s424 = scalar_lea.vmem %s1, %s423
        %s425 = smul.u32 64, %s23
        %p426 = scmp.lt.s32.totalorder %s22, 0
        %s427 = scalar_select %p426, %s22, 0
        %s428 = scalar_lea.vmem %s2, %s427
        %s429 = smul.u32 32, %s21
        %p430 = scmp.lt.s32.totalorder %s429, 63
        %s431 = scalar_select %p430, %s429, 63
        %p432 = scmp.lt.s32.totalorder %s22, 0
        %s433 = scalar_select %p432, %s22, 0
        %s434 = sadd.s32 %s433, %s431
        %s435 = smul.addr %s434, 8
        %s436 = scalar_lea.vmem %s3, %s435
        %s437 = smul.u32 32, %s21
        %p438 = scmp.lt.s32.totalorder %s21, 1
        %s439 = scalar_select %p438, %s21, 1
        %p440 = scmp.lt.s32.totalorder %s22, 0
        %s441 = scalar_select %p440, %s22, 0
        %s442 = sadd.s32 %s441, %s439
        %s443 = smul.addr %s442, 8
        %s444 = scalar_lea.vmem %s4, %s443
        %p446 = scmp.eq.s32.totalorder %s23, 0
        // Predicated region
        $region56: #{discriminator_forward.5} parent=50 // pred_check
          %p447 = pneg %p446
        $region57: #{discriminator_forward.5} parent=50 // pred_check_branch
          %449 = sbr.rel (%p447) target = $region59
        $region58: #{discriminator_forward.5} parent=50 // pred_region
          %450 = vst [vmem:[#allocation2] sm:$0xff] 0.0
          %451 = vst [vmem:[#allocation2 + $0x8] sm:$0xff] 0.0
          %452 = vst [vmem:[#allocation2 + $0x10] sm:$0xff] 0.0
          %453 = vst [vmem:[#allocation2 + $0x18] sm:$0xff] 0.0
          %454 = vst [vmem:[#allocation2 + $0x20] sm:$0xff] 0.0
          %455 = vst [vmem:[#allocation2 + $0x28] sm:$0xff] 0.0
          %456 = vst [vmem:[#allocation2 + $0x30] sm:$0xff] 0.0
          %457 = vst [vmem:[#allocation2 + $0x38] sm:$0xff] 0.0
          %458 = vst [vmem:[#allocation2 + $0x40] sm:$0xff] 0.0
          %459 = vst [vmem:[#allocation2 + $0x48] sm:$0xff] 0.0
          %460 = vst [vmem:[#allocation2 + $0x50] sm:$0xff] 0.0
          %461 = vst [vmem:[#allocation2 + $0x58] sm:$0xff] 0.0
          %462 = vst [vmem:[#allocation2 + $0x60] sm:$0xff] 0.0
          %463 = vst [vmem:[#allocation2 + $0x68] sm:$0xff] 0.0
          %464 = vst [vmem:[#allocation2 + $0x70] sm:$0xff] 0.0
          %465 = vst [vmem:[#allocation2 + $0x78] sm:$0xff] 0.0
          %466 = vst [vmem:[#allocation2 + $0x80] sm:$0xff] 0.0
          %467 = vst [vmem:[#allocation2 + $0x88] sm:$0xff] 0.0
          %468 = vst [vmem:[#allocation2 + $0x90] sm:$0xff] 0.0
          %469 = vst [vmem:[#allocation2 + $0x98] sm:$0xff] 0.0
          %470 = vst [vmem:[#allocation2 + $0xa0] sm:$0xff] 0.0
          %471 = vst [vmem:[#allocation2 + $0xa8] sm:$0xff] 0.0
          %472 = vst [vmem:[#allocation2 + $0xb0] sm:$0xff] 0.0
          %473 = vst [vmem:[#allocation2 + $0xb8] sm:$0xff] 0.0
          %474 = vst [vmem:[#allocation2 + $0xc0] sm:$0xff] 0.0
          %475 = vst [vmem:[#allocation2 + $0xc8] sm:$0xff] 0.0
          %476 = vst [vmem:[#allocation2 + $0xd0] sm:$0xff] 0.0
          %477 = vst [vmem:[#allocation2 + $0xd8] sm:$0xff] 0.0
          %478 = vst [vmem:[#allocation2 + $0xe0] sm:$0xff] 0.0
          %479 = vst [vmem:[#allocation2 + $0xe8] sm:$0xff] 0.0
          %480 = vst [vmem:[#allocation2 + $0xf0] sm:$0xff] 0.0
          %481 = vst [vmem:[#allocation2 + $0xf8] sm:$0xff] 0.0
        $region59: #{discriminator_forward.5} parent=50 // pred_fallthru
          _
        %v482 = vld [vmem:[#allocation2] sm:$0xff]
        %v483 = vld [vmem:[#allocation2 + $0x8] sm:$0xff]
        %v484 = vld [vmem:[#allocation2 + $0x10] sm:$0xff]
        %v485 = vld [vmem:[#allocation2 + $0x18] sm:$0xff]
        %v486 = vld [vmem:[#allocation2 + $0x20] sm:$0xff]
        %v487 = vld [vmem:[#allocation2 + $0x28] sm:$0xff]
        %v488 = vld [vmem:[#allocation2 + $0x30] sm:$0xff]
        %v489 = vld [vmem:[#allocation2 + $0x38] sm:$0xff]
        %v490 = vld [vmem:[#allocation2 + $0x40] sm:$0xff]
        %v491 = vld [vmem:[#allocation2 + $0x48] sm:$0xff]
        %v492 = vld [vmem:[#allocation2 + $0x50] sm:$0xff]
        %v493 = vld [vmem:[#allocation2 + $0x58] sm:$0xff]
        %v494 = vld [vmem:[#allocation2 + $0x60] sm:$0xff]
        %v495 = vld [vmem:[#allocation2 + $0x68] sm:$0xff]
        %v496 = vld [vmem:[#allocation2 + $0x70] sm:$0xff]
        %v497 = vld [vmem:[#allocation2 + $0x78] sm:$0xff]
        %v498 = vld [vmem:[#allocation2 + $0x80] sm:$0xff]
        %v499 = vld [vmem:[#allocation2 + $0x88] sm:$0xff]
        %v500 = vld [vmem:[#allocation2 + $0x90] sm:$0xff]
        %v501 = vld [vmem:[#allocation2 + $0x98] sm:$0xff]
        %v502 = vld [vmem:[#allocation2 + $0xa0] sm:$0xff]
        %v503 = vld [vmem:[#allocation2 + $0xa8] sm:$0xff]
        %v504 = vld [vmem:[#allocation2 + $0xb0] sm:$0xff]
        %v505 = vld [vmem:[#allocation2 + $0xb8] sm:$0xff]
        %v506 = vld [vmem:[#allocation2 + $0xc0] sm:$0xff]
        %v507 = vld [vmem:[#allocation2 + $0xc8] sm:$0xff]
        %v508 = vld [vmem:[#allocation2 + $0xd0] sm:$0xff]
        %v509 = vld [vmem:[#allocation2 + $0xd8] sm:$0xff]
        %v510 = vld [vmem:[#allocation2 + $0xe0] sm:$0xff]
        %v511 = vld [vmem:[#allocation2 + $0xe8] sm:$0xff]
        %v512 = vld [vmem:[#allocation2 + $0xf0] sm:$0xff]
        %v513 = vld [vmem:[#allocation2 + $0xf8] sm:$0xff]
        %v514 = vld [vmem:[%s371] sm:$0xff]
        %v515 = vld [vmem:[%s371 + $0x8] sm:$0xff]
        %v516 = vld [vmem:[%s371 + $0x10] sm:$0xff]
        %v517 = vld [vmem:[%s371 + $0x18] sm:$0xff]
        %v518 = vld [vmem:[%s371 + $0x20] sm:$0xff]
        %v519 = vld [vmem:[%s371 + $0x28] sm:$0xff]
        %v520 = vld [vmem:[%s371 + $0x30] sm:$0xff]
        %v521 = vld [vmem:[%s371 + $0x38] sm:$0xff]
        %v522 = vld [vmem:[%s371 + $0x40] sm:$0xff]
        %v523 = vld [vmem:[%s371 + $0x48] sm:$0xff]
        %v524 = vld [vmem:[%s371 + $0x50] sm:$0xff]
        %v525 = vld [vmem:[%s371 + $0x58] sm:$0xff]
        %v526 = vld [vmem:[%s371 + $0x60] sm:$0xff]
        %v527 = vld [vmem:[%s371 + $0x68] sm:$0xff]
        %v528 = vld [vmem:[%s371 + $0x70] sm:$0xff]
        %v529 = vld [vmem:[%s371 + $0x78] sm:$0xff]
        %v530 = vld [vmem:[%s371 + $0x80] sm:$0xff]
        %v531 = vld [vmem:[%s371 + $0x88] sm:$0xff]
        %v532 = vld [vmem:[%s371 + $0x90] sm:$0xff]
        %v533 = vld [vmem:[%s371 + $0x98] sm:$0xff]
        %v534 = vld [vmem:[%s371 + $0xa0] sm:$0xff]
        %v535 = vld [vmem:[%s371 + $0xa8] sm:$0xff]
        %v536 = vld [vmem:[%s371 + $0xb0] sm:$0xff]
        %v537 = vld [vmem:[%s371 + $0xb8] sm:$0xff]
        %v538 = vld [vmem:[%s371 + $0xc0] sm:$0xff]
        %v539 = vld [vmem:[%s371 + $0xc8] sm:$0xff]
        %v540 = vld [vmem:[%s371 + $0xd0] sm:$0xff]
        %v541 = vld [vmem:[%s371 + $0xd8] sm:$0xff]
        %v542 = vld [vmem:[%s371 + $0xe0] sm:$0xff]
        %v543 = vld [vmem:[%s371 + $0xe8] sm:$0xff]
        %v544 = vld [vmem:[%s371 + $0xf0] sm:$0xff]
        %v545 = vld [vmem:[%s371 + $0xf8] sm:$0xff]
        %v546 = vld [vmem:[%s371 + $0x100] sm:$0xff]
        %v547 = vld [vmem:[%s371 + $0x108] sm:$0xff]
        %v548 = vld [vmem:[%s371 + $0x110] sm:$0xff]
        %v549 = vld [vmem:[%s371 + $0x118] sm:$0xff]
        %v550 = vld [vmem:[%s371 + $0x120] sm:$0xff]
        %v551 = vld [vmem:[%s371 + $0x128] sm:$0xff]
        %v552 = vld [vmem:[%s371 + $0x130] sm:$0xff]
        %v553 = vld [vmem:[%s371 + $0x138] sm:$0xff]
        %v554 = vld [vmem:[%s371 + $0x140] sm:$0xff]
        %v555 = vld [vmem:[%s371 + $0x148] sm:$0xff]
        %v556 = vld [vmem:[%s371 + $0x150] sm:$0xff]
        %v557 = vld [vmem:[%s371 + $0x158] sm:$0xff]
        %v558 = vld [vmem:[%s371 + $0x160] sm:$0xff]
        %v559 = vld [vmem:[%s371 + $0x168] sm:$0xff]
        %v560 = vld [vmem:[%s371 + $0x170] sm:$0xff]
        %v561 = vld [vmem:[%s371 + $0x178] sm:$0xff]
        %v562 = vld [vmem:[%s371 + $0x180] sm:$0xff]
        %v563 = vld [vmem:[%s371 + $0x188] sm:$0xff]
        %v564 = vld [vmem:[%s371 + $0x190] sm:$0xff]
        %v565 = vld [vmem:[%s371 + $0x198] sm:$0xff]
        %v566 = vld [vmem:[%s371 + $0x1a0] sm:$0xff]
        %v567 = vld [vmem:[%s371 + $0x1a8] sm:$0xff]
        %v568 = vld [vmem:[%s371 + $0x1b0] sm:$0xff]
        %v569 = vld [vmem:[%s371 + $0x1b8] sm:$0xff]
        %v570 = vld [vmem:[%s371 + $0x1c0] sm:$0xff]
        %v571 = vld [vmem:[%s371 + $0x1c8] sm:$0xff]
        %v572 = vld [vmem:[%s371 + $0x1d0] sm:$0xff]
        %v573 = vld [vmem:[%s371 + $0x1d8] sm:$0xff]
        %v574 = vld [vmem:[%s371 + $0x1e0] sm:$0xff]
        %v575 = vld [vmem:[%s371 + $0x1e8] sm:$0xff]
        %v576 = vld [vmem:[%s371 + $0x1f0] sm:$0xff]
        %v577 = vld [vmem:[%s371 + $0x1f8] sm:$0xff]
        %v578 = vld [vmem:[%s424] sm:$0xf]
        %v579 = vld [vmem:[%s424 + $0x4] sm:$0xf]
        %v580 = vld [vmem:[%s424 + $0x8] sm:$0xf]
        %v581 = vld [vmem:[%s424 + $0xc] sm:$0xf]
        %v582 = vld [vmem:[%s424 + $0x10] sm:$0xf]
        %v583 = vld [vmem:[%s424 + $0x14] sm:$0xf]
        %v584 = vld [vmem:[%s424 + $0x18] sm:$0xf]
        %v585 = vld [vmem:[%s424 + $0x1c] sm:$0xf]
        %v586 = vld [vmem:[%s424 + $0x20] sm:$0xf]
        %v587 = vld [vmem:[%s424 + $0x24] sm:$0xf]
        %v588 = vld [vmem:[%s424 + $0x28] sm:$0xf]
        %v589 = vld [vmem:[%s424 + $0x2c] sm:$0xf]
        %v590 = vld [vmem:[%s424 + $0x30] sm:$0xf]
        %v591 = vld [vmem:[%s424 + $0x34] sm:$0xf]
        %v592 = vld [vmem:[%s424 + $0x38] sm:$0xf]
        %v593 = vld [vmem:[%s424 + $0x3c] sm:$0xf]
        %v594 = vld [vmem:[%s424 + $0x40] sm:$0xf]
        %v595 = vld [vmem:[%s424 + $0x44] sm:$0xf]
        %v596 = vld [vmem:[%s424 + $0x48] sm:$0xf]
        %v597 = vld [vmem:[%s424 + $0x4c] sm:$0xf]
        %v598 = vld [vmem:[%s424 + $0x50] sm:$0xf]
        %v599 = vld [vmem:[%s424 + $0x54] sm:$0xf]
        %v600 = vld [vmem:[%s424 + $0x58] sm:$0xf]
        %v601 = vld [vmem:[%s424 + $0x5c] sm:$0xf]
        %v602 = vld [vmem:[%s424 + $0x60] sm:$0xf]
        %v603 = vld [vmem:[%s424 + $0x64] sm:$0xf]
        %v604 = vld [vmem:[%s424 + $0x68] sm:$0xf]
        %v605 = vld [vmem:[%s424 + $0x6c] sm:$0xf]
        %v606 = vld [vmem:[%s424 + $0x70] sm:$0xf]
        %v607 = vld [vmem:[%s424 + $0x74] sm:$0xf]
        %v608 = vld [vmem:[%s424 + $0x78] sm:$0xf]
        %v609 = vld [vmem:[%s424 + $0x7c] sm:$0xf]
        %v610 = vld [vmem:[%s424 + $0x80] sm:$0xf]
        %v611 = vld [vmem:[%s424 + $0x84] sm:$0xf]
        %v612 = vld [vmem:[%s424 + $0x88] sm:$0xf]
        %v613 = vld [vmem:[%s424 + $0x8c] sm:$0xf]
        %v614 = vld [vmem:[%s424 + $0x90] sm:$0xf]
        %v615 = vld [vmem:[%s424 + $0x94] sm:$0xf]
        %v616 = vld [vmem:[%s424 + $0x98] sm:$0xf]
        %v617 = vld [vmem:[%s424 + $0x9c] sm:$0xf]
        %v618 = vld [vmem:[%s424 + $0xa0] sm:$0xf]
        %v619 = vld [vmem:[%s424 + $0xa4] sm:$0xf]
        %v620 = vld [vmem:[%s424 + $0xa8] sm:$0xf]
        %v621 = vld [vmem:[%s424 + $0xac] sm:$0xf]
        %v622 = vld [vmem:[%s424 + $0xb0] sm:$0xf]
        %v623 = vld [vmem:[%s424 + $0xb4] sm:$0xf]
        %v624 = vld [vmem:[%s424 + $0xb8] sm:$0xf]
        %v625 = vld [vmem:[%s424 + $0xbc] sm:$0xf]
        %v626 = vld [vmem:[%s424 + $0xc0] sm:$0xf]
        %v627 = vld [vmem:[%s424 + $0xc4] sm:$0xf]
        %v628 = vld [vmem:[%s424 + $0xc8] sm:$0xf]
        %v629 = vld [vmem:[%s424 + $0xcc] sm:$0xf]
        %v630 = vld [vmem:[%s424 + $0xd0] sm:$0xf]
        %v631 = vld [vmem:[%s424 + $0xd4] sm:$0xf]
        %v632 = vld [vmem:[%s424 + $0xd8] sm:$0xf]
        %v633 = vld [vmem:[%s424 + $0xdc] sm:$0xf]
        %v634 = vld [vmem:[%s424 + $0xe0] sm:$0xf]
        %v635 = vld [vmem:[%s424 + $0xe4] sm:$0xf]
        %v636 = vld [vmem:[%s424 + $0xe8] sm:$0xf]
        %v637 = vld [vmem:[%s424 + $0xec] sm:$0xf]
        %v638 = vld [vmem:[%s424 + $0xf0] sm:$0xf]
        %v639 = vld [vmem:[%s424 + $0xf4] sm:$0xf]
        %v640 = vld [vmem:[%s424 + $0xf8] sm:$0xf]
        %v641 = vld [vmem:[%s424 + $0xfc] sm:$0xf]
        %v706 = vunpack.c.l.b16 %v514
        %v707 = vunpack.c.h.b16 %v514
        %v708 = vunpack.c.l.b16 %v515
        %v709 = vunpack.c.h.b16 %v515
        %v710 = vunpack.c.l.b16 %v516
        %v711 = vunpack.c.h.b16 %v516
        %v712 = vunpack.c.l.b16 %v517
        %v713 = vunpack.c.h.b16 %v517
        %v714 = vunpack.c.l.b16 %v518
        %v715 = vunpack.c.h.b16 %v518
        %v716 = vunpack.c.l.b16 %v519
        %v717 = vunpack.c.h.b16 %v519
        %v718 = vunpack.c.l.b16 %v520
        %v719 = vunpack.c.h.b16 %v520
        %v720 = vunpack.c.l.b16 %v521
        %v721 = vunpack.c.h.b16 %v521
        %v722 = vunpack.c.l.b16 %v522
        %v723 = vunpack.c.h.b16 %v522
        %v724 = vunpack.c.l.b16 %v523
        %v725 = vunpack.c.h.b16 %v523
        %v726 = vunpack.c.l.b16 %v524
        %v727 = vunpack.c.h.b16 %v524
        %v728 = vunpack.c.l.b16 %v525
        %v729 = vunpack.c.h.b16 %v525
        %v730 = vunpack.c.l.b16 %v526
        %v731 = vunpack.c.h.b16 %v526
        %v732 = vunpack.c.l.b16 %v527
        %v733 = vunpack.c.h.b16 %v527
        %v734 = vunpack.c.l.b16 %v528
        %v735 = vunpack.c.h.b16 %v528
        %v736 = vunpack.c.l.b16 %v529
        %v737 = vunpack.c.h.b16 %v529
        %v738 = vunpack.c.l.b16 %v530
        %v739 = vunpack.c.h.b16 %v530
        %v740 = vunpack.c.l.b16 %v531
        %v741 = vunpack.c.h.b16 %v531
        %v742 = vunpack.c.l.b16 %v532
        %v743 = vunpack.c.h.b16 %v532
        %v744 = vunpack.c.l.b16 %v533
        %v745 = vunpack.c.h.b16 %v533
        %v746 = vunpack.c.l.b16 %v534
        %v747 = vunpack.c.h.b16 %v534
        %v748 = vunpack.c.l.b16 %v535
        %v749 = vunpack.c.h.b16 %v535
        %v750 = vunpack.c.l.b16 %v536
        %v751 = vunpack.c.h.b16 %v536
        %v752 = vunpack.c.l.b16 %v537
        %v753 = vunpack.c.h.b16 %v537
        %v754 = vunpack.c.l.b16 %v538
        %v755 = vunpack.c.h.b16 %v538
        %v756 = vunpack.c.l.b16 %v539
        %v757 = vunpack.c.h.b16 %v539
        %v758 = vunpack.c.l.b16 %v540
        %v759 = vunpack.c.h.b16 %v540
        %v760 = vunpack.c.l.b16 %v541
        %v761 = vunpack.c.h.b16 %v541
        %v762 = vunpack.c.l.b16 %v542
        %v763 = vunpack.c.h.b16 %v542
        %v764 = vunpack.c.l.b16 %v543
        %v765 = vunpack.c.h.b16 %v543
        %v766 = vunpack.c.l.b16 %v544
        %v767 = vunpack.c.h.b16 %v544
        %v768 = vunpack.c.l.b16 %v545
        %v769 = vunpack.c.h.b16 %v545
        %v770 = vunpack.c.l.b16 %v546
        %v771 = vunpack.c.h.b16 %v546
        %v772 = vunpack.c.l.b16 %v547
        %v773 = vunpack.c.h.b16 %v547
        %v774 = vunpack.c.l.b16 %v548
        %v775 = vunpack.c.h.b16 %v548
        %v776 = vunpack.c.l.b16 %v549
        %v777 = vunpack.c.h.b16 %v549
        %v778 = vunpack.c.l.b16 %v550
        %v779 = vunpack.c.h.b16 %v550
        %v780 = vunpack.c.l.b16 %v551
        %v781 = vunpack.c.h.b16 %v551
        %v782 = vunpack.c.l.b16 %v552
        %v783 = vunpack.c.h.b16 %v552
        %v784 = vunpack.c.l.b16 %v553
        %v785 = vunpack.c.h.b16 %v553
        %v786 = vunpack.c.l.b16 %v554
        %v787 = vunpack.c.h.b16 %v554
        %v788 = vunpack.c.l.b16 %v555
        %v789 = vunpack.c.h.b16 %v555
        %v790 = vunpack.c.l.b16 %v556
        %v791 = vunpack.c.h.b16 %v556
        %v792 = vunpack.c.l.b16 %v557
        %v793 = vunpack.c.h.b16 %v557
        %v794 = vunpack.c.l.b16 %v558
        %v795 = vunpack.c.h.b16 %v558
        %v796 = vunpack.c.l.b16 %v559
        %v797 = vunpack.c.h.b16 %v559
        %v798 = vunpack.c.l.b16 %v560
        %v799 = vunpack.c.h.b16 %v560
        %v800 = vunpack.c.l.b16 %v561
        %v801 = vunpack.c.h.b16 %v561
        %v802 = vunpack.c.l.b16 %v562
        %v803 = vunpack.c.h.b16 %v562
        %v804 = vunpack.c.l.b16 %v563
        %v805 = vunpack.c.h.b16 %v563
        %v806 = vunpack.c.l.b16 %v564
        %v807 = vunpack.c.h.b16 %v564
        %v808 = vunpack.c.l.b16 %v565
        %v809 = vunpack.c.h.b16 %v565
        %v810 = vunpack.c.l.b16 %v566
        %v811 = vunpack.c.h.b16 %v566
        %v812 = vunpack.c.l.b16 %v567
        %v813 = vunpack.c.h.b16 %v567
        %v814 = vunpack.c.l.b16 %v568
        %v815 = vunpack.c.h.b16 %v568
        %v816 = vunpack.c.l.b16 %v569
        %v817 = vunpack.c.h.b16 %v569
        %v818 = vunpack.c.l.b16 %v570
        %v819 = vunpack.c.h.b16 %v570
        %v820 = vunpack.c.l.b16 %v571
        %v821 = vunpack.c.h.b16 %v571
        %v822 = vunpack.c.l.b16 %v572
        %v823 = vunpack.c.h.b16 %v572
        %v824 = vunpack.c.l.b16 %v573
        %v825 = vunpack.c.h.b16 %v573
        %v826 = vunpack.c.l.b16 %v574
        %v827 = vunpack.c.h.b16 %v574
        %v828 = vunpack.c.l.b16 %v575
        %v829 = vunpack.c.h.b16 %v575
        %v830 = vunpack.c.l.b16 %v576
        %v831 = vunpack.c.h.b16 %v576
        %v832 = vunpack.c.l.b16 %v577
        %v833 = vunpack.c.h.b16 %v577
        %v834 = vpack.c.b16 %v710, %v706
        %v835 = vpack.c.b16 %v711, %v707
        %v836 = vpack.c.b16 %v712, %v708
        %v837 = vpack.c.b16 %v713, %v709
        %v838 = vpack.c.b16 %v718, %v714
        %v839 = vpack.c.b16 %v719, %v715
        %v840 = vpack.c.b16 %v720, %v716
        %v841 = vpack.c.b16 %v721, %v717
        %v842 = vpack.c.b16 %v726, %v722
        %v843 = vpack.c.b16 %v727, %v723
        %v844 = vpack.c.b16 %v728, %v724
        %v845 = vpack.c.b16 %v729, %v725
        %v846 = vpack.c.b16 %v734, %v730
        %v847 = vpack.c.b16 %v735, %v731
        %v848 = vpack.c.b16 %v736, %v732
        %v849 = vpack.c.b16 %v737, %v733
        %v850 = vpack.c.b16 %v742, %v738
        %v851 = vpack.c.b16 %v743, %v739
        %v852 = vpack.c.b16 %v744, %v740
        %v853 = vpack.c.b16 %v745, %v741
        %v854 = vpack.c.b16 %v750, %v746
        %v855 = vpack.c.b16 %v751, %v747
        %v856 = vpack.c.b16 %v752, %v748
        %v857 = vpack.c.b16 %v753, %v749
        %v858 = vpack.c.b16 %v758, %v754
        %v859 = vpack.c.b16 %v759, %v755
        %v860 = vpack.c.b16 %v760, %v756
        %v861 = vpack.c.b16 %v761, %v757
        %v862 = vpack.c.b16 %v766, %v762
        %v863 = vpack.c.b16 %v767, %v763
        %v864 = vpack.c.b16 %v768, %v764
        %v865 = vpack.c.b16 %v769, %v765
        %v866 = vpack.c.b16 %v774, %v770
        %v867 = vpack.c.b16 %v775, %v771
        %v868 = vpack.c.b16 %v776, %v772
        %v869 = vpack.c.b16 %v777, %v773
        %v870 = vpack.c.b16 %v782, %v778
        %v871 = vpack.c.b16 %v783, %v779
        %v872 = vpack.c.b16 %v784, %v780
        %v873 = vpack.c.b16 %v785, %v781
        %v874 = vpack.c.b16 %v790, %v786
        %v875 = vpack.c.b16 %v791, %v787
        %v876 = vpack.c.b16 %v792, %v788
        %v877 = vpack.c.b16 %v793, %v789
        %v878 = vpack.c.b16 %v798, %v794
        %v879 = vpack.c.b16 %v799, %v795
        %v880 = vpack.c.b16 %v800, %v796
        %v881 = vpack.c.b16 %v801, %v797
        %v882 = vpack.c.b16 %v806, %v802
        %v883 = vpack.c.b16 %v807, %v803
        %v884 = vpack.c.b16 %v808, %v804
        %v885 = vpack.c.b16 %v809, %v805
        %v886 = vpack.c.b16 %v814, %v810
        %v887 = vpack.c.b16 %v815, %v811
        %v888 = vpack.c.b16 %v816, %v812
        %v889 = vpack.c.b16 %v817, %v813
        %v890 = vpack.c.b16 %v822, %v818
        %v891 = vpack.c.b16 %v823, %v819
        %v892 = vpack.c.b16 %v824, %v820
        %v893 = vpack.c.b16 %v825, %v821
        %v894 = vpack.c.b16 %v830, %v826
        %v895 = vpack.c.b16 %v831, %v827
        %v896 = vpack.c.b16 %v832, %v828
        %v897 = vpack.c.b16 %v833, %v829
        %v1026 = vunpack.c.l.b16 %v578
        %v1027 = vunpack.c.l.b16 %v579
        %v1028 = vunpack.c.l.b16 %v580
        %v1029 = vunpack.c.l.b16 %v581
        %v1030 = vunpack.c.l.b16 %v582
        %v1031 = vunpack.c.l.b16 %v583
        %v1032 = vunpack.c.l.b16 %v584
        %v1033 = vunpack.c.l.b16 %v585
        %v1034 = vunpack.c.l.b16 %v586
        %v1035 = vunpack.c.l.b16 %v587
        %v1036 = vunpack.c.l.b16 %v588
        %v1037 = vunpack.c.l.b16 %v589
        %v1038 = vunpack.c.l.b16 %v590
        %v1039 = vunpack.c.l.b16 %v591
        %v1040 = vunpack.c.l.b16 %v592
        %v1041 = vunpack.c.l.b16 %v593
        %v1042 = vunpack.c.l.b16 %v594
        %v1043 = vunpack.c.l.b16 %v595
        %v1044 = vunpack.c.l.b16 %v596
        %v1045 = vunpack.c.l.b16 %v597
        %v1046 = vunpack.c.l.b16 %v598
        %v1047 = vunpack.c.l.b16 %v599
        %v1048 = vunpack.c.l.b16 %v600
        %v1049 = vunpack.c.l.b16 %v601
        %v1050 = vunpack.c.l.b16 %v602
        %v1051 = vunpack.c.l.b16 %v603
        %v1052 = vunpack.c.l.b16 %v604
        %v1053 = vunpack.c.l.b16 %v605
        %v1054 = vunpack.c.l.b16 %v606
        %v1055 = vunpack.c.l.b16 %v607
        %v1056 = vunpack.c.l.b16 %v608
        %v1057 = vunpack.c.l.b16 %v609
        %v1058 = vunpack.c.l.b16 %v610
        %v1059 = vunpack.c.l.b16 %v611
        %v1060 = vunpack.c.l.b16 %v612
        %v1061 = vunpack.c.l.b16 %v613
        %v1062 = vunpack.c.l.b16 %v614
        %v1063 = vunpack.c.l.b16 %v615
        %v1064 = vunpack.c.l.b16 %v616
        %v1065 = vunpack.c.l.b16 %v617
        %v1066 = vunpack.c.l.b16 %v618
        %v1067 = vunpack.c.l.b16 %v619
        %v1068 = vunpack.c.l.b16 %v620
        %v1069 = vunpack.c.l.b16 %v621
        %v1070 = vunpack.c.l.b16 %v622
        %v1071 = vunpack.c.l.b16 %v623
        %v1072 = vunpack.c.l.b16 %v624
        %v1073 = vunpack.c.l.b16 %v625
        %v1074 = vunpack.c.l.b16 %v626
        %v1075 = vunpack.c.l.b16 %v627
        %v1076 = vunpack.c.l.b16 %v628
        %v1077 = vunpack.c.l.b16 %v629
        %v1078 = vunpack.c.l.b16 %v630
        %v1079 = vunpack.c.l.b16 %v631
        %v1080 = vunpack.c.l.b16 %v632
        %v1081 = vunpack.c.l.b16 %v633
        %v1082 = vunpack.c.l.b16 %v634
        %v1083 = vunpack.c.l.b16 %v635
        %v1084 = vunpack.c.l.b16 %v636
        %v1085 = vunpack.c.l.b16 %v637
        %v1086 = vunpack.c.l.b16 %v638
        %v1087 = vunpack.c.l.b16 %v639
        %v1088 = vunpack.c.l.b16 %v640
        %v1089 = vunpack.c.l.b16 %v641
        %v1090 = vpack.c.b16 %v1027, %v1026
        %v1091 = vpack.c.b16 %v1029, %v1028
        %v1092 = vpack.c.b16 %v1031, %v1030
        %v1093 = vpack.c.b16 %v1033, %v1032
        %v1094 = vpack.c.b16 %v1035, %v1034
        %v1095 = vpack.c.b16 %v1037, %v1036
        %v1096 = vpack.c.b16 %v1039, %v1038
        %v1097 = vpack.c.b16 %v1041, %v1040
        %v1098 = vpack.c.b16 %v1043, %v1042
        %v1099 = vpack.c.b16 %v1045, %v1044
        %v1100 = vpack.c.b16 %v1047, %v1046
        %v1101 = vpack.c.b16 %v1049, %v1048
        %v1102 = vpack.c.b16 %v1051, %v1050
        %v1103 = vpack.c.b16 %v1053, %v1052
        %v1104 = vpack.c.b16 %v1055, %v1054
        %v1105 = vpack.c.b16 %v1057, %v1056
        %v1106 = vpack.c.b16 %v1059, %v1058
        %v1107 = vpack.c.b16 %v1061, %v1060
        %v1108 = vpack.c.b16 %v1063, %v1062
        %v1109 = vpack.c.b16 %v1065, %v1064
        %v1110 = vpack.c.b16 %v1067, %v1066
        %v1111 = vpack.c.b16 %v1069, %v1068
        %v1112 = vpack.c.b16 %v1071, %v1070
        %v1113 = vpack.c.b16 %v1073, %v1072
        %v1114 = vpack.c.b16 %v1075, %v1074
        %v1115 = vpack.c.b16 %v1077, %v1076
        %v1116 = vpack.c.b16 %v1079, %v1078
        %v1117 = vpack.c.b16 %v1081, %v1080
        %v1118 = vpack.c.b16 %v1083, %v1082
        %v1119 = vpack.c.b16 %v1085, %v1084
        %v1120 = vpack.c.b16 %v1087, %v1086
        %v1121 = vpack.c.b16 %v1089, %v1088
        %1154 = vmatprep.subr.bf16.mxu0 0
        %1155 = vmatpush1.bf16.msra.mxu0 %v1097
        %1156 = vmatprep.subr.bf16.mxu0 0
        %1157 = vmatpush1.bf16.msra.mxu0 %v1096
        %1158 = vmatprep.subr.bf16.mxu0 0
        %1159 = vmatpush1.bf16.msra.mxu0 %v1095
        %1160 = vmatprep.subr.bf16.mxu0 0
        %1161 = vmatpush1.bf16.msra.mxu0 %v1094
        %1162 = vmatprep.subr.bf16.mxu0 0
        %1163 = vmatpush1.bf16.msra.mxu0 %v1093
        %1164 = vmatprep.subr.bf16.mxu0 0
        %1165 = vmatpush1.bf16.msra.mxu0 %v1092
        %1166 = vmatprep.subr.bf16.mxu0 0
        %1167 = vmatpush1.bf16.msra.mxu0 %v1091
        %1168 = vmatprep.subr.bf16.mxu0 0
        %1169 = vmatpush1.bf16.msra.mxu0 %v1090
        %1170 = vmatprep.subr.bf16.mxu0 0
        %1171 = vmatpush2.bf16.msra.mxu0 %v1105
        %1172 = vmatprep.subr.bf16.mxu0 0
        %1173 = vmatpush2.bf16.msra.mxu0 %v1104
        %1174 = vmatprep.subr.bf16.mxu0 0
        %1175 = vmatpush2.bf16.msra.mxu0 %v1103
        %1176 = vmatprep.subr.bf16.mxu0 0
        %1177 = vmatpush2.bf16.msra.mxu0 %v1102
        %1178 = vmatprep.subr.bf16.mxu0 0
        %1179 = vmatpush2.bf16.msra.mxu0 %v1101
        %1180 = vmatprep.subr.bf16.mxu0 0
        %1181 = vmatpush2.bf16.msra.mxu0 %v1100
        %1182 = vmatprep.subr.bf16.mxu0 0
        %1183 = vmatpush2.bf16.msra.mxu0 %v1099
        %1184 = vmatprep.subr.bf16.mxu0 0
        %1185 = vmatpush2.bf16.msra.mxu0 %v1098
        %1186 = vmatprep.mubr.bf16.mxu0 %v835
        %1187 = vmatmul.mubr.bf16.gmra.mxu0 %v834
        %v1188 = vpop.f32.mrf.mxu0
        %v1189 = vadd.f32 0.0, %v1188
        %v1190 = vpop.f32.mrf.mxu0
        %v1191 = vpop.f32.mrf.mxu0
        %v1192 = vadd.f32 0.0, %v1191
        %v1193 = vpop.f32.mrf.mxu0
        %1194 = vmatprep.mubr.bf16.mxu0 %v839
        %1195 = vmatmul.mubr.bf16.gmra.mxu0 %v838
        %v1196 = vpop.f32.mrf.mxu0
        %v1197 = vadd.f32 0.0, %v1196
        %v1198 = vpop.f32.mrf.mxu0
        %v1199 = vpop.f32.mrf.mxu0
        %v1200 = vadd.f32 0.0, %v1199
        %v1201 = vpop.f32.mrf.mxu0
        %1202 = vmatprep.mubr.bf16.mxu0 %v843
        %1203 = vmatmul.mubr.bf16.gmra.mxu0 %v842
        %v1204 = vpop.f32.mrf.mxu0
        %v1205 = vadd.f32 0.0, %v1204
        %v1206 = vpop.f32.mrf.mxu0
        %v1207 = vpop.f32.mrf.mxu0
        %v1208 = vadd.f32 0.0, %v1207
        %v1209 = vpop.f32.mrf.mxu0
        %1210 = vmatprep.mubr.bf16.mxu0 %v847
        %1211 = vmatmul.mubr.bf16.gmra.mxu0 %v846
        %v1212 = vpop.f32.mrf.mxu0
        %v1213 = vadd.f32 0.0, %v1212
        %v1214 = vpop.f32.mrf.mxu0
        %v1215 = vpop.f32.mrf.mxu0
        %v1216 = vadd.f32 0.0, %v1215
        %v1217 = vpop.f32.mrf.mxu0
        %1218 = vmatprep.mubr.bf16.mxu0 %v851
        %1219 = vmatmul.mubr.bf16.gmra.mxu0 %v850
        %v1220 = vpop.f32.mrf.mxu0
        %v1221 = vadd.f32 0.0, %v1220
        %v1222 = vpop.f32.mrf.mxu0
        %v1223 = vpop.f32.mrf.mxu0
        %v1224 = vadd.f32 0.0, %v1223
        %v1225 = vpop.f32.mrf.mxu0
        %1226 = vmatprep.mubr.bf16.mxu0 %v855
        %1227 = vmatmul.mubr.bf16.gmra.mxu0 %v854
        %v1228 = vpop.f32.mrf.mxu0
        %v1229 = vadd.f32 0.0, %v1228
        %v1230 = vpop.f32.mrf.mxu0
        %v1231 = vpop.f32.mrf.mxu0
        %v1232 = vadd.f32 0.0, %v1231
        %v1233 = vpop.f32.mrf.mxu0
        %1234 = vmatprep.mubr.bf16.mxu0 %v859
        %1235 = vmatmul.mubr.bf16.gmra.mxu0 %v858
        %v1236 = vpop.f32.mrf.mxu0
        %v1237 = vadd.f32 0.0, %v1236
        %v1238 = vpop.f32.mrf.mxu0
        %v1239 = vpop.f32.mrf.mxu0
        %v1240 = vadd.f32 0.0, %v1239
        %v1241 = vpop.f32.mrf.mxu0
        %1242 = vmatprep.mubr.bf16.mxu0 %v863
        %1243 = vmatmul.mubr.bf16.gmra.mxu0 %v862
        %v1244 = vpop.f32.mrf.mxu0
        %v1245 = vadd.f32 0.0, %v1244
        %v1246 = vpop.f32.mrf.mxu0
        %v1247 = vpop.f32.mrf.mxu0
        %v1248 = vadd.f32 0.0, %v1247
        %v1249 = vpop.f32.mrf.mxu0
        %1250 = vmatprep.mubr.bf16.mxu0 %v867
        %1251 = vmatmul.mubr.bf16.gmra.mxu0 %v866
        %v1252 = vpop.f32.mrf.mxu0
        %v1253 = vadd.f32 0.0, %v1252
        %v1254 = vpop.f32.mrf.mxu0
        %v1255 = vpop.f32.mrf.mxu0
        %v1256 = vadd.f32 0.0, %v1255
        %v1257 = vpop.f32.mrf.mxu0
        %1258 = vmatprep.mubr.bf16.mxu0 %v871
        %1259 = vmatmul.mubr.bf16.gmra.mxu0 %v870
        %v1260 = vpop.f32.mrf.mxu0
        %v1261 = vadd.f32 0.0, %v1260
        %v1262 = vpop.f32.mrf.mxu0
        %v1263 = vpop.f32.mrf.mxu0
        %v1264 = vadd.f32 0.0, %v1263
        %v1265 = vpop.f32.mrf.mxu0
        %1266 = vmatprep.mubr.bf16.mxu0 %v875
        %1267 = vmatmul.mubr.bf16.gmra.mxu0 %v874
        %v1268 = vpop.f32.mrf.mxu0
        %v1269 = vadd.f32 0.0, %v1268
        %v1270 = vpop.f32.mrf.mxu0
        %v1271 = vpop.f32.mrf.mxu0
        %v1272 = vadd.f32 0.0, %v1271
        %v1273 = vpop.f32.mrf.mxu0
        %1274 = vmatprep.mubr.bf16.mxu0 %v879
        %1275 = vmatmul.mubr.bf16.gmra.mxu0 %v878
        %v1276 = vpop.f32.mrf.mxu0
        %v1277 = vadd.f32 0.0, %v1276
        %v1278 = vpop.f32.mrf.mxu0
        %v1279 = vpop.f32.mrf.mxu0
        %v1280 = vadd.f32 0.0, %v1279
        %v1281 = vpop.f32.mrf.mxu0
        %1282 = vmatprep.mubr.bf16.mxu0 %v883
        %1283 = vmatmul.mubr.bf16.gmra.mxu0 %v882
        %v1284 = vpop.f32.mrf.mxu0
        %v1285 = vadd.f32 0.0, %v1284
        %v1286 = vpop.f32.mrf.mxu0
        %v1287 = vpop.f32.mrf.mxu0
        %v1288 = vadd.f32 0.0, %v1287
        %v1289 = vpop.f32.mrf.mxu0
        %1290 = vmatprep.mubr.bf16.mxu0 %v887
        %1291 = vmatmul.mubr.bf16.gmra.mxu0 %v886
        %v1292 = vpop.f32.mrf.mxu0
        %v1293 = vadd.f32 0.0, %v1292
        %v1294 = vpop.f32.mrf.mxu0
        %v1295 = vpop.f32.mrf.mxu0
        %v1296 = vadd.f32 0.0, %v1295
        %v1297 = vpop.f32.mrf.mxu0
        %1298 = vmatprep.mubr.bf16.mxu0 %v891
        %1299 = vmatmul.mubr.bf16.gmra.mxu0 %v890
        %v1300 = vpop.f32.mrf.mxu0
        %v1301 = vadd.f32 0.0, %v1300
        %v1302 = vpop.f32.mrf.mxu0
        %v1303 = vpop.f32.mrf.mxu0
        %v1304 = vadd.f32 0.0, %v1303
        %v1305 = vpop.f32.mrf.mxu0
        %1306 = vmatprep.mubr.bf16.mxu0 %v895
        %1307 = vmatmul.mubr.bf16.gmra.mxu0 %v894
        %v1308 = vpop.f32.mrf.mxu0
        %v1309 = vadd.f32 0.0, %v1308
        %v1310 = vpop.f32.mrf.mxu0
        %v1311 = vpop.f32.mrf.mxu0
        %v1312 = vadd.f32 0.0, %v1311
        %v1313 = vpop.f32.mrf.mxu0
        %1314 = vdwg.mxu0
        %1315 = vmatprep.subr.bf16.mxu0 0
        %1316 = vmatpush1.bf16.msra.mxu0 %v1113
        %1317 = vmatprep.subr.bf16.mxu0 0
        %1318 = vmatpush1.bf16.msra.mxu0 %v1112
        %1319 = vmatprep.subr.bf16.mxu0 0
        %1320 = vmatpush1.bf16.msra.mxu0 %v1111
        %1321 = vmatprep.subr.bf16.mxu0 0
        %1322 = vmatpush1.bf16.msra.mxu0 %v1110
        %1323 = vmatprep.subr.bf16.mxu0 0
        %1324 = vmatpush1.bf16.msra.mxu0 %v1109
        %1325 = vmatprep.subr.bf16.mxu0 0
        %1326 = vmatpush1.bf16.msra.mxu0 %v1108
        %1327 = vmatprep.subr.bf16.mxu0 0
        %1328 = vmatpush1.bf16.msra.mxu0 %v1107
        %1329 = vmatprep.subr.bf16.mxu0 0
        %1330 = vmatpush1.bf16.msra.mxu0 %v1106
        %1331 = vmatprep.subr.bf16.mxu0 0
        %1332 = vmatpush2.bf16.msra.mxu0 %v1121
        %1333 = vmatprep.subr.bf16.mxu0 0
        %1334 = vmatpush2.bf16.msra.mxu0 %v1120
        %1335 = vmatprep.subr.bf16.mxu0 0
        %1336 = vmatpush2.bf16.msra.mxu0 %v1119
        %1337 = vmatprep.subr.bf16.mxu0 0
        %1338 = vmatpush2.bf16.msra.mxu0 %v1118
        %1339 = vmatprep.subr.bf16.mxu0 0
        %1340 = vmatpush2.bf16.msra.mxu0 %v1117
        %1341 = vmatprep.subr.bf16.mxu0 0
        %1342 = vmatpush2.bf16.msra.mxu0 %v1116
        %1343 = vmatprep.subr.bf16.mxu0 0
        %1344 = vmatpush2.bf16.msra.mxu0 %v1115
        %1345 = vmatprep.subr.bf16.mxu0 0
        %1346 = vmatpush2.bf16.msra.mxu0 %v1114
        %1347 = vmatprep.mubr.bf16.mxu0 %v837
        %1348 = vmatmul.mubr.bf16.gmra.mxu0 %v836
        %v1349 = vpop.f32.mrf.mxu0
        %v1350 = vadd.f32 %v1189, %v1349
        %v1351 = vpop.f32.mrf.mxu0
        %v1352 = vpop.f32.mrf.mxu0
        %v1353 = vadd.f32 %v1192, %v1352
        %v1354 = vpop.f32.mrf.mxu0
        %1355 = vmatprep.mubr.bf16.mxu0 %v841
        %1356 = vmatmul.mubr.bf16.gmra.mxu0 %v840
        %v1357 = vpop.f32.mrf.mxu0
        %v1358 = vadd.f32 %v1197, %v1357
        %v1359 = vpop.f32.mrf.mxu0
        %v1360 = vpop.f32.mrf.mxu0
        %v1361 = vadd.f32 %v1200, %v1360
        %v1362 = vpop.f32.mrf.mxu0
        %1363 = vmatprep.mubr.bf16.mxu0 %v845
        %1364 = vmatmul.mubr.bf16.gmra.mxu0 %v844
        %v1365 = vpop.f32.mrf.mxu0
        %v1366 = vadd.f32 %v1205, %v1365
        %v1367 = vpop.f32.mrf.mxu0
        %v1368 = vpop.f32.mrf.mxu0
        %v1369 = vadd.f32 %v1208, %v1368
        %v1370 = vpop.f32.mrf.mxu0
        %1371 = vmatprep.mubr.bf16.mxu0 %v849
        %1372 = vmatmul.mubr.bf16.gmra.mxu0 %v848
        %v1373 = vpop.f32.mrf.mxu0
        %v1374 = vadd.f32 %v1213, %v1373
        %v1375 = vpop.f32.mrf.mxu0
        %v1376 = vpop.f32.mrf.mxu0
        %v1377 = vadd.f32 %v1216, %v1376
        %v1378 = vpop.f32.mrf.mxu0
        %1379 = vmatprep.mubr.bf16.mxu0 %v853
        %1380 = vmatmul.mubr.bf16.gmra.mxu0 %v852
        %v1381 = vpop.f32.mrf.mxu0
        %v1382 = vadd.f32 %v1221, %v1381
        %v1383 = vpop.f32.mrf.mxu0
        %v1384 = vpop.f32.mrf.mxu0
        %v1385 = vadd.f32 %v1224, %v1384
        %v1386 = vpop.f32.mrf.mxu0
        %1387 = vmatprep.mubr.bf16.mxu0 %v857
        %1388 = vmatmul.mubr.bf16.gmra.mxu0 %v856
        %v1389 = vpop.f32.mrf.mxu0
        %v1390 = vadd.f32 %v1229, %v1389
        %v1391 = vpop.f32.mrf.mxu0
        %v1392 = vpop.f32.mrf.mxu0
        %v1393 = vadd.f32 %v1232, %v1392
        %v1394 = vpop.f32.mrf.mxu0
        %1395 = vmatprep.mubr.bf16.mxu0 %v861
        %1396 = vmatmul.mubr.bf16.gmra.mxu0 %v860
        %v1397 = vpop.f32.mrf.mxu0
        %v1398 = vadd.f32 %v1237, %v1397
        %v1399 = vpop.f32.mrf.mxu0
        %v1400 = vpop.f32.mrf.mxu0
        %v1401 = vadd.f32 %v1240, %v1400
        %v1402 = vpop.f32.mrf.mxu0
        %1403 = vmatprep.mubr.bf16.mxu0 %v865
        %1404 = vmatmul.mubr.bf16.gmra.mxu0 %v864
        %v1405 = vpop.f32.mrf.mxu0
        %v1406 = vadd.f32 %v1245, %v1405
        %v1407 = vpop.f32.mrf.mxu0
        %v1408 = vpop.f32.mrf.mxu0
        %v1409 = vadd.f32 %v1248, %v1408
        %v1410 = vpop.f32.mrf.mxu0
        %1411 = vmatprep.mubr.bf16.mxu0 %v869
        %1412 = vmatmul.mubr.bf16.gmra.mxu0 %v868
        %v1413 = vpop.f32.mrf.mxu0
        %v1414 = vadd.f32 %v1253, %v1413
        %v1415 = vpop.f32.mrf.mxu0
        %v1416 = vpop.f32.mrf.mxu0
        %v1417 = vadd.f32 %v1256, %v1416
        %v1418 = vpop.f32.mrf.mxu0
        %1419 = vmatprep.mubr.bf16.mxu0 %v873
        %1420 = vmatmul.mubr.bf16.gmra.mxu0 %v872
        %v1421 = vpop.f32.mrf.mxu0
        %v1422 = vadd.f32 %v1261, %v1421
        %v1423 = vpop.f32.mrf.mxu0
        %v1424 = vpop.f32.mrf.mxu0
        %v1425 = vadd.f32 %v1264, %v1424
        %v1426 = vpop.f32.mrf.mxu0
        %1427 = vmatprep.mubr.bf16.mxu0 %v877
        %1428 = vmatmul.mubr.bf16.gmra.mxu0 %v876
        %v1429 = vpop.f32.mrf.mxu0
        %v1430 = vadd.f32 %v1269, %v1429
        %v1431 = vpop.f32.mrf.mxu0
        %v1432 = vpop.f32.mrf.mxu0
        %v1433 = vadd.f32 %v1272, %v1432
        %v1434 = vpop.f32.mrf.mxu0
        %1435 = vmatprep.mubr.bf16.mxu0 %v881
        %1436 = vmatmul.mubr.bf16.gmra.mxu0 %v880
        %v1437 = vpop.f32.mrf.mxu0
        %v1438 = vadd.f32 %v1277, %v1437
        %v1439 = vpop.f32.mrf.mxu0
        %v1440 = vpop.f32.mrf.mxu0
        %v1441 = vadd.f32 %v1280, %v1440
        %v1442 = vpop.f32.mrf.mxu0
        %1443 = vmatprep.mubr.bf16.mxu0 %v885
        %1444 = vmatmul.mubr.bf16.gmra.mxu0 %v884
        %v1445 = vpop.f32.mrf.mxu0
        %v1446 = vadd.f32 %v1285, %v1445
        %v1447 = vpop.f32.mrf.mxu0
        %v1448 = vpop.f32.mrf.mxu0
        %v1449 = vadd.f32 %v1288, %v1448
        %v1450 = vpop.f32.mrf.mxu0
        %1451 = vmatprep.mubr.bf16.mxu0 %v889
        %1452 = vmatmul.mubr.bf16.gmra.mxu0 %v888
        %v1453 = vpop.f32.mrf.mxu0
        %v1454 = vadd.f32 %v1293, %v1453
        %v1455 = vpop.f32.mrf.mxu0
        %v1456 = vpop.f32.mrf.mxu0
        %v1457 = vadd.f32 %v1296, %v1456
        %v1458 = vpop.f32.mrf.mxu0
        %1459 = vmatprep.mubr.bf16.mxu0 %v893
        %1460 = vmatmul.mubr.bf16.gmra.mxu0 %v892
        %v1461 = vpop.f32.mrf.mxu0
        %v1462 = vadd.f32 %v1301, %v1461
        %v1463 = vpop.f32.mrf.mxu0
        %v1464 = vpop.f32.mrf.mxu0
        %v1465 = vadd.f32 %v1304, %v1464
        %v1466 = vpop.f32.mrf.mxu0
        %1467 = vmatprep.mubr.bf16.mxu0 %v897
        %1468 = vmatmul.mubr.bf16.gmra.mxu0 %v896
        %v1469 = vpop.f32.mrf.mxu0
        %v1470 = vadd.f32 %v1309, %v1469
        %v1471 = vpop.f32.mrf.mxu0
        %v1472 = vpop.f32.mrf.mxu0
        %v1473 = vadd.f32 %v1312, %v1472
        %v1474 = vpop.f32.mrf.mxu0
        %1475 = vdwg.mxu0
        %v1476 = vadd.f32 %v482, %v1350
        %v1477 = vadd.f32 %v483, %v1353
        %v1478 = vadd.f32 %v484, %v1358
        %v1479 = vadd.f32 %v485, %v1361
        %v1480 = vadd.f32 %v486, %v1366
        %v1481 = vadd.f32 %v487, %v1369
        %v1482 = vadd.f32 %v488, %v1374
        %v1483 = vadd.f32 %v489, %v1377
        %v1484 = vadd.f32 %v490, %v1382
        %v1485 = vadd.f32 %v491, %v1385
        %v1486 = vadd.f32 %v492, %v1390
        %v1487 = vadd.f32 %v493, %v1393
        %v1488 = vadd.f32 %v494, %v1398
        %v1489 = vadd.f32 %v495, %v1401
        %v1490 = vadd.f32 %v496, %v1406
        %v1491 = vadd.f32 %v497, %v1409
        %v1492 = vadd.f32 %v498, %v1414
        %v1493 = vadd.f32 %v499, %v1417
        %v1494 = vadd.f32 %v500, %v1422
        %v1495 = vadd.f32 %v501, %v1425
        %v1496 = vadd.f32 %v502, %v1430
        %v1497 = vadd.f32 %v503, %v1433
        %v1498 = vadd.f32 %v504, %v1438
        %v1499 = vadd.f32 %v505, %v1441
        %v1500 = vadd.f32 %v506, %v1446
        %v1501 = vadd.f32 %v507, %v1449
        %v1502 = vadd.f32 %v508, %v1454
        %v1503 = vadd.f32 %v509, %v1457
        %v1504 = vadd.f32 %v510, %v1462
        %v1505 = vadd.f32 %v511, %v1465
        %v1506 = vadd.f32 %v512, %v1470
        %v1507 = vadd.f32 %v513, %v1473
        %1508 = vst [vmem:[#allocation2] sm:$0xff] %v1476
        %1509 = vst [vmem:[#allocation2 + $0x8] sm:$0xff] %v1477
        %1510 = vst [vmem:[#allocation2 + $0x10] sm:$0xff] %v1478
        %1511 = vst [vmem:[#allocation2 + $0x18] sm:$0xff] %v1479
        %1512 = vst [vmem:[#allocation2 + $0x20] sm:$0xff] %v1480
        %1513 = vst [vmem:[#allocation2 + $0x28] sm:$0xff] %v1481
        %1514 = vst [vmem:[#allocation2 + $0x30] sm:$0xff] %v1482
        %1515 = vst [vmem:[#allocation2 + $0x38] sm:$0xff] %v1483
        %1516 = vst [vmem:[#allocation2 + $0x40] sm:$0xff] %v1484
        %1517 = vst [vmem:[#allocation2 + $0x48] sm:$0xff] %v1485
        %1518 = vst [vmem:[#allocation2 + $0x50] sm:$0xff] %v1486
        %1519 = vst [vmem:[#allocation2 + $0x58] sm:$0xff] %v1487
        %1520 = vst [vmem:[#allocation2 + $0x60] sm:$0xff] %v1488
        %1521 = vst [vmem:[#allocation2 + $0x68] sm:$0xff] %v1489
        %1522 = vst [vmem:[#allocation2 + $0x70] sm:$0xff] %v1490
        %1523 = vst [vmem:[#allocation2 + $0x78] sm:$0xff] %v1491
        %1524 = vst [vmem:[#allocation2 + $0x80] sm:$0xff] %v1492
        %1525 = vst [vmem:[#allocation2 + $0x88] sm:$0xff] %v1493
        %1526 = vst [vmem:[#allocation2 + $0x90] sm:$0xff] %v1494
        %1527 = vst [vmem:[#allocation2 + $0x98] sm:$0xff] %v1495
        %1528 = vst [vmem:[#allocation2 + $0xa0] sm:$0xff] %v1496
        %1529 = vst [vmem:[#allocation2 + $0xa8] sm:$0xff] %v1497
        %1530 = vst [vmem:[#allocation2 + $0xb0] sm:$0xff] %v1498
        %1531 = vst [vmem:[#allocation2 + $0xb8] sm:$0xff] %v1499
        %1532 = vst [vmem:[#allocation2 + $0xc0] sm:$0xff] %v1500
        %1533 = vst [vmem:[#allocation2 + $0xc8] sm:$0xff] %v1501
        %1534 = vst [vmem:[#allocation2 + $0xd0] sm:$0xff] %v1502
        %1535 = vst [vmem:[#allocation2 + $0xd8] sm:$0xff] %v1503
        %1536 = vst [vmem:[#allocation2 + $0xe0] sm:$0xff] %v1504
        %1537 = vst [vmem:[#allocation2 + $0xe8] sm:$0xff] %v1505
        %1538 = vst [vmem:[#allocation2 + $0xf0] sm:$0xff] %v1506
        %1539 = vst [vmem:[#allocation2 + $0xf8] sm:$0xff] %v1507
        %p1540 = scmp.eq.s32.totalorder %s23, 1
        // Predicated region
        $region60: #{discriminator_forward.5} parent=50 // pred_check
          %p1541 = pneg %p1540
        $region61: #{discriminator_forward.5} parent=50 // pred_check_branch
          %1543 = sbr.rel (%p1541) target = $region63
        $region62: #{discriminator_forward.5} parent=50 // pred_region
          %v1544 = vld [vmem:[#allocation2] sm:$0xff]
          %v1545 = vld [vmem:[#allocation2 + $0x8] sm:$0xff]
          %v1546 = vld [vmem:[#allocation2 + $0x10] sm:$0xff]
          %v1547 = vld [vmem:[#allocation2 + $0x18] sm:$0xff]
          %v1548 = vld [vmem:[#allocation2 + $0x20] sm:$0xff]
          %v1549 = vld [vmem:[#allocation2 + $0x28] sm:$0xff]
          %v1550 = vld [vmem:[#allocation2 + $0x30] sm:$0xff]
          %v1551 = vld [vmem:[#allocation2 + $0x38] sm:$0xff]
          %v1552 = vld [vmem:[#allocation2 + $0x40] sm:$0xff]
          %v1553 = vld [vmem:[#allocation2 + $0x48] sm:$0xff]
          %v1554 = vld [vmem:[#allocation2 + $0x50] sm:$0xff]
          %v1555 = vld [vmem:[#allocation2 + $0x58] sm:$0xff]
          %v1556 = vld [vmem:[#allocation2 + $0x60] sm:$0xff]
          %v1557 = vld [vmem:[#allocation2 + $0x68] sm:$0xff]
          %v1558 = vld [vmem:[#allocation2 + $0x70] sm:$0xff]
          %v1559 = vld [vmem:[#allocation2 + $0x78] sm:$0xff]
          %v1560 = vld [vmem:[#allocation2 + $0x80] sm:$0xff]
          %v1561 = vld [vmem:[#allocation2 + $0x88] sm:$0xff]
          %v1562 = vld [vmem:[#allocation2 + $0x90] sm:$0xff]
          %v1563 = vld [vmem:[#allocation2 + $0x98] sm:$0xff]
          %v1564 = vld [vmem:[#allocation2 + $0xa0] sm:$0xff]
          %v1565 = vld [vmem:[#allocation2 + $0xa8] sm:$0xff]
          %v1566 = vld [vmem:[#allocation2 + $0xb0] sm:$0xff]
          %v1567 = vld [vmem:[#allocation2 + $0xb8] sm:$0xff]
          %v1568 = vld [vmem:[#allocation2 + $0xc0] sm:$0xff]
          %v1569 = vld [vmem:[#allocation2 + $0xc8] sm:$0xff]
          %v1570 = vld [vmem:[#allocation2 + $0xd0] sm:$0xff]
          %v1571 = vld [vmem:[#allocation2 + $0xd8] sm:$0xff]
          %v1572 = vld [vmem:[#allocation2 + $0xe0] sm:$0xff]
          %v1573 = vld [vmem:[#allocation2 + $0xe8] sm:$0xff]
          %v1574 = vld [vmem:[#allocation2 + $0xf0] sm:$0xff]
          %v1575 = vld [vmem:[#allocation2 + $0xf8] sm:$0xff]
          %v1576 = vld [vmem:[%s428] sm:$0x1]
          %v1578 = vlaneseq
          %v1579 = vshrl.u32 %v1578, 7
          %v1580 = vsub.s32 0, %v1579
          %v1581 = vrot.slane %v1576, %v1580
          %v1583 = vadd.f32 %v1544, %v1581
          %v1584 = vadd.f32 %v1545, %v1581
          %v1585 = vadd.f32 %v1546, %v1581
          %v1586 = vadd.f32 %v1547, %v1581
          %v1587 = vadd.f32 %v1548, %v1581
          %v1588 = vadd.f32 %v1549, %v1581
          %v1589 = vadd.f32 %v1550, %v1581
          %v1590 = vadd.f32 %v1551, %v1581
          %v1591 = vadd.f32 %v1552, %v1581
          %v1592 = vadd.f32 %v1553, %v1581
          %v1593 = vadd.f32 %v1554, %v1581
          %v1594 = vadd.f32 %v1555, %v1581
          %v1595 = vadd.f32 %v1556, %v1581
          %v1596 = vadd.f32 %v1557, %v1581
          %v1597 = vadd.f32 %v1558, %v1581
          %v1598 = vadd.f32 %v1559, %v1581
          %v1599 = vadd.f32 %v1560, %v1581
          %v1600 = vadd.f32 %v1561, %v1581
          %v1601 = vadd.f32 %v1562, %v1581
          %v1602 = vadd.f32 %v1563, %v1581
          %v1603 = vadd.f32 %v1564, %v1581
          %v1604 = vadd.f32 %v1565, %v1581
          %v1605 = vadd.f32 %v1566, %v1581
          %v1606 = vadd.f32 %v1567, %v1581
          %v1607 = vadd.f32 %v1568, %v1581
          %v1608 = vadd.f32 %v1569, %v1581
          %v1609 = vadd.f32 %v1570, %v1581
          %v1610 = vadd.f32 %v1571, %v1581
          %v1611 = vadd.f32 %v1572, %v1581
          %v1612 = vadd.f32 %v1573, %v1581
          %v1613 = vadd.f32 %v1574, %v1581
          %v1614 = vadd.f32 %v1575, %v1581
          %vm1615 = vcmp.gt.f32.partialorder %v1583, 0.0
          %vm1616 = vcmp.gt.f32.partialorder %v1584, 0.0
          %vm1617 = vcmp.gt.f32.partialorder %v1585, 0.0
          %vm1618 = vcmp.gt.f32.partialorder %v1586, 0.0
          %vm1619 = vcmp.gt.f32.partialorder %v1587, 0.0
          %vm1620 = vcmp.gt.f32.partialorder %v1588, 0.0
          %vm1621 = vcmp.gt.f32.partialorder %v1589, 0.0
          %vm1622 = vcmp.gt.f32.partialorder %v1590, 0.0
          %vm1623 = vcmp.gt.f32.partialorder %v1591, 0.0
          %vm1624 = vcmp.gt.f32.partialorder %v1592, 0.0
          %vm1625 = vcmp.gt.f32.partialorder %v1593, 0.0
          %vm1626 = vcmp.gt.f32.partialorder %v1594, 0.0
          %vm1627 = vcmp.gt.f32.partialorder %v1595, 0.0
          %vm1628 = vcmp.gt.f32.partialorder %v1596, 0.0
          %vm1629 = vcmp.gt.f32.partialorder %v1597, 0.0
          %vm1630 = vcmp.gt.f32.partialorder %v1598, 0.0
          %vm1631 = vcmp.gt.f32.partialorder %v1599, 0.0
          %vm1632 = vcmp.gt.f32.partialorder %v1600, 0.0
          %vm1633 = vcmp.gt.f32.partialorder %v1601, 0.0
          %vm1634 = vcmp.gt.f32.partialorder %v1602, 0.0
          %vm1635 = vcmp.gt.f32.partialorder %v1603, 0.0
          %vm1636 = vcmp.gt.f32.partialorder %v1604, 0.0
          %vm1637 = vcmp.gt.f32.partialorder %v1605, 0.0
          %vm1638 = vcmp.gt.f32.partialorder %v1606, 0.0
          %vm1639 = vcmp.gt.f32.partialorder %v1607, 0.0
          %vm1640 = vcmp.gt.f32.partialorder %v1608, 0.0
          %vm1641 = vcmp.gt.f32.partialorder %v1609, 0.0
          %vm1642 = vcmp.gt.f32.partialorder %v1610, 0.0
          %vm1643 = vcmp.gt.f32.partialorder %v1611, 0.0
          %vm1644 = vcmp.gt.f32.partialorder %v1612, 0.0
          %vm1645 = vcmp.gt.f32.partialorder %v1613, 0.0
          %vm1646 = vcmp.gt.f32.partialorder %v1614, 0.0
          %v1647 = vmul.f32 %v1583, 0.01
          %v1648 = vmul.f32 %v1584, 0.01
          %v1649 = vmul.f32 %v1585, 0.01
          %v1650 = vmul.f32 %v1586, 0.01
          %v1651 = vmul.f32 %v1587, 0.01
          %v1652 = vmul.f32 %v1588, 0.01
          %v1653 = vmul.f32 %v1589, 0.01
          %v1654 = vmul.f32 %v1590, 0.01
          %v1655 = vmul.f32 %v1591, 0.01
          %v1656 = vmul.f32 %v1592, 0.01
          %v1657 = vmul.f32 %v1593, 0.01
          %v1658 = vmul.f32 %v1594, 0.01
          %v1659 = vmul.f32 %v1595, 0.01
          %v1660 = vmul.f32 %v1596, 0.01
          %v1661 = vmul.f32 %v1597, 0.01
          %v1662 = vmul.f32 %v1598, 0.01
          %v1663 = vmul.f32 %v1599, 0.01
          %v1664 = vmul.f32 %v1600, 0.01
          %v1665 = vmul.f32 %v1601, 0.01
          %v1666 = vmul.f32 %v1602, 0.01
          %v1667 = vmul.f32 %v1603, 0.01
          %v1668 = vmul.f32 %v1604, 0.01
          %v1669 = vmul.f32 %v1605, 0.01
          %v1670 = vmul.f32 %v1606, 0.01
          %v1671 = vmul.f32 %v1607, 0.01
          %v1672 = vmul.f32 %v1608, 0.01
          %v1673 = vmul.f32 %v1609, 0.01
          %v1674 = vmul.f32 %v1610, 0.01
          %v1675 = vmul.f32 %v1611, 0.01
          %v1676 = vmul.f32 %v1612, 0.01
          %v1677 = vmul.f32 %v1613, 0.01
          %v1678 = vmul.f32 %v1614, 0.01
          %v1679 = vsel %vm1615, %v1583, %v1647
          %v1680 = vsel %vm1616, %v1584, %v1648
          %v1681 = vsel %vm1617, %v1585, %v1649
          %v1682 = vsel %vm1618, %v1586, %v1650
          %v1683 = vsel %vm1619, %v1587, %v1651
          %v1684 = vsel %vm1620, %v1588, %v1652
          %v1685 = vsel %vm1621, %v1589, %v1653
          %v1686 = vsel %vm1622, %v1590, %v1654
          %v1687 = vsel %vm1623, %v1591, %v1655
          %v1688 = vsel %vm1624, %v1592, %v1656
          %v1689 = vsel %vm1625, %v1593, %v1657
          %v1690 = vsel %vm1626, %v1594, %v1658
          %v1691 = vsel %vm1627, %v1595, %v1659
          %v1692 = vsel %vm1628, %v1596, %v1660
          %v1693 = vsel %vm1629, %v1597, %v1661
          %v1694 = vsel %vm1630, %v1598, %v1662
          %v1695 = vsel %vm1631, %v1599, %v1663
          %v1696 = vsel %vm1632, %v1600, %v1664
          %v1697 = vsel %vm1633, %v1601, %v1665
          %v1698 = vsel %vm1634, %v1602, %v1666
          %v1699 = vsel %vm1635, %v1603, %v1667
          %v1700 = vsel %vm1636, %v1604, %v1668
          %v1701 = vsel %vm1637, %v1605, %v1669
          %v1702 = vsel %vm1638, %v1606, %v1670
          %v1703 = vsel %vm1639, %v1607, %v1671
          %v1704 = vsel %vm1640, %v1608, %v1672
          %v1705 = vsel %vm1641, %v1609, %v1673
          %v1706 = vsel %vm1642, %v1610, %v1674
          %v1707 = vsel %vm1643, %v1611, %v1675
          %v1708 = vsel %vm1644, %v1612, %v1676
          %v1709 = vsel %vm1645, %v1613, %v1677
          %v1710 = vsel %vm1646, %v1614, %v1678
          %1711 = vst [vmem:[%s436] sm:$0xff] %v1679
          %1712 = vst [vmem:[%s436 + $0x8] sm:$0xff] %v1680
          %1713 = vst [vmem:[%s436 + $0x10] sm:$0xff] %v1681
          %1714 = vst [vmem:[%s436 + $0x18] sm:$0xff] %v1682
          %1715 = vst [vmem:[%s436 + $0x20] sm:$0xff] %v1683
          %1716 = vst [vmem:[%s436 + $0x28] sm:$0xff] %v1684
          %1717 = vst [vmem:[%s436 + $0x30] sm:$0xff] %v1685
          %1718 = vst [vmem:[%s436 + $0x38] sm:$0xff] %v1686
          %1719 = vst [vmem:[%s436 + $0x40] sm:$0xff] %v1687
          %1720 = vst [vmem:[%s436 + $0x48] sm:$0xff] %v1688
          %1721 = vst [vmem:[%s436 + $0x50] sm:$0xff] %v1689
          %1722 = vst [vmem:[%s436 + $0x58] sm:$0xff] %v1690
          %1723 = vst [vmem:[%s436 + $0x60] sm:$0xff] %v1691
          %1724 = vst [vmem:[%s436 + $0x68] sm:$0xff] %v1692
          %1725 = vst [vmem:[%s436 + $0x70] sm:$0xff] %v1693
          %1726 = vst [vmem:[%s436 + $0x78] sm:$0xff] %v1694
          %1727 = vst [vmem:[%s436 + $0x80] sm:$0xff] %v1695
          %1728 = vst [vmem:[%s436 + $0x88] sm:$0xff] %v1696
          %1729 = vst [vmem:[%s436 + $0x90] sm:$0xff] %v1697
          %1730 = vst [vmem:[%s436 + $0x98] sm:$0xff] %v1698
          %1731 = vst [vmem:[%s436 + $0xa0] sm:$0xff] %v1699
          %1732 = vst [vmem:[%s436 + $0xa8] sm:$0xff] %v1700
          %1733 = vst [vmem:[%s436 + $0xb0] sm:$0xff] %v1701
          %1734 = vst [vmem:[%s436 + $0xb8] sm:$0xff] %v1702
          %1735 = vst [vmem:[%s436 + $0xc0] sm:$0xff] %v1703
          %1736 = vst [vmem:[%s436 + $0xc8] sm:$0xff] %v1704
          %1737 = vst [vmem:[%s436 + $0xd0] sm:$0xff] %v1705
          %1738 = vst [vmem:[%s436 + $0xd8] sm:$0xff] %v1706
          %1739 = vst [vmem:[%s436 + $0xe0] sm:$0xff] %v1707
          %1740 = vst [vmem:[%s436 + $0xe8] sm:$0xff] %v1708
          %1741 = vst [vmem:[%s436 + $0xf0] sm:$0xff] %v1709
          %1742 = vst [vmem:[%s436 + $0xf8] sm:$0xff] %v1710
          %v1743 = vadd.f32 %v1679, %v1680
          %v1744 = vadd.f32 %v1743, %v1681
          %v1745 = vadd.f32 %v1744, %v1682
          %v1746 = vadd.f32 %v1745, %v1683
          %v1747 = vadd.f32 %v1746, %v1684
          %v1748 = vadd.f32 %v1747, %v1685
          %v1749 = vadd.f32 %v1748, %v1686
          %v1750 = vadd.f32 %v1749, %v1687
          %v1751 = vadd.f32 %v1750, %v1688
          %v1752 = vadd.f32 %v1751, %v1689
          %v1753 = vadd.f32 %v1752, %v1690
          %v1754 = vadd.f32 %v1753, %v1691
          %v1755 = vadd.f32 %v1754, %v1692
          %v1756 = vadd.f32 %v1755, %v1693
          %v1757 = vadd.f32 %v1756, %v1694
          %v1758 = vadd.f32 %v1757, %v1695
          %v1759 = vadd.f32 %v1758, %v1696
          %v1760 = vadd.f32 %v1759, %v1697
          %v1761 = vadd.f32 %v1760, %v1698
          %v1762 = vadd.f32 %v1761, %v1699
          %v1763 = vadd.f32 %v1762, %v1700
          %v1764 = vadd.f32 %v1763, %v1701
          %v1765 = vadd.f32 %v1764, %v1702
          %v1766 = vadd.f32 %v1765, %v1703
          %v1767 = vadd.f32 %v1766, %v1704
          %v1768 = vadd.f32 %v1767, %v1705
          %v1769 = vadd.f32 %v1768, %v1706
          %v1770 = vadd.f32 %v1769, %v1707
          %v1771 = vadd.f32 %v1770, %v1708
          %v1772 = vadd.f32 %v1771, %v1709
          %v1773 = vadd.f32 %v1772, %v1710
          %v1774 = vrot.slane %v1773, 4
          %v1775 = vadd.f32 %v1773, %v1774
          %v1776 = vrot.slane %v1775, 2
          %v1777 = vadd.f32 %v1775, %v1776
          %v1778 = vrot.slane %v1777, 1
          %v1779 = vadd.f32 %v1777, %v1778
          %v1780 = vmul.f32 %v1679, %v1679
          %v1781 = vmul.f32 %v1680, %v1680
          %v1782 = vmul.f32 %v1681, %v1681
          %v1783 = vmul.f32 %v1682, %v1682
          %v1784 = vmul.f32 %v1683, %v1683
          %v1785 = vmul.f32 %v1684, %v1684
          %v1786 = vmul.f32 %v1685, %v1685
          %v1787 = vmul.f32 %v1686, %v1686
          %v1788 = vmul.f32 %v1687, %v1687
          %v1789 = vmul.f32 %v1688, %v1688
          %v1790 = vmul.f32 %v1689, %v1689
          %v1791 = vmul.f32 %v1690, %v1690
          %v1792 = vmul.f32 %v1691, %v1691
          %v1793 = vmul.f32 %v1692, %v1692
          %v1794 = vmul.f32 %v1693, %v1693
          %v1795 = vmul.f32 %v1694, %v1694
          %v1796 = vmul.f32 %v1695, %v1695
          %v1797 = vmul.f32 %v1696, %v1696
          %v1798 = vmul.f32 %v1697, %v1697
          %v1799 = vmul.f32 %v1698, %v1698
          %v1800 = vmul.f32 %v1699, %v1699
          %v1801 = vmul.f32 %v1700, %v1700
          %v1802 = vmul.f32 %v1701, %v1701
          %v1803 = vmul.f32 %v1702, %v1702
          %v1804 = vmul.f32 %v1703, %v1703
          %v1805 = vmul.f32 %v1704, %v1704
          %v1806 = vmul.f32 %v1705, %v1705
          %v1807 = vmul.f32 %v1706, %v1706
          %v1808 = vmul.f32 %v1707, %v1707
          %v1809 = vmul.f32 %v1708, %v1708
          %v1810 = vmul.f32 %v1709, %v1709
          %v1811 = vmul.f32 %v1710, %v1710
          %v1812 = vadd.f32 %v1780, %v1781
          %v1813 = vadd.f32 %v1812, %v1782
          %v1814 = vadd.f32 %v1813, %v1783
          %v1815 = vadd.f32 %v1814, %v1784
          %v1816 = vadd.f32 %v1815, %v1785
          %v1817 = vadd.f32 %v1816, %v1786
          %v1818 = vadd.f32 %v1817, %v1787
          %v1819 = vadd.f32 %v1818, %v1788
          %v1820 = vadd.f32 %v1819, %v1789
          %v1821 = vadd.f32 %v1820, %v1790
          %v1822 = vadd.f32 %v1821, %v1791
          %v1823 = vadd.f32 %v1822, %v1792
          %v1824 = vadd.f32 %v1823, %v1793
          %v1825 = vadd.f32 %v1824, %v1794
          %v1826 = vadd.f32 %v1825, %v1795
          %v1827 = vadd.f32 %v1826, %v1796
          %v1828 = vadd.f32 %v1827, %v1797
          %v1829 = vadd.f32 %v1828, %v1798
          %v1830 = vadd.f32 %v1829, %v1799
          %v1831 = vadd.f32 %v1830, %v1800
          %v1832 = vadd.f32 %v1831, %v1801
          %v1833 = vadd.f32 %v1832, %v1802
          %v1834 = vadd.f32 %v1833, %v1803
          %v1835 = vadd.f32 %v1834, %v1804
          %v1836 = vadd.f32 %v1835, %v1805
          %v1837 = vadd.f32 %v1836, %v1806
          %v1838 = vadd.f32 %v1837, %v1807
          %v1839 = vadd.f32 %v1838, %v1808
          %v1840 = vadd.f32 %v1839, %v1809
          %v1841 = vadd.f32 %v1840, %v1810
          %v1842 = vadd.f32 %v1841, %v1811
          %v1843 = vrot.slane %v1842, 4
          %v1844 = vadd.f32 %v1842, %v1843
          %v1845 = vrot.slane %v1844, 2
          %v1846 = vadd.f32 %v1844, %v1845
          %v1847 = vrot.slane %v1846, 1
          %v1848 = vadd.f32 %v1846, %v1847
          %vm1849 = vcmask 1040384
          %v1850 = vsel %vm1849, %v1779, %v1848
          %vm1851 = vcmask 1041408
          %v1852 = vsel %vm1851, %v1850, 0.0
          %1853 = vst [vmem:[%s444] sm:$0xff] %v1852
        $region63: #{discriminator_forward.5} parent=50 // pred_fallthru
          _
        %s1854 = smul.u32 32, %s21
        %p1855 = scmp.lt.s32.totalorder %s1854, 63
        %s1856 = scalar_select %p1855, %s1854, 63
        %p1857 = scmp.lt.s32.totalorder %s22, 0
        %s1858 = scalar_select %p1857, %s22, 0
        %s1859 = sadd.s32 %s1858, %s1856
        %s1860 = smul.addr %s1859, 8
        %s1861 = scalar_lea.vmem %s3, %s1860
        %p1862 = scmp.lt.s32.totalorder %s21, 1
        %s1863 = scalar_select %p1862, %s21, 1
        %p1864 = scmp.lt.s32.totalorder %s22, 0
        %s1865 = scalar_select %p1864, %s22, 0
        %s1866 = sadd.s32 %s1865, %s1863
        %s1867 = smul.addr %s1866, 8
        %s1868 = scalar_lea.vmem %s4, %s1867
        // Predicated region
        $region64: #{discriminator_forward.5} parent=50 // pred_check
          %p1869 = pneg %p137
        $region65: #{discriminator_forward.5} parent=50 // pred_check_branch
          %1871 = sbr.rel (%p1869) target = $region67
        $region66: #{discriminator_forward.5} parent=50 // pred_region
          %s1872 = smul.u32 32, %s21
        $region67: #{discriminator_forward.5} parent=50 // pred_fallthru
          _
        // Predicated region
        $region68: #{discriminator_forward.5} parent=50 // pred_check
          %p1873 = pneg %p165
        $region69: #{discriminator_forward.5} parent=50 // pred_check_branch
          %1875 = sbr.rel (%p1873) target = $region71
        $region70: #{discriminator_forward.5} parent=50 // pred_region
          _
        $region71: #{discriminator_forward.5} parent=50 // pred_fallthru
          _
      $region51: #{discriminator_forward.5} parent=5 // pred_fallthru
        _
      %p1876 = scmp.le.s32.totalorder 2, %s11
      // Predicated region
      $region72: #{discriminator_forward.5} parent=5 // pred_check
        %p1877 = pneg %p1876
      $region73: #{discriminator_forward.5} parent=5 // pred_check_branch
        %1879 = sbr.rel (%p1877) target = $region75
      $region74: #{discriminator_forward.5} parent=5 // pred_region
        %s1880 = ssub.s32 %s11, 2
        // Predicated region
        $region76: #{discriminator_forward.5} parent=74 // pred_check
          %p1881 = pneg %p143
        $region77: #{discriminator_forward.5} parent=74 // pred_check_branch
          %1883 = sbr.rel (%p1881) target = $region79
        $region78: #{discriminator_forward.5} parent=74 // pred_region
          %s1884 = smul.u32 32, %s24
          %p1885 = scmp.lt.s32.totalorder %s1884, 63
          %s1886 = scalar_select %p1885, %s1884, 63
          %p1887 = scmp.lt.s32.totalorder %s25, 0
          %s1888 = scalar_select %p1887, %s25, 0
          %s1889 = sadd.s32 %s1888, %s1886
          %s1890 = smul.addr %s1889, 8
          %s1891 = scalar_lea.vmem %s3, %s1890
        $region79: #{discriminator_forward.5} parent=74 // pred_fallthru
          _
        // Predicated region
        $region80: #{discriminator_forward.5} parent=74 // pred_check
          %p1892 = pneg %p171
        $region81: #{discriminator_forward.5} parent=74 // pred_check_branch
          %1894 = sbr.rel (%p1892) target = $region83
        $region82: #{discriminator_forward.5} parent=74 // pred_region
          %p1895 = scmp.lt.s32.totalorder %s24, 1
          %s1896 = scalar_select %p1895, %s24, 1
          %p1897 = scmp.lt.s32.totalorder %s25, 0
          %s1898 = scalar_select %p1897, %s25, 0
          %s1899 = sadd.s32 %s1898, %s1896
          %s1900 = smul.addr %s1899, 8
          %s1901 = scalar_lea.vmem %s4, %s1900
        $region83: #{discriminator_forward.5} parent=74 // pred_fallthru
          _
      $region75: #{discriminator_forward.5} parent=5 // pred_fallthru
        _
    $region6: #{discriminator_forward.5} parent=1 // loop_footer
      %s15 = sadd.s32 1, %s11
    $region7: #{discriminator_forward.5} parent=1 // loop_footer_branch
      %10 = sbr.rel target = $region3
    $region8: #{discriminator_forward.5} parent=1 // loop_exit
      _

// kernel: discriminator_forward.6
$region0: #{discriminator_forward.6}
  #allocation0 [shape = 'u32[]', space=smem, size = 0x4, offset = 0x4, fixed_abs, tag = 'smem constant byte address 0x4 - core index']
  #allocation1 [shape = 'u32[144,128]{1,0:T(1,128)}', space=vmem, size = 0x12000, scoped, tag = 'internal scratch']
  #allocation2 [shape = 'f32[128,128]{1,0:T(8,128)}', space=vmem, size = 0x10000, scoped, tag = 'scratch operand']
  %s0 = inlined_call_operand.vmem [shape: bf16[128,2048], index: 0, kind: input, shape index: {}]
  %s1 = inlined_call_operand.vmem [shape: bf16[2048,256], index: 1, kind: input, shape index: {}]
  %s2 = inlined_call_operand.vmem [shape: f32[1,256], index: 2, kind: input, shape index: {}]
  %s3 = inlined_call_operand.vmem [shape: f32[128,256], index: 3, kind: output, shape index: {0}]
  %s4 = inlined_call_operand.vmem [shape: f32[8,256], index: 4, kind: output, shape index: {1}]
  %5 = xla_tuple %s3, %s4
  %s6 = sld [smem:[#allocation0]]
  $region159: #{discriminator_forward.6} parent=0
    _
  %s8 = ssub.s32 1, %s6
  %s9 = scalar_select 0, %s8, %s6
  $region1: #{discriminator_forward.6} parent=0
    #allocation3 [shape = 'u8[262144]{0}', space=vmem, size = 0x40000, scoped, tag = 'input window, operand 0']
    #allocation4 [shape = 'u8[262144]{0}', space=vmem, size = 0x40000, scoped, tag = 'input window, operand 1']
    #allocation5 [shape = 'u8[131072]{0}', space=vmem, size = 0x20000, scoped, tag = 'output window, operand 0']
    loop: start=0, step=1, limit=10
    $region2: #{discriminator_forward.6} parent=1 // loop_pre_header
      _
    $region3: #{discriminator_forward.6} parent=1 // loop_header
      %s11 = sphi 0, %s15
      %p12 = scmp.ge.s32.totalorder %s11, 10
      %s18 = sphi 0, %s37
      %s19 = sphi 0, %s33
      %s20 = sphi 0, %s29
      %s21 = sphi 0, %s18
      %s22 = sphi 0, %s19
      %s23 = sphi 0, %s20
      %s24 = sphi 0, %s21
      %s25 = sphi 0, %s22
      %s26 = sphi 0, %s23
      %s42 = sphi 0, %s44
      %s45 = sphi 0, %s42
      %s46 = sphi 0, %s45
      %s62 = sphi 0, %s46
      %s70 = sphi 0, %s72
      %s73 = sphi 0, %s70
      %s74 = sphi 0, %s73
      %s90 = sphi 0, %s74
      %s96 = sphi 0, %s98
      %s99 = sphi 0, %s96
      %s100 = sphi 0, %s99
      %s116 = sphi 0, %s100
      %s124 = sphi 0, %s126
      %s127 = sphi 0, %s124
      %s128 = sphi 0, %s127
      %s144 = sphi 0, %s128
      %s152 = sphi 0, %s154
      %s155 = sphi 0, %s152
      %s156 = sphi 0, %s155
      %s172 = sphi 0, %s156
    $region4: #{discriminator_forward.6} parent=1 // loop_header_branch
      %14 = sbr.rel (%p12) target = $region8
    $region5: #{discriminator_forward.6} parent=1 // loop_body
      %s16 = ssub.s32 %s11, 1
      %s17 = ssub.s32 %s11, 2
      %s27 = sadd.s32 1, %s20
      %p28 = scmp.ge.s32.totalorder %s27, 4
      %s29 = scalar_select %p28, 0, %s27
      %s30 = sadd.s32 1, %s19
      %s31 = scalar_select %p28, %s30, %s19
      %p32 = scmp.ge.s32.totalorder %s31, 2
      %s33 = scalar_select %p32, 0, %s31
      %s34 = sadd.s32 1, %s18
      %s35 = scalar_select %p32, %s34, %s18
      %p36 = scmp.ge.s32.totalorder %s35, 1
      %s37 = scalar_select %p36, 0, %s35
      %s38 = ssub.s32 %s18, %s37
      %s39 = ssub.s32 %s20, %s29
      %s40 = sor.u32 %s38, %s39
      %p41 = scmp.eq.s32.totalorder %s40, 0
      %s43 = sadd.s32 %s42, 1
      %s44 = scalar_select %p41, %s42, %s43
      %p47 = pneg %p41
      %p48 = scmp.eq.s32.totalorder %s11, 7
      %p49 = por %p47, %p48
      %p50 = scmp.ne.s32.totalorder %s42, %s45
      %p51 = scmp.eq.s32.totalorder %s11, 0
      %p52 = por %p50, %p51
      %p53 = scmp.ne.s32.totalorder %s42, %s45
      %p54 = scmp.eq.s32.totalorder %s16, 7
      %p55 = por %p53, %p54
      %p56 = scmp.ne.s32.totalorder %s45, %s46
      %p57 = scmp.eq.s32.totalorder %s16, 0
      %p58 = por %p56, %p57
      %p59 = scmp.ne.s32.totalorder %s45, %s46
      %p60 = scmp.eq.s32.totalorder %s17, 7
      %p61 = por %p59, %p60
      %p63 = scmp.ne.s32.totalorder %s46, %s62
      %p64 = scmp.eq.s32.totalorder %s17, 0
      %p65 = por %p63, %p64
      %s66 = ssub.s32 %s20, %s29
      %s67 = ssub.s32 %s19, %s33
      %s68 = sor.u32 %s66, %s67
      %p69 = scmp.eq.s32.totalorder %s68, 0
      %s71 = sadd.s32 %s70, 1
      %s72 = scalar_select %p69, %s70, %s71
      %p75 = pneg %p69
      %p76 = scmp.eq.s32.totalorder %s11, 7
      %p77 = por %p75, %p76
      %p78 = scmp.ne.s32.totalorder %s70, %s73
      %p79 = scmp.eq.s32.totalorder %s11, 0
      %p80 = por %p78, %p79
      %p81 = scmp.ne.s32.totalorder %s70, %s73
      %p82 = scmp.eq.s32.totalorder %s16, 7
      %p83 = por %p81, %p82
      %p84 = scmp.ne.s32.totalorder %s73, %s74
      %p85 = scmp.eq.s32.totalorder %s16, 0
      %p86 = por %p84, %p85
      %p87 = scmp.ne.s32.totalorder %s73, %s74
      %p88 = scmp.eq.s32.totalorder %s17, 7
      %p89 = por %p87, %p88
      %p91 = scmp.ne.s32.totalorder %s74, %s90
      %p92 = scmp.eq.s32.totalorder %s17, 0
      %p93 = por %p91, %p92
      %s94 = ssub.s32 %s19, %s33
      %p95 = scmp.eq.s32.totalorder %s94, 0
      %s97 = sadd.s32 %s96, 1
      %s98 = scalar_select %p95, %s96, %s97
      %p101 = pneg %p95
      %p102 = scmp.eq.s32.totalorder %s11, 7
      %p103 = por %p101, %p102
      %p104 = scmp.ne.s32.totalorder %s96, %s99
      %p105 = scmp.eq.s32.totalorder %s11, 0
      %p106 = por %p104, %p105
      %p107 = scmp.ne.s32.totalorder %s96, %s99
      %p108 = scmp.eq.s32.totalorder %s16, 7
      %p109 = por %p107, %p108
      %p110 = scmp.ne.s32.totalorder %s99, %s100
      %p111 = scmp.eq.s32.totalorder %s16, 0
      %p112 = por %p110, %p111
      %p113 = scmp.ne.s32.totalorder %s99, %s100
      %p114 = scmp.eq.s32.totalorder %s17, 7
      %p115 = por %p113, %p114
      %p117 = scmp.ne.s32.totalorder %s100, %s116
      %p118 = scmp.eq.s32.totalorder %s17, 0
      %p119 = por %p117, %p118
      %s120 = ssub.s32 %s18, %s37
      %s121 = ssub.s32 %s19, %s33
      %s122 = sor.u32 %s120, %s121
      %p123 = scmp.eq.s32.totalorder %s122, 0
      %s125 = sadd.s32 %s124, 1
      %s126 = scalar_select %p123, %s124, %s125
      %p129 = pneg %p123
      %p130 = scmp.eq.s32.totalorder %s11, 7
      %p131 = por %p129, %p130
      %p132 = scmp.ne.s32.totalorder %s124, %s127
      %p133 = scmp.eq.s32.totalorder %s11, 0
      %p134 = por %p132, %p133
      %p135 = scmp.ne.s32.totalorder %s124, %s127
      %p136 = scmp.eq.s32.totalorder %s16, 7
      %p137 = por %p135, %p136
      %p138 = scmp.ne.s32.totalorder %s127, %s128
      %p139 = scmp.eq.s32.totalorder %s16, 0
      %p140 = por %p138, %p139
      %p141 = scmp.ne.s32.totalorder %s127, %s128
      %p142 = scmp.eq.s32.totalorder %s17, 7
      %p143 = por %p141, %p142
      %p145 = scmp.ne.s32.totalorder %s128, %s144
      %p146 = scmp.eq.s32.totalorder %s17, 0
      %p147 = por %p145, %p146
      %s148 = ssub.s32 %s18, %s37
      %s149 = ssub.s32 %s19, %s33
      %s150 = sor.u32 %s148, %s149
      %p151 = scmp.eq.s32.totalorder %s150, 0
      %s153 = sadd.s32 %s152, 1
      %s154 = scalar_select %p151, %s152, %s153
      %p157 = pneg %p151
      %p158 = scmp.eq.s32.totalorder %s11, 7
      %p159 = por %p157, %p158
      %p160 = scmp.ne.s32.totalorder %s152, %s155
      %p161 = scmp.eq.s32.totalorder %s11, 0
      %p162 = por %p160, %p161
      %p163 = scmp.ne.s32.totalorder %s152, %s155
      %p164 = scmp.eq.s32.totalorder %s16, 7
      %p165 = por %p163, %p164
      %p166 = scmp.ne.s32.totalorder %s155, %s156
      %p167 = scmp.eq.s32.totalorder %s16, 0
      %p168 = por %p166, %p167
      %p169 = scmp.ne.s32.totalorder %s155, %s156
      %p170 = scmp.eq.s32.totalorder %s17, 7
      %p171 = por %p169, %p170
      %p173 = scmp.ne.s32.totalorder %s156, %s172
      %p174 = scmp.eq.s32.totalorder %s17, 0
      %p175 = por %p173, %p174
      %p176 = scmp.le.s32.totalorder 1, %s11
      %p177 = scmp.lt.s32.totalorder %s11, 9
      %p178 = pnand %p176, %p177
      %p179 = pneg %p178
      // Predicated region
      $region9: #{discriminator_forward.6} parent=5 // pred_check
        _
      $region10: #{discriminator_forward.6} parent=5 // pred_check_branch
        %181 = sbr.rel (%p178) target = $region12
      $region11: #{discriminator_forward.6} parent=5 // pred_region
        %s182 = ssub.s32 %s11, 1
      $region12: #{discriminator_forward.6} parent=5 // pred_fallthru
        _
      %p183 = scmp.lt.s32.totalorder %s11, 8
      // Predicated region
      $region13: #{discriminator_forward.6} parent=5 // pred_check
        %p184 = pneg %p183
      $region14: #{discriminator_forward.6} parent=5 // pred_check_branch
        %186 = sbr.rel (%p184) target = $region16
      $region15: #{discriminator_forward.6} parent=5 // pred_region
        // Predicated region
        $region17: #{discriminator_forward.6} parent=15 // pred_check
          %p187 = pneg %p52
        $region18: #{discriminator_forward.6} parent=15 // pred_check_branch
          %189 = sbr.rel (%p187) target = $region20
        $region19: #{discriminator_forward.6} parent=15 // pred_region
          %s190 = sand.u32 %s42, 1
          %s191 = sand.u32 %s42, 1
          %s192 = smul.addr %s191, 256
          %s193 = scalar_lea.vmem [#allocation3], %s192
          %s194 = smul.u32 16, %s18
          %s195 = smul.u32 4, %s20
          %s196 = smul.addr %s194, 16
          %s197 = sadd.s32 %s195, %s196
          %s198 = smul.addr %s197, 4
          %s199 = scalar_lea.vmem %s0, %s198
          // Predicated region
          $region21: #{discriminator_forward.6} parent=19 // pred_check
            _
          $region22: #{discriminator_forward.6} parent=19 // pred_check_branch
            %201 = sbr.rel (0) target = $region24
          $region23: #{discriminator_forward.6} parent=19 // pred_region
            // Predicated region
            $region25: #{discriminator_forward.6} parent=23 // pred_check
              _
            $region26: #{discriminator_forward.6} parent=23 // pred_check_branch
              %203 = sbr.rel (0) target = $region28
            $region27: #{discriminator_forward.6} parent=23 // pred_region
              loop: start=0, step=1, limit=1
              $region29: #{discriminator_forward.6} parent=27 // loop_pre_header
                _
              $region30: #{discriminator_forward.6} parent=27 // loop_header
                %s205 = sphi 0, %s209
                %p206 = scmp.ge.s32.totalorder %s205, 1
                %s210 = sphi %s199, %s199
                %s211 = sphi %s193, %s193
              $region31: #{discriminator_forward.6} parent=27 // loop_header_branch
                %208 = sbr.rel (%p206) target = $region35
              $region32: #{discriminator_forward.6} parent=27 // loop_body
                %v212 = vld [vmem:[%s210] sm:$0xff]
                %213 = vst [vmem:[%s211] sm:$0xff] %v212
                %v214 = vld [vmem:[%s210 + $0x8] sm:$0xff]
                %215 = vst [vmem:[%s211 + $0x8] sm:$0xff] %v214
                %v216 = vld [vmem:[%s210 + $0x40] sm:$0xff]
                %217 = vst [vmem:[%s211 + $0x10] sm:$0xff] %v216
                %v218 = vld [vmem:[%s210 + $0x48] sm:$0xff]
                %219 = vst [vmem:[%s211 + $0x18] sm:$0xff] %v218
                %v220 = vld [vmem:[%s210 + $0x80] sm:$0xff]
                %221 = vst [vmem:[%s211 + $0x20] sm:$0xff] %v220
                %v222 = vld [vmem:[%s210 + $0x88] sm:$0xff]
                %223 = vst [vmem:[%s211 + $0x28] sm:$0xff] %v222
                %v224 = vld [vmem:[%s210 + $0xc0] sm:$0xff]
                %225 = vst [vmem:[%s211 + $0x30] sm:$0xff] %v224
                %v226 = vld [vmem:[%s210 + $0xc8] sm:$0xff]
                %227 = vst [vmem:[%s211 + $0x38] sm:$0xff] %v226
                %v228 = vld [vmem:[%s210 + $0x100] sm:$0xff]
                %229 = vst [vmem:[%s211 + $0x40] sm:$0xff] %v228
                %v230 = vld [vmem:[%s210 + $0x108] sm:$0xff]
                %231 = vst [vmem:[%s211 + $0x48] sm:$0xff] %v230
                %v232 = vld [vmem:[%s210 + $0x140] sm:$0xff]
                %233 = vst [vmem:[%s211 + $0x50] sm:$0xff] %v232
                %v234 = vld [vmem:[%s210 + $0x148] sm:$0xff]
                %235 = vst [vmem:[%s211 + $0x58] sm:$0xff] %v234
                %v236 = vld [vmem:[%s210 + $0x180] sm:$0xff]
                %237 = vst [vmem:[%s211 + $0x60] sm:$0xff] %v236
                %v238 = vld [vmem:[%s210 + $0x188] sm:$0xff]
                %239 = vst [vmem:[%s211 + $0x68] sm:$0xff] %v238
                %v240 = vld [vmem:[%s210 + $0x1c0] sm:$0xff]
                %241 = vst [vmem:[%s211 + $0x70] sm:$0xff] %v240
                %v242 = vld [vmem:[%s210 + $0x1c8] sm:$0xff]
                %243 = vst [vmem:[%s211 + $0x78] sm:$0xff] %v242
                %v244 = vld [vmem:[%s210 + $0x200] sm:$0xff]
                %245 = vst [vmem:[%s211 + $0x80] sm:$0xff] %v244
                %v246 = vld [vmem:[%s210 + $0x208] sm:$0xff]
                %247 = vst [vmem:[%s211 + $0x88] sm:$0xff] %v246
                %v248 = vld [vmem:[%s210 + $0x240] sm:$0xff]
                %249 = vst [vmem:[%s211 + $0x90] sm:$0xff] %v248
                %v250 = vld [vmem:[%s210 + $0x248] sm:$0xff]
                %251 = vst [vmem:[%s211 + $0x98] sm:$0xff] %v250
                %v252 = vld [vmem:[%s210 + $0x280] sm:$0xff]
                %253 = vst [vmem:[%s211 + $0xa0] sm:$0xff] %v252
                %v254 = vld [vmem:[%s210 + $0x288] sm:$0xff]
                %255 = vst [vmem:[%s211 + $0xa8] sm:$0xff] %v254
                %v256 = vld [vmem:[%s210 + $0x2c0] sm:$0xff]
                %257 = vst [vmem:[%s211 + $0xb0] sm:$0xff] %v256
                %v258 = vld [vmem:[%s210 + $0x2c8] sm:$0xff]
                %259 = vst [vmem:[%s211 + $0xb8] sm:$0xff] %v258
                %v260 = vld [vmem:[%s210 + $0x300] sm:$0xff]
                %261 = vst [vmem:[%s211 + $0xc0] sm:$0xff] %v260
                %v262 = vld [vmem:[%s210 + $0x308] sm:$0xff]
                %263 = vst [vmem:[%s211 + $0xc8] sm:$0xff] %v262
                %v264 = vld [vmem:[%s210 + $0x340] sm:$0xff]
                %265 = vst [vmem:[%s211 + $0xd0] sm:$0xff] %v264
                %v266 = vld [vmem:[%s210 + $0x348] sm:$0xff]
                %267 = vst [vmem:[%s211 + $0xd8] sm:$0xff] %v266
                %v268 = vld [vmem:[%s210 + $0x380] sm:$0xff]
                %269 = vst [vmem:[%s211 + $0xe0] sm:$0xff] %v268
                %v270 = vld [vmem:[%s210 + $0x388] sm:$0xff]
                %271 = vst [vmem:[%s211 + $0xe8] sm:$0xff] %v270
                %v272 = vld [vmem:[%s210 + $0x3c0] sm:$0xff]
                %273 = vst [vmem:[%s211 + $0xf0] sm:$0xff] %v272
                %v274 = vld [vmem:[%s210 + $0x3c8] sm:$0xff]
                %275 = vst [vmem:[%s211 + $0xf8] sm:$0xff] %v274
              $region33: #{discriminator_forward.6} parent=27 // loop_footer
                %s209 = sadd.s32 1, %s205
              $region34: #{discriminator_forward.6} parent=27 // loop_footer_branch
                %204 = sbr.rel target = $region30
              $region35: #{discriminator_forward.6} parent=27 // loop_exit
                _
            $region28: #{discriminator_forward.6} parent=23 // pred_fallthru
              _
            // Predicated region
            $region36: #{discriminator_forward.6} parent=23 // pred_check
              _
            $region37: #{discriminator_forward.6} parent=23 // pred_check_branch
              %277 = sbr.rel target = $region39
            $region38: #{discriminator_forward.6} parent=23 // pred_region
              _
            $region39: #{discriminator_forward.6} parent=23 // pred_fallthru
              _
          $region24: #{discriminator_forward.6} parent=19 // pred_fallthru
            _
          %278 = vnop
        $region20: #{discriminator_forward.6} parent=15 // pred_fallthru
          _
        // Predicated region
        $region40: #{discriminator_forward.6} parent=15 // pred_check
          %p279 = pneg %p80
        $region41: #{discriminator_forward.6} parent=15 // pred_check_branch
          %281 = sbr.rel (%p279) target = $region43
        $region42: #{discriminator_forward.6} parent=15 // pred_region
          %s282 = sand.u32 %s70, 1
          %s283 = sand.u32 %s70, 1
          %s284 = smul.addr %s283, 256
          %s285 = scalar_lea.vmem [#allocation4], %s284
          %s286 = smul.u32 64, %s20
          %s287 = smul.addr %s286, 2
          %s288 = sadd.s32 %s19, %s287
          %s289 = smul.addr %s288, 4
          %s290 = scalar_lea.vmem %s1, %s289
          // Predicated region
          $region44: #{discriminator_forward.6} parent=42 // pred_check
            _
          $region45: #{discriminator_forward.6} parent=42 // pred_check_branch
            %292 = sbr.rel (0) target = $region47
          $region46: #{discriminator_forward.6} parent=42 // pred_region
            // Predicated region
            $region48: #{discriminator_forward.6} parent=46 // pred_check
              _
            $region49: #{discriminator_forward.6} parent=46 // pred_check_branch
              %294 = sbr.rel target = $region51
            $region50: #{discriminator_forward.6} parent=46 // pred_region
              // Predicated region
              $region63: #{discriminator_forward.6} parent=50 // pred_check
                _
              $region64: #{discriminator_forward.6} parent=50 // pred_check_branch
                %436 = sbr.rel (0) target = $region66
              $region65: #{discriminator_forward.6} parent=50 // pred_region
                loop: start=0, step=1, limit=1
                $region67: #{discriminator_forward.6} parent=65 // loop_pre_header
                  _
                $region68: #{discriminator_forward.6} parent=65 // loop_header
                  %s438 = sphi 0, %s442
                  %p439 = scmp.ge.s32.totalorder %s438, 1
                  %s443 = sphi %s290, %s290
                  %s444 = sphi %s285, %s285
                $region69: #{discriminator_forward.6} parent=65 // loop_header_branch
                  %441 = sbr.rel (%p439) target = $region73
                $region70: #{discriminator_forward.6} parent=65 // loop_body
                  _
                $region71: #{discriminator_forward.6} parent=65 // loop_footer
                  %s442 = sadd.s32 1, %s438
                $region72: #{discriminator_forward.6} parent=65 // loop_footer_branch
                  %437 = sbr.rel target = $region68
                $region73: #{discriminator_forward.6} parent=65 // loop_exit
                  _
                %s446 = ssub.s32 16, 1
                loop: start=0, step=1, limit=1
                $region74: #{discriminator_forward.6} parent=65 // loop_pre_header
                  _
                $region75: #{discriminator_forward.6} parent=65 // loop_header
                  %s448 = sphi 0, %s452
                  %p449 = scmp.ge.s32.totalorder %s448, 1
                  %s453 = sphi %s290, %s290
                  %s454 = sphi %s285, %s285
                $region76: #{discriminator_forward.6} parent=65 // loop_header_branch
                  %451 = sbr.rel (%p449) target = $region80
                $region77: #{discriminator_forward.6} parent=65 // loop_body
                  %v455 = vld [vmem:[%s453] sm:%s446]
                  %456 = vst [vmem:[%s454] sm:%s446] %v455
                  %v457 = vld [vmem:[%s453 + $0x8] sm:%s446]
                  %458 = vst [vmem:[%s454 + $0x4] sm:%s446] %v457
                  %v459 = vld [vmem:[%s453 + $0x10] sm:%s446]
                  %460 = vst [vmem:[%s454 + $0x8] sm:%s446] %v459
                  %v461 = vld [vmem:[%s453 + $0x18] sm:%s446]
                  %462 = vst [vmem:[%s454 + $0xc] sm:%s446] %v461
                  %v463 = vld [vmem:[%s453 + $0x20] sm:%s446]
                  %464 = vst [vmem:[%s454 + $0x10] sm:%s446] %v463
                  %v465 = vld [vmem:[%s453 + $0x28] sm:%s446]
                  %466 = vst [vmem:[%s454 + $0x14] sm:%s446] %v465
                  %v467 = vld [vmem:[%s453 + $0x30] sm:%s446]
                  %468 = vst [vmem:[%s454 + $0x18] sm:%s446] %v467
                  %v469 = vld [vmem:[%s453 + $0x38] sm:%s446]
                  %470 = vst [vmem:[%s454 + $0x1c] sm:%s446] %v469
                  %v471 = vld [vmem:[%s453 + $0x40] sm:%s446]
                  %472 = vst [vmem:[%s454 + $0x20] sm:%s446] %v471
                  %v473 = vld [vmem:[%s453 + $0x48] sm:%s446]
                  %474 = vst [vmem:[%s454 + $0x24] sm:%s446] %v473
                  %v475 = vld [vmem:[%s453 + $0x50] sm:%s446]
                  %476 = vst [vmem:[%s454 + $0x28] sm:%s446] %v475
                  %v477 = vld [vmem:[%s453 + $0x58] sm:%s446]
                  %478 = vst [vmem:[%s454 + $0x2c] sm:%s446] %v477
                  %v479 = vld [vmem:[%s453 + $0x60] sm:%s446]
                  %480 = vst [vmem:[%s454 + $0x30] sm:%s446] %v479
                  %v481 = vld [vmem:[%s453 + $0x68] sm:%s446]
                  %482 = vst [vmem:[%s454 + $0x34] sm:%s446] %v481
                  %v483 = vld [vmem:[%s453 + $0x70] sm:%s446]
                  %484 = vst [vmem:[%s454 + $0x38] sm:%s446] %v483
                  %v485 = vld [vmem:[%s453 + $0x78] sm:%s446]
                  %486 = vst [vmem:[%s454 + $0x3c] sm:%s446] %v485
                  %v487 = vld [vmem:[%s453 + $0x80] sm:%s446]
                  %488 = vst [vmem:[%s454 + $0x40] sm:%s446] %v487
                  %v489 = vld [vmem:[%s453 + $0x88] sm:%s446]
                  %490 = vst [vmem:[%s454 + $0x44] sm:%s446] %v489
                  %v491 = vld [vmem:[%s453 + $0x90] sm:%s446]
                  %492 = vst [vmem:[%s454 + $0x48] sm:%s446] %v491
                  %v493 = vld [vmem:[%s453 + $0x98] sm:%s446]
                  %494 = vst [vmem:[%s454 + $0x4c] sm:%s446] %v493
                  %v495 = vld [vmem:[%s453 + $0xa0] sm:%s446]
                  %496 = vst [vmem:[%s454 + $0x50] sm:%s446] %v495
                  %v497 = vld [vmem:[%s453 + $0xa8] sm:%s446]
                  %498 = vst [vmem:[%s454 + $0x54] sm:%s446] %v497
                  %v499 = vld [vmem:[%s453 + $0xb0] sm:%s446]
                  %500 = vst [vmem:[%s454 + $0x58] sm:%s446] %v499
                  %v501 = vld [vmem:[%s453 + $0xb8] sm:%s446]
                  %502 = vst [vmem:[%s454 + $0x5c] sm:%s446] %v501
                  %v503 = vld [vmem:[%s453 + $0xc0] sm:%s446]
                  %504 = vst [vmem:[%s454 + $0x60] sm:%s446] %v503
                  %v505 = vld [vmem:[%s453 + $0xc8] sm:%s446]
                  %506 = vst [vmem:[%s454 + $0x64] sm:%s446] %v505
                  %v507 = vld [vmem:[%s453 + $0xd0] sm:%s446]
                  %508 = vst [vmem:[%s454 + $0x68] sm:%s446] %v507
                  %v509 = vld [vmem:[%s453 + $0xd8] sm:%s446]
                  %510 = vst [vmem:[%s454 + $0x6c] sm:%s446] %v509
                  %v511 = vld [vmem:[%s453 + $0xe0] sm:%s446]
                  %512 = vst [vmem:[%s454 + $0x70] sm:%s446] %v511
                  %v513 = vld [vmem:[%s453 + $0xe8] sm:%s446]
                  %514 = vst [vmem:[%s454 + $0x74] sm:%s446] %v513
                  %v515 = vld [vmem:[%s453 + $0xf0] sm:%s446]
                  %516 = vst [vmem:[%s454 + $0x78] sm:%s446] %v515
                  %v517 = vld [vmem:[%s453 + $0xf8] sm:%s446]
                  %518 = vst [vmem:[%s454 + $0x7c] sm:%s446] %v517
                  %v519 = vld [vmem:[%s453 + $0x100] sm:%s446]
                  %520 = vst [vmem:[%s454 + $0x80] sm:%s446] %v519
                  %v521 = vld [vmem:[%s453 + $0x108] sm:%s446]
                  %522 = vst [vmem:[%s454 + $0x84] sm:%s446] %v521
                  %v523 = vld [vmem:[%s453 + $0x110] sm:%s446]
                  %524 = vst [vmem:[%s454 + $0x88] sm:%s446] %v523
                  %v525 = vld [vmem:[%s453 + $0x118] sm:%s446]
                  %526 = vst [vmem:[%s454 + $0x8c] sm:%s446] %v525
                  %v527 = vld [vmem:[%s453 + $0x120] sm:%s446]
                  %528 = vst [vmem:[%s454 + $0x90] sm:%s446] %v527
                  %v529 = vld [vmem:[%s453 + $0x128] sm:%s446]
                  %530 = vst [vmem:[%s454 + $0x94] sm:%s446] %v529
                  %v531 = vld [vmem:[%s453 + $0x130] sm:%s446]
                  %532 = vst [vmem:[%s454 + $0x98] sm:%s446] %v531
                  %v533 = vld [vmem:[%s453 + $0x138] sm:%s446]
                  %534 = vst [vmem:[%s454 + $0x9c] sm:%s446] %v533
                  %v535 = vld [vmem:[%s453 + $0x140] sm:%s446]
                  %536 = vst [vmem:[%s454 + $0xa0] sm:%s446] %v535
                  %v537 = vld [vmem:[%s453 + $0x148] sm:%s446]
                  %538 = vst [vmem:[%s454 + $0xa4] sm:%s446] %v537
                  %v539 = vld [vmem:[%s453 + $0x150] sm:%s446]
                  %540 = vst [vmem:[%s454 + $0xa8] sm:%s446] %v539
                  %v541 = vld [vmem:[%s453 + $0x158] sm:%s446]
                  %542 = vst [vmem:[%s454 + $0xac] sm:%s446] %v541
                  %v543 = vld [vmem:[%s453 + $0x160] sm:%s446]
                  %544 = vst [vmem:[%s454 + $0xb0] sm:%s446] %v543
                  %v545 = vld [vmem:[%s453 + $0x168] sm:%s446]
                  %546 = vst [vmem:[%s454 + $0xb4] sm:%s446] %v545
                  %v547 = vld [vmem:[%s453 + $0x170] sm:%s446]
                  %548 = vst [vmem:[%s454 + $0xb8] sm:%s446] %v547
                  %v549 = vld [vmem:[%s453 + $0x178] sm:%s446]
                  %550 = vst [vmem:[%s454 + $0xbc] sm:%s446] %v549
                  %v551 = vld [vmem:[%s453 + $0x180] sm:%s446]
                  %552 = vst [vmem:[%s454 + $0xc0] sm:%s446] %v551
                  %v553 = vld [vmem:[%s453 + $0x188] sm:%s446]
                  %554 = vst [vmem:[%s454 + $0xc4] sm:%s446] %v553
                  %v555 = vld [vmem:[%s453 + $0x190] sm:%s446]
                  %556 = vst [vmem:[%s454 + $0xc8] sm:%s446] %v555
                  %v557 = vld [vmem:[%s453 + $0x198] sm:%s446]
                  %558 = vst [vmem:[%s454 + $0xcc] sm:%s446] %v557
                  %v559 = vld [vmem:[%s453 + $0x1a0] sm:%s446]
                  %560 = vst [vmem:[%s454 + $0xd0] sm:%s446] %v559
                  %v561 = vld [vmem:[%s453 + $0x1a8] sm:%s446]
                  %562 = vst [vmem:[%s454 + $0xd4] sm:%s446] %v561
                  %v563 = vld [vmem:[%s453 + $0x1b0] sm:%s446]
                  %564 = vst [vmem:[%s454 + $0xd8] sm:%s446] %v563
                  %v565 = vld [vmem:[%s453 + $0x1b8] sm:%s446]
                  %566 = vst [vmem:[%s454 + $0xdc] sm:%s446] %v565
                  %v567 = vld [vmem:[%s453 + $0x1c0] sm:%s446]
                  %568 = vst [vmem:[%s454 + $0xe0] sm:%s446] %v567
                  %v569 = vld [vmem:[%s453 + $0x1c8] sm:%s446]
                  %570 = vst [vmem:[%s454 + $0xe4] sm:%s446] %v569
                  %v571 = vld [vmem:[%s453 + $0x1d0] sm:%s446]
                  %572 = vst [vmem:[%s454 + $0xe8] sm:%s446] %v571
                  %v573 = vld [vmem:[%s453 + $0x1d8] sm:%s446]
                  %574 = vst [vmem:[%s454 + $0xec] sm:%s446] %v573
                  %v575 = vld [vmem:[%s453 + $0x1e0] sm:%s446]
                  %576 = vst [vmem:[%s454 + $0xf0] sm:%s446] %v575
                  %v577 = vld [vmem:[%s453 + $0x1e8] sm:%s446]
                  %578 = vst [vmem:[%s454 + $0xf4] sm:%s446] %v577
                  %v579 = vld [vmem:[%s453 + $0x1f0] sm:%s446]
                  %580 = vst [vmem:[%s454 + $0xf8] sm:%s446] %v579
                  %v581 = vld [vmem:[%s453 + $0x1f8] sm:%s446]
                  %582 = vst [vmem:[%s454 + $0xfc] sm:%s446] %v581
                $region78: #{discriminator_forward.6} parent=65 // loop_footer
                  %s452 = sadd.s32 1, %s448
                $region79: #{discriminator_forward.6} parent=65 // loop_footer_branch
                  %447 = sbr.rel target = $region75
                $region80: #{discriminator_forward.6} parent=65 // loop_exit
                  _
              $region66: #{discriminator_forward.6} parent=50 // pred_fallthru
                _
            $region51: #{discriminator_forward.6} parent=46 // pred_fallthru
              _
            // Predicated region
            $region52: #{discriminator_forward.6} parent=46 // pred_check
              _
            $region53: #{discriminator_forward.6} parent=46 // pred_check_branch
              %296 = sbr.rel (0) target = $region55
            $region54: #{discriminator_forward.6} parent=46 // pred_region
              %s298 = ssub.s32 16, 1
              loop: start=0, step=1, limit=1
              $region56: #{discriminator_forward.6} parent=54 // loop_pre_header
                _
              $region57: #{discriminator_forward.6} parent=54 // loop_header
                %s300 = sphi 0, %s304
                %p301 = scmp.ge.s32.totalorder %s300, 1
                %s305 = sphi %s290, %s290
                %s306 = sphi %s285, %s285
              $region58: #{discriminator_forward.6} parent=54 // loop_header_branch
                %303 = sbr.rel (%p301) target = $region62
              $region59: #{discriminator_forward.6} parent=54 // loop_body
                %v307 = vld [vmem:[%s305] sm:%s298]
                %308 = vst [vmem:[%s306] sm:%s298] %v307
                %v309 = vld [vmem:[%s305 + $0x8] sm:%s298]
                %310 = vst [vmem:[%s306 + $0x4] sm:%s298] %v309
                %v311 = vld [vmem:[%s305 + $0x10] sm:%s298]
                %312 = vst [vmem:[%s306 + $0x8] sm:%s298] %v311
                %v313 = vld [vmem:[%s305 + $0x18] sm:%s298]
                %314 = vst [vmem:[%s306 + $0xc] sm:%s298] %v313
                %v315 = vld [vmem:[%s305 + $0x20] sm:%s298]
                %316 = vst [vmem:[%s306 + $0x10] sm:%s298] %v315
                %v317 = vld [vmem:[%s305 + $0x28] sm:%s298]
                %318 = vst [vmem:[%s306 + $0x14] sm:%s298] %v317
                %v319 = vld [vmem:[%s305 + $0x30] sm:%s298]
                %320 = vst [vmem:[%s306 + $0x18] sm:%s298] %v319
                %v321 = vld [vmem:[%s305 + $0x38] sm:%s298]
                %322 = vst [vmem:[%s306 + $0x1c] sm:%s298] %v321
                %v323 = vld [vmem:[%s305 + $0x40] sm:%s298]
                %324 = vst [vmem:[%s306 + $0x20] sm:%s298] %v323
                %v325 = vld [vmem:[%s305 + $0x48] sm:%s298]
                %326 = vst [vmem:[%s306 + $0x24] sm:%s298] %v325
                %v327 = vld [vmem:[%s305 + $0x50] sm:%s298]
                %328 = vst [vmem:[%s306 + $0x28] sm:%s298] %v327
                %v329 = vld [vmem:[%s305 + $0x58] sm:%s298]
                %330 = vst [vmem:[%s306 + $0x2c] sm:%s298] %v329
                %v331 = vld [vmem:[%s305 + $0x60] sm:%s298]
                %332 = vst [vmem:[%s306 + $0x30] sm:%s298] %v331
                %v333 = vld [vmem:[%s305 + $0x68] sm:%s298]
                %334 = vst [vmem:[%s306 + $0x34] sm:%s298] %v333
                %v335 = vld [vmem:[%s305 + $0x70] sm:%s298]
                %336 = vst [vmem:[%s306 + $0x38] sm:%s298] %v335
                %v337 = vld [vmem:[%s305 + $0x78] sm:%s298]
                %338 = vst [vmem:[%s306 + $0x3c] sm:%s298] %v337
                %v339 = vld [vmem:[%s305 + $0x80] sm:%s298]
                %340 = vst [vmem:[%s306 + $0x40] sm:%s298] %v339
                %v341 = vld [vmem:[%s305 + $0x88] sm:%s298]
                %342 = vst [vmem:[%s306 + $0x44] sm:%s298] %v341
                %v343 = vld [vmem:[%s305 + $0x90] sm:%s298]
                %344 = vst [vmem:[%s306 + $0x48] sm:%s298] %v343
                %v345 = vld [vmem:[%s305 + $0x98] sm:%s298]
                %346 = vst [vmem:[%s306 + $0x4c] sm:%s298] %v345
                %v347 = vld [vmem:[%s305 + $0xa0] sm:%s298]
                %348 = vst [vmem:[%s306 + $0x50] sm:%s298] %v347
                %v349 = vld [vmem:[%s305 + $0xa8] sm:%s298]
                %350 = vst [vmem:[%s306 + $0x54] sm:%s298] %v349
                %v351 = vld [vmem:[%s305 + $0xb0] sm:%s298]
                %352 = vst [vmem:[%s306 + $0x58] sm:%s298] %v351
                %v353 = vld [vmem:[%s305 + $0xb8] sm:%s298]
                %354 = vst [vmem:[%s306 + $0x5c] sm:%s298] %v353
                %v355 = vld [vmem:[%s305 + $0xc0] sm:%s298]
                %356 = vst [vmem:[%s306 + $0x60] sm:%s298] %v355
                %v357 = vld [vmem:[%s305 + $0xc8] sm:%s298]
                %358 = vst [vmem:[%s306 + $0x64] sm:%s298] %v357
                %v359 = vld [vmem:[%s305 + $0xd0] sm:%s298]
                %360 = vst [vmem:[%s306 + $0x68] sm:%s298] %v359
                %v361 = vld [vmem:[%s305 + $0xd8] sm:%s298]
                %362 = vst [vmem:[%s306 + $0x6c] sm:%s298] %v361
                %v363 = vld [vmem:[%s305 + $0xe0] sm:%s298]
                %364 = vst [vmem:[%s306 + $0x70] sm:%s298] %v363
                %v365 = vld [vmem:[%s305 + $0xe8] sm:%s298]
                %366 = vst [vmem:[%s306 + $0x74] sm:%s298] %v365
                %v367 = vld [vmem:[%s305 + $0xf0] sm:%s298]
                %368 = vst [vmem:[%s306 + $0x78] sm:%s298] %v367
                %v369 = vld [vmem:[%s305 + $0xf8] sm:%s298]
                %370 = vst [vmem:[%s306 + $0x7c] sm:%s298] %v369
                %v371 = vld [vmem:[%s305 + $0x100] sm:%s298]
                %372 = vst [vmem:[%s306 + $0x80] sm:%s298] %v371
                %v373 = vld [vmem:[%s305 + $0x108] sm:%s298]
                %374 = vst [vmem:[%s306 + $0x84] sm:%s298] %v373
                %v375 = vld [vmem:[%s305 + $0x110] sm:%s298]
                %376 = vst [vmem:[%s306 + $0x88] sm:%s298] %v375
                %v377 = vld [vmem:[%s305 + $0x118] sm:%s298]
                %378 = vst [vmem:[%s306 + $0x8c] sm:%s298] %v377
                %v379 = vld [vmem:[%s305 + $0x120] sm:%s298]
                %380 = vst [vmem:[%s306 + $0x90] sm:%s298] %v379
                %v381 = vld [vmem:[%s305 + $0x128] sm:%s298]
                %382 = vst [vmem:[%s306 + $0x94] sm:%s298] %v381
                %v383 = vld [vmem:[%s305 + $0x130] sm:%s298]
                %384 = vst [vmem:[%s306 + $0x98] sm:%s298] %v383
                %v385 = vld [vmem:[%s305 + $0x138] sm:%s298]
                %386 = vst [vmem:[%s306 + $0x9c] sm:%s298] %v385
                %v387 = vld [vmem:[%s305 + $0x140] sm:%s298]
                %388 = vst [vmem:[%s306 + $0xa0] sm:%s298] %v387
                %v389 = vld [vmem:[%s305 + $0x148] sm:%s298]
                %390 = vst [vmem:[%s306 + $0xa4] sm:%s298] %v389
                %v391 = vld [vmem:[%s305 + $0x150] sm:%s298]
                %392 = vst [vmem:[%s306 + $0xa8] sm:%s298] %v391
                %v393 = vld [vmem:[%s305 + $0x158] sm:%s298]
                %394 = vst [vmem:[%s306 + $0xac] sm:%s298] %v393
                %v395 = vld [vmem:[%s305 + $0x160] sm:%s298]
                %396 = vst [vmem:[%s306 + $0xb0] sm:%s298] %v395
                %v397 = vld [vmem:[%s305 + $0x168] sm:%s298]
                %398 = vst [vmem:[%s306 + $0xb4] sm:%s298] %v397
                %v399 = vld [vmem:[%s305 + $0x170] sm:%s298]
                %400 = vst [vmem:[%s306 + $0xb8] sm:%s298] %v399
                %v401 = vld [vmem:[%s305 + $0x178] sm:%s298]
                %402 = vst [vmem:[%s306 + $0xbc] sm:%s298] %v401
                %v403 = vld [vmem:[%s305 + $0x180] sm:%s298]
                %404 = vst [vmem:[%s306 + $0xc0] sm:%s298] %v403
                %v405 = vld [vmem:[%s305 + $0x188] sm:%s298]
                %406 = vst [vmem:[%s306 + $0xc4] sm:%s298] %v405
                %v407 = vld [vmem:[%s305 + $0x190] sm:%s298]
                %408 = vst [vmem:[%s306 + $0xc8] sm:%s298] %v407
                %v409 = vld [vmem:[%s305 + $0x198] sm:%s298]
                %410 = vst [vmem:[%s306 + $0xcc] sm:%s298] %v409
                %v411 = vld [vmem:[%s305 + $0x1a0] sm:%s298]
                %412 = vst [vmem:[%s306 + $0xd0] sm:%s298] %v411
                %v413 = vld [vmem:[%s305 + $0x1a8] sm:%s298]
                %414 = vst [vmem:[%s306 + $0xd4] sm:%s298] %v413
                %v415 = vld [vmem:[%s305 + $0x1b0] sm:%s298]
                %416 = vst [vmem:[%s306 + $0xd8] sm:%s298] %v415
                %v417 = vld [vmem:[%s305 + $0x1b8] sm:%s298]
                %418 = vst [vmem:[%s306 + $0xdc] sm:%s298] %v417
                %v419 = vld [vmem:[%s305 + $0x1c0] sm:%s298]
                %420 = vst [vmem:[%s306 + $0xe0] sm:%s298] %v419
                %v421 = vld [vmem:[%s305 + $0x1c8] sm:%s298]
                %422 = vst [vmem:[%s306 + $0xe4] sm:%s298] %v421
                %v423 = vld [vmem:[%s305 + $0x1d0] sm:%s298]
                %424 = vst [vmem:[%s306 + $0xe8] sm:%s298] %v423
                %v425 = vld [vmem:[%s305 + $0x1d8] sm:%s298]
                %426 = vst [vmem:[%s306 + $0xec] sm:%s298] %v425
                %v427 = vld [vmem:[%s305 + $0x1e0] sm:%s298]
                %428 = vst [vmem:[%s306 + $0xf0] sm:%s298] %v427
                %v429 = vld [vmem:[%s305 + $0x1e8] sm:%s298]
                %430 = vst [vmem:[%s306 + $0xf4] sm:%s298] %v429
                %v431 = vld [vmem:[%s305 + $0x1f0] sm:%s298]
                %432 = vst [vmem:[%s306 + $0xf8] sm:%s298] %v431
                %v433 = vld [vmem:[%s305 + $0x1f8] sm:%s298]
                %434 = vst [vmem:[%s306 + $0xfc] sm:%s298] %v433
              $region60: #{discriminator_forward.6} parent=54 // loop_footer
                %s304 = sadd.s32 1, %s300
              $region61: #{discriminator_forward.6} parent=54 // loop_footer_branch
                %299 = sbr.rel target = $region57
              $region62: #{discriminator_forward.6} parent=54 // loop_exit
                _
            $region55: #{discriminator_forward.6} parent=46 // pred_fallthru
              _
          $region47: #{discriminator_forward.6} parent=42 // pred_fallthru
            _
          %583 = vnop
        $region43: #{discriminator_forward.6} parent=15 // pred_fallthru
          _
        // Predicated region
        $region81: #{discriminator_forward.6} parent=15 // pred_check
          %p584 = pneg %p106
        $region82: #{discriminator_forward.6} parent=15 // pred_check_branch
          %586 = sbr.rel (%p584) target = $region84
        $region83: #{discriminator_forward.6} parent=15 // pred_region
          %p587 = scmp.lt.s32.totalorder %s19, 1
          %s588 = scalar_select %p587, %s19, 1
          %s589 = scalar_lea.vmem %s2, %s588
        $region84: #{discriminator_forward.6} parent=15 // pred_fallthru
          _
      $region16: #{discriminator_forward.6} parent=5 // pred_fallthru
        _
      %p590 = scmp.le.s32.totalorder 1, %s11
      %p591 = scmp.lt.s32.totalorder %s11, 9
      %p592 = pnand %p590, %p591
      %p593 = pneg %p592
      // Predicated region
      $region85: #{discriminator_forward.6} parent=5 // pred_check
        _
      $region86: #{discriminator_forward.6} parent=5 // pred_check_branch
        %595 = sbr.rel (%p592) target = $region88
      $region87: #{discriminator_forward.6} parent=5 // pred_region
        %s596 = ssub.s32 %s11, 1
        %s597 = sand.u32 %s45, 1
        %s598 = sand.u32 %s45, 1
        %s599 = smul.addr %s598, 256
        %s600 = scalar_lea.vmem [#allocation3], %s599
        // Predicated region
        $region89: #{discriminator_forward.6} parent=87 // pred_check
          %p601 = pneg %p58
        $region90: #{discriminator_forward.6} parent=87 // pred_check_branch
          %603 = sbr.rel (%p601) target = $region92
        $region91: #{discriminator_forward.6} parent=87 // pred_region
          _
        $region92: #{discriminator_forward.6} parent=87 // pred_fallthru
          _
        %s604 = sand.u32 %s73, 1
        %s605 = sand.u32 %s73, 1
        %s606 = smul.addr %s605, 256
        %s607 = scalar_lea.vmem [#allocation4], %s606
        // Predicated region
        $region93: #{discriminator_forward.6} parent=87 // pred_check
          %p608 = pneg %p86
        $region94: #{discriminator_forward.6} parent=87 // pred_check_branch
          %610 = sbr.rel (%p608) target = $region96
        $region95: #{discriminator_forward.6} parent=87 // pred_region
          _
        $region96: #{discriminator_forward.6} parent=87 // pred_fallthru
          _
        %s611 = sand.u32 %s45, 1
        %s612 = sand.u32 %s45, 1
        %s613 = smul.addr %s612, 256
        %s614 = scalar_lea.vmem [#allocation3], %s613
        %p615 = pneg %p58
        %p616 = pneg %p55
        %s617 = sand.u32 %s73, 1
        %s618 = sand.u32 %s73, 1
        %s619 = smul.addr %s618, 256
        %s620 = scalar_lea.vmem [#allocation4], %s619
        %p621 = pneg %p86
        %p622 = pneg %p83
        %p623 = scmp.lt.s32.totalorder %s22, 1
        %s624 = scalar_select %p623, %s22, 1
        %s625 = scalar_lea.vmem %s2, %s624
        %p626 = pneg %p112
        %p627 = pneg %p109
        %p628 = pneg %p140
        %p629 = pneg %p137
        %s630 = sand.u32 %s127, 1
        %s631 = sand.u32 %s127, 1
        %s632 = smul.addr %s631, 128
        %s633 = scalar_lea.vmem [#allocation5], %s632
        %p634 = pneg %p168
        %p635 = pneg %p165
        %p636 = scmp.lt.s32.totalorder %s21, 0
        %s637 = scalar_select %p636, %s21, 0
        %p638 = scmp.lt.s32.totalorder %s22, 1
        %s639 = scalar_select %p638, %s22, 1
        %s640 = smul.addr %s637, 2
        %s641 = sadd.s32 %s639, %s640
        %s642 = smul.addr %s641, 8
        %s643 = scalar_lea.vmem %s4, %s642
        %s644 = smul.u32 16, %s21
        %s645 = smul.u32 4, %s23
        %s646 = smul.u32 64, %s23
        %p647 = scmp.lt.s32.totalorder %s22, 1
        %s648 = scalar_select %p647, %s22, 1
        %s649 = scalar_lea.vmem %s2, %s648
        %s650 = smul.u32 16, %s21
        %p651 = scmp.lt.s32.totalorder %s21, 0
        %s652 = scalar_select %p651, %s21, 0
        %p653 = scmp.lt.s32.totalorder %s22, 1
        %s654 = scalar_select %p653, %s22, 1
        %s655 = smul.addr %s652, 2
        %s656 = sadd.s32 %s654, %s655
        %s657 = smul.addr %s656, 8
        %s658 = scalar_lea.vmem %s4, %s657
        %p660 = scmp.eq.s32.totalorder %s23, 0
        // Predicated region
        $region97: #{discriminator_forward.6} parent=87 // pred_check
          %p661 = pneg %p660
        $region98: #{discriminator_forward.6} parent=87 // pred_check_branch
          %663 = sbr.rel (%p661) target = $region100
        $region99: #{discriminator_forward.6} parent=87 // pred_region
          %664 = vst [vmem:[#allocation2] sm:$0xff] 0.0
          %665 = vst [vmem:[#allocation2 + $0x8] sm:$0xff] 0.0
          %666 = vst [vmem:[#allocation2 + $0x10] sm:$0xff] 0.0
          %667 = vst [vmem:[#allocation2 + $0x18] sm:$0xff] 0.0
          %668 = vst [vmem:[#allocation2 + $0x20] sm:$0xff] 0.0
          %669 = vst [vmem:[#allocation2 + $0x28] sm:$0xff] 0.0
          %670 = vst [vmem:[#allocation2 + $0x30] sm:$0xff] 0.0
          %671 = vst [vmem:[#allocation2 + $0x38] sm:$0xff] 0.0
          %672 = vst [vmem:[#allocation2 + $0x40] sm:$0xff] 0.0
          %673 = vst [vmem:[#allocation2 + $0x48] sm:$0xff] 0.0
          %674 = vst [vmem:[#allocation2 + $0x50] sm:$0xff] 0.0
          %675 = vst [vmem:[#allocation2 + $0x58] sm:$0xff] 0.0
          %676 = vst [vmem:[#allocation2 + $0x60] sm:$0xff] 0.0
          %677 = vst [vmem:[#allocation2 + $0x68] sm:$0xff] 0.0
          %678 = vst [vmem:[#allocation2 + $0x70] sm:$0xff] 0.0
          %679 = vst [vmem:[#allocation2 + $0x78] sm:$0xff] 0.0
        $region100: #{discriminator_forward.6} parent=87 // pred_fallthru
          _
        %v680 = vld [vmem:[#allocation2] sm:$0xff]
        %v681 = vld [vmem:[#allocation2 + $0x8] sm:$0xff]
        %v682 = vld [vmem:[#allocation2 + $0x10] sm:$0xff]
        %v683 = vld [vmem:[#allocation2 + $0x18] sm:$0xff]
        %v684 = vld [vmem:[#allocation2 + $0x20] sm:$0xff]
        %v685 = vld [vmem:[#allocation2 + $0x28] sm:$0xff]
        %v686 = vld [vmem:[#allocation2 + $0x30] sm:$0xff]
        %v687 = vld [vmem:[#allocation2 + $0x38] sm:$0xff]
        %v688 = vld [vmem:[#allocation2 + $0x40] sm:$0xff]
        %v689 = vld [vmem:[#allocation2 + $0x48] sm:$0xff]
        %v690 = vld [vmem:[#allocation2 + $0x50] sm:$0xff]
        %v691 = vld [vmem:[#allocation2 + $0x58] sm:$0xff]
        %v692 = vld [vmem:[#allocation2 + $0x60] sm:$0xff]
        %v693 = vld [vmem:[#allocation2 + $0x68] sm:$0xff]
        %v694 = vld [vmem:[#allocation2 + $0x70] sm:$0xff]
        %v695 = vld [vmem:[#allocation2 + $0x78] sm:$0xff]
        %v696 = vld [vmem:[%s600] sm:$0xff]
        %v697 = vld [vmem:[%s600 + $0x8] sm:$0xff]
        %v698 = vld [vmem:[%s600 + $0x10] sm:$0xff]
        %v699 = vld [vmem:[%s600 + $0x18] sm:$0xff]
        %v700 = vld [vmem:[%s600 + $0x20] sm:$0xff]
        %v701 = vld [vmem:[%s600 + $0x28] sm:$0xff]
        %v702 = vld [vmem:[%s600 + $0x30] sm:$0xff]
        %v703 = vld [vmem:[%s600 + $0x38] sm:$0xff]
        %v704 = vld [vmem:[%s600 + $0x40] sm:$0xff]
        %v705 = vld [vmem:[%s600 + $0x48] sm:$0xff]
        %v706 = vld [vmem:[%s600 + $0x50] sm:$0xff]
        %v707 = vld [vmem:[%s600 + $0x58] sm:$0xff]
        %v708 = vld [vmem:[%s600 + $0x60] sm:$0xff]
        %v709 = vld [vmem:[%s600 + $0x68] sm:$0xff]
        %v710 = vld [vmem:[%s600 + $0x70] sm:$0xff]
        %v711 = vld [vmem:[%s600 + $0x78] sm:$0xff]
        %v712 = vld [vmem:[%s600 + $0x80] sm:$0xff]
        %v713 = vld [vmem:[%s600 + $0x88] sm:$0xff]
        %v714 = vld [vmem:[%s600 + $0x90] sm:$0xff]
        %v715 = vld [vmem:[%s600 + $0x98] sm:$0xff]
        %v716 = vld [vmem:[%s600 + $0xa0] sm:$0xff]
        %v717 = vld [vmem:[%s600 + $0xa8] sm:$0xff]
        %v718 = vld [vmem:[%s600 + $0xb0] sm:$0xff]
        %v719 = vld [vmem:[%s600 + $0xb8] sm:$0xff]
        %v720 = vld [vmem:[%s600 + $0xc0] sm:$0xff]
        %v721 = vld [vmem:[%s600 + $0xc8] sm:$0xff]
        %v722 = vld [vmem:[%s600 + $0xd0] sm:$0xff]
        %v723 = vld [vmem:[%s600 + $0xd8] sm:$0xff]
        %v724 = vld [vmem:[%s600 + $0xe0] sm:$0xff]
        %v725 = vld [vmem:[%s600 + $0xe8] sm:$0xff]
        %v726 = vld [vmem:[%s600 + $0xf0] sm:$0xff]
        %v727 = vld [vmem:[%s600 + $0xf8] sm:$0xff]
        %v728 = vld [vmem:[%s607] sm:$0xf]
        %v729 = vld [vmem:[%s607 + $0x4] sm:$0xf]
        %v730 = vld [vmem:[%s607 + $0x8] sm:$0xf]
        %v731 = vld [vmem:[%s607 + $0xc] sm:$0xf]
        %v732 = vld [vmem:[%s607 + $0x10] sm:$0xf]
        %v733 = vld [vmem:[%s607 + $0x14] sm:$0xf]
        %v734 = vld [vmem:[%s607 + $0x18] sm:$0xf]
        %v735 = vld [vmem:[%s607 + $0x1c] sm:$0xf]
        %v736 = vld [vmem:[%s607 + $0x20] sm:$0xf]
        %v737 = vld [vmem:[%s607 + $0x24] sm:$0xf]
        %v738 = vld [vmem:[%s607 + $0x28] sm:$0xf]
        %v739 = vld [vmem:[%s607 + $0x2c] sm:$0xf]
        %v740 = vld [vmem:[%s607 + $0x30] sm:$0xf]
        %v741 = vld [vmem:[%s607 + $0x34] sm:$0xf]
        %v742 = vld [vmem:[%s607 + $0x38] sm:$0xf]
        %v743 = vld [vmem:[%s607 + $0x3c] sm:$0xf]
        %v744 = vld [vmem:[%s607 + $0x40] sm:$0xf]
        %v745 = vld [vmem:[%s607 + $0x44] sm:$0xf]
        %v746 = vld [vmem:[%s607 + $0x48] sm:$0xf]
        %v747 = vld [vmem:[%s607 + $0x4c] sm:$0xf]
        %v748 = vld [vmem:[%s607 + $0x50] sm:$0xf]
        %v749 = vld [vmem:[%s607 + $0x54] sm:$0xf]
        %v750 = vld [vmem:[%s607 + $0x58] sm:$0xf]
        %v751 = vld [vmem:[%s607 + $0x5c] sm:$0xf]
        %v752 = vld [vmem:[%s607 + $0x60] sm:$0xf]
        %v753 = vld [vmem:[%s607 + $0x64] sm:$0xf]
        %v754 = vld [vmem:[%s607 + $0x68] sm:$0xf]
        %v755 = vld [vmem:[%s607 + $0x6c] sm:$0xf]
        %v756 = vld [vmem:[%s607 + $0x70] sm:$0xf]
        %v757 = vld [vmem:[%s607 + $0x74] sm:$0xf]
        %v758 = vld [vmem:[%s607 + $0x78] sm:$0xf]
        %v759 = vld [vmem:[%s607 + $0x7c] sm:$0xf]
        %v760 = vld [vmem:[%s607 + $0x80] sm:$0xf]
        %v761 = vld [vmem:[%s607 + $0x84] sm:$0xf]
        %v762 = vld [vmem:[%s607 + $0x88] sm:$0xf]
        %v763 = vld [vmem:[%s607 + $0x8c] sm:$0xf]
        %v764 = vld [vmem:[%s607 + $0x90] sm:$0xf]
        %v765 = vld [vmem:[%s607 + $0x94] sm:$0xf]
        %v766 = vld [vmem:[%s607 + $0x98] sm:$0xf]
        %v767 = vld [vmem:[%s607 + $0x9c] sm:$0xf]
        %v768 = vld [vmem:[%s607 + $0xa0] sm:$0xf]
        %v769 = vld [vmem:[%s607 + $0xa4] sm:$0xf]
        %v770 = vld [vmem:[%s607 + $0xa8] sm:$0xf]
        %v771 = vld [vmem:[%s607 + $0xac] sm:$0xf]
        %v772 = vld [vmem:[%s607 + $0xb0] sm:$0xf]
        %v773 = vld [vmem:[%s607 + $0xb4] sm:$0xf]
        %v774 = vld [vmem:[%s607 + $0xb8] sm:$0xf]
        %v775 = vld [vmem:[%s607 + $0xbc] sm:$0xf]
        %v776 = vld [vmem:[%s607 + $0xc0] sm:$0xf]
        %v777 = vld [vmem:[%s607 + $0xc4] sm:$0xf]
        %v778 = vld [vmem:[%s607 + $0xc8] sm:$0xf]
        %v779 = vld [vmem:[%s607 + $0xcc] sm:$0xf]
        %v780 = vld [vmem:[%s607 + $0xd0] sm:$0xf]
        %v781 = vld [vmem:[%s607 + $0xd4] sm:$0xf]
        %v782 = vld [vmem:[%s607 + $0xd8] sm:$0xf]
        %v783 = vld [vmem:[%s607 + $0xdc] sm:$0xf]
        %v784 = vld [vmem:[%s607 + $0xe0] sm:$0xf]
        %v785 = vld [vmem:[%s607 + $0xe4] sm:$0xf]
        %v786 = vld [vmem:[%s607 + $0xe8] sm:$0xf]
        %v787 = vld [vmem:[%s607 + $0xec] sm:$0xf]
        %v788 = vld [vmem:[%s607 + $0xf0] sm:$0xf]
        %v789 = vld [vmem:[%s607 + $0xf4] sm:$0xf]
        %v790 = vld [vmem:[%s607 + $0xf8] sm:$0xf]
        %v791 = vld [vmem:[%s607 + $0xfc] sm:$0xf]
        %v824 = vunpack.c.l.b16 %v696
        %v825 = vunpack.c.h.b16 %v696
        %v826 = vunpack.c.l.b16 %v697
        %v827 = vunpack.c.h.b16 %v697
        %v828 = vunpack.c.l.b16 %v698
        %v829 = vunpack.c.h.b16 %v698
        %v830 = vunpack.c.l.b16 %v699
        %v831 = vunpack.c.h.b16 %v699
        %v832 = vunpack.c.l.b16 %v700
        %v833 = vunpack.c.h.b16 %v700
        %v834 = vunpack.c.l.b16 %v701
        %v835 = vunpack.c.h.b16 %v701
        %v836 = vunpack.c.l.b16 %v702
        %v837 = vunpack.c.h.b16 %v702
        %v838 = vunpack.c.l.b16 %v703
        %v839 = vunpack.c.h.b16 %v703
        %v840 = vunpack.c.l.b16 %v704
        %v841 = vunpack.c.h.b16 %v704
        %v842 = vunpack.c.l.b16 %v705
        %v843 = vunpack.c.h.b16 %v705
        %v844 = vunpack.c.l.b16 %v706
        %v845 = vunpack.c.h.b16 %v706
        %v846 = vunpack.c.l.b16 %v707
        %v847 = vunpack.c.h.b16 %v707
        %v848 = vunpack.c.l.b16 %v708
        %v849 = vunpack.c.h.b16 %v708
        %v850 = vunpack.c.l.b16 %v709
        %v851 = vunpack.c.h.b16 %v709
        %v852 = vunpack.c.l.b16 %v710
        %v853 = vunpack.c.h.b16 %v710
        %v854 = vunpack.c.l.b16 %v711
        %v855 = vunpack.c.h.b16 %v711
        %v856 = vunpack.c.l.b16 %v712
        %v857 = vunpack.c.h.b16 %v712
        %v858 = vunpack.c.l.b16 %v713
        %v859 = vunpack.c.h.b16 %v713
        %v860 = vunpack.c.l.b16 %v714
        %v861 = vunpack.c.h.b16 %v714
        %v862 = vunpack.c.l.b16 %v715
        %v863 = vunpack.c.h.b16 %v715
        %v864 = vunpack.c.l.b16 %v716
        %v865 = vunpack.c.h.b16 %v716
        %v866 = vunpack.c.l.b16 %v717
        %v867 = vunpack.c.h.b16 %v717
        %v868 = vunpack.c.l.b16 %v718
        %v869 = vunpack.c.h.b16 %v718
        %v870 = vunpack.c.l.b16 %v719
        %v871 = vunpack.c.h.b16 %v719
        %v872 = vunpack.c.l.b16 %v720
        %v873 = vunpack.c.h.b16 %v720
        %v874 = vunpack.c.l.b16 %v721
        %v875 = vunpack.c.h.b16 %v721
        %v876 = vunpack.c.l.b16 %v722
        %v877 = vunpack.c.h.b16 %v722
        %v878 = vunpack.c.l.b16 %v723
        %v879 = vunpack.c.h.b16 %v723
        %v880 = vunpack.c.l.b16 %v724
        %v881 = vunpack.c.h.b16 %v724
        %v882 = vunpack.c.l.b16 %v725
        %v883 = vunpack.c.h.b16 %v725
        %v884 = vunpack.c.l.b16 %v726
        %v885 = vunpack.c.h.b16 %v726
        %v886 = vunpack.c.l.b16 %v727
        %v887 = vunpack.c.h.b16 %v727
        %v888 = vpack.c.b16 %v828, %v824
        %v889 = vpack.c.b16 %v829, %v825
        %v890 = vpack.c.b16 %v830, %v826
        %v891 = vpack.c.b16 %v831, %v827
        %v892 = vpack.c.b16 %v836, %v832
        %v893 = vpack.c.b16 %v837, %v833
        %v894 = vpack.c.b16 %v838, %v834
        %v895 = vpack.c.b16 %v839, %v835
        %v896 = vpack.c.b16 %v844, %v840
        %v897 = vpack.c.b16 %v845, %v841
        %v898 = vpack.c.b16 %v846, %v842
        %v899 = vpack.c.b16 %v847, %v843
        %v900 = vpack.c.b16 %v852, %v848
        %v901 = vpack.c.b16 %v853, %v849
        %v902 = vpack.c.b16 %v854, %v850
        %v903 = vpack.c.b16 %v855, %v851
        %v904 = vpack.c.b16 %v860, %v856
        %v905 = vpack.c.b16 %v861, %v857
        %v906 = vpack.c.b16 %v862, %v858
        %v907 = vpack.c.b16 %v863, %v859
        %v908 = vpack.c.b16 %v868, %v864
        %v909 = vpack.c.b16 %v869, %v865
        %v910 = vpack.c.b16 %v870, %v866
        %v911 = vpack.c.b16 %v871, %v867
        %v912 = vpack.c.b16 %v876, %v872
        %v913 = vpack.c.b16 %v877, %v873
        %v914 = vpack.c.b16 %v878, %v874
        %v915 = vpack.c.b16 %v879, %v875
        %v916 = vpack.c.b16 %v884, %v880
        %v917 = vpack.c.b16 %v885, %v881
        %v918 = vpack.c.b16 %v886, %v882
        %v919 = vpack.c.b16 %v887, %v883
        %v1016 = vunpack.c.l.b16 %v728
        %v1017 = vunpack.c.l.b16 %v729
        %v1018 = vunpack.c.l.b16 %v730
        %v1019 = vunpack.c.l.b16 %v731
        %v1020 = vunpack.c.l.b16 %v732
        %v1021 = vunpack.c.l.b16 %v733
        %v1022 = vunpack.c.l.b16 %v734
        %v1023 = vunpack.c.l.b16 %v735
        %v1024 = vunpack.c.l.b16 %v736
        %v1025 = vunpack.c.l.b16 %v737
        %v1026 = vunpack.c.l.b16 %v738
        %v1027 = vunpack.c.l.b16 %v739
        %v1028 = vunpack.c.l.b16 %v740
        %v1029 = vunpack.c.l.b16 %v741
        %v1030 = vunpack.c.l.b16 %v742
        %v1031 = vunpack.c.l.b16 %v743
        %v1032 = vunpack.c.l.b16 %v744
        %v1033 = vunpack.c.l.b16 %v745
        %v1034 = vunpack.c.l.b16 %v746
        %v1035 = vunpack.c.l.b16 %v747
        %v1036 = vunpack.c.l.b16 %v748
        %v1037 = vunpack.c.l.b16 %v749
        %v1038 = vunpack.c.l.b16 %v750
        %v1039 = vunpack.c.l.b16 %v751
        %v1040 = vunpack.c.l.b16 %v752
        %v1041 = vunpack.c.l.b16 %v753
        %v1042 = vunpack.c.l.b16 %v754
        %v1043 = vunpack.c.l.b16 %v755
        %v1044 = vunpack.c.l.b16 %v756
        %v1045 = vunpack.c.l.b16 %v757
        %v1046 = vunpack.c.l.b16 %v758
        %v1047 = vunpack.c.l.b16 %v759
        %v1048 = vunpack.c.l.b16 %v760
        %v1049 = vunpack.c.l.b16 %v761
        %v1050 = vunpack.c.l.b16 %v762
        %v1051 = vunpack.c.l.b16 %v763
        %v1052 = vunpack.c.l.b16 %v764
        %v1053 = vunpack.c.l.b16 %v765
        %v1054 = vunpack.c.l.b16 %v766
        %v1055 = vunpack.c.l.b16 %v767
        %v1056 = vunpack.c.l.b16 %v768
        %v1057 = vunpack.c.l.b16 %v769
        %v1058 = vunpack.c.l.b16 %v770
        %v1059 = vunpack.c.l.b16 %v771
        %v1060 = vunpack.c.l.b16 %v772
        %v1061 = vunpack.c.l.b16 %v773
        %v1062 = vunpack.c.l.b16 %v774
        %v1063 = vunpack.c.l.b16 %v775
        %v1064 = vunpack.c.l.b16 %v776
        %v1065 = vunpack.c.l.b16 %v777
        %v1066 = vunpack.c.l.b16 %v778
        %v1067 = vunpack.c.l.b16 %v779
        %v1068 = vunpack.c.l.b16 %v780
        %v1069 = vunpack.c.l.b16 %v781
        %v1070 = vunpack.c.l.b16 %v782
        %v1071 = vunpack.c.l.b16 %v783
        %v1072 = vunpack.c.l.b16 %v784
        %v1073 = vunpack.c.l.b16 %v785
        %v1074 = vunpack.c.l.b16 %v786
        %v1075 = vunpack.c.l.b16 %v787
        %v1076 = vunpack.c.l.b16 %v788
        %v1077 = vunpack.c.l.b16 %v789
        %v1078 = vunpack.c.l.b16 %v790
        %v1079 = vunpack.c.l.b16 %v791
        %v1080 = vpack.c.b16 %v1017, %v1016
        %v1081 = vpack.c.b16 %v1019, %v1018
        %v1082 = vpack.c.b16 %v1021, %v1020
        %v1083 = vpack.c.b16 %v1023, %v1022
        %v1084 = vpack.c.b16 %v1025, %v1024
        %v1085 = vpack.c.b16 %v1027, %v1026
        %v1086 = vpack.c.b16 %v1029, %v1028
        %v1087 = vpack.c.b16 %v1031, %v1030
        %v1088 = vpack.c.b16 %v1033, %v1032
        %v1089 = vpack.c.b16 %v1035, %v1034
        %v1090 = vpack.c.b16 %v1037, %v1036
        %v1091 = vpack.c.b16 %v1039, %v1038
        %v1092 = vpack.c.b16 %v1041, %v1040
        %v1093 = vpack.c.b16 %v1043, %v1042
        %v1094 = vpack.c.b16 %v1045, %v1044
        %v1095 = vpack.c.b16 %v1047, %v1046
        %v1096 = vpack.c.b16 %v1049, %v1048
        %v1097 = vpack.c.b16 %v1051, %v1050
        %v1098 = vpack.c.b16 %v1053, %v1052
        %v1099 = vpack.c.b16 %v1055, %v1054
        %v1100 = vpack.c.b16 %v1057, %v1056
        %v1101 = vpack.c.b16 %v1059, %v1058
        %v1102 = vpack.c.b16 %v1061, %v1060
        %v1103 = vpack.c.b16 %v1063, %v1062
        %v1104 = vpack.c.b16 %v1065, %v1064
        %v1105 = vpack.c.b16 %v1067, %v1066
        %v1106 = vpack.c.b16 %v1069, %v1068
        %v1107 = vpack.c.b16 %v1071, %v1070
        %v1108 = vpack.c.b16 %v1073, %v1072
        %v1109 = vpack.c.b16 %v1075, %v1074
        %v1110 = vpack.c.b16 %v1077, %v1076
        %v1111 = vpack.c.b16 %v1079, %v1078
        %1144 = vmatprep.subr.bf16.mxu0 0
        %1145 = vmatpush1.bf16.msra.mxu0 %v1087
        %1146 = vmatprep.subr.bf16.mxu0 0
        %1147 = vmatpush1.bf16.msra.mxu0 %v1086
        %1148 = vmatprep.subr.bf16.mxu0 0
        %1149 = vmatpush1.bf16.msra.mxu0 %v1085
        %1150 = vmatprep.subr.bf16.mxu0 0
        %1151 = vmatpush1.bf16.msra.mxu0 %v1084
        %1152 = vmatprep.subr.bf16.mxu0 0
        %1153 = vmatpush1.bf16.msra.mxu0 %v1083
        %1154 = vmatprep.subr.bf16.mxu0 0
        %1155 = vmatpush1.bf16.msra.mxu0 %v1082
        %1156 = vmatprep.subr.bf16.mxu0 0
        %1157 = vmatpush1.bf16.msra.mxu0 %v1081
        %1158 = vmatprep.subr.bf16.mxu0 0
        %1159 = vmatpush1.bf16.msra.mxu0 %v1080
        %1160 = vmatprep.subr.bf16.mxu0 0
        %1161 = vmatpush2.bf16.msra.mxu0 %v1095
        %1162 = vmatprep.subr.bf16.mxu0 0
        %1163 = vmatpush2.bf16.msra.mxu0 %v1094
        %1164 = vmatprep.subr.bf16.mxu0 0
        %1165 = vmatpush2.bf16.msra.mxu0 %v1093
        %1166 = vmatprep.subr.bf16.mxu0 0
        %1167 = vmatpush2.bf16.msra.mxu0 %v1092
        %1168 = vmatprep.subr.bf16.mxu0 0
        %1169 = vmatpush2.bf16.msra.mxu0 %v1091
        %1170 = vmatprep.subr.bf16.mxu0 0
        %1171 = vmatpush2.bf16.msra.mxu0 %v1090
        %1172 = vmatprep.subr.bf16.mxu0 0
        %1173 = vmatpush2.bf16.msra.mxu0 %v1089
        %1174 = vmatprep.subr.bf16.mxu0 0
        %1175 = vmatpush2.bf16.msra.mxu0 %v1088
        %1176 = vmatprep.mubr.bf16.mxu0 %v889
        %1177 = vmatmul.mubr.bf16.gmra.mxu0 %v888
        %v1178 = vpop.f32.mrf.mxu0
        %v1179 = vadd.f32 0.0, %v1178
        %v1180 = vpop.f32.mrf.mxu0
        %v1181 = vpop.f32.mrf.mxu0
        %v1182 = vadd.f32 0.0, %v1181
        %v1183 = vpop.f32.mrf.mxu0
        %1184 = vmatprep.mubr.bf16.mxu0 %v893
        %1185 = vmatmul.mubr.bf16.gmra.mxu0 %v892
        %v1186 = vpop.f32.mrf.mxu0
        %v1187 = vadd.f32 0.0, %v1186
        %v1188 = vpop.f32.mrf.mxu0
        %v1189 = vpop.f32.mrf.mxu0
        %v1190 = vadd.f32 0.0, %v1189
        %v1191 = vpop.f32.mrf.mxu0
        %1192 = vmatprep.mubr.bf16.mxu0 %v897
        %1193 = vmatmul.mubr.bf16.gmra.mxu0 %v896
        %v1194 = vpop.f32.mrf.mxu0
        %v1195 = vadd.f32 0.0, %v1194
        %v1196 = vpop.f32.mrf.mxu0
        %v1197 = vpop.f32.mrf.mxu0
        %v1198 = vadd.f32 0.0, %v1197
        %v1199 = vpop.f32.mrf.mxu0
        %1200 = vmatprep.mubr.bf16.mxu0 %v901
        %1201 = vmatmul.mubr.bf16.gmra.mxu0 %v900
        %v1202 = vpop.f32.mrf.mxu0
        %v1203 = vadd.f32 0.0, %v1202
        %v1204 = vpop.f32.mrf.mxu0
        %v1205 = vpop.f32.mrf.mxu0
        %v1206 = vadd.f32 0.0, %v1205
        %v1207 = vpop.f32.mrf.mxu0
        %1208 = vmatprep.mubr.bf16.mxu0 %v905
        %1209 = vmatmul.mubr.bf16.gmra.mxu0 %v904
        %v1210 = vpop.f32.mrf.mxu0
        %v1211 = vadd.f32 0.0, %v1210
        %v1212 = vpop.f32.mrf.mxu0
        %v1213 = vpop.f32.mrf.mxu0
        %v1214 = vadd.f32 0.0, %v1213
        %v1215 = vpop.f32.mrf.mxu0
        %1216 = vmatprep.mubr.bf16.mxu0 %v909
        %1217 = vmatmul.mubr.bf16.gmra.mxu0 %v908
        %v1218 = vpop.f32.mrf.mxu0
        %v1219 = vadd.f32 0.0, %v1218
        %v1220 = vpop.f32.mrf.mxu0
        %v1221 = vpop.f32.mrf.mxu0
        %v1222 = vadd.f32 0.0, %v1221
        %v1223 = vpop.f32.mrf.mxu0
        %1224 = vmatprep.mubr.bf16.mxu0 %v913
        %1225 = vmatmul.mubr.bf16.gmra.mxu0 %v912
        %v1226 = vpop.f32.mrf.mxu0
        %v1227 = vadd.f32 0.0, %v1226
        %v1228 = vpop.f32.mrf.mxu0
        %v1229 = vpop.f32.mrf.mxu0
        %v1230 = vadd.f32 0.0, %v1229
        %v1231 = vpop.f32.mrf.mxu0
        %1232 = vmatprep.mubr.bf16.mxu0 %v917
        %1233 = vmatmul.mubr.bf16.gmra.mxu0 %v916
        %v1234 = vpop.f32.mrf.mxu0
        %v1235 = vadd.f32 0.0, %v1234
        %v1236 = vpop.f32.mrf.mxu0
        %v1237 = vpop.f32.mrf.mxu0
        %v1238 = vadd.f32 0.0, %v1237
        %v1239 = vpop.f32.mrf.mxu0
        %1240 = vdwg.mxu0
        %1241 = vmatprep.subr.bf16.mxu0 0
        %1242 = vmatpush1.bf16.msra.mxu0 %v1103
        %1243 = vmatprep.subr.bf16.mxu0 0
        %1244 = vmatpush1.bf16.msra.mxu0 %v1102
        %1245 = vmatprep.subr.bf16.mxu0 0
        %1246 = vmatpush1.bf16.msra.mxu0 %v1101
        %1247 = vmatprep.subr.bf16.mxu0 0
        %1248 = vmatpush1.bf16.msra.mxu0 %v1100
        %1249 = vmatprep.subr.bf16.mxu0 0
        %1250 = vmatpush1.bf16.msra.mxu0 %v1099
        %1251 = vmatprep.subr.bf16.mxu0 0
        %1252 = vmatpush1.bf16.msra.mxu0 %v1098
        %1253 = vmatprep.subr.bf16.mxu0 0
        %1254 = vmatpush1.bf16.msra.mxu0 %v1097
        %1255 = vmatprep.subr.bf16.mxu0 0
        %1256 = vmatpush1.bf16.msra.mxu0 %v1096
        %1257 = vmatprep.subr.bf16.mxu0 0
        %1258 = vmatpush2.bf16.msra.mxu0 %v1111
        %1259 = vmatprep.subr.bf16.mxu0 0
        %1260 = vmatpush2.bf16.msra.mxu0 %v1110
        %1261 = vmatprep.subr.bf16.mxu0 0
        %1262 = vmatpush2.bf16.msra.mxu0 %v1109
        %1263 = vmatprep.subr.bf16.mxu0 0
        %1264 = vmatpush2.bf16.msra.mxu0 %v1108
        %1265 = vmatprep.subr.bf16.mxu0 0
        %1266 = vmatpush2.bf16.msra.mxu0 %v1107
        %1267 = vmatprep.subr.bf16.mxu0 0
        %1268 = vmatpush2.bf16.msra.mxu0 %v1106
        %1269 = vmatprep.subr.bf16.mxu0 0
        %1270 = vmatpush2.bf16.msra.mxu0 %v1105
        %1271 = vmatprep.subr.bf16.mxu0 0
        %1272 = vmatpush2.bf16.msra.mxu0 %v1104
        %1273 = vmatprep.mubr.bf16.mxu0 %v891
        %1274 = vmatmul.mubr.bf16.gmra.mxu0 %v890
        %v1275 = vpop.f32.mrf.mxu0
        %v1276 = vadd.f32 %v1179, %v1275
        %v1277 = vpop.f32.mrf.mxu0
        %v1278 = vpop.f32.mrf.mxu0
        %v1279 = vadd.f32 %v1182, %v1278
        %v1280 = vpop.f32.mrf.mxu0
        %1281 = vmatprep.mubr.bf16.mxu0 %v895
        %1282 = vmatmul.mubr.bf16.gmra.mxu0 %v894
        %v1283 = vpop.f32.mrf.mxu0
        %v1284 = vadd.f32 %v1187, %v1283
        %v1285 = vpop.f32.mrf.mxu0
        %v1286 = vpop.f32.mrf.mxu0
        %v1287 = vadd.f32 %v1190, %v1286
        %v1288 = vpop.f32.mrf.mxu0
        %1289 = vmatprep.mubr.bf16.mxu0 %v899
        %1290 = vmatmul.mubr.bf16.gmra.mxu0 %v898
        %v1291 = vpop.f32.mrf.mxu0
        %v1292 = vadd.f32 %v1195, %v1291
        %v1293 = vpop.f32.mrf.mxu0
        %v1294 = vpop.f32.mrf.mxu0
        %v1295 = vadd.f32 %v1198, %v1294
        %v1296 = vpop.f32.mrf.mxu0
        %1297 = vmatprep.mubr.bf16.mxu0 %v903
        %1298 = vmatmul.mubr.bf16.gmra.mxu0 %v902
        %v1299 = vpop.f32.mrf.mxu0
        %v1300 = vadd.f32 %v1203, %v1299
        %v1301 = vpop.f32.mrf.mxu0
        %v1302 = vpop.f32.mrf.mxu0
        %v1303 = vadd.f32 %v1206, %v1302
        %v1304 = vpop.f32.mrf.mxu0
        %1305 = vmatprep.mubr.bf16.mxu0 %v907
        %1306 = vmatmul.mubr.bf16.gmra.mxu0 %v906
        %v1307 = vpop.f32.mrf.mxu0
        %v1308 = vadd.f32 %v1211, %v1307
        %v1309 = vpop.f32.mrf.mxu0
        %v1310 = vpop.f32.mrf.mxu0
        %v1311 = vadd.f32 %v1214, %v1310
        %v1312 = vpop.f32.mrf.mxu0
        %1313 = vmatprep.mubr.bf16.mxu0 %v911
        %1314 = vmatmul.mubr.bf16.gmra.mxu0 %v910
        %v1315 = vpop.f32.mrf.mxu0
        %v1316 = vadd.f32 %v1219, %v1315
        %v1317 = vpop.f32.mrf.mxu0
        %v1318 = vpop.f32.mrf.mxu0
        %v1319 = vadd.f32 %v1222, %v1318
        %v1320 = vpop.f32.mrf.mxu0
        %1321 = vmatprep.mubr.bf16.mxu0 %v915
        %1322 = vmatmul.mubr.bf16.gmra.mxu0 %v914
        %v1323 = vpop.f32.mrf.mxu0
        %v1324 = vadd.f32 %v1227, %v1323
        %v1325 = vpop.f32.mrf.mxu0
        %v1326 = vpop.f32.mrf.mxu0
        %v1327 = vadd.f32 %v1230, %v1326
        %v1328 = vpop.f32.mrf.mxu0
        %1329 = vmatprep.mubr.bf16.mxu0 %v919
        %1330 = vmatmul.mubr.bf16.gmra.mxu0 %v918
        %v1331 = vpop.f32.mrf.mxu0
        %v1332 = vadd.f32 %v1235, %v1331
        %v1333 = vpop.f32.mrf.mxu0
        %v1334 = vpop.f32.mrf.mxu0
        %v1335 = vadd.f32 %v1238, %v1334
        %v1336 = vpop.f32.mrf.mxu0
        %1337 = vdwg.mxu0
        %v1338 = vadd.f32 %v680, %v1276
        %v1339 = vadd.f32 %v681, %v1279
        %v1340 = vadd.f32 %v682, %v1284
        %v1341 = vadd.f32 %v683, %v1287
        %v1342 = vadd.f32 %v684, %v1292
        %v1343 = vadd.f32 %v685, %v1295
        %v1344 = vadd.f32 %v686, %v1300
        %v1345 = vadd.f32 %v687, %v1303
        %v1346 = vadd.f32 %v688, %v1308
        %v1347 = vadd.f32 %v689, %v1311
        %v1348 = vadd.f32 %v690, %v1316
        %v1349 = vadd.f32 %v691, %v1319
        %v1350 = vadd.f32 %v692, %v1324
        %v1351 = vadd.f32 %v693, %v1327
        %v1352 = vadd.f32 %v694, %v1332
        %v1353 = vadd.f32 %v695, %v1335
        %1354 = vst [vmem:[#allocation2] sm:$0xff] %v1338
        %1355 = vst [vmem:[#allocation2 + $0x8] sm:$0xff] %v1339
        %1356 = vst [vmem:[#allocation2 + $0x10] sm:$0xff] %v1340
        %1357 = vst [vmem:[#allocation2 + $0x18] sm:$0xff] %v1341
        %1358 = vst [vmem:[#allocation2 + $0x20] sm:$0xff] %v1342
        %1359 = vst [vmem:[#allocation2 + $0x28] sm:$0xff] %v1343
        %1360 = vst [vmem:[#allocation2 + $0x30] sm:$0xff] %v1344
        %1361 = vst [vmem:[#allocation2 + $0x38] sm:$0xff] %v1345
        %1362 = vst [vmem:[#allocation2 + $0x40] sm:$0xff] %v1346
        %1363 = vst [vmem:[#allocation2 + $0x48] sm:$0xff] %v1347
        %1364 = vst [vmem:[#allocation2 + $0x50] sm:$0xff] %v1348
        %1365 = vst [vmem:[#allocation2 + $0x58] sm:$0xff] %v1349
        %1366 = vst [vmem:[#allocation2 + $0x60] sm:$0xff] %v1350
        %1367 = vst [vmem:[#allocation2 + $0x68] sm:$0xff] %v1351
        %1368 = vst [vmem:[#allocation2 + $0x70] sm:$0xff] %v1352
        %1369 = vst [vmem:[#allocation2 + $0x78] sm:$0xff] %v1353
        %p1370 = scmp.eq.s32.totalorder %s23, 3
        // Predicated region
        $region101: #{discriminator_forward.6} parent=87 // pred_check
          %p1371 = pneg %p1370
        $region102: #{discriminator_forward.6} parent=87 // pred_check_branch
          %1373 = sbr.rel (%p1371) target = $region104
        $region103: #{discriminator_forward.6} parent=87 // pred_region
          %v1374 = vld [vmem:[#allocation2] sm:$0xff]
          %v1375 = vld [vmem:[#allocation2 + $0x8] sm:$0xff]
          %v1376 = vld [vmem:[#allocation2 + $0x10] sm:$0xff]
          %v1377 = vld [vmem:[#allocation2 + $0x18] sm:$0xff]
          %v1378 = vld [vmem:[#allocation2 + $0x20] sm:$0xff]
          %v1379 = vld [vmem:[#allocation2 + $0x28] sm:$0xff]
          %v1380 = vld [vmem:[#allocation2 + $0x30] sm:$0xff]
          %v1381 = vld [vmem:[#allocation2 + $0x38] sm:$0xff]
          %v1382 = vld [vmem:[#allocation2 + $0x40] sm:$0xff]
          %v1383 = vld [vmem:[#allocation2 + $0x48] sm:$0xff]
          %v1384 = vld [vmem:[#allocation2 + $0x50] sm:$0xff]
          %v1385 = vld [vmem:[#allocation2 + $0x58] sm:$0xff]
          %v1386 = vld [vmem:[#allocation2 + $0x60] sm:$0xff]
          %v1387 = vld [vmem:[#allocation2 + $0x68] sm:$0xff]
          %v1388 = vld [vmem:[#allocation2 + $0x70] sm:$0xff]
          %v1389 = vld [vmem:[#allocation2 + $0x78] sm:$0xff]
          %v1390 = vld [vmem:[%s649] sm:$0x1]
          %v1392 = vlaneseq
          %v1393 = vshrl.u32 %v1392, 7
          %v1394 = vsub.s32 0, %v1393
          %v1395 = vrot.slane %v1390, %v1394
          %v1397 = vadd.f32 %v1374, %v1395
          %v1398 = vadd.f32 %v1375, %v1395
          %v1399 = vadd.f32 %v1376, %v1395
          %v1400 = vadd.f32 %v1377, %v1395
          %v1401 = vadd.f32 %v1378, %v1395
          %v1402 = vadd.f32 %v1379, %v1395
          %v1403 = vadd.f32 %v1380, %v1395
          %v1404 = vadd.f32 %v1381, %v1395
          %v1405 = vadd.f32 %v1382, %v1395
          %v1406 = vadd.f32 %v1383, %v1395
          %v1407 = vadd.f32 %v1384, %v1395
          %v1408 = vadd.f32 %v1385, %v1395
          %v1409 = vadd.f32 %v1386, %v1395
          %v1410 = vadd.f32 %v1387, %v1395
          %v1411 = vadd.f32 %v1388, %v1395
          %v1412 = vadd.f32 %v1389, %v1395
          %vm1413 = vcmp.gt.f32.partialorder %v1397, 0.0
          %vm1414 = vcmp.gt.f32.partialorder %v1398, 0.0
          %vm1415 = vcmp.gt.f32.partialorder %v1399, 0.0
          %vm1416 = vcmp.gt.f32.partialorder %v1400, 0.0
          %vm1417 = vcmp.gt.f32.partialorder %v1401, 0.0
          %vm1418 = vcmp.gt.f32.partialorder %v1402, 0.0
          %vm1419 = vcmp.gt.f32.partialorder %v1403, 0.0
          %vm1420 = vcmp.gt.f32.partialorder %v1404, 0.0
          %vm1421 = vcmp.gt.f32.partialorder %v1405, 0.0
          %vm1422 = vcmp.gt.f32.partialorder %v1406, 0.0
          %vm1423 = vcmp.gt.f32.partialorder %v1407, 0.0
          %vm1424 = vcmp.gt.f32.partialorder %v1408, 0.0
          %vm1425 = vcmp.gt.f32.partialorder %v1409, 0.0
          %vm1426 = vcmp.gt.f32.partialorder %v1410, 0.0
          %vm1427 = vcmp.gt.f32.partialorder %v1411, 0.0
          %vm1428 = vcmp.gt.f32.partialorder %v1412, 0.0
          %v1429 = vmul.f32 %v1397, 0.01
          %v1430 = vmul.f32 %v1398, 0.01
          %v1431 = vmul.f32 %v1399, 0.01
          %v1432 = vmul.f32 %v1400, 0.01
          %v1433 = vmul.f32 %v1401, 0.01
          %v1434 = vmul.f32 %v1402, 0.01
          %v1435 = vmul.f32 %v1403, 0.01
          %v1436 = vmul.f32 %v1404, 0.01
          %v1437 = vmul.f32 %v1405, 0.01
          %v1438 = vmul.f32 %v1406, 0.01
          %v1439 = vmul.f32 %v1407, 0.01
          %v1440 = vmul.f32 %v1408, 0.01
          %v1441 = vmul.f32 %v1409, 0.01
          %v1442 = vmul.f32 %v1410, 0.01
          %v1443 = vmul.f32 %v1411, 0.01
          %v1444 = vmul.f32 %v1412, 0.01
          %v1445 = vsel %vm1413, %v1397, %v1429
          %v1446 = vsel %vm1414, %v1398, %v1430
          %v1447 = vsel %vm1415, %v1399, %v1431
          %v1448 = vsel %vm1416, %v1400, %v1432
          %v1449 = vsel %vm1417, %v1401, %v1433
          %v1450 = vsel %vm1418, %v1402, %v1434
          %v1451 = vsel %vm1419, %v1403, %v1435
          %v1452 = vsel %vm1420, %v1404, %v1436
          %v1453 = vsel %vm1421, %v1405, %v1437
          %v1454 = vsel %vm1422, %v1406, %v1438
          %v1455 = vsel %vm1423, %v1407, %v1439
          %v1456 = vsel %vm1424, %v1408, %v1440
          %v1457 = vsel %vm1425, %v1409, %v1441
          %v1458 = vsel %vm1426, %v1410, %v1442
          %v1459 = vsel %vm1427, %v1411, %v1443
          %v1460 = vsel %vm1428, %v1412, %v1444
          %1461 = vst [vmem:[%s633] sm:$0xff] %v1445
          %1462 = vst [vmem:[%s633 + $0x8] sm:$0xff] %v1446
          %1463 = vst [vmem:[%s633 + $0x10] sm:$0xff] %v1447
          %1464 = vst [vmem:[%s633 + $0x18] sm:$0xff] %v1448
          %1465 = vst [vmem:[%s633 + $0x20] sm:$0xff] %v1449
          %1466 = vst [vmem:[%s633 + $0x28] sm:$0xff] %v1450
          %1467 = vst [vmem:[%s633 + $0x30] sm:$0xff] %v1451
          %1468 = vst [vmem:[%s633 + $0x38] sm:$0xff] %v1452
          %1469 = vst [vmem:[%s633 + $0x40] sm:$0xff] %v1453
          %1470 = vst [vmem:[%s633 + $0x48] sm:$0xff] %v1454
          %1471 = vst [vmem:[%s633 + $0x50] sm:$0xff] %v1455
          %1472 = vst [vmem:[%s633 + $0x58] sm:$0xff] %v1456
          %1473 = vst [vmem:[%s633 + $0x60] sm:$0xff] %v1457
          %1474 = vst [vmem:[%s633 + $0x68] sm:$0xff] %v1458
          %1475 = vst [vmem:[%s633 + $0x70] sm:$0xff] %v1459
          %1476 = vst [vmem:[%s633 + $0x78] sm:$0xff] %v1460
          %v1477 = vadd.f32 %v1445, %v1446
          %v1478 = vadd.f32 %v1477, %v1447
          %v1479 = vadd.f32 %v1478, %v1448
          %v1480 = vadd.f32 %v1479, %v1449
          %v1481 = vadd.f32 %v1480, %v1450
          %v1482 = vadd.f32 %v1481, %v1451
          %v1483 = vadd.f32 %v1482, %v1452
          %v1484 = vadd.f32 %v1483, %v1453
          %v1485 = vadd.f32 %v1484, %v1454
          %v1486 = vadd.f32 %v1485, %v1455
          %v1487 = vadd.f32 %v1486, %v1456
          %v1488 = vadd.f32 %v1487, %v1457
          %v1489 = vadd.f32 %v1488, %v1458
          %v1490 = vadd.f32 %v1489, %v1459
          %v1491 = vadd.f32 %v1490, %v1460
          %v1492 = vrot.slane %v1491, 4
          %v1493 = vadd.f32 %v1491, %v1492
          %v1494 = vrot.slane %v1493, 2
          %v1495 = vadd.f32 %v1493, %v1494
          %v1496 = vrot.slane %v1495, 1
          %v1497 = vadd.f32 %v1495, %v1496
          %v1498 = vmul.f32 %v1445, %v1445
          %v1499 = vmul.f32 %v1446, %v1446
          %v1500 = vmul.f32 %v1447, %v1447
          %v1501 = vmul.f32 %v1448, %v1448
          %v1502 = vmul.f32 %v1449, %v1449
          %v1503 = vmul.f32 %v1450, %v1450
          %v1504 = vmul.f32 %v1451, %v1451
          %v1505 = vmul.f32 %v1452, %v1452
          %v1506 = vmul.f32 %v1453, %v1453
          %v1507 = vmul.f32 %v1454, %v1454
          %v1508 = vmul.f32 %v1455, %v1455
          %v1509 = vmul.f32 %v1456, %v1456
          %v1510 = vmul.f32 %v1457, %v1457
          %v1511 = vmul.f32 %v1458, %v1458
          %v1512 = vmul.f32 %v1459, %v1459
          %v1513 = vmul.f32 %v1460, %v1460
          %v1514 = vadd.f32 %v1498, %v1499
          %v1515 = vadd.f32 %v1514, %v1500
          %v1516 = vadd.f32 %v1515, %v1501
          %v1517 = vadd.f32 %v1516, %v1502
          %v1518 = vadd.f32 %v1517, %v1503
          %v1519 = vadd.f32 %v1518, %v1504
          %v1520 = vadd.f32 %v1519, %v1505
          %v1521 = vadd.f32 %v1520, %v1506
          %v1522 = vadd.f32 %v1521, %v1507
          %v1523 = vadd.f32 %v1522, %v1508
          %v1524 = vadd.f32 %v1523, %v1509
          %v1525 = vadd.f32 %v1524, %v1510
          %v1526 = vadd.f32 %v1525, %v1511
          %v1527 = vadd.f32 %v1526, %v1512
          %v1528 = vadd.f32 %v1527, %v1513
          %v1529 = vrot.slane %v1528, 4
          %v1530 = vadd.f32 %v1528, %v1529
          %v1531 = vrot.slane %v1530, 2
          %v1532 = vadd.f32 %v1530, %v1531
          %v1533 = vrot.slane %v1532, 1
          %v1534 = vadd.f32 %v1532, %v1533
          %vm1535 = vcmask 1040384
          %v1536 = vsel %vm1535, %v1497, %v1534
          %vm1537 = vcmask 1041408
          %v1538 = vsel %vm1537, %v1536, 0.0
          %1539 = vst [vmem:[%s658] sm:$0xff] %v1538
        $region104: #{discriminator_forward.6} parent=87 // pred_fallthru
          _
        %s1540 = sand.u32 %s127, 1
        %s1541 = sand.u32 %s127, 1
        %s1542 = smul.addr %s1541, 128
        %s1543 = scalar_lea.vmem [#allocation5], %s1542
        %p1544 = scmp.lt.s32.totalorder %s21, 0
        %s1545 = scalar_select %p1544, %s21, 0
        %p1546 = scmp.lt.s32.totalorder %s22, 1
        %s1547 = scalar_select %p1546, %s22, 1
        %s1548 = smul.addr %s1545, 2
        %s1549 = sadd.s32 %s1547, %s1548
        %s1550 = smul.addr %s1549, 8
        %s1551 = scalar_lea.vmem %s4, %s1550
        // Predicated region
        $region105: #{discriminator_forward.6} parent=87 // pred_check
          %p1552 = pneg %p137
        $region106: #{discriminator_forward.6} parent=87 // pred_check_branch
          %1554 = sbr.rel (%p1552) target = $region108
        $region107: #{discriminator_forward.6} parent=87 // pred_region
          %s1555 = smul.u32 16, %s21
          %s1556 = smul.addr %s1555, 2
          %s1557 = sadd.s32 %s22, %s1556
          %s1558 = smul.addr %s1557, 8
          %s1559 = scalar_lea.vmem %s3, %s1558
          // Predicated region
          $region109: #{discriminator_forward.6} parent=107 // pred_check
            _
          $region110: #{discriminator_forward.6} parent=107 // pred_check_branch
            %1561 = sbr.rel (0) target = $region112
          $region111: #{discriminator_forward.6} parent=107 // pred_region
            // Predicated region
            $region113: #{discriminator_forward.6} parent=111 // pred_check
              _
            $region114: #{discriminator_forward.6} parent=111 // pred_check_branch
              %1563 = sbr.rel (0) target = $region116
            $region115: #{discriminator_forward.6} parent=111 // pred_region
              // Predicated region
              $region128: #{discriminator_forward.6} parent=115 // pred_check
                _
              $region129: #{discriminator_forward.6} parent=115 // pred_check_branch
                %1609 = sbr.rel (0) target = $region131
              $region130: #{discriminator_forward.6} parent=115 // pred_region
                loop: start=0, step=1, limit=1
                $region132: #{discriminator_forward.6} parent=130 // loop_pre_header
                  _
                $region133: #{discriminator_forward.6} parent=130 // loop_header
                  %s1611 = sphi 0, %s1615
                  %p1612 = scmp.ge.s32.totalorder %s1611, 1
                  %s1616 = sphi %s1543, %s1543
                  %s1617 = sphi %s1559, %s1559
                $region134: #{discriminator_forward.6} parent=130 // loop_header_branch
                  %1614 = sbr.rel (%p1612) target = $region138
                $region135: #{discriminator_forward.6} parent=130 // loop_body
                  %v1618 = vld [vmem:[%s1616] sm:$0xff]
                  %1619 = vst [vmem:[%s1617] sm:$0xff] %v1618
                  %v1620 = vld [vmem:[%s1616 + $0x8] sm:$0xff]
                  %1621 = vst [vmem:[%s1617 + $0x10] sm:$0xff] %v1620
                  %v1622 = vld [vmem:[%s1616 + $0x10] sm:$0xff]
                  %1623 = vst [vmem:[%s1617 + $0x20] sm:$0xff] %v1622
                  %v1624 = vld [vmem:[%s1616 + $0x18] sm:$0xff]
                  %1625 = vst [vmem:[%s1617 + $0x30] sm:$0xff] %v1624
                  %v1626 = vld [vmem:[%s1616 + $0x20] sm:$0xff]
                  %1627 = vst [vmem:[%s1617 + $0x40] sm:$0xff] %v1626
                  %v1628 = vld [vmem:[%s1616 + $0x28] sm:$0xff]
                  %1629 = vst [vmem:[%s1617 + $0x50] sm:$0xff] %v1628
                  %v1630 = vld [vmem:[%s1616 + $0x30] sm:$0xff]
                  %1631 = vst [vmem:[%s1617 + $0x60] sm:$0xff] %v1630
                  %v1632 = vld [vmem:[%s1616 + $0x38] sm:$0xff]
                  %1633 = vst [vmem:[%s1617 + $0x70] sm:$0xff] %v1632
                  %v1634 = vld [vmem:[%s1616 + $0x40] sm:$0xff]
                  %1635 = vst [vmem:[%s1617 + $0x80] sm:$0xff] %v1634
                  %v1636 = vld [vmem:[%s1616 + $0x48] sm:$0xff]
                  %1637 = vst [vmem:[%s1617 + $0x90] sm:$0xff] %v1636
                  %v1638 = vld [vmem:[%s1616 + $0x50] sm:$0xff]
                  %1639 = vst [vmem:[%s1617 + $0xa0] sm:$0xff] %v1638
                  %v1640 = vld [vmem:[%s1616 + $0x58] sm:$0xff]
                  %1641 = vst [vmem:[%s1617 + $0xb0] sm:$0xff] %v1640
                  %v1642 = vld [vmem:[%s1616 + $0x60] sm:$0xff]
                  %1643 = vst [vmem:[%s1617 + $0xc0] sm:$0xff] %v1642
                  %v1644 = vld [vmem:[%s1616 + $0x68] sm:$0xff]
                  %1645 = vst [vmem:[%s1617 + $0xd0] sm:$0xff] %v1644
                  %v1646 = vld [vmem:[%s1616 + $0x70] sm:$0xff]
                  %1647 = vst [vmem:[%s1617 + $0xe0] sm:$0xff] %v1646
                  %v1648 = vld [vmem:[%s1616 + $0x78] sm:$0xff]
                  %1649 = vst [vmem:[%s1617 + $0xf0] sm:$0xff] %v1648
                $region136: #{discriminator_forward.6} parent=130 // loop_footer
                  %s1615 = sadd.s32 1, %s1611
                $region137: #{discriminator_forward.6} parent=130 // loop_footer_branch
                  %1610 = sbr.rel target = $region133
                $region138: #{discriminator_forward.6} parent=130 // loop_exit
                  _
              $region131: #{discriminator_forward.6} parent=115 // pred_fallthru
                _
              // Predicated region
              $region139: #{discriminator_forward.6} parent=115 // pred_check
                _
              $region140: #{discriminator_forward.6} parent=115 // pred_check_branch
                %1651 = sbr.rel target = $region142
              $region141: #{discriminator_forward.6} parent=115 // pred_region
                _
              $region142: #{discriminator_forward.6} parent=115 // pred_fallthru
                _
            $region116: #{discriminator_forward.6} parent=111 // pred_fallthru
              _
            // Predicated region
            $region117: #{discriminator_forward.6} parent=111 // pred_check
              _
            $region118: #{discriminator_forward.6} parent=111 // pred_check_branch
              %1565 = sbr.rel target = $region120
            $region119: #{discriminator_forward.6} parent=111 // pred_region
              %s1567 = ssub.s32 256, 1
              loop: start=0, step=1, limit=1
              $region121: #{discriminator_forward.6} parent=119 // loop_pre_header
                _
              $region122: #{discriminator_forward.6} parent=119 // loop_header
                %s1569 = sphi 0, %s1573
                %p1570 = scmp.ge.s32.totalorder %s1569, 1
                %s1574 = sphi %s1543, %s1543
                %s1575 = sphi %s1559, %s1559
              $region123: #{discriminator_forward.6} parent=119 // loop_header_branch
                %1572 = sbr.rel (%p1570) target = $region127
              $region124: #{discriminator_forward.6} parent=119 // loop_body
                %v1576 = vld [vmem:[%s1574] sm:%s1567]
                %1577 = vst [vmem:[%s1575] sm:%s1567] %v1576
                %v1578 = vld [vmem:[%s1574 + $0x8] sm:%s1567]
                %1579 = vst [vmem:[%s1575 + $0x10] sm:%s1567] %v1578
                %v1580 = vld [vmem:[%s1574 + $0x10] sm:%s1567]
                %1581 = vst [vmem:[%s1575 + $0x20] sm:%s1567] %v1580
                %v1582 = vld [vmem:[%s1574 + $0x18] sm:%s1567]
                %1583 = vst [vmem:[%s1575 + $0x30] sm:%s1567] %v1582
                %v1584 = vld [vmem:[%s1574 + $0x20] sm:%s1567]
                %1585 = vst [vmem:[%s1575 + $0x40] sm:%s1567] %v1584
                %v1586 = vld [vmem:[%s1574 + $0x28] sm:%s1567]
                %1587 = vst [vmem:[%s1575 + $0x50] sm:%s1567] %v1586
                %v1588 = vld [vmem:[%s1574 + $0x30] sm:%s1567]
                %1589 = vst [vmem:[%s1575 + $0x60] sm:%s1567] %v1588
                %v1590 = vld [vmem:[%s1574 + $0x38] sm:%s1567]
                %1591 = vst [vmem:[%s1575 + $0x70] sm:%s1567] %v1590
                %v1592 = vld [vmem:[%s1574 + $0x40] sm:%s1567]
                %1593 = vst [vmem:[%s1575 + $0x80] sm:%s1567] %v1592
                %v1594 = vld [vmem:[%s1574 + $0x48] sm:%s1567]
                %1595 = vst [vmem:[%s1575 + $0x90] sm:%s1567] %v1594
                %v1596 = vld [vmem:[%s1574 + $0x50] sm:%s1567]
                %1597 = vst [vmem:[%s1575 + $0xa0] sm:%s1567] %v1596
                %v1598 = vld [vmem:[%s1574 + $0x58] sm:%s1567]
                %1599 = vst [vmem:[%s1575 + $0xb0] sm:%s1567] %v1598
                %v1600 = vld [vmem:[%s1574 + $0x60] sm:%s1567]
                %1601 = vst [vmem:[%s1575 + $0xc0] sm:%s1567] %v1600
                %v1602 = vld [vmem:[%s1574 + $0x68] sm:%s1567]
                %1603 = vst [vmem:[%s1575 + $0xd0] sm:%s1567] %v1602
                %v1604 = vld [vmem:[%s1574 + $0x70] sm:%s1567]
                %1605 = vst [vmem:[%s1575 + $0xe0] sm:%s1567] %v1604
                %v1606 = vld [vmem:[%s1574 + $0x78] sm:%s1567]
                %1607 = vst [vmem:[%s1575 + $0xf0] sm:%s1567] %v1606
              $region125: #{discriminator_forward.6} parent=119 // loop_footer
                %s1573 = sadd.s32 1, %s1569
              $region126: #{discriminator_forward.6} parent=119 // loop_footer_branch
                %1568 = sbr.rel target = $region122
              $region127: #{discriminator_forward.6} parent=119 // loop_exit
                _
            $region120: #{discriminator_forward.6} parent=111 // pred_fallthru
              _
          $region112: #{discriminator_forward.6} parent=107 // pred_fallthru
            _
          %1652 = vnop
        $region108: #{discriminator_forward.6} parent=87 // pred_fallthru
          _
        // Predicated region
        $region143: #{discriminator_forward.6} parent=87 // pred_check
          %p1653 = pneg %p165
        $region144: #{discriminator_forward.6} parent=87 // pred_check_branch
          %1655 = sbr.rel (%p1653) target = $region146
        $region145: #{discriminator_forward.6} parent=87 // pred_region
          _
        $region146: #{discriminator_forward.6} parent=87 // pred_fallthru
          _
      $region88: #{discriminator_forward.6} parent=5 // pred_fallthru
        _
      %p1656 = scmp.le.s32.totalorder 2, %s11
      // Predicated region
      $region147: #{discriminator_forward.6} parent=5 // pred_check
        %p1657 = pneg %p1656
      $region148: #{discriminator_forward.6} parent=5 // pred_check_branch
        %1659 = sbr.rel (%p1657) target = $region150
      $region149: #{discriminator_forward.6} parent=5 // pred_region
        %s1660 = ssub.s32 %s11, 2
        // Predicated region
        $region151: #{discriminator_forward.6} parent=149 // pred_check
          %p1661 = pneg %p143
        $region152: #{discriminator_forward.6} parent=149 // pred_check_branch
          %1663 = sbr.rel (%p1661) target = $region154
        $region153: #{discriminator_forward.6} parent=149 // pred_region
          %s1664 = sand.u32 %s128, 1
          %s1665 = sand.u32 %s128, 1
          %s1666 = smul.addr %s1665, 128
          %s1667 = scalar_lea.vmem [#allocation5], %s1666
        $region154: #{discriminator_forward.6} parent=149 // pred_fallthru
          _
        // Predicated region
        $region155: #{discriminator_forward.6} parent=149 // pred_check
          %p1668 = pneg %p171
        $region156: #{discriminator_forward.6} parent=149 // pred_check_branch
          %1670 = sbr.rel (%p1668) target = $region158
        $region157: #{discriminator_forward.6} parent=149 // pred_region
          %p1671 = scmp.lt.s32.totalorder %s24, 0
          %s1672 = scalar_select %p1671, %s24, 0
          %p1673 = scmp.lt.s32.totalorder %s25, 1
          %s1674 = scalar_select %p1673, %s25, 1
          %s1675 = smul.addr %s1672, 2
          %s1676 = sadd.s32 %s1674, %s1675
          %s1677 = smul.addr %s1676, 8
          %s1678 = scalar_lea.vmem %s4, %s1677
        $region158: #{discriminator_forward.6} parent=149 // pred_fallthru
          _
      $region150: #{discriminator_forward.6} parent=5 // pred_fallthru
        _
    $region6: #{discriminator_forward.6} parent=1 // loop_footer
      %s15 = sadd.s32 1, %s11
    $region7: #{discriminator_forward.6} parent=1 // loop_footer_branch
      %10 = sbr.rel target = $region3
    $region8: #{discriminator_forward.6} parent=1 // loop_exit
      _

// kernel: discriminator_forward.7
$region0: #{discriminator_forward.7}
  #allocation0 [shape = 'u32[]', space=smem, size = 0x4, offset = 0x4, fixed_abs, tag = 'smem constant byte address 0x4 - core index']
  #allocation1 [shape = 'u32[144,128]{1,0:T(1,128)}', space=vmem, size = 0x12000, scoped, tag = 'internal scratch']
  #allocation2 [shape = 'f32[32,128]{1,0:T(8,128)}', space=vmem, size = 0x4000, scoped, tag = 'scratch operand']
  %s0 = inlined_call_operand.vmem [shape: bf16[32,4096], index: 0, kind: input, shape index: {}]
  %s1 = inlined_call_operand.vmem [shape: bf16[4096,512], index: 1, kind: input, shape index: {}]
  %s2 = inlined_call_operand.vmem [shape: f32[1,512], index: 2, kind: input, shape index: {}]
  %s3 = inlined_call_operand.vmem [shape: f32[32,512], index: 3, kind: output, shape index: {0}]
  %s4 = inlined_call_operand.vmem [shape: f32[8,512], index: 4, kind: output, shape index: {1}]
  %5 = xla_tuple %s3, %s4
  %s6 = sld [smem:[#allocation0]]
  $region159: #{discriminator_forward.7} parent=0
    _
  %s8 = ssub.s32 1, %s6
  %s9 = scalar_select 0, %s8, %s6
  $region1: #{discriminator_forward.7} parent=0
    #allocation3 [shape = 'u8[65536]{0}', space=vmem, size = 0x10000, scoped, tag = 'input window, operand 0']
    #allocation4 [shape = 'u8[262144]{0}', space=vmem, size = 0x40000, scoped, tag = 'input window, operand 1']
    #allocation5 [shape = 'u8[32768]{0}', space=vmem, size = 0x8000, scoped, tag = 'output window, operand 0']
    loop: start=0, step=1, limit=34
    $region2: #{discriminator_forward.7} parent=1 // loop_pre_header
      _
    $region3: #{discriminator_forward.7} parent=1 // loop_header
      %s11 = sphi 0, %s15
      %p12 = scmp.ge.s32.totalorder %s11, 34
      %s18 = sphi 0, %s37
      %s19 = sphi 0, %s33
      %s20 = sphi 0, %s29
      %s21 = sphi 0, %s18
      %s22 = sphi 0, %s19
      %s23 = sphi 0, %s20
      %s24 = sphi 0, %s21
      %s25 = sphi 0, %s22
      %s26 = sphi 0, %s23
      %s42 = sphi 0, %s44
      %s45 = sphi 0, %s42
      %s46 = sphi 0, %s45
      %s62 = sphi 0, %s46
      %s70 = sphi 0, %s72
      %s73 = sphi 0, %s70
      %s74 = sphi 0, %s73
      %s90 = sphi 0, %s74
      %s96 = sphi 0, %s98
      %s99 = sphi 0, %s96
      %s100 = sphi 0, %s99
      %s116 = sphi 0, %s100
      %s124 = sphi 0, %s126
      %s127 = sphi 0, %s124
      %s128 = sphi 0, %s127
      %s144 = sphi 0, %s128
      %s152 = sphi 0, %s154
      %s155 = sphi 0, %s152
      %s156 = sphi 0, %s155
      %s172 = sphi 0, %s156
    $region4: #{discriminator_forward.7} parent=1 // loop_header_branch
      %14 = sbr.rel (%p12) target = $region8
    $region5: #{discriminator_forward.7} parent=1 // loop_body
      %s16 = ssub.s32 %s11, 1
      %s17 = ssub.s32 %s11, 2
      %s27 = sadd.s32 1, %s20
      %p28 = scmp.ge.s32.totalorder %s27, 8
      %s29 = scalar_select %p28, 0, %s27
      %s30 = sadd.s32 1, %s19
      %s31 = scalar_select %p28, %s30, %s19
      %p32 = scmp.ge.s32.totalorder %s31, 4
      %s33 = scalar_select %p32, 0, %s31
      %s34 = sadd.s32 1, %s18
      %s35 = scalar_select %p32, %s34, %s18
      %p36 = scmp.ge.s32.totalorder %s35, 1
      %s37 = scalar_select %p36, 0, %s35
      %s38 = ssub.s32 %s18, %s37
      %s39 = ssub.s32 %s20, %s29
      %s40 = sor.u32 %s38, %s39
      %p41 = scmp.eq.s32.totalorder %s40, 0
      %s43 = sadd.s32 %s42, 1
      %s44 = scalar_select %p41, %s42, %s43
      %p47 = pneg %p41
      %p48 = scmp.eq.s32.totalorder %s11, 31
      %p49 = por %p47, %p48
      %p50 = scmp.ne.s32.totalorder %s42, %s45
      %p51 = scmp.eq.s32.totalorder %s11, 0
      %p52 = por %p50, %p51
      %p53 = scmp.ne.s32.totalorder %s42, %s45
      %p54 = scmp.eq.s32.totalorder %s16, 31
      %p55 = por %p53, %p54
      %p56 = scmp.ne.s32.totalorder %s45, %s46
      %p57 = scmp.eq.s32.totalorder %s16, 0
      %p58 = por %p56, %p57
      %p59 = scmp.ne.s32.totalorder %s45, %s46
      %p60 = scmp.eq.s32.totalorder %s17, 31
      %p61 = por %p59, %p60
      %p63 = scmp.ne.s32.totalorder %s46, %s62
      %p64 = scmp.eq.s32.totalorder %s17, 0
      %p65 = por %p63, %p64
      %s66 = ssub.s32 %s20, %s29
      %s67 = ssub.s32 %s19, %s33
      %s68 = sor.u32 %s66, %s67
      %p69 = scmp.eq.s32.totalorder %s68, 0
      %s71 = sadd.s32 %s70, 1
      %s72 = scalar_select %p69, %s70, %s71
      %p75 = pneg %p69
      %p76 = scmp.eq.s32.totalorder %s11, 31
      %p77 = por %p75, %p76
      %p78 = scmp.ne.s32.totalorder %s70, %s73
      %p79 = scmp.eq.s32.totalorder %s11, 0
      %p80 = por %p78, %p79
      %p81 = scmp.ne.s32.totalorder %s70, %s73
      %p82 = scmp.eq.s32.totalorder %s16, 31
      %p83 = por %p81, %p82
      %p84 = scmp.ne.s32.totalorder %s73, %s74
      %p85 = scmp.eq.s32.totalorder %s16, 0
      %p86 = por %p84, %p85
      %p87 = scmp.ne.s32.totalorder %s73, %s74
      %p88 = scmp.eq.s32.totalorder %s17, 31
      %p89 = por %p87, %p88
      %p91 = scmp.ne.s32.totalorder %s74, %s90
      %p92 = scmp.eq.s32.totalorder %s17, 0
      %p93 = por %p91, %p92
      %s94 = ssub.s32 %s19, %s33
      %p95 = scmp.eq.s32.totalorder %s94, 0
      %s97 = sadd.s32 %s96, 1
      %s98 = scalar_select %p95, %s96, %s97
      %p101 = pneg %p95
      %p102 = scmp.eq.s32.totalorder %s11, 31
      %p103 = por %p101, %p102
      %p104 = scmp.ne.s32.totalorder %s96, %s99
      %p105 = scmp.eq.s32.totalorder %s11, 0
      %p106 = por %p104, %p105
      %p107 = scmp.ne.s32.totalorder %s96, %s99
      %p108 = scmp.eq.s32.totalorder %s16, 31
      %p109 = por %p107, %p108
      %p110 = scmp.ne.s32.totalorder %s99, %s100
      %p111 = scmp.eq.s32.totalorder %s16, 0
      %p112 = por %p110, %p111
      %p113 = scmp.ne.s32.totalorder %s99, %s100
      %p114 = scmp.eq.s32.totalorder %s17, 31
      %p115 = por %p113, %p114
      %p117 = scmp.ne.s32.totalorder %s100, %s116
      %p118 = scmp.eq.s32.totalorder %s17, 0
      %p119 = por %p117, %p118
      %s120 = ssub.s32 %s18, %s37
      %s121 = ssub.s32 %s19, %s33
      %s122 = sor.u32 %s120, %s121
      %p123 = scmp.eq.s32.totalorder %s122, 0
      %s125 = sadd.s32 %s124, 1
      %s126 = scalar_select %p123, %s124, %s125
      %p129 = pneg %p123
      %p130 = scmp.eq.s32.totalorder %s11, 31
      %p131 = por %p129, %p130
      %p132 = scmp.ne.s32.totalorder %s124, %s127
      %p133 = scmp.eq.s32.totalorder %s11, 0
      %p134 = por %p132, %p133
      %p135 = scmp.ne.s32.totalorder %s124, %s127
      %p136 = scmp.eq.s32.totalorder %s16, 31
      %p137 = por %p135, %p136
      %p138 = scmp.ne.s32.totalorder %s127, %s128
      %p139 = scmp.eq.s32.totalorder %s16, 0
      %p140 = por %p138, %p139
      %p141 = scmp.ne.s32.totalorder %s127, %s128
      %p142 = scmp.eq.s32.totalorder %s17, 31
      %p143 = por %p141, %p142
      %p145 = scmp.ne.s32.totalorder %s128, %s144
      %p146 = scmp.eq.s32.totalorder %s17, 0
      %p147 = por %p145, %p146
      %s148 = ssub.s32 %s18, %s37
      %s149 = ssub.s32 %s19, %s33
      %s150 = sor.u32 %s148, %s149
      %p151 = scmp.eq.s32.totalorder %s150, 0
      %s153 = sadd.s32 %s152, 1
      %s154 = scalar_select %p151, %s152, %s153
      %p157 = pneg %p151
      %p158 = scmp.eq.s32.totalorder %s11, 31
      %p159 = por %p157, %p158
      %p160 = scmp.ne.s32.totalorder %s152, %s155
      %p161 = scmp.eq.s32.totalorder %s11, 0
      %p162 = por %p160, %p161
      %p163 = scmp.ne.s32.totalorder %s152, %s155
      %p164 = scmp.eq.s32.totalorder %s16, 31
      %p165 = por %p163, %p164
      %p166 = scmp.ne.s32.totalorder %s155, %s156
      %p167 = scmp.eq.s32.totalorder %s16, 0
      %p168 = por %p166, %p167
      %p169 = scmp.ne.s32.totalorder %s155, %s156
      %p170 = scmp.eq.s32.totalorder %s17, 31
      %p171 = por %p169, %p170
      %p173 = scmp.ne.s32.totalorder %s156, %s172
      %p174 = scmp.eq.s32.totalorder %s17, 0
      %p175 = por %p173, %p174
      %p176 = scmp.le.s32.totalorder 1, %s11
      %p177 = scmp.lt.s32.totalorder %s11, 33
      %p178 = pnand %p176, %p177
      %p179 = pneg %p178
      // Predicated region
      $region9: #{discriminator_forward.7} parent=5 // pred_check
        _
      $region10: #{discriminator_forward.7} parent=5 // pred_check_branch
        %181 = sbr.rel (%p178) target = $region12
      $region11: #{discriminator_forward.7} parent=5 // pred_region
        %s182 = ssub.s32 %s11, 1
      $region12: #{discriminator_forward.7} parent=5 // pred_fallthru
        _
      %p183 = scmp.lt.s32.totalorder %s11, 32
      // Predicated region
      $region13: #{discriminator_forward.7} parent=5 // pred_check
        %p184 = pneg %p183
      $region14: #{discriminator_forward.7} parent=5 // pred_check_branch
        %186 = sbr.rel (%p184) target = $region16
      $region15: #{discriminator_forward.7} parent=5 // pred_region
        // Predicated region
        $region17: #{discriminator_forward.7} parent=15 // pred_check
          %p187 = pneg %p52
        $region18: #{discriminator_forward.7} parent=15 // pred_check_branch
          %189 = sbr.rel (%p187) target = $region20
        $region19: #{discriminator_forward.7} parent=15 // pred_region
          %s190 = sand.u32 %s42, 1
          %s191 = sand.u32 %s42, 1
          %s192 = smul.addr %s191, 64
          %s193 = scalar_lea.vmem [#allocation3], %s192
          %s194 = smul.u32 4, %s18
          %s195 = smul.u32 4, %s20
          %s196 = smul.addr %s194, 32
          %s197 = sadd.s32 %s195, %s196
          %s198 = smul.addr %s197, 4
          %s199 = scalar_lea.vmem %s0, %s198
          // Predicated region
          $region21: #{discriminator_forward.7} parent=19 // pred_check
            _
          $region22: #{discriminator_forward.7} parent=19 // pred_check_branch
            %201 = sbr.rel (0) target = $region24
          $region23: #{discriminator_forward.7} parent=19 // pred_region
            // Predicated region
            $region25: #{discriminator_forward.7} parent=23 // pred_check
              _
            $region26: #{discriminator_forward.7} parent=23 // pred_check_branch
              %203 = sbr.rel (0) target = $region28
            $region27: #{discriminator_forward.7} parent=23 // pred_region
              loop: start=0, step=1, limit=1
              $region29: #{discriminator_forward.7} parent=27 // loop_pre_header
                _
              $region30: #{discriminator_forward.7} parent=27 // loop_header
                %s205 = sphi 0, %s209
                %p206 = scmp.ge.s32.totalorder %s205, 1
                %s210 = sphi %s199, %s199
                %s211 = sphi %s193, %s193
              $region31: #{discriminator_forward.7} parent=27 // loop_header_branch
                %208 = sbr.rel (%p206) target = $region35
              $region32: #{discriminator_forward.7} parent=27 // loop_body
                %v212 = vld [vmem:[%s210] sm:$0xff]
                %213 = vst [vmem:[%s211] sm:$0xff] %v212
                %v214 = vld [vmem:[%s210 + $0x8] sm:$0xff]
                %215 = vst [vmem:[%s211 + $0x8] sm:$0xff] %v214
                %v216 = vld [vmem:[%s210 + $0x80] sm:$0xff]
                %217 = vst [vmem:[%s211 + $0x10] sm:$0xff] %v216
                %v218 = vld [vmem:[%s210 + $0x88] sm:$0xff]
                %219 = vst [vmem:[%s211 + $0x18] sm:$0xff] %v218
                %v220 = vld [vmem:[%s210 + $0x100] sm:$0xff]
                %221 = vst [vmem:[%s211 + $0x20] sm:$0xff] %v220
                %v222 = vld [vmem:[%s210 + $0x108] sm:$0xff]
                %223 = vst [vmem:[%s211 + $0x28] sm:$0xff] %v222
                %v224 = vld [vmem:[%s210 + $0x180] sm:$0xff]
                %225 = vst [vmem:[%s211 + $0x30] sm:$0xff] %v224
                %v226 = vld [vmem:[%s210 + $0x188] sm:$0xff]
                %227 = vst [vmem:[%s211 + $0x38] sm:$0xff] %v226
              $region33: #{discriminator_forward.7} parent=27 // loop_footer
                %s209 = sadd.s32 1, %s205
              $region34: #{discriminator_forward.7} parent=27 // loop_footer_branch
                %204 = sbr.rel target = $region30
              $region35: #{discriminator_forward.7} parent=27 // loop_exit
                _
            $region28: #{discriminator_forward.7} parent=23 // pred_fallthru
              _
            // Predicated region
            $region36: #{discriminator_forward.7} parent=23 // pred_check
              _
            $region37: #{discriminator_forward.7} parent=23 // pred_check_branch
              %229 = sbr.rel target = $region39
            $region38: #{discriminator_forward.7} parent=23 // pred_region
              _
            $region39: #{discriminator_forward.7} parent=23 // pred_fallthru
              _
          $region24: #{discriminator_forward.7} parent=19 // pred_fallthru
            _
          %230 = vnop
        $region20: #{discriminator_forward.7} parent=15 // pred_fallthru
          _
        // Predicated region
        $region40: #{discriminator_forward.7} parent=15 // pred_check
          %p231 = pneg %p80
        $region41: #{discriminator_forward.7} parent=15 // pred_check_branch
          %233 = sbr.rel (%p231) target = $region43
        $region42: #{discriminator_forward.7} parent=15 // pred_region
          %s234 = sand.u32 %s70, 1
          %s235 = sand.u32 %s70, 1
          %s236 = smul.addr %s235, 256
          %s237 = scalar_lea.vmem [#allocation4], %s236
          %s238 = smul.u32 64, %s20
          %s239 = smul.addr %s238, 4
          %s240 = sadd.s32 %s19, %s239
          %s241 = smul.addr %s240, 4
          %s242 = scalar_lea.vmem %s1, %s241
          // Predicated region
          $region44: #{discriminator_forward.7} parent=42 // pred_check
            _
          $region45: #{discriminator_forward.7} parent=42 // pred_check_branch
            %244 = sbr.rel (0) target = $region47
          $region46: #{discriminator_forward.7} parent=42 // pred_region
            // Predicated region
            $region48: #{discriminator_forward.7} parent=46 // pred_check
              _
            $region49: #{discriminator_forward.7} parent=46 // pred_check_branch
              %246 = sbr.rel target = $region51
            $region50: #{discriminator_forward.7} parent=46 // pred_region
              // Predicated region
              $region63: #{discriminator_forward.7} parent=50 // pred_check
                _
              $region64: #{discriminator_forward.7} parent=50 // pred_check_branch
                %388 = sbr.rel (0) target = $region66
              $region65: #{discriminator_forward.7} parent=50 // pred_region
                loop: start=0, step=1, limit=1
                $region67: #{discriminator_forward.7} parent=65 // loop_pre_header
                  _
                $region68: #{discriminator_forward.7} parent=65 // loop_header
                  %s390 = sphi 0, %s394
                  %p391 = scmp.ge.s32.totalorder %s390, 1
                  %s395 = sphi %s242, %s242
                  %s396 = sphi %s237, %s237
                $region69: #{discriminator_forward.7} parent=65 // loop_header_branch
                  %393 = sbr.rel (%p391) target = $region73
                $region70: #{discriminator_forward.7} parent=65 // loop_body
                  _
                $region71: #{discriminator_forward.7} parent=65 // loop_footer
                  %s394 = sadd.s32 1, %s390
                $region72: #{discriminator_forward.7} parent=65 // loop_footer_branch
                  %389 = sbr.rel target = $region68
                $region73: #{discriminator_forward.7} parent=65 // loop_exit
                  _
                %s398 = ssub.s32 16, 1
                loop: start=0, step=1, limit=1
                $region74: #{discriminator_forward.7} parent=65 // loop_pre_header
                  _
                $region75: #{discriminator_forward.7} parent=65 // loop_header
                  %s400 = sphi 0, %s404
                  %p401 = scmp.ge.s32.totalorder %s400, 1
                  %s405 = sphi %s242, %s242
                  %s406 = sphi %s237, %s237
                $region76: #{discriminator_forward.7} parent=65 // loop_header_branch
                  %403 = sbr.rel (%p401) target = $region80
                $region77: #{discriminator_forward.7} parent=65 // loop_body
                  %v407 = vld [vmem:[%s405] sm:%s398]
                  %408 = vst [vmem:[%s406] sm:%s398] %v407
                  %v409 = vld [vmem:[%s405 + $0x10] sm:%s398]
                  %410 = vst [vmem:[%s406 + $0x4] sm:%s398] %v409
                  %v411 = vld [vmem:[%s405 + $0x20] sm:%s398]
                  %412 = vst [vmem:[%s406 + $0x8] sm:%s398] %v411
                  %v413 = vld [vmem:[%s405 + $0x30] sm:%s398]
                  %414 = vst [vmem:[%s406 + $0xc] sm:%s398] %v413
                  %v415 = vld [vmem:[%s405 + $0x40] sm:%s398]
                  %416 = vst [vmem:[%s406 + $0x10] sm:%s398] %v415
                  %v417 = vld [vmem:[%s405 + $0x50] sm:%s398]
                  %418 = vst [vmem:[%s406 + $0x14] sm:%s398] %v417
                  %v419 = vld [vmem:[%s405 + $0x60] sm:%s398]
                  %420 = vst [vmem:[%s406 + $0x18] sm:%s398] %v419
                  %v421 = vld [vmem:[%s405 + $0x70] sm:%s398]
                  %422 = vst [vmem:[%s406 + $0x1c] sm:%s398] %v421
                  %v423 = vld [vmem:[%s405 + $0x80] sm:%s398]
                  %424 = vst [vmem:[%s406 + $0x20] sm:%s398] %v423
                  %v425 = vld [vmem:[%s405 + $0x90] sm:%s398]
                  %426 = vst [vmem:[%s406 + $0x24] sm:%s398] %v425
                  %v427 = vld [vmem:[%s405 + $0xa0] sm:%s398]
                  %428 = vst [vmem:[%s406 + $0x28] sm:%s398] %v427
                  %v429 = vld [vmem:[%s405 + $0xb0] sm:%s398]
                  %430 = vst [vmem:[%s406 + $0x2c] sm:%s398] %v429
                  %v431 = vld [vmem:[%s405 + $0xc0] sm:%s398]
                  %432 = vst [vmem:[%s406 + $0x30] sm:%s398] %v431
                  %v433 = vld [vmem:[%s405 + $0xd0] sm:%s398]
                  %434 = vst [vmem:[%s406 + $0x34] sm:%s398] %v433
                  %v435 = vld [vmem:[%s405 + $0xe0] sm:%s398]
                  %436 = vst [vmem:[%s406 + $0x38] sm:%s398] %v435
                  %v437 = vld [vmem:[%s405 + $0xf0] sm:%s398]
                  %438 = vst [vmem:[%s406 + $0x3c] sm:%s398] %v437
                  %v439 = vld [vmem:[%s405 + $0x100] sm:%s398]
                  %440 = vst [vmem:[%s406 + $0x40] sm:%s398] %v439
                  %v441 = vld [vmem:[%s405 + $0x110] sm:%s398]
                  %442 = vst [vmem:[%s406 + $0x44] sm:%s398] %v441
                  %v443 = vld [vmem:[%s405 + $0x120] sm:%s398]
                  %444 = vst [vmem:[%s406 + $0x48] sm:%s398] %v443
                  %v445 = vld [vmem:[%s405 + $0x130] sm:%s398]
                  %446 = vst [vmem:[%s406 + $0x4c] sm:%s398] %v445
                  %v447 = vld [vmem:[%s405 + $0x140] sm:%s398]
                  %448 = vst [vmem:[%s406 + $0x50] sm:%s398] %v447
                  %v449 = vld [vmem:[%s405 + $0x150] sm:%s398]
                  %450 = vst [vmem:[%s406 + $0x54] sm:%s398] %v449
                  %v451 = vld [vmem:[%s405 + $0x160] sm:%s398]
                  %452 = vst [vmem:[%s406 + $0x58] sm:%s398] %v451
                  %v453 = vld [vmem:[%s405 + $0x170] sm:%s398]
                  %454 = vst [vmem:[%s406 + $0x5c] sm:%s398] %v453
                  %v455 = vld [vmem:[%s405 + $0x180] sm:%s398]
                  %456 = vst [vmem:[%s406 + $0x60] sm:%s398] %v455
                  %v457 = vld [vmem:[%s405 + $0x190] sm:%s398]
                  %458 = vst [vmem:[%s406 + $0x64] sm:%s398] %v457
                  %v459 = vld [vmem:[%s405 + $0x1a0] sm:%s398]
                  %460 = vst [vmem:[%s406 + $0x68] sm:%s398] %v459
                  %v461 = vld [vmem:[%s405 + $0x1b0] sm:%s398]
                  %462 = vst [vmem:[%s406 + $0x6c] sm:%s398] %v461
                  %v463 = vld [vmem:[%s405 + $0x1c0] sm:%s398]
                  %464 = vst [vmem:[%s406 + $0x70] sm:%s398] %v463
                  %v465 = vld [vmem:[%s405 + $0x1d0] sm:%s398]
                  %466 = vst [vmem:[%s406 + $0x74] sm:%s398] %v465
                  %v467 = vld [vmem:[%s405 + $0x1e0] sm:%s398]
                  %468 = vst [vmem:[%s406 + $0x78] sm:%s398] %v467
                  %v469 = vld [vmem:[%s405 + $0x1f0] sm:%s398]
                  %470 = vst [vmem:[%s406 + $0x7c] sm:%s398] %v469
                  %v471 = vld [vmem:[%s405 + $0x200] sm:%s398]
                  %472 = vst [vmem:[%s406 + $0x80] sm:%s398] %v471
                  %v473 = vld [vmem:[%s405 + $0x210] sm:%s398]
                  %474 = vst [vmem:[%s406 + $0x84] sm:%s398] %v473
                  %v475 = vld [vmem:[%s405 + $0x220] sm:%s398]
                  %476 = vst [vmem:[%s406 + $0x88] sm:%s398] %v475
                  %v477 = vld [vmem:[%s405 + $0x230] sm:%s398]
                  %478 = vst [vmem:[%s406 + $0x8c] sm:%s398] %v477
                  %v479 = vld [vmem:[%s405 + $0x240] sm:%s398]
                  %480 = vst [vmem:[%s406 + $0x90] sm:%s398] %v479
                  %v481 = vld [vmem:[%s405 + $0x250] sm:%s398]
                  %482 = vst [vmem:[%s406 + $0x94] sm:%s398] %v481
                  %v483 = vld [vmem:[%s405 + $0x260] sm:%s398]
                  %484 = vst [vmem:[%s406 + $0x98] sm:%s398] %v483
                  %v485 = vld [vmem:[%s405 + $0x270] sm:%s398]
                  %486 = vst [vmem:[%s406 + $0x9c] sm:%s398] %v485
                  %v487 = vld [vmem:[%s405 + $0x280] sm:%s398]
                  %488 = vst [vmem:[%s406 + $0xa0] sm:%s398] %v487
                  %v489 = vld [vmem:[%s405 + $0x290] sm:%s398]
                  %490 = vst [vmem:[%s406 + $0xa4] sm:%s398] %v489
                  %v491 = vld [vmem:[%s405 + $0x2a0] sm:%s398]
                  %492 = vst [vmem:[%s406 + $0xa8] sm:%s398] %v491
                  %v493 = vld [vmem:[%s405 + $0x2b0] sm:%s398]
                  %494 = vst [vmem:[%s406 + $0xac] sm:%s398] %v493
                  %v495 = vld [vmem:[%s405 + $0x2c0] sm:%s398]
                  %496 = vst [vmem:[%s406 + $0xb0] sm:%s398] %v495
                  %v497 = vld [vmem:[%s405 + $0x2d0] sm:%s398]
                  %498 = vst [vmem:[%s406 + $0xb4] sm:%s398] %v497
                  %v499 = vld [vmem:[%s405 + $0x2e0] sm:%s398]
                  %500 = vst [vmem:[%s406 + $0xb8] sm:%s398] %v499
                  %v501 = vld [vmem:[%s405 + $0x2f0] sm:%s398]
                  %502 = vst [vmem:[%s406 + $0xbc] sm:%s398] %v501
                  %v503 = vld [vmem:[%s405 + $0x300] sm:%s398]
                  %504 = vst [vmem:[%s406 + $0xc0] sm:%s398] %v503
                  %v505 = vld [vmem:[%s405 + $0x310] sm:%s398]
                  %506 = vst [vmem:[%s406 + $0xc4] sm:%s398] %v505
                  %v507 = vld [vmem:[%s405 + $0x320] sm:%s398]
                  %508 = vst [vmem:[%s406 + $0xc8] sm:%s398] %v507
                  %v509 = vld [vmem:[%s405 + $0x330] sm:%s398]
                  %510 = vst [vmem:[%s406 + $0xcc] sm:%s398] %v509
                  %v511 = vld [vmem:[%s405 + $0x340] sm:%s398]
                  %512 = vst [vmem:[%s406 + $0xd0] sm:%s398] %v511
                  %v513 = vld [vmem:[%s405 + $0x350] sm:%s398]
                  %514 = vst [vmem:[%s406 + $0xd4] sm:%s398] %v513
                  %v515 = vld [vmem:[%s405 + $0x360] sm:%s398]
                  %516 = vst [vmem:[%s406 + $0xd8] sm:%s398] %v515
                  %v517 = vld [vmem:[%s405 + $0x370] sm:%s398]
                  %518 = vst [vmem:[%s406 + $0xdc] sm:%s398] %v517
                  %v519 = vld [vmem:[%s405 + $0x380] sm:%s398]
                  %520 = vst [vmem:[%s406 + $0xe0] sm:%s398] %v519
                  %v521 = vld [vmem:[%s405 + $0x390] sm:%s398]
                  %522 = vst [vmem:[%s406 + $0xe4] sm:%s398] %v521
                  %v523 = vld [vmem:[%s405 + $0x3a0] sm:%s398]
                  %524 = vst [vmem:[%s406 + $0xe8] sm:%s398] %v523
                  %v525 = vld [vmem:[%s405 + $0x3b0] sm:%s398]
                  %526 = vst [vmem:[%s406 + $0xec] sm:%s398] %v525
                  %v527 = vld [vmem:[%s405 + $0x3c0] sm:%s398]
                  %528 = vst [vmem:[%s406 + $0xf0] sm:%s398] %v527
                  %v529 = vld [vmem:[%s405 + $0x3d0] sm:%s398]
                  %530 = vst [vmem:[%s406 + $0xf4] sm:%s398] %v529
                  %v531 = vld [vmem:[%s405 + $0x3e0] sm:%s398]
                  %532 = vst [vmem:[%s406 + $0xf8] sm:%s398] %v531
                  %v533 = vld [vmem:[%s405 + $0x3f0] sm:%s398]
                  %534 = vst [vmem:[%s406 + $0xfc] sm:%s398] %v533
                $region78: #{discriminator_forward.7} parent=65 // loop_footer
                  %s404 = sadd.s32 1, %s400
                $region79: #{discriminator_forward.7} parent=65 // loop_footer_branch
                  %399 = sbr.rel target = $region75
                $region80: #{discriminator_forward.7} parent=65 // loop_exit
                  _
              $region66: #{discriminator_forward.7} parent=50 // pred_fallthru
                _
            $region51: #{discriminator_forward.7} parent=46 // pred_fallthru
              _
            // Predicated region
            $region52: #{discriminator_forward.7} parent=46 // pred_check
              _
            $region53: #{discriminator_forward.7} parent=46 // pred_check_branch
              %248 = sbr.rel (0) target = $region55
            $region54: #{discriminator_forward.7} parent=46 // pred_region
              %s250 = ssub.s32 16, 1
              loop: start=0, step=1, limit=1
              $region56: #{discriminator_forward.7} parent=54 // loop_pre_header
                _
              $region57: #{discriminator_forward.7} parent=54 // loop_header
                %s252 = sphi 0, %s256
                %p253 = scmp.ge.s32.totalorder %s252, 1
                %s257 = sphi %s242, %s242
                %s258 = sphi %s237, %s237
              $region58: #{discriminator_forward.7} parent=54 // loop_header_branch
                %255 = sbr.rel (%p253) target = $region62
              $region59: #{discriminator_forward.7} parent=54 // loop_body
                %v259 = vld [vmem:[%s257] sm:%s250]
                %260 = vst [vmem:[%s258] sm:%s250] %v259
                %v261 = vld [vmem:[%s257 + $0x10] sm:%s250]
                %262 = vst [vmem:[%s258 + $0x4] sm:%s250] %v261
                %v263 = vld [vmem:[%s257 + $0x20] sm:%s250]
                %264 = vst [vmem:[%s258 + $0x8] sm:%s250] %v263
                %v265 = vld [vmem:[%s257 + $0x30] sm:%s250]
                %266 = vst [vmem:[%s258 + $0xc] sm:%s250] %v265
                %v267 = vld [vmem:[%s257 + $0x40] sm:%s250]
                %268 = vst [vmem:[%s258 + $0x10] sm:%s250] %v267
                %v269 = vld [vmem:[%s257 + $0x50] sm:%s250]
                %270 = vst [vmem:[%s258 + $0x14] sm:%s250] %v269
                %v271 = vld [vmem:[%s257 + $0x60] sm:%s250]
                %272 = vst [vmem:[%s258 + $0x18] sm:%s250] %v271
                %v273 = vld [vmem:[%s257 + $0x70] sm:%s250]
                %274 = vst [vmem:[%s258 + $0x1c] sm:%s250] %v273
                %v275 = vld [vmem:[%s257 + $0x80] sm:%s250]
                %276 = vst [vmem:[%s258 + $0x20] sm:%s250] %v275
                %v277 = vld [vmem:[%s257 + $0x90] sm:%s250]
                %278 = vst [vmem:[%s258 + $0x24] sm:%s250] %v277
                %v279 = vld [vmem:[%s257 + $0xa0] sm:%s250]
                %280 = vst [vmem:[%s258 + $0x28] sm:%s250] %v279
                %v281 = vld [vmem:[%s257 + $0xb0] sm:%s250]
                %282 = vst [vmem:[%s258 + $0x2c] sm:%s250] %v281
                %v283 = vld [vmem:[%s257 + $0xc0] sm:%s250]
                %284 = vst [vmem:[%s258 + $0x30] sm:%s250] %v283
                %v285 = vld [vmem:[%s257 + $0xd0] sm:%s250]
                %286 = vst [vmem:[%s258 + $0x34] sm:%s250] %v285
                %v287 = vld [vmem:[%s257 + $0xe0] sm:%s250]
                %288 = vst [vmem:[%s258 + $0x38] sm:%s250] %v287
                %v289 = vld [vmem:[%s257 + $0xf0] sm:%s250]
                %290 = vst [vmem:[%s258 + $0x3c] sm:%s250] %v289
                %v291 = vld [vmem:[%s257 + $0x100] sm:%s250]
                %292 = vst [vmem:[%s258 + $0x40] sm:%s250] %v291
                %v293 = vld [vmem:[%s257 + $0x110] sm:%s250]
                %294 = vst [vmem:[%s258 + $0x44] sm:%s250] %v293
                %v295 = vld [vmem:[%s257 + $0x120] sm:%s250]
                %296 = vst [vmem:[%s258 + $0x48] sm:%s250] %v295
                %v297 = vld [vmem:[%s257 + $0x130] sm:%s250]
                %298 = vst [vmem:[%s258 + $0x4c] sm:%s250] %v297
                %v299 = vld [vmem:[%s257 + $0x140] sm:%s250]
                %300 = vst [vmem:[%s258 + $0x50] sm:%s250] %v299
                %v301 = vld [vmem:[%s257 + $0x150] sm:%s250]
                %302 = vst [vmem:[%s258 + $0x54] sm:%s250] %v301
                %v303 = vld [vmem:[%s257 + $0x160] sm:%s250]
                %304 = vst [vmem:[%s258 + $0x58] sm:%s250] %v303
                %v305 = vld [vmem:[%s257 + $0x170] sm:%s250]
                %306 = vst [vmem:[%s258 + $0x5c] sm:%s250] %v305
                %v307 = vld [vmem:[%s257 + $0x180] sm:%s250]
                %308 = vst [vmem:[%s258 + $0x60] sm:%s250] %v307
                %v309 = vld [vmem:[%s257 + $0x190] sm:%s250]
                %310 = vst [vmem:[%s258 + $0x64] sm:%s250] %v309
                %v311 = vld [vmem:[%s257 + $0x1a0] sm:%s250]
                %312 = vst [vmem:[%s258 + $0x68] sm:%s250] %v311
                %v313 = vld [vmem:[%s257 + $0x1b0] sm:%s250]
                %314 = vst [vmem:[%s258 + $0x6c] sm:%s250] %v313
                %v315 = vld [vmem:[%s257 + $0x1c0] sm:%s250]
                %316 = vst [vmem:[%s258 + $0x70] sm:%s250] %v315
                %v317 = vld [vmem:[%s257 + $0x1d0] sm:%s250]
                %318 = vst [vmem:[%s258 + $0x74] sm:%s250] %v317
                %v319 = vld [vmem:[%s257 + $0x1e0] sm:%s250]
                %320 = vst [vmem:[%s258 + $0x78] sm:%s250] %v319
                %v321 = vld [vmem:[%s257 + $0x1f0] sm:%s250]
                %322 = vst [vmem:[%s258 + $0x7c] sm:%s250] %v321
                %v323 = vld [vmem:[%s257 + $0x200] sm:%s250]
                %324 = vst [vmem:[%s258 + $0x80] sm:%s250] %v323
                %v325 = vld [vmem:[%s257 + $0x210] sm:%s250]
                %326 = vst [vmem:[%s258 + $0x84] sm:%s250] %v325
                %v327 = vld [vmem:[%s257 + $0x220] sm:%s250]
                %328 = vst [vmem:[%s258 + $0x88] sm:%s250] %v327
                %v329 = vld [vmem:[%s257 + $0x230] sm:%s250]
                %330 = vst [vmem:[%s258 + $0x8c] sm:%s250] %v329
                %v331 = vld [vmem:[%s257 + $0x240] sm:%s250]
                %332 = vst [vmem:[%s258 + $0x90] sm:%s250] %v331
                %v333 = vld [vmem:[%s257 + $0x250] sm:%s250]
                %334 = vst [vmem:[%s258 + $0x94] sm:%s250] %v333
                %v335 = vld [vmem:[%s257 + $0x260] sm:%s250]
                %336 = vst [vmem:[%s258 + $0x98] sm:%s250] %v335
                %v337 = vld [vmem:[%s257 + $0x270] sm:%s250]
                %338 = vst [vmem:[%s258 + $0x9c] sm:%s250] %v337
                %v339 = vld [vmem:[%s257 + $0x280] sm:%s250]
                %340 = vst [vmem:[%s258 + $0xa0] sm:%s250] %v339
                %v341 = vld [vmem:[%s257 + $0x290] sm:%s250]
                %342 = vst [vmem:[%s258 + $0xa4] sm:%s250] %v341
                %v343 = vld [vmem:[%s257 + $0x2a0] sm:%s250]
                %344 = vst [vmem:[%s258 + $0xa8] sm:%s250] %v343
                %v345 = vld [vmem:[%s257 + $0x2b0] sm:%s250]
                %346 = vst [vmem:[%s258 + $0xac] sm:%s250] %v345
                %v347 = vld [vmem:[%s257 + $0x2c0] sm:%s250]
                %348 = vst [vmem:[%s258 + $0xb0] sm:%s250] %v347
                %v349 = vld [vmem:[%s257 + $0x2d0] sm:%s250]
                %350 = vst [vmem:[%s258 + $0xb4] sm:%s250] %v349
                %v351 = vld [vmem:[%s257 + $0x2e0] sm:%s250]
                %352 = vst [vmem:[%s258 + $0xb8] sm:%s250] %v351
                %v353 = vld [vmem:[%s257 + $0x2f0] sm:%s250]
                %354 = vst [vmem:[%s258 + $0xbc] sm:%s250] %v353
                %v355 = vld [vmem:[%s257 + $0x300] sm:%s250]
                %356 = vst [vmem:[%s258 + $0xc0] sm:%s250] %v355
                %v357 = vld [vmem:[%s257 + $0x310] sm:%s250]
                %358 = vst [vmem:[%s258 + $0xc4] sm:%s250] %v357
                %v359 = vld [vmem:[%s257 + $0x320] sm:%s250]
                %360 = vst [vmem:[%s258 + $0xc8] sm:%s250] %v359
                %v361 = vld [vmem:[%s257 + $0x330] sm:%s250]
                %362 = vst [vmem:[%s258 + $0xcc] sm:%s250] %v361
                %v363 = vld [vmem:[%s257 + $0x340] sm:%s250]
                %364 = vst [vmem:[%s258 + $0xd0] sm:%s250] %v363
                %v365 = vld [vmem:[%s257 + $0x350] sm:%s250]
                %366 = vst [vmem:[%s258 + $0xd4] sm:%s250] %v365
                %v367 = vld [vmem:[%s257 + $0x360] sm:%s250]
                %368 = vst [vmem:[%s258 + $0xd8] sm:%s250] %v367
                %v369 = vld [vmem:[%s257 + $0x370] sm:%s250]
                %370 = vst [vmem:[%s258 + $0xdc] sm:%s250] %v369
                %v371 = vld [vmem:[%s257 + $0x380] sm:%s250]
                %372 = vst [vmem:[%s258 + $0xe0] sm:%s250] %v371
                %v373 = vld [vmem:[%s257 + $0x390] sm:%s250]
                %374 = vst [vmem:[%s258 + $0xe4] sm:%s250] %v373
                %v375 = vld [vmem:[%s257 + $0x3a0] sm:%s250]
                %376 = vst [vmem:[%s258 + $0xe8] sm:%s250] %v375
                %v377 = vld [vmem:[%s257 + $0x3b0] sm:%s250]
                %378 = vst [vmem:[%s258 + $0xec] sm:%s250] %v377
                %v379 = vld [vmem:[%s257 + $0x3c0] sm:%s250]
                %380 = vst [vmem:[%s258 + $0xf0] sm:%s250] %v379
                %v381 = vld [vmem:[%s257 + $0x3d0] sm:%s250]
                %382 = vst [vmem:[%s258 + $0xf4] sm:%s250] %v381
                %v383 = vld [vmem:[%s257 + $0x3e0] sm:%s250]
                %384 = vst [vmem:[%s258 + $0xf8] sm:%s250] %v383
                %v385 = vld [vmem:[%s257 + $0x3f0] sm:%s250]
                %386 = vst [vmem:[%s258 + $0xfc] sm:%s250] %v385
              $region60: #{discriminator_forward.7} parent=54 // loop_footer
                %s256 = sadd.s32 1, %s252
              $region61: #{discriminator_forward.7} parent=54 // loop_footer_branch
                %251 = sbr.rel target = $region57
              $region62: #{discriminator_forward.7} parent=54 // loop_exit
                _
            $region55: #{discriminator_forward.7} parent=46 // pred_fallthru
              _
          $region47: #{discriminator_forward.7} parent=42 // pred_fallthru
            _
          %535 = vnop
        $region43: #{discriminator_forward.7} parent=15 // pred_fallthru
          _
        // Predicated region
        $region81: #{discriminator_forward.7} parent=15 // pred_check
          %p536 = pneg %p106
        $region82: #{discriminator_forward.7} parent=15 // pred_check_branch
          %538 = sbr.rel (%p536) target = $region84
        $region83: #{discriminator_forward.7} parent=15 // pred_region
          %p539 = scmp.lt.s32.totalorder %s19, 3
          %s540 = scalar_select %p539, %s19, 3
          %s541 = scalar_lea.vmem %s2, %s540
        $region84: #{discriminator_forward.7} parent=15 // pred_fallthru
          _
      $region16: #{discriminator_forward.7} parent=5 // pred_fallthru
        _
      %p542 = scmp.le.s32.totalorder 1, %s11
      %p543 = scmp.lt.s32.totalorder %s11, 33
      %p544 = pnand %p542, %p543
      %p545 = pneg %p544
      // Predicated region
      $region85: #{discriminator_forward.7} parent=5 // pred_check
        _
      $region86: #{discriminator_forward.7} parent=5 // pred_check_branch
        %547 = sbr.rel (%p544) target = $region88
      $region87: #{discriminator_forward.7} parent=5 // pred_region
        %s548 = ssub.s32 %s11, 1
        %s549 = sand.u32 %s45, 1
        %s550 = sand.u32 %s45, 1
        %s551 = smul.addr %s550, 64
        %s552 = scalar_lea.vmem [#allocation3], %s551
        // Predicated region
        $region89: #{discriminator_forward.7} parent=87 // pred_check
          %p553 = pneg %p58
        $region90: #{discriminator_forward.7} parent=87 // pred_check_branch
          %555 = sbr.rel (%p553) target = $region92
        $region91: #{discriminator_forward.7} parent=87 // pred_region
          _
        $region92: #{discriminator_forward.7} parent=87 // pred_fallthru
          _
        %s556 = sand.u32 %s73, 1
        %s557 = sand.u32 %s73, 1
        %s558 = smul.addr %s557, 256
        %s559 = scalar_lea.vmem [#allocation4], %s558
        // Predicated region
        $region93: #{discriminator_forward.7} parent=87 // pred_check
          %p560 = pneg %p86
        $region94: #{discriminator_forward.7} parent=87 // pred_check_branch
          %562 = sbr.rel (%p560) target = $region96
        $region95: #{discriminator_forward.7} parent=87 // pred_region
          _
        $region96: #{discriminator_forward.7} parent=87 // pred_fallthru
          _
        %s563 = sand.u32 %s45, 1
        %s564 = sand.u32 %s45, 1
        %s565 = smul.addr %s564, 64
        %s566 = scalar_lea.vmem [#allocation3], %s565
        %p567 = pneg %p58
        %p568 = pneg %p55
        %s569 = sand.u32 %s73, 1
        %s570 = sand.u32 %s73, 1
        %s571 = smul.addr %s570, 256
        %s572 = scalar_lea.vmem [#allocation4], %s571
        %p573 = pneg %p86
        %p574 = pneg %p83
        %p575 = scmp.lt.s32.totalorder %s22, 3
        %s576 = scalar_select %p575, %s22, 3
        %s577 = scalar_lea.vmem %s2, %s576
        %p578 = pneg %p112
        %p579 = pneg %p109
        %p580 = pneg %p140
        %p581 = pneg %p137
        %s582 = sand.u32 %s127, 1
        %s583 = sand.u32 %s127, 1
        %s584 = smul.addr %s583, 32
        %s585 = scalar_lea.vmem [#allocation5], %s584
        %p586 = pneg %p168
        %p587 = pneg %p165
        %p588 = scmp.lt.s32.totalorder %s21, 0
        %s589 = scalar_select %p588, %s21, 0
        %p590 = scmp.lt.s32.totalorder %s22, 3
        %s591 = scalar_select %p590, %s22, 3
        %s592 = smul.addr %s589, 4
        %s593 = sadd.s32 %s591, %s592
        %s594 = smul.addr %s593, 8
        %s595 = scalar_lea.vmem %s4, %s594
        %s596 = smul.u32 4, %s21
        %s597 = smul.u32 4, %s23
        %s598 = smul.u32 64, %s23
        %p599 = scmp.lt.s32.totalorder %s22, 3
        %s600 = scalar_select %p599, %s22, 3
        %s601 = scalar_lea.vmem %s2, %s600
        %s602 = smul.u32 4, %s21
        %p603 = scmp.lt.s32.totalorder %s21, 0
        %s604 = scalar_select %p603, %s21, 0
        %p605 = scmp.lt.s32.totalorder %s22, 3
        %s606 = scalar_select %p605, %s22, 3
        %s607 = smul.addr %s604, 4
        %s608 = sadd.s32 %s606, %s607
        %s609 = smul.addr %s608, 8
        %s610 = scalar_lea.vmem %s4, %s609
        %p612 = scmp.eq.s32.totalorder %s23, 0
        // Predicated region
        $region97: #{discriminator_forward.7} parent=87 // pred_check
          %p613 = pneg %p612
        $region98: #{discriminator_forward.7} parent=87 // pred_check_branch
          %615 = sbr.rel (%p613) target = $region100
        $region99: #{discriminator_forward.7} parent=87 // pred_region
          %616 = vst [vmem:[#allocation2] sm:$0xff] 0.0
          %617 = vst [vmem:[#allocation2 + $0x8] sm:$0xff] 0.0
          %618 = vst [vmem:[#allocation2 + $0x10] sm:$0xff] 0.0
          %619 = vst [vmem:[#allocation2 + $0x18] sm:$0xff] 0.0
        $region100: #{discriminator_forward.7} parent=87 // pred_fallthru
          _
        %v620 = vld [vmem:[#allocation2] sm:$0xff]
        %v621 = vld [vmem:[#allocation2 + $0x8] sm:$0xff]
        %v622 = vld [vmem:[#allocation2 + $0x10] sm:$0xff]
        %v623 = vld [vmem:[#allocation2 + $0x18] sm:$0xff]
        %v624 = vld [vmem:[%s552] sm:$0xff]
        %v625 = vld [vmem:[%s552 + $0x8] sm:$0xff]
        %v626 = vld [vmem:[%s552 + $0x10] sm:$0xff]
        %v627 = vld [vmem:[%s552 + $0x18] sm:$0xff]
        %v628 = vld [vmem:[%s552 + $0x20] sm:$0xff]
        %v629 = vld [vmem:[%s552 + $0x28] sm:$0xff]
        %v630 = vld [vmem:[%s552 + $0x30] sm:$0xff]
        %v631 = vld [vmem:[%s552 + $0x38] sm:$0xff]
        %v632 = vld [vmem:[%s559] sm:$0xf]
        %v633 = vld [vmem:[%s559 + $0x4] sm:$0xf]
        %v634 = vld [vmem:[%s559 + $0x8] sm:$0xf]
        %v635 = vld [vmem:[%s559 + $0xc] sm:$0xf]
        %v636 = vld [vmem:[%s559 + $0x10] sm:$0xf]
        %v637 = vld [vmem:[%s559 + $0x14] sm:$0xf]
        %v638 = vld [vmem:[%s559 + $0x18] sm:$0xf]
        %v639 = vld [vmem:[%s559 + $0x1c] sm:$0xf]
        %v640 = vld [vmem:[%s559 + $0x20] sm:$0xf]
        %v641 = vld [vmem:[%s559 + $0x24] sm:$0xf]
        %v642 = vld [vmem:[%s559 + $0x28] sm:$0xf]
        %v643 = vld [vmem:[%s559 + $0x2c] sm:$0xf]
        %v644 = vld [vmem:[%s559 + $0x30] sm:$0xf]
        %v645 = vld [vmem:[%s559 + $0x34] sm:$0xf]
        %v646 = vld [vmem:[%s559 + $0x38] sm:$0xf]
        %v647 = vld [vmem:[%s559 + $0x3c] sm:$0xf]
        %v648 = vld [vmem:[%s559 + $0x40] sm:$0xf]
        %v649 = vld [vmem:[%s559 + $0x44] sm:$0xf]
        %v650 = vld [vmem:[%s559 + $0x48] sm:$0xf]
        %v651 = vld [vmem:[%s559 + $0x4c] sm:$0xf]
        %v652 = vld [vmem:[%s559 + $0x50] sm:$0xf]
        %v653 = vld [vmem:[%s559 + $0x54] sm:$0xf]
        %v654 = vld [vmem:[%s559 + $0x58] sm:$0xf]
        %v655 = vld [vmem:[%s559 + $0x5c] sm:$0xf]
        %v656 = vld [vmem:[%s559 + $0x60] sm:$0xf]
        %v657 = vld [vmem:[%s559 + $0x64] sm:$0xf]
        %v658 = vld [vmem:[%s559 + $0x68] sm:$0xf]
        %v659 = vld [vmem:[%s559 + $0x6c] sm:$0xf]
        %v660 = vld [vmem:[%s559 + $0x70] sm:$0xf]
        %v661 = vld [vmem:[%s559 + $0x74] sm:$0xf]
        %v662 = vld [vmem:[%s559 + $0x78] sm:$0xf]
        %v663 = vld [vmem:[%s559 + $0x7c] sm:$0xf]
        %v664 = vld [vmem:[%s559 + $0x80] sm:$0xf]
        %v665 = vld [vmem:[%s559 + $0x84] sm:$0xf]
        %v666 = vld [vmem:[%s559 + $0x88] sm:$0xf]
        %v667 = vld [vmem:[%s559 + $0x8c] sm:$0xf]
        %v668 = vld [vmem:[%s559 + $0x90] sm:$0xf]
        %v669 = vld [vmem:[%s559 + $0x94] sm:$0xf]
        %v670 = vld [vmem:[%s559 + $0x98] sm:$0xf]
        %v671 = vld [vmem:[%s559 + $0x9c] sm:$0xf]
        %v672 = vld [vmem:[%s559 + $0xa0] sm:$0xf]
        %v673 = vld [vmem:[%s559 + $0xa4] sm:$0xf]
        %v674 = vld [vmem:[%s559 + $0xa8] sm:$0xf]
        %v675 = vld [vmem:[%s559 + $0xac] sm:$0xf]
        %v676 = vld [vmem:[%s559 + $0xb0] sm:$0xf]
        %v677 = vld [vmem:[%s559 + $0xb4] sm:$0xf]
        %v678 = vld [vmem:[%s559 + $0xb8] sm:$0xf]
        %v679 = vld [vmem:[%s559 + $0xbc] sm:$0xf]
        %v680 = vld [vmem:[%s559 + $0xc0] sm:$0xf]
        %v681 = vld [vmem:[%s559 + $0xc4] sm:$0xf]
        %v682 = vld [vmem:[%s559 + $0xc8] sm:$0xf]
        %v683 = vld [vmem:[%s559 + $0xcc] sm:$0xf]
        %v684 = vld [vmem:[%s559 + $0xd0] sm:$0xf]
        %v685 = vld [vmem:[%s559 + $0xd4] sm:$0xf]
        %v686 = vld [vmem:[%s559 + $0xd8] sm:$0xf]
        %v687 = vld [vmem:[%s559 + $0xdc] sm:$0xf]
        %v688 = vld [vmem:[%s559 + $0xe0] sm:$0xf]
        %v689 = vld [vmem:[%s559 + $0xe4] sm:$0xf]
        %v690 = vld [vmem:[%s559 + $0xe8] sm:$0xf]
        %v691 = vld [vmem:[%s559 + $0xec] sm:$0xf]
        %v692 = vld [vmem:[%s559 + $0xf0] sm:$0xf]
        %v693 = vld [vmem:[%s559 + $0xf4] sm:$0xf]
        %v694 = vld [vmem:[%s559 + $0xf8] sm:$0xf]
        %v695 = vld [vmem:[%s559 + $0xfc] sm:$0xf]
        %v704 = vunpack.c.l.b16 %v624
        %v705 = vunpack.c.h.b16 %v624
        %v706 = vunpack.c.l.b16 %v625
        %v707 = vunpack.c.h.b16 %v625
        %v708 = vunpack.c.l.b16 %v626
        %v709 = vunpack.c.h.b16 %v626
        %v710 = vunpack.c.l.b16 %v627
        %v711 = vunpack.c.h.b16 %v627
        %v712 = vunpack.c.l.b16 %v628
        %v713 = vunpack.c.h.b16 %v628
        %v714 = vunpack.c.l.b16 %v629
        %v715 = vunpack.c.h.b16 %v629
        %v716 = vunpack.c.l.b16 %v630
        %v717 = vunpack.c.h.b16 %v630
        %v718 = vunpack.c.l.b16 %v631
        %v719 = vunpack.c.h.b16 %v631
        %v720 = vpack.c.b16 %v708, %v704
        %v721 = vpack.c.b16 %v709, %v705
        %v722 = vpack.c.b16 %v710, %v706
        %v723 = vpack.c.b16 %v711, %v707
        %v724 = vpack.c.b16 %v716, %v712
        %v725 = vpack.c.b16 %v717, %v713
        %v726 = vpack.c.b16 %v718, %v714
        %v727 = vpack.c.b16 %v719, %v715
        %v800 = vunpack.c.l.b16 %v632
        %v801 = vunpack.c.l.b16 %v633
        %v802 = vunpack.c.l.b16 %v634
        %v803 = vunpack.c.l.b16 %v635
        %v804 = vunpack.c.l.b16 %v636
        %v805 = vunpack.c.l.b16 %v637
        %v806 = vunpack.c.l.b16 %v638
        %v807 = vunpack.c.l.b16 %v639
        %v808 = vunpack.c.l.b16 %v640
        %v809 = vunpack.c.l.b16 %v641
        %v810 = vunpack.c.l.b16 %v642
        %v811 = vunpack.c.l.b16 %v643
        %v812 = vunpack.c.l.b16 %v644
        %v813 = vunpack.c.l.b16 %v645
        %v814 = vunpack.c.l.b16 %v646
        %v815 = vunpack.c.l.b16 %v647
        %v816 = vunpack.c.l.b16 %v648
        %v817 = vunpack.c.l.b16 %v649
        %v818 = vunpack.c.l.b16 %v650
        %v819 = vunpack.c.l.b16 %v651
        %v820 = vunpack.c.l.b16 %v652
        %v821 = vunpack.c.l.b16 %v653
        %v822 = vunpack.c.l.b16 %v654
        %v823 = vunpack.c.l.b16 %v655
        %v824 = vunpack.c.l.b16 %v656
        %v825 = vunpack.c.l.b16 %v657
        %v826 = vunpack.c.l.b16 %v658
        %v827 = vunpack.c.l.b16 %v659
        %v828 = vunpack.c.l.b16 %v660
        %v829 = vunpack.c.l.b16 %v661
        %v830 = vunpack.c.l.b16 %v662
        %v831 = vunpack.c.l.b16 %v663
        %v832 = vunpack.c.l.b16 %v664
        %v833 = vunpack.c.l.b16 %v665
        %v834 = vunpack.c.l.b16 %v666
        %v835 = vunpack.c.l.b16 %v667
        %v836 = vunpack.c.l.b16 %v668
        %v837 = vunpack.c.l.b16 %v669
        %v838 = vunpack.c.l.b16 %v670
        %v839 = vunpack.c.l.b16 %v671
        %v840 = vunpack.c.l.b16 %v672
        %v841 = vunpack.c.l.b16 %v673
        %v842 = vunpack.c.l.b16 %v674
        %v843 = vunpack.c.l.b16 %v675
        %v844 = vunpack.c.l.b16 %v676
        %v845 = vunpack.c.l.b16 %v677
        %v846 = vunpack.c.l.b16 %v678
        %v847 = vunpack.c.l.b16 %v679
        %v848 = vunpack.c.l.b16 %v680
        %v849 = vunpack.c.l.b16 %v681
        %v850 = vunpack.c.l.b16 %v682
        %v851 = vunpack.c.l.b16 %v683
        %v852 = vunpack.c.l.b16 %v684
        %v853 = vunpack.c.l.b16 %v685
        %v854 = vunpack.c.l.b16 %v686
        %v855 = vunpack.c.l.b16 %v687
        %v856 = vunpack.c.l.b16 %v688
        %v857 = vunpack.c.l.b16 %v689
        %v858 = vunpack.c.l.b16 %v690
        %v859 = vunpack.c.l.b16 %v691
        %v860 = vunpack.c.l.b16 %v692
        %v861 = vunpack.c.l.b16 %v693
        %v862 = vunpack.c.l.b16 %v694
        %v863 = vunpack.c.l.b16 %v695
        %v864 = vpack.c.b16 %v801, %v800
        %v865 = vpack.c.b16 %v803, %v802
        %v866 = vpack.c.b16 %v805, %v804
        %v867 = vpack.c.b16 %v807, %v806
        %v868 = vpack.c.b16 %v809, %v808
        %v869 = vpack.c.b16 %v811, %v810
        %v870 = vpack.c.b16 %v813, %v812
        %v871 = vpack.c.b16 %v815, %v814
        %v872 = vpack.c.b16 %v817, %v816
        %v873 = vpack.c.b16 %v819, %v818
        %v874 = vpack.c.b16 %v821, %v820
        %v875 = vpack.c.b16 %v823, %v822
        %v876 = vpack.c.b16 %v825, %v824
        %v877 = vpack.c.b16 %v827, %v826
        %v878 = vpack.c.b16 %v829, %v828
        %v879 = vpack.c.b16 %v831, %v830
        %v880 = vpack.c.b16 %v833, %v832
        %v881 = vpack.c.b16 %v835, %v834
        %v882 = vpack.c.b16 %v837, %v836
        %v883 = vpack.c.b16 %v839, %v838
        %v884 = vpack.c.b16 %v841, %v840
        %v885 = vpack.c.b16 %v843, %v842
        %v886 = vpack.c.b16 %v845, %v844
        %v887 = vpack.c.b16 %v847, %v846
        %v888 = vpack.c.b16 %v849, %v848
        %v889 = vpack.c.b16 %v851, %v850
        %v890 = vpack.c.b16 %v853, %v852
        %v891 = vpack.c.b16 %v855, %v854
        %v892 = vpack.c.b16 %v857, %v856
        %v893 = vpack.c.b16 %v859, %v858
        %v894 = vpack.c.b16 %v861, %v860
        %v895 = vpack.c.b16 %v863, %v862
        %928 = vmatprep.subr.bf16.mxu0 0
        %929 = vmatpush1.bf16.msra.mxu0 %v871
        %930 = vmatprep.subr.bf16.mxu0 0
        %931 = vmatpush1.bf16.msra.mxu0 %v870
        %932 = vmatprep.subr.bf16.mxu0 0
        %933 = vmatpush1.bf16.msra.mxu0 %v869
        %934 = vmatprep.subr.bf16.mxu0 0
        %935 = vmatpush1.bf16.msra.mxu0 %v868
        %936 = vmatprep.subr.bf16.mxu0 0
        %937 = vmatpush1.bf16.msra.mxu0 %v867
        %938 = vmatprep.subr.bf16.mxu0 0
        %939 = vmatpush1.bf16.msra.mxu0 %v866
        %940 = vmatprep.subr.bf16.mxu0 0
        %941 = vmatpush1.bf16.msra.mxu0 %v865
        %942 = vmatprep.subr.bf16.mxu0 0
        %943 = vmatpush1.bf16.msra.mxu0 %v864
        %944 = vmatprep.subr.bf16.mxu0 0
        %945 = vmatpush2.bf16.msra.mxu0 %v879
        %946 = vmatprep.subr.bf16.mxu0 0
        %947 = vmatpush2.bf16.msra.mxu0 %v878
        %948 = vmatprep.subr.bf16.mxu0 0
        %949 = vmatpush2.bf16.msra.mxu0 %v877
        %950 = vmatprep.subr.bf16.mxu0 0
        %951 = vmatpush2.bf16.msra.mxu0 %v876
        %952 = vmatprep.subr.bf16.mxu0 0
        %953 = vmatpush2.bf16.msra.mxu0 %v875
        %954 = vmatprep.subr.bf16.mxu0 0
        %955 = vmatpush2.bf16.msra.mxu0 %v874
        %956 = vmatprep.subr.bf16.mxu0 0
        %957 = vmatpush2.bf16.msra.mxu0 %v873
        %958 = vmatprep.subr.bf16.mxu0 0
        %959 = vmatpush2.bf16.msra.mxu0 %v872
        %960 = vmatprep.mubr.bf16.mxu0 %v721
        %961 = vmatmul.mubr.bf16.gmra.mxu0 %v720
        %v962 = vpop.f32.mrf.mxu0
        %v963 = vadd.f32 0.0, %v962
        %v964 = vpop.f32.mrf.mxu0
        %v965 = vpop.f32.mrf.mxu0
        %v966 = vadd.f32 0.0, %v965
        %v967 = vpop.f32.mrf.mxu0
        %968 = vmatprep.mubr.bf16.mxu0 %v725
        %969 = vmatmul.mubr.bf16.gmra.mxu0 %v724
        %v970 = vpop.f32.mrf.mxu0
        %v971 = vadd.f32 0.0, %v970
        %v972 = vpop.f32.mrf.mxu0
        %v973 = vpop.f32.mrf.mxu0
        %v974 = vadd.f32 0.0, %v973
        %v975 = vpop.f32.mrf.mxu0
        %976 = vdwg.mxu0
        %977 = vmatprep.subr.bf16.mxu0 0
        %978 = vmatpush1.bf16.msra.mxu0 %v887
        %979 = vmatprep.subr.bf16.mxu0 0
        %980 = vmatpush1.bf16.msra.mxu0 %v886
        %981 = vmatprep.subr.bf16.mxu0 0
        %982 = vmatpush1.bf16.msra.mxu0 %v885
        %983 = vmatprep.subr.bf16.mxu0 0
        %984 = vmatpush1.bf16.msra.mxu0 %v884
        %985 = vmatprep.subr.bf16.mxu0 0
        %986 = vmatpush1.bf16.msra.mxu0 %v883
        %987 = vmatprep.subr.bf16.mxu0 0
        %988 = vmatpush1.bf16.msra.mxu0 %v882
        %989 = vmatprep.subr.bf16.mxu0 0
        %990 = vmatpush1.bf16.msra.mxu0 %v881
        %991 = vmatprep.subr.bf16.mxu0 0
        %992 = vmatpush1.bf16.msra.mxu0 %v880
        %993 = vmatprep.subr.bf16.mxu0 0
        %994 = vmatpush2.bf16.msra.mxu0 %v895
        %995 = vmatprep.subr.bf16.mxu0 0
        %996 = vmatpush2.bf16.msra.mxu0 %v894
        %997 = vmatprep.subr.bf16.mxu0 0
        %998 = vmatpush2.bf16.msra.mxu0 %v893
        %999 = vmatprep.subr.bf16.mxu0 0
        %1000 = vmatpush2.bf16.msra.mxu0 %v892
        %1001 = vmatprep.subr.bf16.mxu0 0
        %1002 = vmatpush2.bf16.msra.mxu0 %v891
        %1003 = vmatprep.subr.bf16.mxu0 0
        %1004 = vmatpush2.bf16.msra.mxu0 %v890
        %1005 = vmatprep.subr.bf16.mxu0 0
        %1006 = vmatpush2.bf16.msra.mxu0 %v889
        %1007 = vmatprep.subr.bf16.mxu0 0
        %1008 = vmatpush2.bf16.msra.mxu0 %v888
        %1009 = vmatprep.mubr.bf16.mxu0 %v723
        %1010 = vmatmul.mubr.bf16.gmra.mxu0 %v722
        %v1011 = vpop.f32.mrf.mxu0
        %v1012 = vadd.f32 %v963, %v1011
        %v1013 = vpop.f32.mrf.mxu0
        %v1014 = vpop.f32.mrf.mxu0
        %v1015 = vadd.f32 %v966, %v1014
        %v1016 = vpop.f32.mrf.mxu0
        %1017 = vmatprep.mubr.bf16.mxu0 %v727
        %1018 = vmatmul.mubr.bf16.gmra.mxu0 %v726
        %v1019 = vpop.f32.mrf.mxu0
        %v1020 = vadd.f32 %v971, %v1019
        %v1021 = vpop.f32.mrf.mxu0
        %v1022 = vpop.f32.mrf.mxu0
        %v1023 = vadd.f32 %v974, %v1022
        %v1024 = vpop.f32.mrf.mxu0
        %1025 = vdwg.mxu0
        %v1026 = vadd.f32 %v620, %v1012
        %v1027 = vadd.f32 %v621, %v1015
        %v1028 = vadd.f32 %v622, %v1020
        %v1029 = vadd.f32 %v623, %v1023
        %1030 = vst [vmem:[#allocation2] sm:$0xff] %v1026
        %1031 = vst [vmem:[#allocation2 + $0x8] sm:$0xff] %v1027
        %1032 = vst [vmem:[#allocation2 + $0x10] sm:$0xff] %v1028
        %1033 = vst [vmem:[#allocation2 + $0x18] sm:$0xff] %v1029
        %p1034 = scmp.eq.s32.totalorder %s23, 7
        // Predicated region
        $region101: #{discriminator_forward.7} parent=87 // pred_check
          %p1035 = pneg %p1034
        $region102: #{discriminator_forward.7} parent=87 // pred_check_branch
          %1037 = sbr.rel (%p1035) target = $region104
        $region103: #{discriminator_forward.7} parent=87 // pred_region
          %v1038 = vld [vmem:[#allocation2] sm:$0xff]
          %v1039 = vld [vmem:[#allocation2 + $0x8] sm:$0xff]
          %v1040 = vld [vmem:[#allocation2 + $0x10] sm:$0xff]
          %v1041 = vld [vmem:[#allocation2 + $0x18] sm:$0xff]
          %v1042 = vld [vmem:[%s601] sm:$0x1]
          %v1044 = vlaneseq
          %v1045 = vshrl.u32 %v1044, 7
          %v1046 = vsub.s32 0, %v1045
          %v1047 = vrot.slane %v1042, %v1046
          %v1049 = vadd.f32 %v1038, %v1047
          %v1050 = vadd.f32 %v1039, %v1047
          %v1051 = vadd.f32 %v1040, %v1047
          %v1052 = vadd.f32 %v1041, %v1047
          %vm1053 = vcmp.gt.f32.partialorder %v1049, 0.0
          %vm1054 = vcmp.gt.f32.partialorder %v1050, 0.0
          %vm1055 = vcmp.gt.f32.partialorder %v1051, 0.0
          %vm1056 = vcmp.gt.f32.partialorder %v1052, 0.0
          %v1057 = vmul.f32 %v1049, 0.01
          %v1058 = vmul.f32 %v1050, 0.01
          %v1059 = vmul.f32 %v1051, 0.01
          %v1060 = vmul.f32 %v1052, 0.01
          %v1061 = vsel %vm1053, %v1049, %v1057
          %v1062 = vsel %vm1054, %v1050, %v1058
          %v1063 = vsel %vm1055, %v1051, %v1059
          %v1064 = vsel %vm1056, %v1052, %v1060
          %1065 = vst [vmem:[%s585] sm:$0xff] %v1061
          %1066 = vst [vmem:[%s585 + $0x8] sm:$0xff] %v1062
          %1067 = vst [vmem:[%s585 + $0x10] sm:$0xff] %v1063
          %1068 = vst [vmem:[%s585 + $0x18] sm:$0xff] %v1064
          %v1069 = vadd.f32 %v1061, %v1062
          %v1070 = vadd.f32 %v1069, %v1063
          %v1071 = vadd.f32 %v1070, %v1064
          %v1072 = vrot.slane %v1071, 4
          %v1073 = vadd.f32 %v1071, %v1072
          %v1074 = vrot.slane %v1073, 2
          %v1075 = vadd.f32 %v1073, %v1074
          %v1076 = vrot.slane %v1075, 1
          %v1077 = vadd.f32 %v1075, %v1076
          %v1078 = vmul.f32 %v1061, %v1061
          %v1079 = vmul.f32 %v1062, %v1062
          %v1080 = vmul.f32 %v1063, %v1063
          %v1081 = vmul.f32 %v1064, %v1064
          %v1082 = vadd.f32 %v1078, %v1079
          %v1083 = vadd.f32 %v1082, %v1080
          %v1084 = vadd.f32 %v1083, %v1081
          %v1085 = vrot.slane %v1084, 4
          %v1086 = vadd.f32 %v1084, %v1085
          %v1087 = vrot.slane %v1086, 2
          %v1088 = vadd.f32 %v1086, %v1087
          %v1089 = vrot.slane %v1088, 1
          %v1090 = vadd.f32 %v1088, %v1089
          %vm1091 = vcmask 1040384
          %v1092 = vsel %vm1091, %v1077, %v1090
          %vm1093 = vcmask 1041408
          %v1094 = vsel %vm1093, %v1092, 0.0
          %1095 = vst [vmem:[%s610] sm:$0xff] %v1094
        $region104: #{discriminator_forward.7} parent=87 // pred_fallthru
          _
        %s1096 = sand.u32 %s127, 1
        %s1097 = sand.u32 %s127, 1
        %s1098 = smul.addr %s1097, 32
        %s1099 = scalar_lea.vmem [#allocation5], %s1098
        %p1100 = scmp.lt.s32.totalorder %s21, 0
        %s1101 = scalar_select %p1100, %s21, 0
        %p1102 = scmp.lt.s32.totalorder %s22, 3
        %s1103 = scalar_select %p1102, %s22, 3
        %s1104 = smul.addr %s1101, 4
        %s1105 = sadd.s32 %s1103, %s1104
        %s1106 = smul.addr %s1105, 8
        %s1107 = scalar_lea.vmem %s4, %s1106
        // Predicated region
        $region105: #{discriminator_forward.7} parent=87 // pred_check
          %p1108 = pneg %p137
        $region106: #{discriminator_forward.7} parent=87 // pred_check_branch
          %1110 = sbr.rel (%p1108) target = $region108
        $region107: #{discriminator_forward.7} parent=87 // pred_region
          %s1111 = smul.u32 4, %s21
          %s1112 = smul.addr %s1111, 4
          %s1113 = sadd.s32 %s22, %s1112
          %s1114 = smul.addr %s1113, 8
          %s1115 = scalar_lea.vmem %s3, %s1114
          // Predicated region
          $region109: #{discriminator_forward.7} parent=107 // pred_check
            _
          $region110: #{discriminator_forward.7} parent=107 // pred_check_branch
            %1117 = sbr.rel (0) target = $region112
          $region111: #{discriminator_forward.7} parent=107 // pred_region
            // Predicated region
            $region113: #{discriminator_forward.7} parent=111 // pred_check
              _
            $region114: #{discriminator_forward.7} parent=111 // pred_check_branch
              %1119 = sbr.rel (0) target = $region116
            $region115: #{discriminator_forward.7} parent=111 // pred_region
              // Predicated region
              $region128: #{discriminator_forward.7} parent=115 // pred_check
                _
              $region129: #{discriminator_forward.7} parent=115 // pred_check_branch
                %1141 = sbr.rel (0) target = $region131
              $region130: #{discriminator_forward.7} parent=115 // pred_region
                loop: start=0, step=1, limit=1
                $region132: #{discriminator_forward.7} parent=130 // loop_pre_header
                  _
                $region133: #{discriminator_forward.7} parent=130 // loop_header
                  %s1143 = sphi 0, %s1147
                  %p1144 = scmp.ge.s32.totalorder %s1143, 1
                  %s1148 = sphi %s1099, %s1099
                  %s1149 = sphi %s1115, %s1115
                $region134: #{discriminator_forward.7} parent=130 // loop_header_branch
                  %1146 = sbr.rel (%p1144) target = $region138
                $region135: #{discriminator_forward.7} parent=130 // loop_body
                  %v1150 = vld [vmem:[%s1148] sm:$0xff]
                  %1151 = vst [vmem:[%s1149] sm:$0xff] %v1150
                  %v1152 = vld [vmem:[%s1148 + $0x8] sm:$0xff]
                  %1153 = vst [vmem:[%s1149 + $0x20] sm:$0xff] %v1152
                  %v1154 = vld [vmem:[%s1148 + $0x10] sm:$0xff]
                  %1155 = vst [vmem:[%s1149 + $0x40] sm:$0xff] %v1154
                  %v1156 = vld [vmem:[%s1148 + $0x18] sm:$0xff]
                  %1157 = vst [vmem:[%s1149 + $0x60] sm:$0xff] %v1156
                $region136: #{discriminator_forward.7} parent=130 // loop_footer
                  %s1147 = sadd.s32 1, %s1143
                $region137: #{discriminator_forward.7} parent=130 // loop_footer_branch
                  %1142 = sbr.rel target = $region133
                $region138: #{discriminator_forward.7} parent=130 // loop_exit
                  _
              $region131: #{discriminator_forward.7} parent=115 // pred_fallthru
                _
              // Predicated region
              $region139: #{discriminator_forward.7} parent=115 // pred_check
                _
              $region140: #{discriminator_forward.7} parent=115 // pred_check_branch
                %1159 = sbr.rel target = $region142
              $region141: #{discriminator_forward.7} parent=115 // pred_region
                _
              $region142: #{discriminator_forward.7} parent=115 // pred_fallthru
                _
            $region116: #{discriminator_forward.7} parent=111 // pred_fallthru
              _
            // Predicated region
            $region117: #{discriminator_forward.7} parent=111 // pred_check
              _
            $region118: #{discriminator_forward.7} parent=111 // pred_check_branch
              %1121 = sbr.rel target = $region120
            $region119: #{discriminator_forward.7} parent=111 // pred_region
              %s1123 = ssub.s32 256, 1
              loop: start=0, step=1, limit=1
              $region121: #{discriminator_forward.7} parent=119 // loop_pre_header
                _
              $region122: #{discriminator_forward.7} parent=119 // loop_header
                %s1125 = sphi 0, %s1129
                %p1126 = scmp.ge.s32.totalorder %s1125, 1
                %s1130 = sphi %s1099, %s1099
                %s1131 = sphi %s1115, %s1115
              $region123: #{discriminator_forward.7} parent=119 // loop_header_branch
                %1128 = sbr.rel (%p1126) target = $region127
              $region124: #{discriminator_forward.7} parent=119 // loop_body
                %v1132 = vld [vmem:[%s1130] sm:%s1123]
                %1133 = vst [vmem:[%s1131] sm:%s1123] %v1132
                %v1134 = vld [vmem:[%s1130 + $0x8] sm:%s1123]
                %1135 = vst [vmem:[%s1131 + $0x20] sm:%s1123] %v1134
                %v1136 = vld [vmem:[%s1130 + $0x10] sm:%s1123]
                %1137 = vst [vmem:[%s1131 + $0x40] sm:%s1123] %v1136
                %v1138 = vld [vmem:[%s1130 + $0x18] sm:%s1123]
                %1139 = vst [vmem:[%s1131 + $0x60] sm:%s1123] %v1138
              $region125: #{discriminator_forward.7} parent=119 // loop_footer
                %s1129 = sadd.s32 1, %s1125
              $region126: #{discriminator_forward.7} parent=119 // loop_footer_branch
                %1124 = sbr.rel target = $region122
              $region127: #{discriminator_forward.7} parent=119 // loop_exit
                _
            $region120: #{discriminator_forward.7} parent=111 // pred_fallthru
              _
          $region112: #{discriminator_forward.7} parent=107 // pred_fallthru
            _
          %1160 = vnop
        $region108: #{discriminator_forward.7} parent=87 // pred_fallthru
          _
        // Predicated region
        $region143: #{discriminator_forward.7} parent=87 // pred_check
          %p1161 = pneg %p165
        $region144: #{discriminator_forward.7} parent=87 // pred_check_branch
          %1163 = sbr.rel (%p1161) target = $region146
        $region145: #{discriminator_forward.7} parent=87 // pred_region
          _
        $region146: #{discriminator_forward.7} parent=87 // pred_fallthru
          _
      $region88: #{discriminator_forward.7} parent=5 // pred_fallthru
        _
      %p1164 = scmp.le.s32.totalorder 2, %s11
      // Predicated region
      $region147: #{discriminator_forward.7} parent=5 // pred_check
        %p1165 = pneg %p1164
      $region148: #{discriminator_forward.7} parent=5 // pred_check_branch
        %1167 = sbr.rel (%p1165) target = $region150
      $region149: #{discriminator_forward.7} parent=5 // pred_region
        %s1168 = ssub.s32 %s11, 2
        // Predicated region
        $region151: #{discriminator_forward.7} parent=149 // pred_check
          %p1169 = pneg %p143
        $region152: #{discriminator_forward.7} parent=149 // pred_check_branch
          %1171 = sbr.rel (%p1169) target = $region154
        $region153: #{discriminator_forward.7} parent=149 // pred_region
          %s1172 = sand.u32 %s128, 1
          %s1173 = sand.u32 %s128, 1
          %s1174 = smul.addr %s1173, 32
          %s1175 = scalar_lea.vmem [#allocation5], %s1174
        $region154: #{discriminator_forward.7} parent=149 // pred_fallthru
          _
        // Predicated region
        $region155: #{discriminator_forward.7} parent=149 // pred_check
          %p1176 = pneg %p171
        $region156: #{discriminator_forward.7} parent=149 // pred_check_branch
          %1178 = sbr.rel (%p1176) target = $region158
        $region157: #{discriminator_forward.7} parent=149 // pred_region
          %p1179 = scmp.lt.s32.totalorder %s24, 0
          %s1180 = scalar_select %p1179, %s24, 0
          %p1181 = scmp.lt.s32.totalorder %s25, 3
          %s1182 = scalar_select %p1181, %s25, 3
          %s1183 = smul.addr %s1180, 4
          %s1184 = sadd.s32 %s1182, %s1183
          %s1185 = smul.addr %s1184, 8
          %s1186 = scalar_lea.vmem %s4, %s1185
        $region158: #{discriminator_forward.7} parent=149 // pred_fallthru
          _
      $region150: #{discriminator_forward.7} parent=5 // pred_fallthru
        _
    $region6: #{discriminator_forward.7} parent=1 // loop_footer
      %s15 = sadd.s32 1, %s11
    $region7: #{discriminator_forward.7} parent=1 // loop_footer_branch
      %10 = sbr.rel target = $region3
    $region8: #{discriminator_forward.7} parent=1 // loop_exit
      _

</llo_original>
